<compile_context>
chip_gen: v5e
topology: v5e:2x2
jax: 0.10.0
libtpu: 0.0.40
codegen_flags: <defaults>
</compile_context>

<pallas_src>
import functools

import jax
import jax.numpy as jnp
import numpy as np
from jax.experimental import pallas as pl
from jax.experimental.pallas import tpu as pltpu

EPS = 1e-5                     # PyTorch BatchNorm default eps
KSIZE = 6                      # TemporalBlock kernel_size
DILATION = 9                   # TemporalBlock dilation
PAD = (KSIZE - 1) * DILATION   # 45 == padding; + Chomp1d(45) => causal left pad
E_NODES = 8                    # electrodes (adj is 8x8, Linear(100*8, 1))
T_LEN = 100                    # time steps (forced by reshape(..., 100))
T_PAD = 128                    # lane-dense padded time
LANES = E_NODES * T_PAD        # 1024 lanes per grid step (one batch, 8 rows)

# constant-slab geometry
W_PER_BLK = 3                  # entries per block: [stacked res|gnn, conv1, conv2]
W_ROWS = 64                    # >= 2 * max(cout)
W_COLS = KSIZE * 32            # >= K * max(cout) = 192
V_ROWS = 32                    # >= max(cout)
V_COLS = 8                     # b_res, b_gnn, b_c1, b_c2, bn1_s, bn1_t, wres0, wgnn0


# ---------------------------------------------------------------------------
# Fused kernel: 4 x (STCB + outer ReLU) + head, one grid step per batch
# ---------------------------------------------------------------------------
def make_kernel(channels):
    n_blocks = len(channels) - 1

    def kernel(x_ref, w_ref, v_ref, hw_ref, logp_ref, trunk_ref):
        # lane-in-row index + per-tap causal masks: built once, reused by all 8 convs.
        lane = jax.lax.broadcasted_iota(jnp.int32, (1, LANES), 1)
        t_in_row = jnp.bitwise_and(lane, T_PAD - 1)          # T_PAD is a power of two
        shifts = [(KSIZE - 1 - j) * DILATION for j in range(KSIZE)]
        tap_mask = [t_in_row >= s for s in shifts]            # bool (1, LANES)
        valid = t_in_row < T_LEN                               # real time columns

        h = x_ref[0].astype(jnp.float32)                       # (1, LANES)

        for blk in range(n_blocks):
            cin, cout = channels[blk], channels[blk + 1]
            vec = v_ref[blk, :cout, :]                         # (cout, 8) f32

            # ---- front end: residual Linear + GNN Linear (BatchNorm2d folded) ----
            if cin == 1:                                       # degenerate contraction
                res = vec[:, 6:7] * h + vec[:, 0:1]
                gnn = vec[:, 7:8] * h + vec[:, 1:2]
            else:
                wf = w_ref[W_PER_BLK * blk, :2 * cout, :cin]   # (2*cout, cin) bf16
                fr = jnp.dot(wf, h.astype(jnp.bfloat16),
                             preferred_element_type=jnp.float32)
                res = fr[:cout] + vec[:, 0:1]
                gnn = fr[cout:] + vec[:, 1:2]
            z = jnp.maximum(res + gnn, 0.0)                    # relu(residual + gnn)

            # ---- TCN: two causal dilated convs, each ONE MXU matmul over all rows ----
            def causal_conv(a, w2d, bias_col):
                taps = []
                for j in range(KSIZE):
                    s = shifts[j]
                    if s == 0:
                        taps.append(a)
                    else:
                        # right-rotate the merged (row,time) lane axis, then zero the
                        # first s lanes of every 128-lane row (causal zero pad; also
                        # kills cross-row / wrap-around contamination).
                        taps.append(jnp.where(tap_mask[j],
                                              pltpu.roll(a, shift=s, axis=1), 0.0))
                xs = jnp.concatenate(taps, axis=0).astype(jnp.bfloat16)  # (K*cout, LANES)
                return jnp.dot(w2d, xs, preferred_element_type=jnp.float32) + bias_col

            wc1 = w_ref[W_PER_BLK * blk + 1, :cout, :KSIZE * cout]       # bf16
            wc2 = w_ref[W_PER_BLK * blk + 2, :cout, :KSIZE * cout]       # bf16
            y = jnp.maximum(causal_conv(z, wc1, vec[:, 2:3]), 0.0)       # conv1+chomp+relu
            y = jnp.maximum(causal_conv(y, wc2, vec[:, 3:4]), 0.0)       # conv2+chomp+relu
            y = y * vec[:, 4:5] + vec[:, 5:6]                  # BatchNorm1d (eval) affine
            h = jnp.maximum(res + y, 0.0)                      # STCB residual + outer relu

        # ---- fused head: Linear(800,1) per gesture + log_softmax over gestures ----
        h = jnp.where(valid, h, 0.0)                           # zero the pad lanes
        trunk_ref[0] = h                                       # (G, LANES)
        logits = jnp.sum(h * hw_ref[...], axis=1, keepdims=True)          # (G, 1)
        m = jnp.max(logits, axis=0, keepdims=True)
        lse = jnp.log(jnp.sum(jnp.exp(logits - m), axis=0, keepdims=True)) + m
        logp_ref[0] = logits - lse                             # log_softmax (bias cancels)

    return kernel


def forward_pallas(x_steps, w_slab, v_slab, hw_flat, channels):
    num_steps = x_steps.shape[0]
    g_out = channels[-1]
    return pl.pallas_call(
        make_kernel(channels),
        out_shape=(jax.ShapeDtypeStruct((num_steps, g_out, 1), jnp.float32),
                   jax.ShapeDtypeStruct((num_steps, g_out, LANES), jnp.float32)),
        grid=(num_steps,),
        in_specs=[
            pl.BlockSpec((1, 1, LANES), lambda i: (i, 0, 0)),        # per-batch input
            pl.BlockSpec(w_slab.shape, lambda i: (0, 0, 0)),         # constant slabs
            pl.BlockSpec(v_slab.shape, lambda i: (0, 0, 0)),
            pl.BlockSpec(hw_flat.shape, lambda i: (0, 0)),
        ],
        out_specs=(pl.BlockSpec((1, g_out, 1), lambda i: (i, 0, 0)),
                   pl.BlockSpec((1, g_out, LANES), lambda i: (i, 0, 0))),
        compiler_params=pltpu.CompilerParams(dimension_semantics=("parallel",)),
    )(x_steps, w_slab, v_slab, hw_flat)


@functools.partial(jax.jit, static_argnames=("channels",))
def armbandgnn_forward(x, w_slab, v_slab, hw_flat, channels):
    batch = x.shape[0]
    # rows b*8+e, pad time 100->128 once, flatten each batch's 8 rows into 1024 lanes
    # (column index = e*128 + t).  These are the only per-call wrapper ops.
    x_rows = jnp.pad(x.reshape(batch * E_NODES, T_LEN),
                     ((0, 0), (0, T_PAD - T_LEN)))
    x_steps = x_rows.reshape(batch, 1, LANES)
    logp, trunk = forward_pallas(x_steps, w_slab, v_slab, hw_flat, channels)
    return logp[..., 0], trunk                                  # (B, G), (B, G, 1024)


# ---------------------------------------------------------------------------
# One-time parameter packing (weight_norm + BatchNorm folding, OUTSIDE the jit path)
# ---------------------------------------------------------------------------
def pack_params(params, head_w, channels):
    n_blocks = len(channels) - 1
    w_slab = np.zeros((W_PER_BLK * n_blocks, W_ROWS, W_COLS), np.float32)
    v_slab = np.zeros((n_blocks, V_ROWS, V_COLS), np.float32)
    for blk, p in enumerate(params):
        p = {k: np.asarray(v) for k, v in p.items()}
        cin, cout = channels[blk], channels[blk + 1]
        # Fold BatchNorm2d (eval) into the GNN linear.
        s2 = p["bn2_gamma"] / np.sqrt(p["bn2_var"] + EPS)
        w_gnn_eff = p["w_gnn"] * s2[:, None]
        b_gnn_eff = s2 * (p["b_gnn"] - p["bn2_mean"]) + p["bn2_beta"]
        # BatchNorm1d (eval) as per-channel scale/shift.
        s1 = p["bn1_gamma"] / np.sqrt(p["bn1_var"] + EPS)
        t1 = p["bn1_beta"] - s1 * p["bn1_mean"]

        v_slab[blk, :cout, 0] = p["b_res"]
        v_slab[blk, :cout, 1] = b_gnn_eff
        v_slab[blk, :cout, 2] = p["b_c1"]
        v_slab[blk, :cout, 3] = p["b_c2"]
        v_slab[blk, :cout, 4] = s1
        v_slab[blk, :cout, 5] = t1
        if cin == 1:
            # keep the Cin=1 front end in f32 (stored in the spare vec lanes)
            v_slab[blk, :cout, 6] = p["w_res"][:, 0]
            v_slab[blk, :cout, 7] = w_gnn_eff[:, 0]
        else:
            w_slab[W_PER_BLK * blk, :cout, :cin] = p["w_res"]
            w_slab[W_PER_BLK * blk, cout:2 * cout, :cin] = w_gnn_eff

        def conv2d(w_oik):                     # torch (O, I, K) -> (O, K*I), col = j*I+i
            o = w_oik.shape[0]
            return np.transpose(w_oik, (0, 2, 1)).reshape(o, -1)

        w_slab[W_PER_BLK * blk + 1, :cout, :KSIZE * cout] = conv2d(p["wc1_eff"])
        w_slab[W_PER_BLK * blk + 2, :cout, :KSIZE * cout] = conv2d(p["wc2_eff"])

    # head weight: column e*128 + t == head_w[0, e*100 + t]; zero over pad lanes
    hw = np.zeros((E_NODES, T_PAD), np.float32)
    hw[:, :T_LEN] = np.asarray(head_w).reshape(E_NODES, T_LEN)
    return (jnp.asarray(w_slab, jnp.bfloat16),
            jnp.asarray(v_slab, jnp.float32),
            jnp.asarray(hw.reshape(1, LANES), jnp.float32))


# ---------------------------------------------------------------------------
# Synthetic eval-mode parameters mirroring the module's shapes
# ---------------------------------------------------------------------------
def init_params(key, channels):
    params = []
    for i in range(len(channels) - 1):
        cin, cout = channels[i], channels[i + 1]
        key, *ks = jax.random.split(key, 19)

        def nrm(k, shape, scale=1.0):
            return scale * jax.random.normal(k, shape, jnp.float32)

        def wn_conv(kv, kg, out_c, in_c):
            # weight_norm(nn.Conv1d): w = g * v / ||v||, norm over (in, k) per out ch.
            v = nrm(kv, (out_c, in_c, KSIZE), 0.01)
            g = 1.0 + nrm(kg, (out_c,), 0.1)
            norm = jnp.sqrt(jnp.sum(v * v, axis=(1, 2), keepdims=True)) + 1e-12
            return g[:, None, None] * v / norm                 # torch layout (O, I, K)

        params.append(dict(
            w_res=nrm(ks[0], (cout, cin), 0.7 / np.sqrt(cin)),
            b_res=nrm(ks[1], (cout,), 0.1),
            w_gnn=nrm(ks[2], (cout, cin), 0.7 / np.sqrt(cin)),
            b_gnn=nrm(ks[3], (cout,), 0.1),
            bn2_gamma=1.0 + nrm(ks[4], (cout,), 0.1),
            bn2_beta=nrm(ks[5], (cout,), 0.1),
            bn2_mean=nrm(ks[6], (cout,), 0.1),
            bn2_var=jax.random.uniform(ks[7], (cout,), jnp.float32, 0.5, 1.5),
            wc1_eff=wn_conv(ks[8], ks[9], cout, cout),
            b_c1=nrm(ks[10], (cout,), 0.1),
            wc2_eff=wn_conv(ks[11], ks[12], cout, cout),
            b_c2=nrm(ks[13], (cout,), 0.1),
            bn1_gamma=1.0 + nrm(ks[14], (cout,), 0.1),
            bn1_beta=nrm(ks[15], (cout,), 0.1),
            bn1_mean=nrm(ks[16], (cout,), 0.1),
            bn1_var=jax.random.uniform(ks[17], (cout,), jnp.float32, 0.5, 1.5),
        ))
    return params


# ---------------------------------------------------------------------------
# Pure-JAX (f32) reference reproducing the PyTorch forward (eval mode)
# ---------------------------------------------------------------------------
def causal_conv1d_ref(x, w_oik, b, dilation):
    k = w_oik.shape[-1]
    pad = (k - 1) * dilation
    y = jax.lax.conv_general_dilated(
        x, w_oik, window_strides=(1,), padding=[(pad, 0)],
        rhs_dilation=(dilation,), dimension_numbers=("NCH", "OIH", "NCH"))
    return y + b[None, :, None]


def armbandgnn_ref(x, params, head_w, head_b):
    batch = x.shape[0]
    h = x[:, None, :, :]                                       # unsqueeze(1): (B,1,8,T)
    for p in params:
        res = jnp.einsum("oc,bcet->boet", p["w_res"], h) + p["b_res"][None, :, None, None]
        g = jnp.einsum("oc,bcet->boet", p["w_gnn"], h) + p["b_gnn"][None, :, None, None]
        s2 = p["bn2_gamma"] / jnp.sqrt(p["bn2_var"] + EPS)
        g = (g - p["bn2_mean"][None, :, None, None]) * s2[None, :, None, None] \
            + p["bn2_beta"][None, :, None, None]
        z = jnp.maximum(res + g, 0.0)
        bsz, cout, e, t = z.shape
        zt = jnp.transpose(z, (0, 2, 1, 3)).reshape(bsz * e, cout, t)
        y = jnp.maximum(causal_conv1d_ref(zt, p["wc1_eff"], p["b_c1"], DILATION), 0.0)
        y = jnp.maximum(causal_conv1d_ref(y, p["wc2_eff"], p["b_c2"], DILATION), 0.0)
        s1 = p["bn1_gamma"] / jnp.sqrt(p["bn1_var"] + EPS)
        y = (y - p["bn1_mean"][None, :, None]) * s1[None, :, None] + p["bn1_beta"][None, :, None]
        y = jnp.transpose(y.reshape(bsz, e, cout, t), (0, 2, 1, 3))
        h = jnp.maximum(res + y, 0.0)                          # STCB residual + outer F.relu
    bsz, g_out, e, t = h.shape
    logits = h.reshape(bsz, g_out, e * t) @ head_w.reshape(-1) + head_b[0]
    return jax.nn.log_softmax(logits, axis=1), h


if __name__ == "__main__":
    key = jax.random.PRNGKey(0)
    key, kx, kp, kw, kb = jax.random.split(key, 5)

    BATCH = 2
    NUM_GESTURES = 8
    CHANNELS = (1, 8, 16, 32, NUM_GESTURES)    # STCB1..4: 1->8->16->32->num_gestures

    x = jax.random.normal(kx, (BATCH, E_NODES, T_LEN), jnp.float32)
    params = init_params(kp, CHANNELS)
    head_w = jax.random.normal(kw, (1, E_NODES * T_LEN), jnp.float32) / np.sqrt(E_NODES * T_LEN)
    head_b = 0.1 * jax.random.normal(kb, (1,), jnp.float32)

    # one-time packing (BN / weight_norm folding) outside the per-call jitted path
    w_slab, v_slab, hw_flat = pack_params(params, head_w, CHANNELS)

    out, trunk_out = armbandgnn_forward(x, w_slab, v_slab, hw_flat, channels=CHANNELS)
    out = jax.block_until_ready(out)

    ref_out, ref_trunk = armbandgnn_ref(x, params, head_w, head_b)
    ref_out = jax.block_until_ready(ref_out)

    # Kernel trunk layout: step b, gesture g, lane = e*128 + t; drop the 28 pad lanes.
    # Loose tolerance: matmul operands are bf16 (f32 accumulate/epilogue).
    trunk_np = np.asarray(trunk_out).reshape(BATCH, NUM_GESTURES, E_NODES, T_PAD)[..., :T_LEN]
    np.testing.assert_allclose(trunk_np, np.asarray(ref_trunk), rtol=1e-1, atol=1e-1)
    np.testing.assert_allclose(np.asarray(out), np.asarray(ref_out), rtol=1e-1, atol=1e-1)

    print("KERNEL_OK")
</pallas_src>

<mosaic_0001>
module attributes {stable_mosaic.version = 11 : i64} {
  func.func @kernel(%arg0: i32, %arg1: memref<1x1x1024xf32, #tpu.memory_space<vmem>>, %arg2: memref<12x64x192xbf16, #tpu.memory_space<vmem>>, %arg3: memref<4x32x8xf32, #tpu.memory_space<vmem>>, %arg4: memref<1x1024xf32, #tpu.memory_space<vmem>>, %arg5: memref<1x8x1xf32, #tpu.memory_space<vmem>>, %arg6: memref<1x8x1024xf32, #tpu.memory_space<vmem>>) attributes {dimension_semantics = [#tpu.dimension_semantics<parallel>], iteration_bounds = array<i64: 2>, scalar_prefetch = 0 : i64, scratch_operands = 0 : i64, tpu.core_type = #tpu.core_type<tc>, window_params = [{transform_indices = @transform_0, window_bounds = array<i64: 1, 1, 1024>}, {pipeline_mode = #tpu.pipeline_mode<synchronous>, transform_indices = @transform_1, window_bounds = array<i64: 12, 64, 192>}, {pipeline_mode = #tpu.pipeline_mode<synchronous>, transform_indices = @transform_2, window_bounds = array<i64: 4, 32, 8>}, {pipeline_mode = #tpu.pipeline_mode<synchronous>, transform_indices = @transform_3, window_bounds = array<i64: 1, 1024>}, {transform_indices = @transform_4, window_bounds = array<i64: 1, 8, 1>}, {transform_indices = @transform_5, window_bounds = array<i64: 1, 8, 1024>}]} {
    %0 = tpu.iota {dimensions = array<i32: 1>} : vector<1x1024xi32>
    %c127_i32 = arith.constant 127 : i32
    %1 = vector.broadcast %c127_i32 : i32 to vector<1x1024xi32>
    %2 = arith.andi %0, %1 : vector<1x1024xi32>
    %c45_i32 = arith.constant 45 : i32
    %3 = vector.broadcast %c45_i32 : i32 to vector<1x1024xi32>
    %4 = arith.cmpi sge, %2, %3 : vector<1x1024xi32>
    %c36_i32 = arith.constant 36 : i32
    %5 = vector.broadcast %c36_i32 : i32 to vector<1x1024xi32>
    %6 = arith.cmpi sge, %2, %5 : vector<1x1024xi32>
    %c27_i32 = arith.constant 27 : i32
    %7 = vector.broadcast %c27_i32 : i32 to vector<1x1024xi32>
    %8 = arith.cmpi sge, %2, %7 : vector<1x1024xi32>
    %c18_i32 = arith.constant 18 : i32
    %9 = vector.broadcast %c18_i32 : i32 to vector<1x1024xi32>
    %10 = arith.cmpi sge, %2, %9 : vector<1x1024xi32>
    %c9_i32 = arith.constant 9 : i32
    %11 = vector.broadcast %c9_i32 : i32 to vector<1x1024xi32>
    %12 = arith.cmpi sge, %2, %11 : vector<1x1024xi32>
    %c100_i32 = arith.constant 100 : i32
    %13 = vector.broadcast %c100_i32 : i32 to vector<1x1024xi32>
    %14 = arith.cmpi slt, %2, %13 : vector<1x1024xi32>
    %c0 = arith.constant 0 : index
    %c0_0 = arith.constant 0 : index
    %c0_1 = arith.constant 0 : index
    %15 = vector.load %arg1[%c0, %c0_0, %c0_1] : memref<1x1x1024xf32, #tpu.memory_space<vmem>>, vector<1x1x1024xf32>
    %16 = vector.shape_cast %15 : vector<1x1x1024xf32> to vector<1x1024xf32>
    %c0_2 = arith.constant 0 : index
    %c0_3 = arith.constant 0 : index
    %c0_4 = arith.constant 0 : index
    %17 = vector.load %arg3[%c0_2, %c0_3, %c0_4] : memref<4x32x8xf32, #tpu.memory_space<vmem>>, vector<1x8x8xf32>
    %18 = vector.shape_cast %17 : vector<1x8x8xf32> to vector<8x8xf32>
    %19 = vector.extract_strided_slice %18 {offsets = [0, 6], sizes = [8, 1], strides = [1, 1]} : vector<8x8xf32> to vector<8x1xf32>
    %20 = vector.broadcast %19 : vector<8x1xf32> to vector<8x1024xf32>
    %21 = vector.broadcast %16 : vector<1x1024xf32> to vector<8x1024xf32>
    %22 = arith.mulf %20, %21 : vector<8x1024xf32>
    %23 = vector.extract_strided_slice %18 {offsets = [0, 0], sizes = [8, 1], strides = [1, 1]} : vector<8x8xf32> to vector<8x1xf32>
    %24 = vector.broadcast %23 : vector<8x1xf32> to vector<8x1024xf32>
    %25 = arith.addf %22, %24 : vector<8x1024xf32>
    %26 = vector.extract_strided_slice %18 {offsets = [0, 7], sizes = [8, 1], strides = [1, 1]} : vector<8x8xf32> to vector<8x1xf32>
    %27 = vector.broadcast %26 : vector<8x1xf32> to vector<8x1024xf32>
    %28 = vector.broadcast %16 : vector<1x1024xf32> to vector<8x1024xf32>
    %29 = arith.mulf %27, %28 : vector<8x1024xf32>
    %30 = vector.extract_strided_slice %18 {offsets = [0, 1], sizes = [8, 1], strides = [1, 1]} : vector<8x8xf32> to vector<8x1xf32>
    %31 = vector.broadcast %30 : vector<8x1xf32> to vector<8x1024xf32>
    %32 = arith.addf %29, %31 : vector<8x1024xf32>
    %33 = arith.addf %25, %32 : vector<8x1024xf32>
    %cst = arith.constant 0.000000e+00 : f32
    %34 = vector.broadcast %cst : f32 to vector<8x1024xf32>
    %35 = arith.maximumf %33, %34 : vector<8x1024xf32>
    %c1 = arith.constant 1 : index
    %c0_5 = arith.constant 0 : index
    %c0_6 = arith.constant 0 : index
    %36 = vector.load %arg2[%c1, %c0_5, %c0_6] : memref<12x64x192xbf16, #tpu.memory_space<vmem>>, vector<1x8x48xbf16>
    %37 = vector.shape_cast %36 : vector<1x8x48xbf16> to vector<8x48xbf16>
    %c2 = arith.constant 2 : index
    %c0_7 = arith.constant 0 : index
    %c0_8 = arith.constant 0 : index
    %38 = vector.load %arg2[%c2, %c0_7, %c0_8] : memref<12x64x192xbf16, #tpu.memory_space<vmem>>, vector<1x8x48xbf16>
    %39 = vector.shape_cast %38 : vector<1x8x48xbf16> to vector<8x48xbf16>
    %40 = vector.extract_strided_slice %18 {offsets = [0, 2], sizes = [8, 1], strides = [1, 1]} : vector<8x8xf32> to vector<8x1xf32>
    %c45_i32_9 = arith.constant 45 : i32
    %41 = tpu.dynamic_rotate %35 by %c45_i32_9 dim 1 : vector<8x1024xf32>, i32 -> vector<8x1024xf32>
    %cst_10 = arith.constant 0.000000e+00 : f32
    %42 = vector.shape_cast %4 : vector<1x1024xi1> to vector<1x1024xi1>
    %43 = vector.broadcast %42 : vector<1x1024xi1> to vector<8x1024xi1>
    %44 = vector.broadcast %cst_10 : f32 to vector<8x1024xf32>
    %45 = arith.select %43, %41, %44 : vector<8x1024xi1>, vector<8x1024xf32>
    %c36_i32_11 = arith.constant 36 : i32
    %46 = tpu.dynamic_rotate %35 by %c36_i32_11 dim 1 : vector<8x1024xf32>, i32 -> vector<8x1024xf32>
    %cst_12 = arith.constant 0.000000e+00 : f32
    %47 = vector.shape_cast %6 : vector<1x1024xi1> to vector<1x1024xi1>
    %48 = vector.broadcast %47 : vector<1x1024xi1> to vector<8x1024xi1>
    %49 = vector.broadcast %cst_12 : f32 to vector<8x1024xf32>
    %50 = arith.select %48, %46, %49 : vector<8x1024xi1>, vector<8x1024xf32>
    %c27_i32_13 = arith.constant 27 : i32
    %51 = tpu.dynamic_rotate %35 by %c27_i32_13 dim 1 : vector<8x1024xf32>, i32 -> vector<8x1024xf32>
    %cst_14 = arith.constant 0.000000e+00 : f32
    %52 = vector.shape_cast %8 : vector<1x1024xi1> to vector<1x1024xi1>
    %53 = vector.broadcast %52 : vector<1x1024xi1> to vector<8x1024xi1>
    %54 = vector.broadcast %cst_14 : f32 to vector<8x1024xf32>
    %55 = arith.select %53, %51, %54 : vector<8x1024xi1>, vector<8x1024xf32>
    %c18_i32_15 = arith.constant 18 : i32
    %56 = tpu.dynamic_rotate %35 by %c18_i32_15 dim 1 : vector<8x1024xf32>, i32 -> vector<8x1024xf32>
    %cst_16 = arith.constant 0.000000e+00 : f32
    %57 = vector.shape_cast %10 : vector<1x1024xi1> to vector<1x1024xi1>
    %58 = vector.broadcast %57 : vector<1x1024xi1> to vector<8x1024xi1>
    %59 = vector.broadcast %cst_16 : f32 to vector<8x1024xf32>
    %60 = arith.select %58, %56, %59 : vector<8x1024xi1>, vector<8x1024xf32>
    %c9_i32_17 = arith.constant 9 : i32
    %61 = tpu.dynamic_rotate %35 by %c9_i32_17 dim 1 : vector<8x1024xf32>, i32 -> vector<8x1024xf32>
    %cst_18 = arith.constant 0.000000e+00 : f32
    %62 = vector.shape_cast %12 : vector<1x1024xi1> to vector<1x1024xi1>
    %63 = vector.broadcast %62 : vector<1x1024xi1> to vector<8x1024xi1>
    %64 = vector.broadcast %cst_18 : f32 to vector<8x1024xf32>
    %65 = arith.select %63, %61, %64 : vector<8x1024xi1>, vector<8x1024xf32>
    %66 = tpu.concatenate %45, %50, %55, %60, %65, %35 in 0 : vector<8x1024xf32>, vector<8x1024xf32>, vector<8x1024xf32>, vector<8x1024xf32>, vector<8x1024xf32>, vector<8x1024xf32> -> vector<48x1024xf32>
    %67 = arith.truncf %66 : vector<48x1024xf32> to vector<48x1024xbf16>
    %cst_19 = arith.constant dense<0.000000e+00> : vector<8x1024xf32>
    %68 = tpu.matmul %37, %67, %cst_19 {dimension_numbers = #tpu.dot_dimension_numbers<[1], [0], [0], [1], [0, 0, 1, 1], [], []>} : vector<8x48xbf16>, vector<48x1024xbf16>, vector<8x1024xf32> -> vector<8x1024xf32>
    %69 = vector.broadcast %40 : vector<8x1xf32> to vector<8x1024xf32>
    %70 = arith.addf %68, %69 : vector<8x1024xf32>
    %cst_20 = arith.constant 0.000000e+00 : f32
    %71 = vector.broadcast %cst_20 : f32 to vector<8x1024xf32>
    %72 = arith.maximumf %70, %71 : vector<8x1024xf32>
    %73 = vector.extract_strided_slice %18 {offsets = [0, 3], sizes = [8, 1], strides = [1, 1]} : vector<8x8xf32> to vector<8x1xf32>
    %c45_i32_21 = arith.constant 45 : i32
    %74 = tpu.dynamic_rotate %72 by %c45_i32_21 dim 1 : vector<8x1024xf32>, i32 -> vector<8x1024xf32>
    %cst_22 = arith.constant 0.000000e+00 : f32
    %75 = vector.shape_cast %4 : vector<1x1024xi1> to vector<1x1024xi1>
    %76 = vector.broadcast %75 : vector<1x1024xi1> to vector<8x1024xi1>
    %77 = vector.broadcast %cst_22 : f32 to vector<8x1024xf32>
    %78 = arith.select %76, %74, %77 : vector<8x1024xi1>, vector<8x1024xf32>
    %c36_i32_23 = arith.constant 36 : i32
    %79 = tpu.dynamic_rotate %72 by %c36_i32_23 dim 1 : vector<8x1024xf32>, i32 -> vector<8x1024xf32>
    %cst_24 = arith.constant 0.000000e+00 : f32
    %80 = vector.shape_cast %6 : vector<1x1024xi1> to vector<1x1024xi1>
    %81 = vector.broadcast %80 : vector<1x1024xi1> to vector<8x1024xi1>
    %82 = vector.broadcast %cst_24 : f32 to vector<8x1024xf32>
    %83 = arith.select %81, %79, %82 : vector<8x1024xi1>, vector<8x1024xf32>
    %c27_i32_25 = arith.constant 27 : i32
    %84 = tpu.dynamic_rotate %72 by %c27_i32_25 dim 1 : vector<8x1024xf32>, i32 -> vector<8x1024xf32>
    %cst_26 = arith.constant 0.000000e+00 : f32
    %85 = vector.shape_cast %8 : vector<1x1024xi1> to vector<1x1024xi1>
    %86 = vector.broadcast %85 : vector<1x1024xi1> to vector<8x1024xi1>
    %87 = vector.broadcast %cst_26 : f32 to vector<8x1024xf32>
    %88 = arith.select %86, %84, %87 : vector<8x1024xi1>, vector<8x1024xf32>
    %c18_i32_27 = arith.constant 18 : i32
    %89 = tpu.dynamic_rotate %72 by %c18_i32_27 dim 1 : vector<8x1024xf32>, i32 -> vector<8x1024xf32>
    %cst_28 = arith.constant 0.000000e+00 : f32
    %90 = vector.shape_cast %10 : vector<1x1024xi1> to vector<1x1024xi1>
    %91 = vector.broadcast %90 : vector<1x1024xi1> to vector<8x1024xi1>
    %92 = vector.broadcast %cst_28 : f32 to vector<8x1024xf32>
    %93 = arith.select %91, %89, %92 : vector<8x1024xi1>, vector<8x1024xf32>
    %c9_i32_29 = arith.constant 9 : i32
    %94 = tpu.dynamic_rotate %72 by %c9_i32_29 dim 1 : vector<8x1024xf32>, i32 -> vector<8x1024xf32>
    %cst_30 = arith.constant 0.000000e+00 : f32
    %95 = vector.shape_cast %12 : vector<1x1024xi1> to vector<1x1024xi1>
    %96 = vector.broadcast %95 : vector<1x1024xi1> to vector<8x1024xi1>
    %97 = vector.broadcast %cst_30 : f32 to vector<8x1024xf32>
    %98 = arith.select %96, %94, %97 : vector<8x1024xi1>, vector<8x1024xf32>
    %99 = tpu.concatenate %78, %83, %88, %93, %98, %72 in 0 : vector<8x1024xf32>, vector<8x1024xf32>, vector<8x1024xf32>, vector<8x1024xf32>, vector<8x1024xf32>, vector<8x1024xf32> -> vector<48x1024xf32>
    %100 = arith.truncf %99 : vector<48x1024xf32> to vector<48x1024xbf16>
    %cst_31 = arith.constant dense<0.000000e+00> : vector<8x1024xf32>
    %101 = tpu.matmul %39, %100, %cst_31 {dimension_numbers = #tpu.dot_dimension_numbers<[1], [0], [0], [1], [0, 0, 1, 1], [], []>} : vector<8x48xbf16>, vector<48x1024xbf16>, vector<8x1024xf32> -> vector<8x1024xf32>
    %102 = vector.broadcast %73 : vector<8x1xf32> to vector<8x1024xf32>
    %103 = arith.addf %101, %102 : vector<8x1024xf32>
    %cst_32 = arith.constant 0.000000e+00 : f32
    %104 = vector.broadcast %cst_32 : f32 to vector<8x1024xf32>
    %105 = arith.maximumf %103, %104 : vector<8x1024xf32>
    %106 = vector.extract_strided_slice %18 {offsets = [0, 4], sizes = [8, 1], strides = [1, 1]} : vector<8x8xf32> to vector<8x1xf32>
    %107 = vector.broadcast %106 : vector<8x1xf32> to vector<8x1024xf32>
    %108 = arith.mulf %105, %107 : vector<8x1024xf32>
    %109 = vector.extract_strided_slice %18 {offsets = [0, 5], sizes = [8, 1], strides = [1, 1]} : vector<8x8xf32> to vector<8x1xf32>
    %110 = vector.broadcast %109 : vector<8x1xf32> to vector<8x1024xf32>
    %111 = arith.addf %108, %110 : vector<8x1024xf32>
    %112 = arith.addf %25, %111 : vector<8x1024xf32>
    %cst_33 = arith.constant 0.000000e+00 : f32
    %113 = vector.broadcast %cst_33 : f32 to vector<8x1024xf32>
    %114 = arith.maximumf %112, %113 : vector<8x1024xf32>
    %c1_34 = arith.constant 1 : index
    %c0_35 = arith.constant 0 : index
    %c0_36 = arith.constant 0 : index
    %115 = vector.load %arg3[%c1_34, %c0_35, %c0_36] : memref<4x32x8xf32, #tpu.memory_space<vmem>>, vector<1x16x8xf32>
    %116 = vector.shape_cast %115 : vector<1x16x8xf32> to vector<16x8xf32>
    %c3 = arith.constant 3 : index
    %c0_37 = arith.constant 0 : index
    %c0_38 = arith.constant 0 : index
    %117 = vector.load %arg2[%c3, %c0_37, %c0_38] : memref<12x64x192xbf16, #tpu.memory_space<vmem>>, vector<1x32x8xbf16>
    %118 = vector.shape_cast %117 : vector<1x32x8xbf16> to vector<32x8xbf16>
    %119 = arith.truncf %114 : vector<8x1024xf32> to vector<8x1024xbf16>
    %cst_39 = arith.constant dense<0.000000e+00> : vector<32x1024xf32>
    %120 = tpu.matmul %118, %119, %cst_39 {dimension_numbers = #tpu.dot_dimension_numbers<[1], [0], [0], [1], [0, 0, 1, 1], [], []>} : vector<32x8xbf16>, vector<8x1024xbf16>, vector<32x1024xf32> -> vector<32x1024xf32>
    %121 = vector.extract_strided_slice %120 {offsets = [0, 0], sizes = [16, 1024], strides = [1, 1]} : vector<32x1024xf32> to vector<16x1024xf32>
    %122 = vector.extract_strided_slice %116 {offsets = [0, 0], sizes = [16, 1], strides = [1, 1]} : vector<16x8xf32> to vector<16x1xf32>
    %123 = vector.broadcast %122 : vector<16x1xf32> to vector<16x1024xf32>
    %124 = arith.addf %121, %123 : vector<16x1024xf32>
    %125 = vector.extract_strided_slice %120 {offsets = [16, 0], sizes = [16, 1024], strides = [1, 1]} : vector<32x1024xf32> to vector<16x1024xf32>
    %126 = vector.extract_strided_slice %116 {offsets = [0, 1], sizes = [16, 1], strides = [1, 1]} : vector<16x8xf32> to vector<16x1xf32>
    %127 = vector.broadcast %126 : vector<16x1xf32> to vector<16x1024xf32>
    %128 = arith.addf %125, %127 : vector<16x1024xf32>
    %129 = arith.addf %124, %128 : vector<16x1024xf32>
    %cst_40 = arith.constant 0.000000e+00 : f32
    %130 = vector.broadcast %cst_40 : f32 to vector<16x1024xf32>
    %131 = arith.maximumf %129, %130 : vector<16x1024xf32>
    %c4 = arith.constant 4 : index
    %c0_41 = arith.constant 0 : index
    %c0_42 = arith.constant 0 : index
    %132 = vector.load %arg2[%c4, %c0_41, %c0_42] : memref<12x64x192xbf16, #tpu.memory_space<vmem>>, vector<1x16x96xbf16>
    %133 = vector.shape_cast %132 : vector<1x16x96xbf16> to vector<16x96xbf16>
    %c5 = arith.constant 5 : index
    %c0_43 = arith.constant 0 : index
    %c0_44 = arith.constant 0 : index
    %134 = vector.load %arg2[%c5, %c0_43, %c0_44] : memref<12x64x192xbf16, #tpu.memory_space<vmem>>, vector<1x16x96xbf16>
    %135 = vector.shape_cast %134 : vector<1x16x96xbf16> to vector<16x96xbf16>
    %136 = vector.extract_strided_slice %116 {offsets = [0, 2], sizes = [16, 1], strides = [1, 1]} : vector<16x8xf32> to vector<16x1xf32>
    %c45_i32_45 = arith.constant 45 : i32
    %137 = tpu.dynamic_rotate %131 by %c45_i32_45 dim 1 : vector<16x1024xf32>, i32 -> vector<16x1024xf32>
    %cst_46 = arith.constant 0.000000e+00 : f32
    %138 = vector.shape_cast %4 : vector<1x1024xi1> to vector<1x1024xi1>
    %139 = vector.broadcast %138 : vector<1x1024xi1> to vector<16x1024xi1>
    %140 = vector.broadcast %cst_46 : f32 to vector<16x1024xf32>
    %141 = arith.select %139, %137, %140 : vector<16x1024xi1>, vector<16x1024xf32>
    %c36_i32_47 = arith.constant 36 : i32
    %142 = tpu.dynamic_rotate %131 by %c36_i32_47 dim 1 : vector<16x1024xf32>, i32 -> vector<16x1024xf32>
    %cst_48 = arith.constant 0.000000e+00 : f32
    %143 = vector.shape_cast %6 : vector<1x1024xi1> to vector<1x1024xi1>
    %144 = vector.broadcast %143 : vector<1x1024xi1> to vector<16x1024xi1>
    %145 = vector.broadcast %cst_48 : f32 to vector<16x1024xf32>
    %146 = arith.select %144, %142, %145 : vector<16x1024xi1>, vector<16x1024xf32>
    %c27_i32_49 = arith.constant 27 : i32
    %147 = tpu.dynamic_rotate %131 by %c27_i32_49 dim 1 : vector<16x1024xf32>, i32 -> vector<16x1024xf32>
    %cst_50 = arith.constant 0.000000e+00 : f32
    %148 = vector.shape_cast %8 : vector<1x1024xi1> to vector<1x1024xi1>
    %149 = vector.broadcast %148 : vector<1x1024xi1> to vector<16x1024xi1>
    %150 = vector.broadcast %cst_50 : f32 to vector<16x1024xf32>
    %151 = arith.select %149, %147, %150 : vector<16x1024xi1>, vector<16x1024xf32>
    %c18_i32_51 = arith.constant 18 : i32
    %152 = tpu.dynamic_rotate %131 by %c18_i32_51 dim 1 : vector<16x1024xf32>, i32 -> vector<16x1024xf32>
    %cst_52 = arith.constant 0.000000e+00 : f32
    %153 = vector.shape_cast %10 : vector<1x1024xi1> to vector<1x1024xi1>
    %154 = vector.broadcast %153 : vector<1x1024xi1> to vector<16x1024xi1>
    %155 = vector.broadcast %cst_52 : f32 to vector<16x1024xf32>
    %156 = arith.select %154, %152, %155 : vector<16x1024xi1>, vector<16x1024xf32>
    %c9_i32_53 = arith.constant 9 : i32
    %157 = tpu.dynamic_rotate %131 by %c9_i32_53 dim 1 : vector<16x1024xf32>, i32 -> vector<16x1024xf32>
    %cst_54 = arith.constant 0.000000e+00 : f32
    %158 = vector.shape_cast %12 : vector<1x1024xi1> to vector<1x1024xi1>
    %159 = vector.broadcast %158 : vector<1x1024xi1> to vector<16x1024xi1>
    %160 = vector.broadcast %cst_54 : f32 to vector<16x1024xf32>
    %161 = arith.select %159, %157, %160 : vector<16x1024xi1>, vector<16x1024xf32>
    %162 = tpu.concatenate %141, %146, %151, %156, %161, %131 in 0 : vector<16x1024xf32>, vector<16x1024xf32>, vector<16x1024xf32>, vector<16x1024xf32>, vector<16x1024xf32>, vector<16x1024xf32> -> vector<96x1024xf32>
    %163 = arith.truncf %162 : vector<96x1024xf32> to vector<96x1024xbf16>
    %cst_55 = arith.constant dense<0.000000e+00> : vector<16x1024xf32>
    %164 = tpu.matmul %133, %163, %cst_55 {dimension_numbers = #tpu.dot_dimension_numbers<[1], [0], [0], [1], [0, 0, 1, 1], [], []>} : vector<16x96xbf16>, vector<96x1024xbf16>, vector<16x1024xf32> -> vector<16x1024xf32>
    %165 = vector.broadcast %136 : vector<16x1xf32> to vector<16x1024xf32>
    %166 = arith.addf %164, %165 : vector<16x1024xf32>
    %cst_56 = arith.constant 0.000000e+00 : f32
    %167 = vector.broadcast %cst_56 : f32 to vector<16x1024xf32>
    %168 = arith.maximumf %166, %167 : vector<16x1024xf32>
    %169 = vector.extract_strided_slice %116 {offsets = [0, 3], sizes = [16, 1], strides = [1, 1]} : vector<16x8xf32> to vector<16x1xf32>
    %c45_i32_57 = arith.constant 45 : i32
    %170 = tpu.dynamic_rotate %168 by %c45_i32_57 dim 1 : vector<16x1024xf32>, i32 -> vector<16x1024xf32>
    %cst_58 = arith.constant 0.000000e+00 : f32
    %171 = vector.shape_cast %4 : vector<1x1024xi1> to vector<1x1024xi1>
    %172 = vector.broadcast %171 : vector<1x1024xi1> to vector<16x1024xi1>
    %173 = vector.broadcast %cst_58 : f32 to vector<16x1024xf32>
    %174 = arith.select %172, %170, %173 : vector<16x1024xi1>, vector<16x1024xf32>
    %c36_i32_59 = arith.constant 36 : i32
    %175 = tpu.dynamic_rotate %168 by %c36_i32_59 dim 1 : vector<16x1024xf32>, i32 -> vector<16x1024xf32>
    %cst_60 = arith.constant 0.000000e+00 : f32
    %176 = vector.shape_cast %6 : vector<1x1024xi1> to vector<1x1024xi1>
    %177 = vector.broadcast %176 : vector<1x1024xi1> to vector<16x1024xi1>
    %178 = vector.broadcast %cst_60 : f32 to vector<16x1024xf32>
    %179 = arith.select %177, %175, %178 : vector<16x1024xi1>, vector<16x1024xf32>
    %c27_i32_61 = arith.constant 27 : i32
    %180 = tpu.dynamic_rotate %168 by %c27_i32_61 dim 1 : vector<16x1024xf32>, i32 -> vector<16x1024xf32>
    %cst_62 = arith.constant 0.000000e+00 : f32
    %181 = vector.shape_cast %8 : vector<1x1024xi1> to vector<1x1024xi1>
    %182 = vector.broadcast %181 : vector<1x1024xi1> to vector<16x1024xi1>
    %183 = vector.broadcast %cst_62 : f32 to vector<16x1024xf32>
    %184 = arith.select %182, %180, %183 : vector<16x1024xi1>, vector<16x1024xf32>
    %c18_i32_63 = arith.constant 18 : i32
    %185 = tpu.dynamic_rotate %168 by %c18_i32_63 dim 1 : vector<16x1024xf32>, i32 -> vector<16x1024xf32>
    %cst_64 = arith.constant 0.000000e+00 : f32
    %186 = vector.shape_cast %10 : vector<1x1024xi1> to vector<1x1024xi1>
    %187 = vector.broadcast %186 : vector<1x1024xi1> to vector<16x1024xi1>
    %188 = vector.broadcast %cst_64 : f32 to vector<16x1024xf32>
    %189 = arith.select %187, %185, %188 : vector<16x1024xi1>, vector<16x1024xf32>
    %c9_i32_65 = arith.constant 9 : i32
    %190 = tpu.dynamic_rotate %168 by %c9_i32_65 dim 1 : vector<16x1024xf32>, i32 -> vector<16x1024xf32>
    %cst_66 = arith.constant 0.000000e+00 : f32
    %191 = vector.shape_cast %12 : vector<1x1024xi1> to vector<1x1024xi1>
    %192 = vector.broadcast %191 : vector<1x1024xi1> to vector<16x1024xi1>
    %193 = vector.broadcast %cst_66 : f32 to vector<16x1024xf32>
    %194 = arith.select %192, %190, %193 : vector<16x1024xi1>, vector<16x1024xf32>
    %195 = tpu.concatenate %174, %179, %184, %189, %194, %168 in 0 : vector<16x1024xf32>, vector<16x1024xf32>, vector<16x1024xf32>, vector<16x1024xf32>, vector<16x1024xf32>, vector<16x1024xf32> -> vector<96x1024xf32>
    %196 = arith.truncf %195 : vector<96x1024xf32> to vector<96x1024xbf16>
    %cst_67 = arith.constant dense<0.000000e+00> : vector<16x1024xf32>
    %197 = tpu.matmul %135, %196, %cst_67 {dimension_numbers = #tpu.dot_dimension_numbers<[1], [0], [0], [1], [0, 0, 1, 1], [], []>} : vector<16x96xbf16>, vector<96x1024xbf16>, vector<16x1024xf32> -> vector<16x1024xf32>
    %198 = vector.broadcast %169 : vector<16x1xf32> to vector<16x1024xf32>
    %199 = arith.addf %197, %198 : vector<16x1024xf32>
    %cst_68 = arith.constant 0.000000e+00 : f32
    %200 = vector.broadcast %cst_68 : f32 to vector<16x1024xf32>
    %201 = arith.maximumf %199, %200 : vector<16x1024xf32>
    %202 = vector.extract_strided_slice %116 {offsets = [0, 4], sizes = [16, 1], strides = [1, 1]} : vector<16x8xf32> to vector<16x1xf32>
    %203 = vector.broadcast %202 : vector<16x1xf32> to vector<16x1024xf32>
    %204 = arith.mulf %201, %203 : vector<16x1024xf32>
    %205 = vector.extract_strided_slice %116 {offsets = [0, 5], sizes = [16, 1], strides = [1, 1]} : vector<16x8xf32> to vector<16x1xf32>
    %206 = vector.broadcast %205 : vector<16x1xf32> to vector<16x1024xf32>
    %207 = arith.addf %204, %206 : vector<16x1024xf32>
    %208 = arith.addf %124, %207 : vector<16x1024xf32>
    %cst_69 = arith.constant 0.000000e+00 : f32
    %209 = vector.broadcast %cst_69 : f32 to vector<16x1024xf32>
    %210 = arith.maximumf %208, %209 : vector<16x1024xf32>
    %c2_70 = arith.constant 2 : index
    %c0_71 = arith.constant 0 : index
    %c0_72 = arith.constant 0 : index
    %211 = vector.load %arg3[%c2_70, %c0_71, %c0_72] : memref<4x32x8xf32, #tpu.memory_space<vmem>>, vector<1x32x8xf32>
    %212 = vector.shape_cast %211 : vector<1x32x8xf32> to vector<32x8xf32>
    %c6 = arith.constant 6 : index
    %c0_73 = arith.constant 0 : index
    %c0_74 = arith.constant 0 : index
    %213 = vector.load %arg2[%c6, %c0_73, %c0_74] : memref<12x64x192xbf16, #tpu.memory_space<vmem>>, vector<1x64x16xbf16>
    %214 = vector.shape_cast %213 : vector<1x64x16xbf16> to vector<64x16xbf16>
    %215 = arith.truncf %210 : vector<16x1024xf32> to vector<16x1024xbf16>
    %cst_75 = arith.constant dense<0.000000e+00> : vector<64x1024xf32>
    %216 = tpu.matmul %214, %215, %cst_75 {dimension_numbers = #tpu.dot_dimension_numbers<[1], [0], [0], [1], [0, 0, 1, 1], [], []>} : vector<64x16xbf16>, vector<16x1024xbf16>, vector<64x1024xf32> -> vector<64x1024xf32>
    %217 = vector.extract_strided_slice %216 {offsets = [0, 0], sizes = [32, 1024], strides = [1, 1]} : vector<64x1024xf32> to vector<32x1024xf32>
    %218 = vector.extract_strided_slice %212 {offsets = [0, 0], sizes = [32, 1], strides = [1, 1]} : vector<32x8xf32> to vector<32x1xf32>
    %219 = vector.broadcast %218 : vector<32x1xf32> to vector<32x1024xf32>
    %220 = arith.addf %217, %219 : vector<32x1024xf32>
    %221 = vector.extract_strided_slice %216 {offsets = [32, 0], sizes = [32, 1024], strides = [1, 1]} : vector<64x1024xf32> to vector<32x1024xf32>
    %222 = vector.extract_strided_slice %212 {offsets = [0, 1], sizes = [32, 1], strides = [1, 1]} : vector<32x8xf32> to vector<32x1xf32>
    %223 = vector.broadcast %222 : vector<32x1xf32> to vector<32x1024xf32>
    %224 = arith.addf %221, %223 : vector<32x1024xf32>
    %225 = arith.addf %220, %224 : vector<32x1024xf32>
    %cst_76 = arith.constant 0.000000e+00 : f32
    %226 = vector.broadcast %cst_76 : f32 to vector<32x1024xf32>
    %227 = arith.maximumf %225, %226 : vector<32x1024xf32>
    %c7 = arith.constant 7 : index
    %c0_77 = arith.constant 0 : index
    %c0_78 = arith.constant 0 : index
    %228 = vector.load %arg2[%c7, %c0_77, %c0_78] : memref<12x64x192xbf16, #tpu.memory_space<vmem>>, vector<1x32x192xbf16>
    %229 = vector.shape_cast %228 : vector<1x32x192xbf16> to vector<32x192xbf16>
    %c8 = arith.constant 8 : index
    %c0_79 = arith.constant 0 : index
    %c0_80 = arith.constant 0 : index
    %230 = vector.load %arg2[%c8, %c0_79, %c0_80] : memref<12x64x192xbf16, #tpu.memory_space<vmem>>, vector<1x32x192xbf16>
    %231 = vector.shape_cast %230 : vector<1x32x192xbf16> to vector<32x192xbf16>
    %232 = vector.extract_strided_slice %212 {offsets = [0, 2], sizes = [32, 1], strides = [1, 1]} : vector<32x8xf32> to vector<32x1xf32>
    %c45_i32_81 = arith.constant 45 : i32
    %233 = tpu.dynamic_rotate %227 by %c45_i32_81 dim 1 : vector<32x1024xf32>, i32 -> vector<32x1024xf32>
    %cst_82 = arith.constant 0.000000e+00 : f32
    %234 = vector.shape_cast %4 : vector<1x1024xi1> to vector<1x1024xi1>
    %235 = vector.broadcast %234 : vector<1x1024xi1> to vector<32x1024xi1>
    %236 = vector.broadcast %cst_82 : f32 to vector<32x1024xf32>
    %237 = arith.select %235, %233, %236 : vector<32x1024xi1>, vector<32x1024xf32>
    %c36_i32_83 = arith.constant 36 : i32
    %238 = tpu.dynamic_rotate %227 by %c36_i32_83 dim 1 : vector<32x1024xf32>, i32 -> vector<32x1024xf32>
    %cst_84 = arith.constant 0.000000e+00 : f32
    %239 = vector.shape_cast %6 : vector<1x1024xi1> to vector<1x1024xi1>
    %240 = vector.broadcast %239 : vector<1x1024xi1> to vector<32x1024xi1>
    %241 = vector.broadcast %cst_84 : f32 to vector<32x1024xf32>
    %242 = arith.select %240, %238, %241 : vector<32x1024xi1>, vector<32x1024xf32>
    %c27_i32_85 = arith.constant 27 : i32
    %243 = tpu.dynamic_rotate %227 by %c27_i32_85 dim 1 : vector<32x1024xf32>, i32 -> vector<32x1024xf32>
    %cst_86 = arith.constant 0.000000e+00 : f32
    %244 = vector.shape_cast %8 : vector<1x1024xi1> to vector<1x1024xi1>
    %245 = vector.broadcast %244 : vector<1x1024xi1> to vector<32x1024xi1>
    %246 = vector.broadcast %cst_86 : f32 to vector<32x1024xf32>
    %247 = arith.select %245, %243, %246 : vector<32x1024xi1>, vector<32x1024xf32>
    %c18_i32_87 = arith.constant 18 : i32
    %248 = tpu.dynamic_rotate %227 by %c18_i32_87 dim 1 : vector<32x1024xf32>, i32 -> vector<32x1024xf32>
    %cst_88 = arith.constant 0.000000e+00 : f32
    %249 = vector.shape_cast %10 : vector<1x1024xi1> to vector<1x1024xi1>
    %250 = vector.broadcast %249 : vector<1x1024xi1> to vector<32x1024xi1>
    %251 = vector.broadcast %cst_88 : f32 to vector<32x1024xf32>
    %252 = arith.select %250, %248, %251 : vector<32x1024xi1>, vector<32x1024xf32>
    %c9_i32_89 = arith.constant 9 : i32
    %253 = tpu.dynamic_rotate %227 by %c9_i32_89 dim 1 : vector<32x1024xf32>, i32 -> vector<32x1024xf32>
    %cst_90 = arith.constant 0.000000e+00 : f32
    %254 = vector.shape_cast %12 : vector<1x1024xi1> to vector<1x1024xi1>
    %255 = vector.broadcast %254 : vector<1x1024xi1> to vector<32x1024xi1>
    %256 = vector.broadcast %cst_90 : f32 to vector<32x1024xf32>
    %257 = arith.select %255, %253, %256 : vector<32x1024xi1>, vector<32x1024xf32>
    %258 = tpu.concatenate %237, %242, %247, %252, %257, %227 in 0 : vector<32x1024xf32>, vector<32x1024xf32>, vector<32x1024xf32>, vector<32x1024xf32>, vector<32x1024xf32>, vector<32x1024xf32> -> vector<192x1024xf32>
    %259 = arith.truncf %258 : vector<192x1024xf32> to vector<192x1024xbf16>
    %cst_91 = arith.constant dense<0.000000e+00> : vector<32x1024xf32>
    %260 = tpu.matmul %229, %259, %cst_91 {dimension_numbers = #tpu.dot_dimension_numbers<[1], [0], [0], [1], [0, 0, 1, 1], [], []>} : vector<32x192xbf16>, vector<192x1024xbf16>, vector<32x1024xf32> -> vector<32x1024xf32>
    %261 = vector.broadcast %232 : vector<32x1xf32> to vector<32x1024xf32>
    %262 = arith.addf %260, %261 : vector<32x1024xf32>
    %cst_92 = arith.constant 0.000000e+00 : f32
    %263 = vector.broadcast %cst_92 : f32 to vector<32x1024xf32>
    %264 = arith.maximumf %262, %263 : vector<32x1024xf32>
    %265 = vector.extract_strided_slice %212 {offsets = [0, 3], sizes = [32, 1], strides = [1, 1]} : vector<32x8xf32> to vector<32x1xf32>
    %c45_i32_93 = arith.constant 45 : i32
    %266 = tpu.dynamic_rotate %264 by %c45_i32_93 dim 1 : vector<32x1024xf32>, i32 -> vector<32x1024xf32>
    %cst_94 = arith.constant 0.000000e+00 : f32
    %267 = vector.shape_cast %4 : vector<1x1024xi1> to vector<1x1024xi1>
    %268 = vector.broadcast %267 : vector<1x1024xi1> to vector<32x1024xi1>
    %269 = vector.broadcast %cst_94 : f32 to vector<32x1024xf32>
    %270 = arith.select %268, %266, %269 : vector<32x1024xi1>, vector<32x1024xf32>
    %c36_i32_95 = arith.constant 36 : i32
    %271 = tpu.dynamic_rotate %264 by %c36_i32_95 dim 1 : vector<32x1024xf32>, i32 -> vector<32x1024xf32>
    %cst_96 = arith.constant 0.000000e+00 : f32
    %272 = vector.shape_cast %6 : vector<1x1024xi1> to vector<1x1024xi1>
    %273 = vector.broadcast %272 : vector<1x1024xi1> to vector<32x1024xi1>
    %274 = vector.broadcast %cst_96 : f32 to vector<32x1024xf32>
    %275 = arith.select %273, %271, %274 : vector<32x1024xi1>, vector<32x1024xf32>
    %c27_i32_97 = arith.constant 27 : i32
    %276 = tpu.dynamic_rotate %264 by %c27_i32_97 dim 1 : vector<32x1024xf32>, i32 -> vector<32x1024xf32>
    %cst_98 = arith.constant 0.000000e+00 : f32
    %277 = vector.shape_cast %8 : vector<1x1024xi1> to vector<1x1024xi1>
    %278 = vector.broadcast %277 : vector<1x1024xi1> to vector<32x1024xi1>
    %279 = vector.broadcast %cst_98 : f32 to vector<32x1024xf32>
    %280 = arith.select %278, %276, %279 : vector<32x1024xi1>, vector<32x1024xf32>
    %c18_i32_99 = arith.constant 18 : i32
    %281 = tpu.dynamic_rotate %264 by %c18_i32_99 dim 1 : vector<32x1024xf32>, i32 -> vector<32x1024xf32>
    %cst_100 = arith.constant 0.000000e+00 : f32
    %282 = vector.shape_cast %10 : vector<1x1024xi1> to vector<1x1024xi1>
    %283 = vector.broadcast %282 : vector<1x1024xi1> to vector<32x1024xi1>
    %284 = vector.broadcast %cst_100 : f32 to vector<32x1024xf32>
    %285 = arith.select %283, %281, %284 : vector<32x1024xi1>, vector<32x1024xf32>
    %c9_i32_101 = arith.constant 9 : i32
    %286 = tpu.dynamic_rotate %264 by %c9_i32_101 dim 1 : vector<32x1024xf32>, i32 -> vector<32x1024xf32>
    %cst_102 = arith.constant 0.000000e+00 : f32
    %287 = vector.shape_cast %12 : vector<1x1024xi1> to vector<1x1024xi1>
    %288 = vector.broadcast %287 : vector<1x1024xi1> to vector<32x1024xi1>
    %289 = vector.broadcast %cst_102 : f32 to vector<32x1024xf32>
    %290 = arith.select %288, %286, %289 : vector<32x1024xi1>, vector<32x1024xf32>
    %291 = tpu.concatenate %270, %275, %280, %285, %290, %264 in 0 : vector<32x1024xf32>, vector<32x1024xf32>, vector<32x1024xf32>, vector<32x1024xf32>, vector<32x1024xf32>, vector<32x1024xf32> -> vector<192x1024xf32>
    %292 = arith.truncf %291 : vector<192x1024xf32> to vector<192x1024xbf16>
    %cst_103 = arith.constant dense<0.000000e+00> : vector<32x1024xf32>
    %293 = tpu.matmul %231, %292, %cst_103 {dimension_numbers = #tpu.dot_dimension_numbers<[1], [0], [0], [1], [0, 0, 1, 1], [], []>} : vector<32x192xbf16>, vector<192x1024xbf16>, vector<32x1024xf32> -> vector<32x1024xf32>
    %294 = vector.broadcast %265 : vector<32x1xf32> to vector<32x1024xf32>
    %295 = arith.addf %293, %294 : vector<32x1024xf32>
    %cst_104 = arith.constant 0.000000e+00 : f32
    %296 = vector.broadcast %cst_104 : f32 to vector<32x1024xf32>
    %297 = arith.maximumf %295, %296 : vector<32x1024xf32>
    %298 = vector.extract_strided_slice %212 {offsets = [0, 4], sizes = [32, 1], strides = [1, 1]} : vector<32x8xf32> to vector<32x1xf32>
    %299 = vector.broadcast %298 : vector<32x1xf32> to vector<32x1024xf32>
    %300 = arith.mulf %297, %299 : vector<32x1024xf32>
    %301 = vector.extract_strided_slice %212 {offsets = [0, 5], sizes = [32, 1], strides = [1, 1]} : vector<32x8xf32> to vector<32x1xf32>
    %302 = vector.broadcast %301 : vector<32x1xf32> to vector<32x1024xf32>
    %303 = arith.addf %300, %302 : vector<32x1024xf32>
    %304 = arith.addf %220, %303 : vector<32x1024xf32>
    %cst_105 = arith.constant 0.000000e+00 : f32
    %305 = vector.broadcast %cst_105 : f32 to vector<32x1024xf32>
    %306 = arith.maximumf %304, %305 : vector<32x1024xf32>
    %c3_106 = arith.constant 3 : index
    %c0_107 = arith.constant 0 : index
    %c0_108 = arith.constant 0 : index
    %307 = vector.load %arg3[%c3_106, %c0_107, %c0_108] : memref<4x32x8xf32, #tpu.memory_space<vmem>>, vector<1x8x8xf32>
    %308 = vector.shape_cast %307 : vector<1x8x8xf32> to vector<8x8xf32>
    %c9 = arith.constant 9 : index
    %c0_109 = arith.constant 0 : index
    %c0_110 = arith.constant 0 : index
    %309 = vector.load %arg2[%c9, %c0_109, %c0_110] : memref<12x64x192xbf16, #tpu.memory_space<vmem>>, vector<1x16x32xbf16>
    %310 = vector.shape_cast %309 : vector<1x16x32xbf16> to vector<16x32xbf16>
    %311 = arith.truncf %306 : vector<32x1024xf32> to vector<32x1024xbf16>
    %cst_111 = arith.constant dense<0.000000e+00> : vector<16x1024xf32>
    %312 = tpu.matmul %310, %311, %cst_111 {dimension_numbers = #tpu.dot_dimension_numbers<[1], [0], [0], [1], [0, 0, 1, 1], [], []>} : vector<16x32xbf16>, vector<32x1024xbf16>, vector<16x1024xf32> -> vector<16x1024xf32>
    %313 = vector.extract_strided_slice %312 {offsets = [0, 0], sizes = [8, 1024], strides = [1, 1]} : vector<16x1024xf32> to vector<8x1024xf32>
    %314 = vector.extract_strided_slice %308 {offsets = [0, 0], sizes = [8, 1], strides = [1, 1]} : vector<8x8xf32> to vector<8x1xf32>
    %315 = vector.broadcast %314 : vector<8x1xf32> to vector<8x1024xf32>
    %316 = arith.addf %313, %315 : vector<8x1024xf32>
    %317 = vector.extract_strided_slice %312 {offsets = [8, 0], sizes = [8, 1024], strides = [1, 1]} : vector<16x1024xf32> to vector<8x1024xf32>
    %318 = vector.extract_strided_slice %308 {offsets = [0, 1], sizes = [8, 1], strides = [1, 1]} : vector<8x8xf32> to vector<8x1xf32>
    %319 = vector.broadcast %318 : vector<8x1xf32> to vector<8x1024xf32>
    %320 = arith.addf %317, %319 : vector<8x1024xf32>
    %321 = arith.addf %316, %320 : vector<8x1024xf32>
    %cst_112 = arith.constant 0.000000e+00 : f32
    %322 = vector.broadcast %cst_112 : f32 to vector<8x1024xf32>
    %323 = arith.maximumf %321, %322 : vector<8x1024xf32>
    %c10 = arith.constant 10 : index
    %c0_113 = arith.constant 0 : index
    %c0_114 = arith.constant 0 : index
    %324 = vector.load %arg2[%c10, %c0_113, %c0_114] : memref<12x64x192xbf16, #tpu.memory_space<vmem>>, vector<1x8x48xbf16>
    %325 = vector.shape_cast %324 : vector<1x8x48xbf16> to vector<8x48xbf16>
    %c11 = arith.constant 11 : index
    %c0_115 = arith.constant 0 : index
    %c0_116 = arith.constant 0 : index
    %326 = vector.load %arg2[%c11, %c0_115, %c0_116] : memref<12x64x192xbf16, #tpu.memory_space<vmem>>, vector<1x8x48xbf16>
    %327 = vector.shape_cast %326 : vector<1x8x48xbf16> to vector<8x48xbf16>
    %328 = vector.extract_strided_slice %308 {offsets = [0, 2], sizes = [8, 1], strides = [1, 1]} : vector<8x8xf32> to vector<8x1xf32>
    %c45_i32_117 = arith.constant 45 : i32
    %329 = tpu.dynamic_rotate %323 by %c45_i32_117 dim 1 : vector<8x1024xf32>, i32 -> vector<8x1024xf32>
    %cst_118 = arith.constant 0.000000e+00 : f32
    %330 = vector.shape_cast %4 : vector<1x1024xi1> to vector<1x1024xi1>
    %331 = vector.broadcast %330 : vector<1x1024xi1> to vector<8x1024xi1>
    %332 = vector.broadcast %cst_118 : f32 to vector<8x1024xf32>
    %333 = arith.select %331, %329, %332 : vector<8x1024xi1>, vector<8x1024xf32>
    %c36_i32_119 = arith.constant 36 : i32
    %334 = tpu.dynamic_rotate %323 by %c36_i32_119 dim 1 : vector<8x1024xf32>, i32 -> vector<8x1024xf32>
    %cst_120 = arith.constant 0.000000e+00 : f32
    %335 = vector.shape_cast %6 : vector<1x1024xi1> to vector<1x1024xi1>
    %336 = vector.broadcast %335 : vector<1x1024xi1> to vector<8x1024xi1>
    %337 = vector.broadcast %cst_120 : f32 to vector<8x1024xf32>
    %338 = arith.select %336, %334, %337 : vector<8x1024xi1>, vector<8x1024xf32>
    %c27_i32_121 = arith.constant 27 : i32
    %339 = tpu.dynamic_rotate %323 by %c27_i32_121 dim 1 : vector<8x1024xf32>, i32 -> vector<8x1024xf32>
    %cst_122 = arith.constant 0.000000e+00 : f32
    %340 = vector.shape_cast %8 : vector<1x1024xi1> to vector<1x1024xi1>
    %341 = vector.broadcast %340 : vector<1x1024xi1> to vector<8x1024xi1>
    %342 = vector.broadcast %cst_122 : f32 to vector<8x1024xf32>
    %343 = arith.select %341, %339, %342 : vector<8x1024xi1>, vector<8x1024xf32>
    %c18_i32_123 = arith.constant 18 : i32
    %344 = tpu.dynamic_rotate %323 by %c18_i32_123 dim 1 : vector<8x1024xf32>, i32 -> vector<8x1024xf32>
    %cst_124 = arith.constant 0.000000e+00 : f32
    %345 = vector.shape_cast %10 : vector<1x1024xi1> to vector<1x1024xi1>
    %346 = vector.broadcast %345 : vector<1x1024xi1> to vector<8x1024xi1>
    %347 = vector.broadcast %cst_124 : f32 to vector<8x1024xf32>
    %348 = arith.select %346, %344, %347 : vector<8x1024xi1>, vector<8x1024xf32>
    %c9_i32_125 = arith.constant 9 : i32
    %349 = tpu.dynamic_rotate %323 by %c9_i32_125 dim 1 : vector<8x1024xf32>, i32 -> vector<8x1024xf32>
    %cst_126 = arith.constant 0.000000e+00 : f32
    %350 = vector.shape_cast %12 : vector<1x1024xi1> to vector<1x1024xi1>
    %351 = vector.broadcast %350 : vector<1x1024xi1> to vector<8x1024xi1>
    %352 = vector.broadcast %cst_126 : f32 to vector<8x1024xf32>
    %353 = arith.select %351, %349, %352 : vector<8x1024xi1>, vector<8x1024xf32>
    %354 = tpu.concatenate %333, %338, %343, %348, %353, %323 in 0 : vector<8x1024xf32>, vector<8x1024xf32>, vector<8x1024xf32>, vector<8x1024xf32>, vector<8x1024xf32>, vector<8x1024xf32> -> vector<48x1024xf32>
    %355 = arith.truncf %354 : vector<48x1024xf32> to vector<48x1024xbf16>
    %cst_127 = arith.constant dense<0.000000e+00> : vector<8x1024xf32>
    %356 = tpu.matmul %325, %355, %cst_127 {dimension_numbers = #tpu.dot_dimension_numbers<[1], [0], [0], [1], [0, 0, 1, 1], [], []>} : vector<8x48xbf16>, vector<48x1024xbf16>, vector<8x1024xf32> -> vector<8x1024xf32>
    %357 = vector.broadcast %328 : vector<8x1xf32> to vector<8x1024xf32>
    %358 = arith.addf %356, %357 : vector<8x1024xf32>
    %cst_128 = arith.constant 0.000000e+00 : f32
    %359 = vector.broadcast %cst_128 : f32 to vector<8x1024xf32>
    %360 = arith.maximumf %358, %359 : vector<8x1024xf32>
    %361 = vector.extract_strided_slice %308 {offsets = [0, 3], sizes = [8, 1], strides = [1, 1]} : vector<8x8xf32> to vector<8x1xf32>
    %c45_i32_129 = arith.constant 45 : i32
    %362 = tpu.dynamic_rotate %360 by %c45_i32_129 dim 1 : vector<8x1024xf32>, i32 -> vector<8x1024xf32>
    %cst_130 = arith.constant 0.000000e+00 : f32
    %363 = vector.shape_cast %4 : vector<1x1024xi1> to vector<1x1024xi1>
    %364 = vector.broadcast %363 : vector<1x1024xi1> to vector<8x1024xi1>
    %365 = vector.broadcast %cst_130 : f32 to vector<8x1024xf32>
    %366 = arith.select %364, %362, %365 : vector<8x1024xi1>, vector<8x1024xf32>
    %c36_i32_131 = arith.constant 36 : i32
    %367 = tpu.dynamic_rotate %360 by %c36_i32_131 dim 1 : vector<8x1024xf32>, i32 -> vector<8x1024xf32>
    %cst_132 = arith.constant 0.000000e+00 : f32
    %368 = vector.shape_cast %6 : vector<1x1024xi1> to vector<1x1024xi1>
    %369 = vector.broadcast %368 : vector<1x1024xi1> to vector<8x1024xi1>
    %370 = vector.broadcast %cst_132 : f32 to vector<8x1024xf32>
    %371 = arith.select %369, %367, %370 : vector<8x1024xi1>, vector<8x1024xf32>
    %c27_i32_133 = arith.constant 27 : i32
    %372 = tpu.dynamic_rotate %360 by %c27_i32_133 dim 1 : vector<8x1024xf32>, i32 -> vector<8x1024xf32>
    %cst_134 = arith.constant 0.000000e+00 : f32
    %373 = vector.shape_cast %8 : vector<1x1024xi1> to vector<1x1024xi1>
    %374 = vector.broadcast %373 : vector<1x1024xi1> to vector<8x1024xi1>
    %375 = vector.broadcast %cst_134 : f32 to vector<8x1024xf32>
    %376 = arith.select %374, %372, %375 : vector<8x1024xi1>, vector<8x1024xf32>
    %c18_i32_135 = arith.constant 18 : i32
    %377 = tpu.dynamic_rotate %360 by %c18_i32_135 dim 1 : vector<8x1024xf32>, i32 -> vector<8x1024xf32>
    %cst_136 = arith.constant 0.000000e+00 : f32
    %378 = vector.shape_cast %10 : vector<1x1024xi1> to vector<1x1024xi1>
    %379 = vector.broadcast %378 : vector<1x1024xi1> to vector<8x1024xi1>
    %380 = vector.broadcast %cst_136 : f32 to vector<8x1024xf32>
    %381 = arith.select %379, %377, %380 : vector<8x1024xi1>, vector<8x1024xf32>
    %c9_i32_137 = arith.constant 9 : i32
    %382 = tpu.dynamic_rotate %360 by %c9_i32_137 dim 1 : vector<8x1024xf32>, i32 -> vector<8x1024xf32>
    %cst_138 = arith.constant 0.000000e+00 : f32
    %383 = vector.shape_cast %12 : vector<1x1024xi1> to vector<1x1024xi1>
    %384 = vector.broadcast %383 : vector<1x1024xi1> to vector<8x1024xi1>
    %385 = vector.broadcast %cst_138 : f32 to vector<8x1024xf32>
    %386 = arith.select %384, %382, %385 : vector<8x1024xi1>, vector<8x1024xf32>
    %387 = tpu.concatenate %366, %371, %376, %381, %386, %360 in 0 : vector<8x1024xf32>, vector<8x1024xf32>, vector<8x1024xf32>, vector<8x1024xf32>, vector<8x1024xf32>, vector<8x1024xf32> -> vector<48x1024xf32>
    %388 = arith.truncf %387 : vector<48x1024xf32> to vector<48x1024xbf16>
    %cst_139 = arith.constant dense<0.000000e+00> : vector<8x1024xf32>
    %389 = tpu.matmul %327, %388, %cst_139 {dimension_numbers = #tpu.dot_dimension_numbers<[1], [0], [0], [1], [0, 0, 1, 1], [], []>} : vector<8x48xbf16>, vector<48x1024xbf16>, vector<8x1024xf32> -> vector<8x1024xf32>
    %390 = vector.broadcast %361 : vector<8x1xf32> to vector<8x1024xf32>
    %391 = arith.addf %389, %390 : vector<8x1024xf32>
    %cst_140 = arith.constant 0.000000e+00 : f32
    %392 = vector.broadcast %cst_140 : f32 to vector<8x1024xf32>
    %393 = arith.maximumf %391, %392 : vector<8x1024xf32>
    %394 = vector.extract_strided_slice %308 {offsets = [0, 4], sizes = [8, 1], strides = [1, 1]} : vector<8x8xf32> to vector<8x1xf32>
    %395 = vector.broadcast %394 : vector<8x1xf32> to vector<8x1024xf32>
    %396 = arith.mulf %393, %395 : vector<8x1024xf32>
    %397 = vector.extract_strided_slice %308 {offsets = [0, 5], sizes = [8, 1], strides = [1, 1]} : vector<8x8xf32> to vector<8x1xf32>
    %398 = vector.broadcast %397 : vector<8x1xf32> to vector<8x1024xf32>
    %399 = arith.addf %396, %398 : vector<8x1024xf32>
    %400 = arith.addf %316, %399 : vector<8x1024xf32>
    %cst_141 = arith.constant 0.000000e+00 : f32
    %401 = vector.broadcast %cst_141 : f32 to vector<8x1024xf32>
    %402 = arith.maximumf %400, %401 : vector<8x1024xf32>
    %cst_142 = arith.constant 0.000000e+00 : f32
    %403 = vector.shape_cast %14 : vector<1x1024xi1> to vector<1x1024xi1>
    %404 = vector.broadcast %403 : vector<1x1024xi1> to vector<8x1024xi1>
    %405 = vector.broadcast %cst_142 : f32 to vector<8x1024xf32>
    %406 = arith.select %404, %402, %405 : vector<8x1024xi1>, vector<8x1024xf32>
    %c0_143 = arith.constant 0 : index
    %c0_144 = arith.constant 0 : index
    %c0_145 = arith.constant 0 : index
    %407 = vector.load %arg6[%c0_143, %c0_144, %c0_145] : memref<1x8x1024xf32, #tpu.memory_space<vmem>>, vector<1x8x1024xf32>
    %408 = vector.shape_cast %407 : vector<1x8x1024xf32> to vector<8x1024xf32>
    %409 = vector.shape_cast %406 : vector<8x1024xf32> to vector<1x8x1024xf32>
    tpu.vector_store %arg6[%c0_143, %c0_144, %c0_145], %409 {strides = array<i32>} : memref<1x8x1024xf32, #tpu.memory_space<vmem>>, vector<1x8x1024xf32>,
    %c0_146 = arith.constant 0 : index
    %c0_147 = arith.constant 0 : index
    %410 = vector.load %arg4[%c0_146, %c0_147] : memref<1x1024xf32, #tpu.memory_space<vmem>>, vector<1x1024xf32>
    %411 = vector.broadcast %410 : vector<1x1024xf32> to vector<8x1024xf32>
    %412 = arith.mulf %406, %411 : vector<8x1024xf32>
    %cst_148 = arith.constant dense<0.000000e+00> : vector<8xf32>
    %413 = vector.multi_reduction <add>, %412, %cst_148 [1] : vector<8x1024xf32> to vector<8xf32>
    %414 = vector.shape_cast %413 : vector<8xf32> to vector<8x1xf32>
    %cst_149 = arith.constant dense<0xFF800000> : vector<1xf32>
    %415 = vector.multi_reduction <maximumf>, %414, %cst_149 [0] : vector<8x1xf32> to vector<1xf32>
    %416 = vector.shape_cast %415 : vector<1xf32> to vector<1x1xf32>
    %417 = vector.broadcast %416 : vector<1x1xf32> to vector<8x1xf32>
    %418 = arith.subf %414, %417 : vector<8x1xf32>
    %419 = math.exp %418 : vector<8x1xf32>
    %cst_150 = arith.constant dense<0.000000e+00> : vector<1xf32>
    %420 = vector.multi_reduction <add>, %419, %cst_150 [0] : vector<8x1xf32> to vector<1xf32>
    %421 = vector.shape_cast %420 : vector<1xf32> to vector<1x1xf32>
    %422 = math.log %421 : vector<1x1xf32>
    %423 = arith.addf %422, %416 : vector<1x1xf32>
    %424 = vector.broadcast %423 : vector<1x1xf32> to vector<8x1xf32>
    %425 = arith.subf %414, %424 : vector<8x1xf32>
    %c0_151 = arith.constant 0 : index
    %c0_152 = arith.constant 0 : index
    %c0_153 = arith.constant 0 : index
    %426 = vector.load %arg5[%c0_151, %c0_152, %c0_153] : memref<1x8x1xf32, #tpu.memory_space<vmem>>, vector<1x8x1xf32>
    %427 = vector.shape_cast %426 : vector<1x8x1xf32> to vector<8x1xf32>
    %428 = vector.shape_cast %425 : vector<8x1xf32> to vector<1x8x1xf32>
    tpu.vector_store %arg5[%c0_151, %c0_152, %c0_153], %428 {strides = array<i32>} : memref<1x8x1xf32, #tpu.memory_space<vmem>>, vector<1x8x1xf32>,
    return
  }
  func.func @transform_0(%arg0: i32) -> (i32, i32, i32) {
    %c0_i32 = arith.constant 0 : i32
    %c0_i32_0 = arith.constant 0 : i32
    %c0_i32_1 = arith.constant 0 : i32
    return %arg0, %c0_i32, %c0_i32_0 : i32, i32, i32
  }
  func.func @transform_1(%arg0: i32) -> (i32, i32, i32) {
    %c0_i32 = arith.constant 0 : i32
    %c0_i32_0 = arith.constant 0 : i32
    %c0_i32_1 = arith.constant 0 : i32
    %c0_i32_2 = arith.constant 0 : i32
    return %c0_i32, %c0_i32_0, %c0_i32_1 : i32, i32, i32
  }
  func.func @transform_2(%arg0: i32) -> (i32, i32, i32) {
    %c0_i32 = arith.constant 0 : i32
    %c0_i32_0 = arith.constant 0 : i32
    %c0_i32_1 = arith.constant 0 : i32
    %c0_i32_2 = arith.constant 0 : i32
    return %c0_i32, %c0_i32_0, %c0_i32_1 : i32, i32, i32
  }
  func.func @transform_3(%arg0: i32) -> (i32, i32) {
    %c0_i32 = arith.constant 0 : i32
    %c0_i32_0 = arith.constant 0 : i32
    %c0_i32_1 = arith.constant 0 : i32
    return %c0_i32, %c0_i32_0 : i32, i32
  }
  func.func @transform_4(%arg0: i32) -> (i32, i32, i32) {
    %c0_i32 = arith.constant 0 : i32
    %c0_i32_0 = arith.constant 0 : i32
    %c0_i32_1 = arith.constant 0 : i32
    return %arg0, %c0_i32, %c0_i32_0 : i32, i32, i32
  }
  func.func @transform_5(%arg0: i32) -> (i32, i32, i32) {
    %c0_i32 = arith.constant 0 : i32
    %c0_i32_0 = arith.constant 0 : i32
    %c0_i32_1 = arith.constant 0 : i32
    return %arg0, %c0_i32, %c0_i32_0 : i32, i32, i32
  }
}

</mosaic_0001>

<llo_original>
// kernel: armbandgnn_forward.1
$region0: #{armbandgnn_forward.1}
  #allocation0 [shape = 'u32[]', space=smem, size = 0x4, offset = 0x4, fixed_abs, tag = 'smem constant byte address 0x4 - core index']
  #allocation1 [shape = 'u32[72,128]{1,0:T(1,128)}', space=vmem, size = 0x9000, scoped, tag = 'internal scratch']
  %s0 = inlined_call_operand.vmem [shape: f32[2,1,1024], index: 0, kind: input, shape index: {}]
  %s1 = inlined_call_operand.hbm [shape: bf16[12,64,192], index: 1, kind: input, shape index: {}]
  %s2 = inlined_call_operand.vmem [shape: f32[4,32,8], index: 2, kind: input, shape index: {}]
  %s3 = inlined_call_operand.vmem [shape: f32[1,1024], index: 3, kind: input, shape index: {}]
  %s4 = inlined_call_operand.vmem [shape: f32[2,8,1], index: 4, kind: output, shape index: {0}]
  %s5 = inlined_call_operand.hbm [shape: f32[2,8,1024], index: 5, kind: output, shape index: {1}]
  %6 = xla_tuple %s4, %s5
  %s7 = sld [smem:[#allocation0]]
  $region61: #{armbandgnn_forward.1} parent=0
    _
  %s9 = ssub.s32 1, %s7
  %s10 = scalar_select 0, %s9, %s7
  $region1: #{armbandgnn_forward.1} parent=0
    #allocation2 [shape = 'u8[393216]{0}', space=vmem, size = 0x60000, scoped, tag = 'input window, operand 1, single buffered']
    #allocation3 [shape = 's32[2]{0}', space=sflag, size = 0x8, scoped, tag = 'scoped memory for armbandgnn_forward.1']
    #allocation4 [shape = 's32[2]{0}', space=sflag, size = 0x8, scoped, tag = 'scoped memory for armbandgnn_forward.1']
    #allocation5 [shape = 'u8[65536]{0}', space=vmem, size = 0x10000, scoped, tag = 'output window, operand 1']
    %11 = vsyncpa [#allocation3], 0
    %12 = vsyncpa [#allocation4], 0
    %s13 = scalar_lea.sflag [#allocation4], 1
    %14 = vsyncpa %s13, 0
    loop: start=0, step=1, limit=4
    $region2: #{armbandgnn_forward.1} parent=1 // loop_pre_header
      _
    $region3: #{armbandgnn_forward.1} parent=1 // loop_header
      %s16 = sphi 0, %s20
      %p17 = scmp.ge.s32.totalorder %s16, 4
      %s26 = sphi 0, %s28
      %s29 = sphi 0, %s26
      %s30 = sphi 0, %s29
      %s46 = sphi 0, %s30
      %s50 = sphi 0, %s50
      %s52 = sphi 0, %s50
      %s53 = sphi 0, %s52
      %s67 = sphi 0, %s53
      %s71 = sphi 0, %s71
      %s73 = sphi 0, %s71
      %s74 = sphi 0, %s73
      %s88 = sphi 0, %s74
      %s92 = sphi 0, %s92
      %s94 = sphi 0, %s92
      %s95 = sphi 0, %s94
      %s109 = sphi 0, %s95
      %s115 = sphi 0, %s117
      %s118 = sphi 0, %s115
      %s119 = sphi 0, %s118
      %s135 = sphi 0, %s119
      %s141 = sphi 0, %s143
      %s144 = sphi 0, %s141
      %s145 = sphi 0, %s144
      %s161 = sphi 0, %s145
    $region4: #{armbandgnn_forward.1} parent=1 // loop_header_branch
      %19 = sbr.rel (%p17) target = $region8
    $region5: #{armbandgnn_forward.1} parent=1 // loop_body
      %s21 = ssub.s32 %s16, 1
      %s22 = ssub.s32 %s16, 2
      %s23 = sadd.s32 %s16, 1
      %s24 = ssub.s32 %s16, %s23
      %p25 = scmp.eq.s32.totalorder %s24, 0
      %s27 = sadd.s32 %s26, 1
      %s28 = scalar_select %p25, %s26, %s27
      %p31 = pneg %p25
      %p32 = scmp.eq.s32.totalorder %s16, 1
      %p33 = por %p31, %p32
      %p34 = scmp.ne.s32.totalorder %s26, %s29
      %p35 = scmp.eq.s32.totalorder %s16, 0
      %p36 = por %p34, %p35
      %p37 = scmp.ne.s32.totalorder %s26, %s29
      %p38 = scmp.eq.s32.totalorder %s21, 1
      %p39 = por %p37, %p38
      %p40 = scmp.ne.s32.totalorder %s29, %s30
      %p41 = scmp.eq.s32.totalorder %s21, 0
      %p42 = por %p40, %p41
      %p43 = scmp.ne.s32.totalorder %s29, %s30
      %p44 = scmp.eq.s32.totalorder %s22, 1
      %p45 = por %p43, %p44
      %p47 = scmp.ne.s32.totalorder %s30, %s46
      %p48 = scmp.eq.s32.totalorder %s22, 0
      %p49 = por %p47, %p48
      %s51 = sadd.s32 %s50, 1
      %p54 = scmp.eq.s32.totalorder %s16, 1
      %p55 = scmp.ne.s32.totalorder %s50, %s52
      %p56 = scmp.eq.s32.totalorder %s16, 0
      %p57 = por %p55, %p56
      %p58 = scmp.ne.s32.totalorder %s50, %s52
      %p59 = scmp.eq.s32.totalorder %s21, 1
      %p60 = por %p58, %p59
      %p61 = scmp.ne.s32.totalorder %s52, %s53
      %p62 = scmp.eq.s32.totalorder %s21, 0
      %p63 = por %p61, %p62
      %p64 = scmp.ne.s32.totalorder %s52, %s53
      %p65 = scmp.eq.s32.totalorder %s22, 1
      %p66 = por %p64, %p65
      %p68 = scmp.ne.s32.totalorder %s53, %s67
      %p69 = scmp.eq.s32.totalorder %s22, 0
      %p70 = por %p68, %p69
      %s72 = sadd.s32 %s71, 1
      %p75 = scmp.eq.s32.totalorder %s16, 1
      %p76 = scmp.ne.s32.totalorder %s71, %s73
      %p77 = scmp.eq.s32.totalorder %s16, 0
      %p78 = por %p76, %p77
      %p79 = scmp.ne.s32.totalorder %s71, %s73
      %p80 = scmp.eq.s32.totalorder %s21, 1
      %p81 = por %p79, %p80
      %p82 = scmp.ne.s32.totalorder %s73, %s74
      %p83 = scmp.eq.s32.totalorder %s21, 0
      %p84 = por %p82, %p83
      %p85 = scmp.ne.s32.totalorder %s73, %s74
      %p86 = scmp.eq.s32.totalorder %s22, 1
      %p87 = por %p85, %p86
      %p89 = scmp.ne.s32.totalorder %s74, %s88
      %p90 = scmp.eq.s32.totalorder %s22, 0
      %p91 = por %p89, %p90
      %s93 = sadd.s32 %s92, 1
      %p96 = scmp.eq.s32.totalorder %s16, 1
      %p97 = scmp.ne.s32.totalorder %s92, %s94
      %p98 = scmp.eq.s32.totalorder %s16, 0
      %p99 = por %p97, %p98
      %p100 = scmp.ne.s32.totalorder %s92, %s94
      %p101 = scmp.eq.s32.totalorder %s21, 1
      %p102 = por %p100, %p101
      %p103 = scmp.ne.s32.totalorder %s94, %s95
      %p104 = scmp.eq.s32.totalorder %s21, 0
      %p105 = por %p103, %p104
      %p106 = scmp.ne.s32.totalorder %s94, %s95
      %p107 = scmp.eq.s32.totalorder %s22, 1
      %p108 = por %p106, %p107
      %p110 = scmp.ne.s32.totalorder %s95, %s109
      %p111 = scmp.eq.s32.totalorder %s22, 0
      %p112 = por %p110, %p111
      %s113 = ssub.s32 %s16, %s23
      %p114 = scmp.eq.s32.totalorder %s113, 0
      %s116 = sadd.s32 %s115, 1
      %s117 = scalar_select %p114, %s115, %s116
      %p120 = pneg %p114
      %p121 = scmp.eq.s32.totalorder %s16, 1
      %p122 = por %p120, %p121
      %p123 = scmp.ne.s32.totalorder %s115, %s118
      %p124 = scmp.eq.s32.totalorder %s16, 0
      %p125 = por %p123, %p124
      %p126 = scmp.ne.s32.totalorder %s115, %s118
      %p127 = scmp.eq.s32.totalorder %s21, 1
      %p128 = por %p126, %p127
      %p129 = scmp.ne.s32.totalorder %s118, %s119
      %p130 = scmp.eq.s32.totalorder %s21, 0
      %p131 = por %p129, %p130
      %p132 = scmp.ne.s32.totalorder %s118, %s119
      %p133 = scmp.eq.s32.totalorder %s22, 1
      %p134 = por %p132, %p133
      %p136 = scmp.ne.s32.totalorder %s119, %s135
      %p137 = scmp.eq.s32.totalorder %s22, 0
      %p138 = por %p136, %p137
      %s139 = ssub.s32 %s16, %s23
      %p140 = scmp.eq.s32.totalorder %s139, 0
      %s142 = sadd.s32 %s141, 1
      %s143 = scalar_select %p140, %s141, %s142
      %p146 = pneg %p140
      %p147 = scmp.eq.s32.totalorder %s16, 1
      %p148 = por %p146, %p147
      %p149 = scmp.ne.s32.totalorder %s141, %s144
      %p150 = scmp.eq.s32.totalorder %s16, 0
      %p151 = por %p149, %p150
      %p152 = scmp.ne.s32.totalorder %s141, %s144
      %p153 = scmp.eq.s32.totalorder %s21, 1
      %p154 = por %p152, %p153
      %p155 = scmp.ne.s32.totalorder %s144, %s145
      %p156 = scmp.eq.s32.totalorder %s21, 0
      %p157 = por %p155, %p156
      %p158 = scmp.ne.s32.totalorder %s144, %s145
      %p159 = scmp.eq.s32.totalorder %s22, 1
      %p160 = por %p158, %p159
      %p162 = scmp.ne.s32.totalorder %s145, %s161
      %p163 = scmp.eq.s32.totalorder %s22, 0
      %p164 = por %p162, %p163
      %p165 = scmp.le.s32.totalorder 1, %s16
      %p166 = scmp.lt.s32.totalorder %s16, 3
      %p167 = pnand %p165, %p166
      %p168 = pneg %p167
      // Predicated region
      $region9: #{armbandgnn_forward.1} parent=5 // pred_check
        _
      $region10: #{armbandgnn_forward.1} parent=5 // pred_check_branch
        %170 = sbr.rel (%p167) target = $region12
      $region11: #{armbandgnn_forward.1} parent=5 // pred_region
        %s171 = ssub.s32 %s16, 1
        // Predicated region
        $region13: #{armbandgnn_forward.1} parent=11 // pred_check
          %p172 = pneg %p63
        $region14: #{armbandgnn_forward.1} parent=11 // pred_check_branch
          %174 = sbr.rel (%p172) target = $region16
        $region15: #{armbandgnn_forward.1} parent=11 // pred_region
          %176 = vsyncadd [#allocation3], 0
          %s177 = sshll.u32 %s1, 4
          %s178 = int_to_ptr.hbm [resolvable:$true] %s177
          %s179 = sshll.u32 [#allocation2], 4
          %s180 = int_to_ptr.vmem [resolvable:$true] %s179
          %185 = dma.hbm_to_vmem [thread:$0]  %s178, 12288, %s180, [#allocation3], 128, 128, 8
        $region16: #{armbandgnn_forward.1} parent=11 // pred_fallthru
          _
        // Predicated region
        $region17: #{armbandgnn_forward.1} parent=11 // pred_check
          %p186 = pneg %p84
        $region18: #{armbandgnn_forward.1} parent=11 // pred_check_branch
          %188 = sbr.rel (%p186) target = $region20
        $region19: #{armbandgnn_forward.1} parent=11 // pred_region
          _
        $region20: #{armbandgnn_forward.1} parent=11 // pred_fallthru
          _
        // Predicated region
        $region21: #{armbandgnn_forward.1} parent=11 // pred_check
          %p189 = pneg %p105
        $region22: #{armbandgnn_forward.1} parent=11 // pred_check_branch
          %191 = sbr.rel (%p189) target = $region24
        $region23: #{armbandgnn_forward.1} parent=11 // pred_region
          _
        $region24: #{armbandgnn_forward.1} parent=11 // pred_fallthru
          _
      $region12: #{armbandgnn_forward.1} parent=5 // pred_fallthru
        _
      %p192 = scmp.lt.s32.totalorder %s16, 2
      // Predicated region
      $region25: #{armbandgnn_forward.1} parent=5 // pred_check
        %p193 = pneg %p192
      $region26: #{armbandgnn_forward.1} parent=5 // pred_check_branch
        %195 = sbr.rel (%p193) target = $region28
      $region27: #{armbandgnn_forward.1} parent=5 // pred_region
        // Predicated region
        $region29: #{armbandgnn_forward.1} parent=27 // pred_check
          %p196 = pneg %p36
        $region30: #{armbandgnn_forward.1} parent=27 // pred_check_branch
          %198 = sbr.rel (%p196) target = $region32
        $region31: #{armbandgnn_forward.1} parent=27 // pred_region
          %p199 = scmp.lt.s32.totalorder %s16, 1
          %s200 = scalar_select %p199, %s16, 1
          %s201 = smul.addr %s200, 8
          %s202 = scalar_lea.vmem %s0, %s201
        $region32: #{armbandgnn_forward.1} parent=27 // pred_fallthru
          _
      $region28: #{armbandgnn_forward.1} parent=5 // pred_fallthru
        _
      %p203 = scmp.le.s32.totalorder 1, %s16
      %p204 = scmp.lt.s32.totalorder %s16, 3
      %p205 = pnand %p203, %p204
      %p206 = pneg %p205
      // Predicated region
      $region33: #{armbandgnn_forward.1} parent=5 // pred_check
        _
      $region34: #{armbandgnn_forward.1} parent=5 // pred_check_branch
        %208 = sbr.rel (%p205) target = $region36
      $region35: #{armbandgnn_forward.1} parent=5 // pred_region
        %s209 = ssub.s32 %s16, 1
        // Predicated region
        $region37: #{armbandgnn_forward.1} parent=35 // pred_check
          %p210 = pneg %p63
        $region38: #{armbandgnn_forward.1} parent=35 // pred_check_branch
          %212 = sbr.rel (%p210) target = $region40
        $region39: #{armbandgnn_forward.1} parent=35 // pred_region
          %214 = dma.done [#allocation3], 12288
        $region40: #{armbandgnn_forward.1} parent=35 // pred_fallthru
          _
        %p215 = scmp.lt.s32.totalorder %s21, 1
        %s216 = scalar_select %p215, %s21, 1
        %s217 = smul.addr %s216, 8
        %s218 = scalar_lea.vmem %s0, %s217
        %p219 = pneg %p42
        %p220 = pneg %p39
        %p221 = pneg %p63
        %p222 = pneg %p60
        %p223 = pneg %p84
        %p224 = pneg %p81
        %p225 = pneg %p105
        %p226 = pneg %p102
        %p227 = pneg %p131
        %p228 = pneg %p128
        %p229 = scmp.lt.s32.totalorder %s21, 1
        %s230 = scalar_select %p229, %s21, 1
        %s231 = smul.addr %s230, 8
        %s232 = scalar_lea.vmem %s4, %s231
        %p233 = pneg %p157
        %p234 = pneg %p154
        %s235 = sand.u32 %s144, 1
        %s236 = scalar_lea.sflag [#allocation4], %s235
        %s237 = sand.u32 %s144, 1
        %s238 = smul.addr %s237, 64
        %s239 = scalar_lea.vmem [#allocation5], %s238
        %p240 = scmp.lt.s32.totalorder %s21, 1
        %s241 = scalar_select %p240, %s21, 1
        %s242 = smul.addr %s241, 8
        %s243 = scalar_lea.vmem %s0, %s242
        %p244 = scmp.lt.s32.totalorder %s21, 1
        %s245 = scalar_select %p244, %s21, 1
        %s246 = smul.addr %s245, 8
        %s247 = scalar_lea.vmem %s4, %s246
        %v249 = vlaneseq
        %v250 = vand.u32 %v249, 127
        %v251 = vadd.s32 %v250, 128
        %v252 = vadd.s32 %v250, 256
        %v253 = vadd.s32 %v250, 384
        %v254 = vadd.s32 %v250, 512
        %v255 = vadd.s32 %v250, 640
        %v256 = vadd.s32 %v250, 768
        %v257 = vadd.s32 %v250, 896
        %v258 = vand.u32 %v250, 127
        %v259 = vand.u32 %v251, 127
        %v260 = vand.u32 %v252, 127
        %v261 = vand.u32 %v253, 127
        %v262 = vand.u32 %v254, 127
        %v263 = vand.u32 %v255, 127
        %v264 = vand.u32 %v256, 127
        %v265 = vand.u32 %v257, 127
        %vm266 = vcmp.ge.s32.totalorder %v258, 45
        %vm267 = vcmp.ge.s32.totalorder %v259, 45
        %vm268 = vcmp.ge.s32.totalorder %v260, 45
        %vm269 = vcmp.ge.s32.totalorder %v261, 45
        %vm270 = vcmp.ge.s32.totalorder %v262, 45
        %vm271 = vcmp.ge.s32.totalorder %v263, 45
        %vm272 = vcmp.ge.s32.totalorder %v264, 45
        %vm273 = vcmp.ge.s32.totalorder %v265, 45
        %vm274 = vcmp.ge.s32.totalorder %v258, 36
        %vm275 = vcmp.ge.s32.totalorder %v259, 36
        %vm276 = vcmp.ge.s32.totalorder %v260, 36
        %vm277 = vcmp.ge.s32.totalorder %v261, 36
        %vm278 = vcmp.ge.s32.totalorder %v262, 36
        %vm279 = vcmp.ge.s32.totalorder %v263, 36
        %vm280 = vcmp.ge.s32.totalorder %v264, 36
        %vm281 = vcmp.ge.s32.totalorder %v265, 36
        %vm282 = vcmp.ge.s32.totalorder %v258, 27
        %vm283 = vcmp.ge.s32.totalorder %v259, 27
        %vm284 = vcmp.ge.s32.totalorder %v260, 27
        %vm285 = vcmp.ge.s32.totalorder %v261, 27
        %vm286 = vcmp.ge.s32.totalorder %v262, 27
        %vm287 = vcmp.ge.s32.totalorder %v263, 27
        %vm288 = vcmp.ge.s32.totalorder %v264, 27
        %vm289 = vcmp.ge.s32.totalorder %v265, 27
        %vm290 = vcmp.ge.s32.totalorder %v258, 18
        %vm291 = vcmp.ge.s32.totalorder %v259, 18
        %vm292 = vcmp.ge.s32.totalorder %v260, 18
        %vm293 = vcmp.ge.s32.totalorder %v261, 18
        %vm294 = vcmp.ge.s32.totalorder %v262, 18
        %vm295 = vcmp.ge.s32.totalorder %v263, 18
        %vm296 = vcmp.ge.s32.totalorder %v264, 18
        %vm297 = vcmp.ge.s32.totalorder %v265, 18
        %vm298 = vcmp.ge.s32.totalorder %v258, 9
        %vm299 = vcmp.ge.s32.totalorder %v259, 9
        %vm300 = vcmp.ge.s32.totalorder %v260, 9
        %vm301 = vcmp.ge.s32.totalorder %v261, 9
        %vm302 = vcmp.ge.s32.totalorder %v262, 9
        %vm303 = vcmp.ge.s32.totalorder %v263, 9
        %vm304 = vcmp.ge.s32.totalorder %v264, 9
        %vm305 = vcmp.ge.s32.totalorder %v265, 9
        %vm306 = vcmp.lt.s32.totalorder %v258, 100
        %vm307 = vcmp.lt.s32.totalorder %v259, 100
        %vm308 = vcmp.lt.s32.totalorder %v260, 100
        %vm309 = vcmp.lt.s32.totalorder %v261, 100
        %vm310 = vcmp.lt.s32.totalorder %v262, 100
        %vm311 = vcmp.lt.s32.totalorder %v263, 100
        %vm312 = vcmp.lt.s32.totalorder %v264, 100
        %vm313 = vcmp.lt.s32.totalorder %v265, 100
        %v314 = vld [vmem:[%s243] sm:$0xff]
        %v315 = vld [vmem:[%s2] sm:$0xff]
        %317 = vset.pattern.permute.xlu0 6
        %318 = vperm.xlu0 %317, %v315
        %v319 = vpop.permute.xlu0 %318
        %v322 = vperm.slane %v314, 0
        %v323 = vperm.slane %v314, 1
        %v324 = vperm.slane %v314, 2
        %v325 = vperm.slane %v314, 3
        %v326 = vperm.slane %v314, 4
        %v327 = vperm.slane %v314, 5
        %v328 = vperm.slane %v314, 6
        %v329 = vperm.slane %v314, 7
        %v338 = vmul.f32 %v319, %v322
        %v339 = vmul.f32 %v319, %v323
        %v340 = vmul.f32 %v319, %v324
        %v341 = vmul.f32 %v319, %v325
        %v342 = vmul.f32 %v319, %v326
        %v343 = vmul.f32 %v319, %v327
        %v344 = vmul.f32 %v319, %v328
        %v345 = vmul.f32 %v319, %v329
        %346 = vset.pattern.permute.xlu0 0
        %347 = vperm.xlu0 %346, %v315
        %v348 = vpop.permute.xlu0 %347
        %v350 = vadd.f32 %v338, %v348
        %v351 = vadd.f32 %v339, %v348
        %v352 = vadd.f32 %v340, %v348
        %v353 = vadd.f32 %v341, %v348
        %v354 = vadd.f32 %v342, %v348
        %v355 = vadd.f32 %v343, %v348
        %v356 = vadd.f32 %v344, %v348
        %v357 = vadd.f32 %v345, %v348
        %358 = vset.pattern.permute.xlu0 7
        %359 = vperm.xlu0 %358, %v315
        %v360 = vpop.permute.xlu0 %359
        %v362 = vmul.f32 %v360, %v322
        %v363 = vmul.f32 %v360, %v323
        %v364 = vmul.f32 %v360, %v324
        %v365 = vmul.f32 %v360, %v325
        %v366 = vmul.f32 %v360, %v326
        %v367 = vmul.f32 %v360, %v327
        %v368 = vmul.f32 %v360, %v328
        %v369 = vmul.f32 %v360, %v329
        %370 = vset.pattern.permute.xlu0 1
        %371 = vperm.xlu0 %370, %v315
        %v372 = vpop.permute.xlu0 %371
        %v374 = vadd.f32 %v362, %v372
        %v375 = vadd.f32 %v363, %v372
        %v376 = vadd.f32 %v364, %v372
        %v377 = vadd.f32 %v365, %v372
        %v378 = vadd.f32 %v366, %v372
        %v379 = vadd.f32 %v367, %v372
        %v380 = vadd.f32 %v368, %v372
        %v381 = vadd.f32 %v369, %v372
        %v382 = vadd.f32 %v350, %v374
        %v383 = vadd.f32 %v351, %v375
        %v384 = vadd.f32 %v352, %v376
        %v385 = vadd.f32 %v353, %v377
        %v386 = vadd.f32 %v354, %v378
        %v387 = vadd.f32 %v355, %v379
        %v388 = vadd.f32 %v356, %v380
        %v389 = vadd.f32 %v357, %v381
        %v390 = vmax.f32 %v382, 0.0
        %v391 = vmax.f32 %v383, 0.0
        %v392 = vmax.f32 %v384, 0.0
        %v393 = vmax.f32 %v385, 0.0
        %v394 = vmax.f32 %v386, 0.0
        %v395 = vmax.f32 %v387, 0.0
        %v396 = vmax.f32 %v388, 0.0
        %v397 = vmax.f32 %v389, 0.0
        %s398 = scalar_lea.vmem [#allocation2], 64
        %v399 = vld [vmem:[%s398] sm:$0xf]
        %s400 = scalar_lea.vmem [#allocation2], 128
        %v401 = vld [vmem:[%s400] sm:$0xf]
        %402 = vrot.lane.b32.xlu0 %v390, 45
        %v403 = vpop.permute.xlu0 %402
        %404 = vrot.lane.b32.xlu0 %v391, 45
        %v405 = vpop.permute.xlu0 %404
        %406 = vrot.lane.b32.xlu0 %v392, 45
        %v407 = vpop.permute.xlu0 %406
        %408 = vrot.lane.b32.xlu0 %v393, 45
        %v409 = vpop.permute.xlu0 %408
        %410 = vrot.lane.b32.xlu0 %v394, 45
        %v411 = vpop.permute.xlu0 %410
        %412 = vrot.lane.b32.xlu0 %v395, 45
        %v413 = vpop.permute.xlu0 %412
        %414 = vrot.lane.b32.xlu0 %v396, 45
        %v415 = vpop.permute.xlu0 %414
        %416 = vrot.lane.b32.xlu0 %v397, 45
        %v417 = vpop.permute.xlu0 %416
        %vm418 = vcmp.lt.s32.totalorder %v250, 45
        %v419 = vsel %vm418, %v415, %v417
        %v420 = vsel %vm418, %v413, %v415
        %v421 = vsel %vm418, %v411, %v413
        %v422 = vsel %vm418, %v409, %v411
        %v423 = vsel %vm418, %v407, %v409
        %v424 = vsel %vm418, %v405, %v407
        %v425 = vsel %vm418, %v403, %v405
        %v426 = vsel %vm418, %v417, %v403
        %v427 = vsel %vm266, 1, 0
        %v428 = vsel %vm267, 1, 0
        %v429 = vsel %vm268, 1, 0
        %v430 = vsel %vm269, 1, 0
        %v431 = vsel %vm270, 1, 0
        %v432 = vsel %vm271, 1, 0
        %v433 = vsel %vm272, 1, 0
        %v434 = vsel %vm273, 1, 0
        %vm435 = vcmp.eq.s32.totalorder %v427, 1
        %vm436 = vcmp.eq.s32.totalorder %v428, 1
        %vm437 = vcmp.eq.s32.totalorder %v429, 1
        %vm438 = vcmp.eq.s32.totalorder %v430, 1
        %vm439 = vcmp.eq.s32.totalorder %v431, 1
        %vm440 = vcmp.eq.s32.totalorder %v432, 1
        %vm441 = vcmp.eq.s32.totalorder %v433, 1
        %vm442 = vcmp.eq.s32.totalorder %v434, 1
        %v443 = vsel %vm435, %v426, 0.0
        %v444 = vsel %vm436, %v425, 0.0
        %v445 = vsel %vm437, %v424, 0.0
        %v446 = vsel %vm438, %v423, 0.0
        %v447 = vsel %vm439, %v422, 0.0
        %v448 = vsel %vm440, %v421, 0.0
        %v449 = vsel %vm441, %v420, 0.0
        %v450 = vsel %vm442, %v419, 0.0
        %451 = vrot.lane.b32.xlu0 %v390, 36
        %v452 = vpop.permute.xlu0 %451
        %453 = vrot.lane.b32.xlu0 %v391, 36
        %v454 = vpop.permute.xlu0 %453
        %455 = vrot.lane.b32.xlu0 %v392, 36
        %v456 = vpop.permute.xlu0 %455
        %457 = vrot.lane.b32.xlu0 %v393, 36
        %v458 = vpop.permute.xlu0 %457
        %459 = vrot.lane.b32.xlu0 %v394, 36
        %v460 = vpop.permute.xlu0 %459
        %461 = vrot.lane.b32.xlu0 %v395, 36
        %v462 = vpop.permute.xlu0 %461
        %463 = vrot.lane.b32.xlu0 %v396, 36
        %v464 = vpop.permute.xlu0 %463
        %465 = vrot.lane.b32.xlu0 %v397, 36
        %v466 = vpop.permute.xlu0 %465
        %vm467 = vcmp.lt.s32.totalorder %v250, 36
        %v468 = vsel %vm467, %v464, %v466
        %v469 = vsel %vm467, %v462, %v464
        %v470 = vsel %vm467, %v460, %v462
        %v471 = vsel %vm467, %v458, %v460
        %v472 = vsel %vm467, %v456, %v458
        %v473 = vsel %vm467, %v454, %v456
        %v474 = vsel %vm467, %v452, %v454
        %v475 = vsel %vm467, %v466, %v452
        %v476 = vsel %vm274, 1, 0
        %v477 = vsel %vm275, 1, 0
        %v478 = vsel %vm276, 1, 0
        %v479 = vsel %vm277, 1, 0
        %v480 = vsel %vm278, 1, 0
        %v481 = vsel %vm279, 1, 0
        %v482 = vsel %vm280, 1, 0
        %v483 = vsel %vm281, 1, 0
        %vm484 = vcmp.eq.s32.totalorder %v476, 1
        %vm485 = vcmp.eq.s32.totalorder %v477, 1
        %vm486 = vcmp.eq.s32.totalorder %v478, 1
        %vm487 = vcmp.eq.s32.totalorder %v479, 1
        %vm488 = vcmp.eq.s32.totalorder %v480, 1
        %vm489 = vcmp.eq.s32.totalorder %v481, 1
        %vm490 = vcmp.eq.s32.totalorder %v482, 1
        %vm491 = vcmp.eq.s32.totalorder %v483, 1
        %v492 = vsel %vm484, %v475, 0.0
        %v493 = vsel %vm485, %v474, 0.0
        %v494 = vsel %vm486, %v473, 0.0
        %v495 = vsel %vm487, %v472, 0.0
        %v496 = vsel %vm488, %v471, 0.0
        %v497 = vsel %vm489, %v470, 0.0
        %v498 = vsel %vm490, %v469, 0.0
        %v499 = vsel %vm491, %v468, 0.0
        %500 = vrot.lane.b32.xlu0 %v390, 27
        %v501 = vpop.permute.xlu0 %500
        %502 = vrot.lane.b32.xlu0 %v391, 27
        %v503 = vpop.permute.xlu0 %502
        %504 = vrot.lane.b32.xlu0 %v392, 27
        %v505 = vpop.permute.xlu0 %504
        %506 = vrot.lane.b32.xlu0 %v393, 27
        %v507 = vpop.permute.xlu0 %506
        %508 = vrot.lane.b32.xlu0 %v394, 27
        %v509 = vpop.permute.xlu0 %508
        %510 = vrot.lane.b32.xlu0 %v395, 27
        %v511 = vpop.permute.xlu0 %510
        %512 = vrot.lane.b32.xlu0 %v396, 27
        %v513 = vpop.permute.xlu0 %512
        %514 = vrot.lane.b32.xlu0 %v397, 27
        %v515 = vpop.permute.xlu0 %514
        %vm516 = vcmp.lt.s32.totalorder %v250, 27
        %v517 = vsel %vm516, %v513, %v515
        %v518 = vsel %vm516, %v511, %v513
        %v519 = vsel %vm516, %v509, %v511
        %v520 = vsel %vm516, %v507, %v509
        %v521 = vsel %vm516, %v505, %v507
        %v522 = vsel %vm516, %v503, %v505
        %v523 = vsel %vm516, %v501, %v503
        %v524 = vsel %vm516, %v515, %v501
        %v525 = vsel %vm282, 1, 0
        %v526 = vsel %vm283, 1, 0
        %v527 = vsel %vm284, 1, 0
        %v528 = vsel %vm285, 1, 0
        %v529 = vsel %vm286, 1, 0
        %v530 = vsel %vm287, 1, 0
        %v531 = vsel %vm288, 1, 0
        %v532 = vsel %vm289, 1, 0
        %vm533 = vcmp.eq.s32.totalorder %v525, 1
        %vm534 = vcmp.eq.s32.totalorder %v526, 1
        %vm535 = vcmp.eq.s32.totalorder %v527, 1
        %vm536 = vcmp.eq.s32.totalorder %v528, 1
        %vm537 = vcmp.eq.s32.totalorder %v529, 1
        %vm538 = vcmp.eq.s32.totalorder %v530, 1
        %vm539 = vcmp.eq.s32.totalorder %v531, 1
        %vm540 = vcmp.eq.s32.totalorder %v532, 1
        %v541 = vsel %vm533, %v524, 0.0
        %v542 = vsel %vm534, %v523, 0.0
        %v543 = vsel %vm535, %v522, 0.0
        %v544 = vsel %vm536, %v521, 0.0
        %v545 = vsel %vm537, %v520, 0.0
        %v546 = vsel %vm538, %v519, 0.0
        %v547 = vsel %vm539, %v518, 0.0
        %v548 = vsel %vm540, %v517, 0.0
        %549 = vrot.lane.b32.xlu0 %v390, 18
        %v550 = vpop.permute.xlu0 %549
        %551 = vrot.lane.b32.xlu0 %v391, 18
        %v552 = vpop.permute.xlu0 %551
        %553 = vrot.lane.b32.xlu0 %v392, 18
        %v554 = vpop.permute.xlu0 %553
        %555 = vrot.lane.b32.xlu0 %v393, 18
        %v556 = vpop.permute.xlu0 %555
        %557 = vrot.lane.b32.xlu0 %v394, 18
        %v558 = vpop.permute.xlu0 %557
        %559 = vrot.lane.b32.xlu0 %v395, 18
        %v560 = vpop.permute.xlu0 %559
        %561 = vrot.lane.b32.xlu0 %v396, 18
        %v562 = vpop.permute.xlu0 %561
        %563 = vrot.lane.b32.xlu0 %v397, 18
        %v564 = vpop.permute.xlu0 %563
        %vm565 = vcmp.lt.s32.totalorder %v250, 18
        %v566 = vsel %vm565, %v562, %v564
        %v567 = vsel %vm565, %v560, %v562
        %v568 = vsel %vm565, %v558, %v560
        %v569 = vsel %vm565, %v556, %v558
        %v570 = vsel %vm565, %v554, %v556
        %v571 = vsel %vm565, %v552, %v554
        %v572 = vsel %vm565, %v550, %v552
        %v573 = vsel %vm565, %v564, %v550
        %v574 = vsel %vm290, 1, 0
        %v575 = vsel %vm291, 1, 0
        %v576 = vsel %vm292, 1, 0
        %v577 = vsel %vm293, 1, 0
        %v578 = vsel %vm294, 1, 0
        %v579 = vsel %vm295, 1, 0
        %v580 = vsel %vm296, 1, 0
        %v581 = vsel %vm297, 1, 0
        %vm582 = vcmp.eq.s32.totalorder %v574, 1
        %vm583 = vcmp.eq.s32.totalorder %v575, 1
        %vm584 = vcmp.eq.s32.totalorder %v576, 1
        %vm585 = vcmp.eq.s32.totalorder %v577, 1
        %vm586 = vcmp.eq.s32.totalorder %v578, 1
        %vm587 = vcmp.eq.s32.totalorder %v579, 1
        %vm588 = vcmp.eq.s32.totalorder %v580, 1
        %vm589 = vcmp.eq.s32.totalorder %v581, 1
        %v590 = vsel %vm582, %v573, 0.0
        %v591 = vsel %vm583, %v572, 0.0
        %v592 = vsel %vm584, %v571, 0.0
        %v593 = vsel %vm585, %v570, 0.0
        %v594 = vsel %vm586, %v569, 0.0
        %v595 = vsel %vm587, %v568, 0.0
        %v596 = vsel %vm588, %v567, 0.0
        %v597 = vsel %vm589, %v566, 0.0
        %598 = vrot.lane.b32.xlu0 %v390, 9
        %v599 = vpop.permute.xlu0 %598
        %600 = vrot.lane.b32.xlu0 %v391, 9
        %v601 = vpop.permute.xlu0 %600
        %602 = vrot.lane.b32.xlu0 %v392, 9
        %v603 = vpop.permute.xlu0 %602
        %604 = vrot.lane.b32.xlu0 %v393, 9
        %v605 = vpop.permute.xlu0 %604
        %606 = vrot.lane.b32.xlu0 %v394, 9
        %v607 = vpop.permute.xlu0 %606
        %608 = vrot.lane.b32.xlu0 %v395, 9
        %v609 = vpop.permute.xlu0 %608
        %610 = vrot.lane.b32.xlu0 %v396, 9
        %v611 = vpop.permute.xlu0 %610
        %612 = vrot.lane.b32.xlu0 %v397, 9
        %v613 = vpop.permute.xlu0 %612
        %vm614 = vcmp.lt.s32.totalorder %v250, 9
        %v615 = vsel %vm614, %v611, %v613
        %v616 = vsel %vm614, %v609, %v611
        %v617 = vsel %vm614, %v607, %v609
        %v618 = vsel %vm614, %v605, %v607
        %v619 = vsel %vm614, %v603, %v605
        %v620 = vsel %vm614, %v601, %v603
        %v621 = vsel %vm614, %v599, %v601
        %v622 = vsel %vm614, %v613, %v599
        %v623 = vsel %vm298, 1, 0
        %v624 = vsel %vm299, 1, 0
        %v625 = vsel %vm300, 1, 0
        %v626 = vsel %vm301, 1, 0
        %v627 = vsel %vm302, 1, 0
        %v628 = vsel %vm303, 1, 0
        %v629 = vsel %vm304, 1, 0
        %v630 = vsel %vm305, 1, 0
        %vm631 = vcmp.eq.s32.totalorder %v623, 1
        %vm632 = vcmp.eq.s32.totalorder %v624, 1
        %vm633 = vcmp.eq.s32.totalorder %v625, 1
        %vm634 = vcmp.eq.s32.totalorder %v626, 1
        %vm635 = vcmp.eq.s32.totalorder %v627, 1
        %vm636 = vcmp.eq.s32.totalorder %v628, 1
        %vm637 = vcmp.eq.s32.totalorder %v629, 1
        %vm638 = vcmp.eq.s32.totalorder %v630, 1
        %v639 = vsel %vm631, %v622, 0.0
        %v640 = vsel %vm632, %v621, 0.0
        %v641 = vsel %vm633, %v620, 0.0
        %v642 = vsel %vm634, %v619, 0.0
        %v643 = vsel %vm635, %v618, 0.0
        %v644 = vsel %vm636, %v617, 0.0
        %v645 = vsel %vm637, %v616, 0.0
        %v646 = vsel %vm638, %v615, 0.0
        %v647 = vpack.c.bf16 %v492, %v443
        %v648 = vpack.c.bf16 %v493, %v444
        %v649 = vpack.c.bf16 %v494, %v445
        %v650 = vpack.c.bf16 %v495, %v446
        %v651 = vpack.c.bf16 %v496, %v447
        %v652 = vpack.c.bf16 %v497, %v448
        %v653 = vpack.c.bf16 %v498, %v449
        %v654 = vpack.c.bf16 %v499, %v450
        %v655 = vpack.c.bf16 %v590, %v541
        %v656 = vpack.c.bf16 %v591, %v542
        %v657 = vpack.c.bf16 %v592, %v543
        %v658 = vpack.c.bf16 %v593, %v544
        %v659 = vpack.c.bf16 %v594, %v545
        %v660 = vpack.c.bf16 %v595, %v546
        %v661 = vpack.c.bf16 %v596, %v547
        %v662 = vpack.c.bf16 %v597, %v548
        %v663 = vpack.c.bf16 %v390, %v639
        %v664 = vpack.c.bf16 %v391, %v640
        %v665 = vpack.c.bf16 %v392, %v641
        %v666 = vpack.c.bf16 %v393, %v642
        %v667 = vpack.c.bf16 %v394, %v643
        %v668 = vpack.c.bf16 %v395, %v644
        %v669 = vpack.c.bf16 %v396, %v645
        %v670 = vpack.c.bf16 %v397, %v646
        %671 = vset.pattern.permute.xlu0 2
        %672 = vperm.xlu0 %671, %v315
        %v673 = vpop.permute.xlu0 %672
        %vm675 = vcmask 392192
        %v677 = vsel %vm675, %v399, 0
        %679 = vmatpush.bf16.msra.mxu0 0
        %680 = vmatpush.bf16.msra.mxu0 0
        %681 = vmatpush.bf16.msra.mxu0 0
        %682 = vmatpush.bf16.msra.mxu0 0
        %683 = vmatpush.bf16.msra.mxu0 0
        %684 = vmatpush.bf16.msra.mxu0 %v663
        %685 = vmatpush.bf16.msra.mxu0 %v655
        %686 = vmatpush.bf16.msra.mxu0 %v647
        %687 = vmatmul.bf16.gmra.mxu0 %v677
        %v688 = vpop.f32.mrf.mxu0
        %v689 = vadd.f32 %v673, %v688
        %v690 = vpop.f32.mrf.mxu0
        %691 = vdwg.mxu0
        %692 = vmatpush.bf16.msra.mxu0 0
        %693 = vmatpush.bf16.msra.mxu0 0
        %694 = vmatpush.bf16.msra.mxu0 0
        %695 = vmatpush.bf16.msra.mxu0 0
        %696 = vmatpush.bf16.msra.mxu0 0
        %697 = vmatpush.bf16.msra.mxu0 %v664
        %698 = vmatpush.bf16.msra.mxu0 %v656
        %699 = vmatpush.bf16.msra.mxu0 %v648
        %700 = vmatmul.bf16.gmra.mxu0 %v677
        %v701 = vpop.f32.mrf.mxu0
        %v702 = vadd.f32 %v673, %v701
        %v703 = vpop.f32.mrf.mxu0
        %704 = vdwg.mxu0
        %705 = vmatpush.bf16.msra.mxu0 0
        %706 = vmatpush.bf16.msra.mxu0 0
        %707 = vmatpush.bf16.msra.mxu0 0
        %708 = vmatpush.bf16.msra.mxu0 0
        %709 = vmatpush.bf16.msra.mxu0 0
        %710 = vmatpush.bf16.msra.mxu0 %v665
        %711 = vmatpush.bf16.msra.mxu0 %v657
        %712 = vmatpush.bf16.msra.mxu0 %v649
        %713 = vmatmul.bf16.gmra.mxu0 %v677
        %v714 = vpop.f32.mrf.mxu0
        %v715 = vadd.f32 %v673, %v714
        %v716 = vpop.f32.mrf.mxu0
        %717 = vdwg.mxu0
        %718 = vmatpush.bf16.msra.mxu0 0
        %719 = vmatpush.bf16.msra.mxu0 0
        %720 = vmatpush.bf16.msra.mxu0 0
        %721 = vmatpush.bf16.msra.mxu0 0
        %722 = vmatpush.bf16.msra.mxu0 0
        %723 = vmatpush.bf16.msra.mxu0 %v666
        %724 = vmatpush.bf16.msra.mxu0 %v658
        %725 = vmatpush.bf16.msra.mxu0 %v650
        %726 = vmatmul.bf16.gmra.mxu0 %v677
        %v727 = vpop.f32.mrf.mxu0
        %v728 = vadd.f32 %v673, %v727
        %v729 = vpop.f32.mrf.mxu0
        %730 = vdwg.mxu0
        %731 = vmatpush.bf16.msra.mxu0 0
        %732 = vmatpush.bf16.msra.mxu0 0
        %733 = vmatpush.bf16.msra.mxu0 0
        %734 = vmatpush.bf16.msra.mxu0 0
        %735 = vmatpush.bf16.msra.mxu0 0
        %736 = vmatpush.bf16.msra.mxu0 %v667
        %737 = vmatpush.bf16.msra.mxu0 %v659
        %738 = vmatpush.bf16.msra.mxu0 %v651
        %739 = vmatmul.bf16.gmra.mxu0 %v677
        %v740 = vpop.f32.mrf.mxu0
        %v741 = vadd.f32 %v673, %v740
        %v742 = vpop.f32.mrf.mxu0
        %743 = vdwg.mxu0
        %744 = vmatpush.bf16.msra.mxu0 0
        %745 = vmatpush.bf16.msra.mxu0 0
        %746 = vmatpush.bf16.msra.mxu0 0
        %747 = vmatpush.bf16.msra.mxu0 0
        %748 = vmatpush.bf16.msra.mxu0 0
        %749 = vmatpush.bf16.msra.mxu0 %v668
        %750 = vmatpush.bf16.msra.mxu0 %v660
        %751 = vmatpush.bf16.msra.mxu0 %v652
        %752 = vmatmul.bf16.gmra.mxu0 %v677
        %v753 = vpop.f32.mrf.mxu0
        %v754 = vadd.f32 %v673, %v753
        %v755 = vpop.f32.mrf.mxu0
        %756 = vdwg.mxu0
        %757 = vmatpush.bf16.msra.mxu0 0
        %758 = vmatpush.bf16.msra.mxu0 0
        %759 = vmatpush.bf16.msra.mxu0 0
        %760 = vmatpush.bf16.msra.mxu0 0
        %761 = vmatpush.bf16.msra.mxu0 0
        %762 = vmatpush.bf16.msra.mxu0 %v669
        %763 = vmatpush.bf16.msra.mxu0 %v661
        %764 = vmatpush.bf16.msra.mxu0 %v653
        %765 = vmatmul.bf16.gmra.mxu0 %v677
        %v766 = vpop.f32.mrf.mxu0
        %v767 = vadd.f32 %v673, %v766
        %v768 = vpop.f32.mrf.mxu0
        %769 = vdwg.mxu0
        %770 = vmatpush.bf16.msra.mxu0 0
        %771 = vmatpush.bf16.msra.mxu0 0
        %772 = vmatpush.bf16.msra.mxu0 0
        %773 = vmatpush.bf16.msra.mxu0 0
        %774 = vmatpush.bf16.msra.mxu0 0
        %775 = vmatpush.bf16.msra.mxu0 %v670
        %776 = vmatpush.bf16.msra.mxu0 %v662
        %777 = vmatpush.bf16.msra.mxu0 %v654
        %778 = vmatmul.bf16.gmra.mxu0 %v677
        %v779 = vpop.f32.mrf.mxu0
        %v780 = vadd.f32 %v673, %v779
        %v781 = vpop.f32.mrf.mxu0
        %782 = vdwg.mxu0
        %v783 = vmax.f32 %v689, 0.0
        %v784 = vmax.f32 %v702, 0.0
        %v785 = vmax.f32 %v715, 0.0
        %v786 = vmax.f32 %v728, 0.0
        %v787 = vmax.f32 %v741, 0.0
        %v788 = vmax.f32 %v754, 0.0
        %v789 = vmax.f32 %v767, 0.0
        %v790 = vmax.f32 %v780, 0.0
        %791 = vrot.lane.b32.xlu0 %v783, 45
        %v792 = vpop.permute.xlu0 %791
        %793 = vrot.lane.b32.xlu0 %v784, 45
        %v794 = vpop.permute.xlu0 %793
        %795 = vrot.lane.b32.xlu0 %v785, 45
        %v796 = vpop.permute.xlu0 %795
        %797 = vrot.lane.b32.xlu0 %v786, 45
        %v798 = vpop.permute.xlu0 %797
        %799 = vrot.lane.b32.xlu0 %v787, 45
        %v800 = vpop.permute.xlu0 %799
        %801 = vrot.lane.b32.xlu0 %v788, 45
        %v802 = vpop.permute.xlu0 %801
        %803 = vrot.lane.b32.xlu0 %v789, 45
        %v804 = vpop.permute.xlu0 %803
        %805 = vrot.lane.b32.xlu0 %v790, 45
        %v806 = vpop.permute.xlu0 %805
        %v807 = vsel %vm418, %v804, %v806
        %v808 = vsel %vm418, %v802, %v804
        %v809 = vsel %vm418, %v800, %v802
        %v810 = vsel %vm418, %v798, %v800
        %v811 = vsel %vm418, %v796, %v798
        %v812 = vsel %vm418, %v794, %v796
        %v813 = vsel %vm418, %v792, %v794
        %v814 = vsel %vm418, %v806, %v792
        %v815 = vsel %vm435, %v814, 0.0
        %v816 = vsel %vm436, %v813, 0.0
        %v817 = vsel %vm437, %v812, 0.0
        %v818 = vsel %vm438, %v811, 0.0
        %v819 = vsel %vm439, %v810, 0.0
        %v820 = vsel %vm440, %v809, 0.0
        %v821 = vsel %vm441, %v808, 0.0
        %v822 = vsel %vm442, %v807, 0.0
        %823 = vrot.lane.b32.xlu0 %v783, 36
        %v824 = vpop.permute.xlu0 %823
        %825 = vrot.lane.b32.xlu0 %v784, 36
        %v826 = vpop.permute.xlu0 %825
        %827 = vrot.lane.b32.xlu0 %v785, 36
        %v828 = vpop.permute.xlu0 %827
        %829 = vrot.lane.b32.xlu0 %v786, 36
        %v830 = vpop.permute.xlu0 %829
        %831 = vrot.lane.b32.xlu0 %v787, 36
        %v832 = vpop.permute.xlu0 %831
        %833 = vrot.lane.b32.xlu0 %v788, 36
        %v834 = vpop.permute.xlu0 %833
        %835 = vrot.lane.b32.xlu0 %v789, 36
        %v836 = vpop.permute.xlu0 %835
        %837 = vrot.lane.b32.xlu0 %v790, 36
        %v838 = vpop.permute.xlu0 %837
        %v839 = vsel %vm467, %v836, %v838
        %v840 = vsel %vm467, %v834, %v836
        %v841 = vsel %vm467, %v832, %v834
        %v842 = vsel %vm467, %v830, %v832
        %v843 = vsel %vm467, %v828, %v830
        %v844 = vsel %vm467, %v826, %v828
        %v845 = vsel %vm467, %v824, %v826
        %v846 = vsel %vm467, %v838, %v824
        %v847 = vsel %vm484, %v846, 0.0
        %v848 = vsel %vm485, %v845, 0.0
        %v849 = vsel %vm486, %v844, 0.0
        %v850 = vsel %vm487, %v843, 0.0
        %v851 = vsel %vm488, %v842, 0.0
        %v852 = vsel %vm489, %v841, 0.0
        %v853 = vsel %vm490, %v840, 0.0
        %v854 = vsel %vm491, %v839, 0.0
        %855 = vrot.lane.b32.xlu0 %v783, 27
        %v856 = vpop.permute.xlu0 %855
        %857 = vrot.lane.b32.xlu0 %v784, 27
        %v858 = vpop.permute.xlu0 %857
        %859 = vrot.lane.b32.xlu0 %v785, 27
        %v860 = vpop.permute.xlu0 %859
        %861 = vrot.lane.b32.xlu0 %v786, 27
        %v862 = vpop.permute.xlu0 %861
        %863 = vrot.lane.b32.xlu0 %v787, 27
        %v864 = vpop.permute.xlu0 %863
        %865 = vrot.lane.b32.xlu0 %v788, 27
        %v866 = vpop.permute.xlu0 %865
        %867 = vrot.lane.b32.xlu0 %v789, 27
        %v868 = vpop.permute.xlu0 %867
        %869 = vrot.lane.b32.xlu0 %v790, 27
        %v870 = vpop.permute.xlu0 %869
        %v871 = vsel %vm516, %v868, %v870
        %v872 = vsel %vm516, %v866, %v868
        %v873 = vsel %vm516, %v864, %v866
        %v874 = vsel %vm516, %v862, %v864
        %v875 = vsel %vm516, %v860, %v862
        %v876 = vsel %vm516, %v858, %v860
        %v877 = vsel %vm516, %v856, %v858
        %v878 = vsel %vm516, %v870, %v856
        %v879 = vsel %vm533, %v878, 0.0
        %v880 = vsel %vm534, %v877, 0.0
        %v881 = vsel %vm535, %v876, 0.0
        %v882 = vsel %vm536, %v875, 0.0
        %v883 = vsel %vm537, %v874, 0.0
        %v884 = vsel %vm538, %v873, 0.0
        %v885 = vsel %vm539, %v872, 0.0
        %v886 = vsel %vm540, %v871, 0.0
        %887 = vrot.lane.b32.xlu0 %v783, 18
        %v888 = vpop.permute.xlu0 %887
        %889 = vrot.lane.b32.xlu0 %v784, 18
        %v890 = vpop.permute.xlu0 %889
        %891 = vrot.lane.b32.xlu0 %v785, 18
        %v892 = vpop.permute.xlu0 %891
        %893 = vrot.lane.b32.xlu0 %v786, 18
        %v894 = vpop.permute.xlu0 %893
        %895 = vrot.lane.b32.xlu0 %v787, 18
        %v896 = vpop.permute.xlu0 %895
        %897 = vrot.lane.b32.xlu0 %v788, 18
        %v898 = vpop.permute.xlu0 %897
        %899 = vrot.lane.b32.xlu0 %v789, 18
        %v900 = vpop.permute.xlu0 %899
        %901 = vrot.lane.b32.xlu0 %v790, 18
        %v902 = vpop.permute.xlu0 %901
        %v903 = vsel %vm565, %v900, %v902
        %v904 = vsel %vm565, %v898, %v900
        %v905 = vsel %vm565, %v896, %v898
        %v906 = vsel %vm565, %v894, %v896
        %v907 = vsel %vm565, %v892, %v894
        %v908 = vsel %vm565, %v890, %v892
        %v909 = vsel %vm565, %v888, %v890
        %v910 = vsel %vm565, %v902, %v888
        %v911 = vsel %vm582, %v910, 0.0
        %v912 = vsel %vm583, %v909, 0.0
        %v913 = vsel %vm584, %v908, 0.0
        %v914 = vsel %vm585, %v907, 0.0
        %v915 = vsel %vm586, %v906, 0.0
        %v916 = vsel %vm587, %v905, 0.0
        %v917 = vsel %vm588, %v904, 0.0
        %v918 = vsel %vm589, %v903, 0.0
        %919 = vrot.lane.b32.xlu0 %v783, 9
        %v920 = vpop.permute.xlu0 %919
        %921 = vrot.lane.b32.xlu0 %v784, 9
        %v922 = vpop.permute.xlu0 %921
        %923 = vrot.lane.b32.xlu0 %v785, 9
        %v924 = vpop.permute.xlu0 %923
        %925 = vrot.lane.b32.xlu0 %v786, 9
        %v926 = vpop.permute.xlu0 %925
        %927 = vrot.lane.b32.xlu0 %v787, 9
        %v928 = vpop.permute.xlu0 %927
        %929 = vrot.lane.b32.xlu0 %v788, 9
        %v930 = vpop.permute.xlu0 %929
        %931 = vrot.lane.b32.xlu0 %v789, 9
        %v932 = vpop.permute.xlu0 %931
        %933 = vrot.lane.b32.xlu0 %v790, 9
        %v934 = vpop.permute.xlu0 %933
        %v935 = vsel %vm614, %v932, %v934
        %v936 = vsel %vm614, %v930, %v932
        %v937 = vsel %vm614, %v928, %v930
        %v938 = vsel %vm614, %v926, %v928
        %v939 = vsel %vm614, %v924, %v926
        %v940 = vsel %vm614, %v922, %v924
        %v941 = vsel %vm614, %v920, %v922
        %v942 = vsel %vm614, %v934, %v920
        %v943 = vsel %vm631, %v942, 0.0
        %v944 = vsel %vm632, %v941, 0.0
        %v945 = vsel %vm633, %v940, 0.0
        %v946 = vsel %vm634, %v939, 0.0
        %v947 = vsel %vm635, %v938, 0.0
        %v948 = vsel %vm636, %v937, 0.0
        %v949 = vsel %vm637, %v936, 0.0
        %v950 = vsel %vm638, %v935, 0.0
        %v951 = vpack.c.bf16 %v847, %v815
        %v952 = vpack.c.bf16 %v848, %v816
        %v953 = vpack.c.bf16 %v849, %v817
        %v954 = vpack.c.bf16 %v850, %v818
        %v955 = vpack.c.bf16 %v851, %v819
        %v956 = vpack.c.bf16 %v852, %v820
        %v957 = vpack.c.bf16 %v853, %v821
        %v958 = vpack.c.bf16 %v854, %v822
        %v959 = vpack.c.bf16 %v911, %v879
        %v960 = vpack.c.bf16 %v912, %v880
        %v961 = vpack.c.bf16 %v913, %v881
        %v962 = vpack.c.bf16 %v914, %v882
        %v963 = vpack.c.bf16 %v915, %v883
        %v964 = vpack.c.bf16 %v916, %v884
        %v965 = vpack.c.bf16 %v917, %v885
        %v966 = vpack.c.bf16 %v918, %v886
        %v967 = vpack.c.bf16 %v783, %v943
        %v968 = vpack.c.bf16 %v784, %v944
        %v969 = vpack.c.bf16 %v785, %v945
        %v970 = vpack.c.bf16 %v786, %v946
        %v971 = vpack.c.bf16 %v787, %v947
        %v972 = vpack.c.bf16 %v788, %v948
        %v973 = vpack.c.bf16 %v789, %v949
        %v974 = vpack.c.bf16 %v790, %v950
        %975 = vset.pattern.permute.xlu0 3
        %976 = vperm.xlu0 %975, %v315
        %v977 = vpop.permute.xlu0 %976
        %v980 = vsel %vm675, %v401, 0
        %982 = vmatpush.bf16.msra.mxu0 0
        %983 = vmatpush.bf16.msra.mxu0 0
        %984 = vmatpush.bf16.msra.mxu0 0
        %985 = vmatpush.bf16.msra.mxu0 0
        %986 = vmatpush.bf16.msra.mxu0 0
        %987 = vmatpush.bf16.msra.mxu0 %v967
        %988 = vmatpush.bf16.msra.mxu0 %v959
        %989 = vmatpush.bf16.msra.mxu0 %v951
        %990 = vmatmul.bf16.gmra.mxu0 %v980
        %v991 = vpop.f32.mrf.mxu0
        %v992 = vadd.f32 %v977, %v991
        %v993 = vpop.f32.mrf.mxu0
        %994 = vdwg.mxu0
        %995 = vmatpush.bf16.msra.mxu0 0
        %996 = vmatpush.bf16.msra.mxu0 0
        %997 = vmatpush.bf16.msra.mxu0 0
        %998 = vmatpush.bf16.msra.mxu0 0
        %999 = vmatpush.bf16.msra.mxu0 0
        %1000 = vmatpush.bf16.msra.mxu0 %v968
        %1001 = vmatpush.bf16.msra.mxu0 %v960
        %1002 = vmatpush.bf16.msra.mxu0 %v952
        %1003 = vmatmul.bf16.gmra.mxu0 %v980
        %v1004 = vpop.f32.mrf.mxu0
        %v1005 = vadd.f32 %v977, %v1004
        %v1006 = vpop.f32.mrf.mxu0
        %1007 = vdwg.mxu0
        %1008 = vmatpush.bf16.msra.mxu0 0
        %1009 = vmatpush.bf16.msra.mxu0 0
        %1010 = vmatpush.bf16.msra.mxu0 0
        %1011 = vmatpush.bf16.msra.mxu0 0
        %1012 = vmatpush.bf16.msra.mxu0 0
        %1013 = vmatpush.bf16.msra.mxu0 %v969
        %1014 = vmatpush.bf16.msra.mxu0 %v961
        %1015 = vmatpush.bf16.msra.mxu0 %v953
        %1016 = vmatmul.bf16.gmra.mxu0 %v980
        %v1017 = vpop.f32.mrf.mxu0
        %v1018 = vadd.f32 %v977, %v1017
        %v1019 = vpop.f32.mrf.mxu0
        %1020 = vdwg.mxu0
        %1021 = vmatpush.bf16.msra.mxu0 0
        %1022 = vmatpush.bf16.msra.mxu0 0
        %1023 = vmatpush.bf16.msra.mxu0 0
        %1024 = vmatpush.bf16.msra.mxu0 0
        %1025 = vmatpush.bf16.msra.mxu0 0
        %1026 = vmatpush.bf16.msra.mxu0 %v970
        %1027 = vmatpush.bf16.msra.mxu0 %v962
        %1028 = vmatpush.bf16.msra.mxu0 %v954
        %1029 = vmatmul.bf16.gmra.mxu0 %v980
        %v1030 = vpop.f32.mrf.mxu0
        %v1031 = vadd.f32 %v977, %v1030
        %v1032 = vpop.f32.mrf.mxu0
        %1033 = vdwg.mxu0
        %1034 = vmatpush.bf16.msra.mxu0 0
        %1035 = vmatpush.bf16.msra.mxu0 0
        %1036 = vmatpush.bf16.msra.mxu0 0
        %1037 = vmatpush.bf16.msra.mxu0 0
        %1038 = vmatpush.bf16.msra.mxu0 0
        %1039 = vmatpush.bf16.msra.mxu0 %v971
        %1040 = vmatpush.bf16.msra.mxu0 %v963
        %1041 = vmatpush.bf16.msra.mxu0 %v955
        %1042 = vmatmul.bf16.gmra.mxu0 %v980
        %v1043 = vpop.f32.mrf.mxu0
        %v1044 = vadd.f32 %v977, %v1043
        %v1045 = vpop.f32.mrf.mxu0
        %1046 = vdwg.mxu0
        %1047 = vmatpush.bf16.msra.mxu0 0
        %1048 = vmatpush.bf16.msra.mxu0 0
        %1049 = vmatpush.bf16.msra.mxu0 0
        %1050 = vmatpush.bf16.msra.mxu0 0
        %1051 = vmatpush.bf16.msra.mxu0 0
        %1052 = vmatpush.bf16.msra.mxu0 %v972
        %1053 = vmatpush.bf16.msra.mxu0 %v964
        %1054 = vmatpush.bf16.msra.mxu0 %v956
        %1055 = vmatmul.bf16.gmra.mxu0 %v980
        %v1056 = vpop.f32.mrf.mxu0
        %v1057 = vadd.f32 %v977, %v1056
        %v1058 = vpop.f32.mrf.mxu0
        %1059 = vdwg.mxu0
        %1060 = vmatpush.bf16.msra.mxu0 0
        %1061 = vmatpush.bf16.msra.mxu0 0
        %1062 = vmatpush.bf16.msra.mxu0 0
        %1063 = vmatpush.bf16.msra.mxu0 0
        %1064 = vmatpush.bf16.msra.mxu0 0
        %1065 = vmatpush.bf16.msra.mxu0 %v973
        %1066 = vmatpush.bf16.msra.mxu0 %v965
        %1067 = vmatpush.bf16.msra.mxu0 %v957
        %1068 = vmatmul.bf16.gmra.mxu0 %v980
        %v1069 = vpop.f32.mrf.mxu0
        %v1070 = vadd.f32 %v977, %v1069
        %v1071 = vpop.f32.mrf.mxu0
        %1072 = vdwg.mxu0
        %1073 = vmatpush.bf16.msra.mxu0 0
        %1074 = vmatpush.bf16.msra.mxu0 0
        %1075 = vmatpush.bf16.msra.mxu0 0
        %1076 = vmatpush.bf16.msra.mxu0 0
        %1077 = vmatpush.bf16.msra.mxu0 0
        %1078 = vmatpush.bf16.msra.mxu0 %v974
        %1079 = vmatpush.bf16.msra.mxu0 %v966
        %1080 = vmatpush.bf16.msra.mxu0 %v958
        %1081 = vmatmul.bf16.gmra.mxu0 %v980
        %v1082 = vpop.f32.mrf.mxu0
        %v1083 = vadd.f32 %v977, %v1082
        %v1084 = vpop.f32.mrf.mxu0
        %1085 = vdwg.mxu0
        %v1086 = vmax.f32 %v992, 0.0
        %v1087 = vmax.f32 %v1005, 0.0
        %v1088 = vmax.f32 %v1018, 0.0
        %v1089 = vmax.f32 %v1031, 0.0
        %v1090 = vmax.f32 %v1044, 0.0
        %v1091 = vmax.f32 %v1057, 0.0
        %v1092 = vmax.f32 %v1070, 0.0
        %v1093 = vmax.f32 %v1083, 0.0
        %1094 = vset.pattern.permute.xlu0 4
        %1095 = vperm.xlu0 %1094, %v315
        %v1096 = vpop.permute.xlu0 %1095
        %v1098 = vmul.f32 %v1086, %v1096
        %v1099 = vmul.f32 %v1087, %v1096
        %v1100 = vmul.f32 %v1088, %v1096
        %v1101 = vmul.f32 %v1089, %v1096
        %v1102 = vmul.f32 %v1090, %v1096
        %v1103 = vmul.f32 %v1091, %v1096
        %v1104 = vmul.f32 %v1092, %v1096
        %v1105 = vmul.f32 %v1093, %v1096
        %1106 = vset.pattern.permute.xlu0 5
        %1107 = vperm.xlu0 %1106, %v315
        %v1108 = vpop.permute.xlu0 %1107
        %v1110 = vadd.f32 %v1098, %v1108
        %v1111 = vadd.f32 %v1099, %v1108
        %v1112 = vadd.f32 %v1100, %v1108
        %v1113 = vadd.f32 %v1101, %v1108
        %v1114 = vadd.f32 %v1102, %v1108
        %v1115 = vadd.f32 %v1103, %v1108
        %v1116 = vadd.f32 %v1104, %v1108
        %v1117 = vadd.f32 %v1105, %v1108
        %v1118 = vadd.f32 %v350, %v1110
        %v1119 = vadd.f32 %v351, %v1111
        %v1120 = vadd.f32 %v352, %v1112
        %v1121 = vadd.f32 %v353, %v1113
        %v1122 = vadd.f32 %v354, %v1114
        %v1123 = vadd.f32 %v355, %v1115
        %v1124 = vadd.f32 %v356, %v1116
        %v1125 = vadd.f32 %v357, %v1117
        %v1126 = vmax.f32 %v1118, 0.0
        %v1127 = vmax.f32 %v1119, 0.0
        %v1128 = vmax.f32 %v1120, 0.0
        %v1129 = vmax.f32 %v1121, 0.0
        %v1130 = vmax.f32 %v1122, 0.0
        %v1131 = vmax.f32 %v1123, 0.0
        %v1132 = vmax.f32 %v1124, 0.0
        %v1133 = vmax.f32 %v1125, 0.0
        %s1134 = scalar_lea.vmem %s2, 32
        %v1135 = vld [vmem:[%s1134] sm:$0xff]
        %v1136 = vld [vmem:[%s1134 + $0x8] sm:$0xff]
        %s1137 = scalar_lea.vmem [#allocation2], 192
        %v1138 = vld [vmem:[%s1137] sm:$0xf]
        %v1139 = vld [vmem:[%s1137 + $0x8] sm:$0xf]
        %v1140 = vld [vmem:[%s1137 + $0x10] sm:$0xf]
        %v1141 = vld [vmem:[%s1137 + $0x18] sm:$0xf]
        %v1142 = vpack.c.bf16 %v1126, %v1126
        %v1143 = vpack.c.bf16 %v1127, %v1127
        %v1144 = vpack.c.bf16 %v1128, %v1128
        %v1145 = vpack.c.bf16 %v1129, %v1129
        %v1146 = vpack.c.bf16 %v1130, %v1130
        %v1147 = vpack.c.bf16 %v1131, %v1131
        %v1148 = vpack.c.bf16 %v1132, %v1132
        %v1149 = vpack.c.bf16 %v1133, %v1133
        %v1154 = vunpack.c.l.b16 %v1138
        %v1155 = vunpack.c.l.b16 %v1139
        %v1156 = vunpack.c.l.b16 %v1140
        %v1157 = vunpack.c.l.b16 %v1141
        %v1158 = vpack.c.b16 %v1155, %v1154
        %v1159 = vpack.c.b16 %v1157, %v1156
        %vm1160 = vcmask 64512
        %v1162 = vsel %vm1160, %v1158, 0
        %v1165 = vsel %vm1160, %v1159, 0
        %vm1167 = vcmask 1043456
        %v1169 = vsel %vm1167, %v1142, 0
        %v1172 = vsel %vm1167, %v1143, 0
        %v1175 = vsel %vm1167, %v1144, 0
        %v1178 = vsel %vm1167, %v1145, 0
        %v1181 = vsel %vm1167, %v1146, 0
        %v1184 = vsel %vm1167, %v1147, 0
        %v1187 = vsel %vm1167, %v1148, 0
        %v1190 = vsel %vm1167, %v1149, 0
        %1192 = vmatpush.bf16.msra.mxu0 0
        %1193 = vmatpush.bf16.msra.mxu0 0
        %1194 = vmatpush.bf16.msra.mxu0 0
        %1195 = vmatpush.bf16.msra.mxu0 0
        %1196 = vmatpush.bf16.msra.mxu0 0
        %1197 = vmatpush.bf16.msra.mxu0 0
        %1198 = vmatpush.bf16.msra.mxu0 0
        %1199 = vmatpush.bf16.msra.mxu0 %v1169
        %1200 = vmatmul.bf16.gmra.mxu0 %v1162
        %v1201 = vpop.f32.mrf.mxu0
        %v1202 = vadd.f32 0.0, %v1201
        %v1203 = vpop.f32.mrf.mxu0
        %v1204 = vadd.f32 0.0, %v1203
        %1205 = vmatmul.bf16.gmra.mxu0 %v1165
        %v1206 = vpop.f32.mrf.mxu0
        %v1207 = vadd.f32 0.0, %v1206
        %v1208 = vpop.f32.mrf.mxu0
        %v1209 = vadd.f32 0.0, %v1208
        %1210 = vdwg.mxu0
        %1211 = vmatpush.bf16.msra.mxu0 0
        %1212 = vmatpush.bf16.msra.mxu0 0
        %1213 = vmatpush.bf16.msra.mxu0 0
        %1214 = vmatpush.bf16.msra.mxu0 0
        %1215 = vmatpush.bf16.msra.mxu0 0
        %1216 = vmatpush.bf16.msra.mxu0 0
        %1217 = vmatpush.bf16.msra.mxu0 0
        %1218 = vmatpush.bf16.msra.mxu0 %v1172
        %1219 = vmatmul.bf16.gmra.mxu0 %v1162
        %v1220 = vpop.f32.mrf.mxu0
        %v1221 = vadd.f32 0.0, %v1220
        %v1222 = vpop.f32.mrf.mxu0
        %v1223 = vadd.f32 0.0, %v1222
        %1224 = vmatmul.bf16.gmra.mxu0 %v1165
        %v1225 = vpop.f32.mrf.mxu0
        %v1226 = vadd.f32 0.0, %v1225
        %v1227 = vpop.f32.mrf.mxu0
        %v1228 = vadd.f32 0.0, %v1227
        %1229 = vdwg.mxu0
        %1230 = vmatpush.bf16.msra.mxu0 0
        %1231 = vmatpush.bf16.msra.mxu0 0
        %1232 = vmatpush.bf16.msra.mxu0 0
        %1233 = vmatpush.bf16.msra.mxu0 0
        %1234 = vmatpush.bf16.msra.mxu0 0
        %1235 = vmatpush.bf16.msra.mxu0 0
        %1236 = vmatpush.bf16.msra.mxu0 0
        %1237 = vmatpush.bf16.msra.mxu0 %v1175
        %1238 = vmatmul.bf16.gmra.mxu0 %v1162
        %v1239 = vpop.f32.mrf.mxu0
        %v1240 = vadd.f32 0.0, %v1239
        %v1241 = vpop.f32.mrf.mxu0
        %v1242 = vadd.f32 0.0, %v1241
        %1243 = vmatmul.bf16.gmra.mxu0 %v1165
        %v1244 = vpop.f32.mrf.mxu0
        %v1245 = vadd.f32 0.0, %v1244
        %v1246 = vpop.f32.mrf.mxu0
        %v1247 = vadd.f32 0.0, %v1246
        %1248 = vdwg.mxu0
        %1249 = vmatpush.bf16.msra.mxu0 0
        %1250 = vmatpush.bf16.msra.mxu0 0
        %1251 = vmatpush.bf16.msra.mxu0 0
        %1252 = vmatpush.bf16.msra.mxu0 0
        %1253 = vmatpush.bf16.msra.mxu0 0
        %1254 = vmatpush.bf16.msra.mxu0 0
        %1255 = vmatpush.bf16.msra.mxu0 0
        %1256 = vmatpush.bf16.msra.mxu0 %v1178
        %1257 = vmatmul.bf16.gmra.mxu0 %v1162
        %v1258 = vpop.f32.mrf.mxu0
        %v1259 = vadd.f32 0.0, %v1258
        %v1260 = vpop.f32.mrf.mxu0
        %v1261 = vadd.f32 0.0, %v1260
        %1262 = vmatmul.bf16.gmra.mxu0 %v1165
        %v1263 = vpop.f32.mrf.mxu0
        %v1264 = vadd.f32 0.0, %v1263
        %v1265 = vpop.f32.mrf.mxu0
        %v1266 = vadd.f32 0.0, %v1265
        %1267 = vdwg.mxu0
        %1268 = vmatpush.bf16.msra.mxu0 0
        %1269 = vmatpush.bf16.msra.mxu0 0
        %1270 = vmatpush.bf16.msra.mxu0 0
        %1271 = vmatpush.bf16.msra.mxu0 0
        %1272 = vmatpush.bf16.msra.mxu0 0
        %1273 = vmatpush.bf16.msra.mxu0 0
        %1274 = vmatpush.bf16.msra.mxu0 0
        %1275 = vmatpush.bf16.msra.mxu0 %v1181
        %1276 = vmatmul.bf16.gmra.mxu0 %v1162
        %v1277 = vpop.f32.mrf.mxu0
        %v1278 = vadd.f32 0.0, %v1277
        %v1279 = vpop.f32.mrf.mxu0
        %v1280 = vadd.f32 0.0, %v1279
        %1281 = vmatmul.bf16.gmra.mxu0 %v1165
        %v1282 = vpop.f32.mrf.mxu0
        %v1283 = vadd.f32 0.0, %v1282
        %v1284 = vpop.f32.mrf.mxu0
        %v1285 = vadd.f32 0.0, %v1284
        %1286 = vdwg.mxu0
        %1287 = vmatpush.bf16.msra.mxu0 0
        %1288 = vmatpush.bf16.msra.mxu0 0
        %1289 = vmatpush.bf16.msra.mxu0 0
        %1290 = vmatpush.bf16.msra.mxu0 0
        %1291 = vmatpush.bf16.msra.mxu0 0
        %1292 = vmatpush.bf16.msra.mxu0 0
        %1293 = vmatpush.bf16.msra.mxu0 0
        %1294 = vmatpush.bf16.msra.mxu0 %v1184
        %1295 = vmatmul.bf16.gmra.mxu0 %v1162
        %v1296 = vpop.f32.mrf.mxu0
        %v1297 = vadd.f32 0.0, %v1296
        %v1298 = vpop.f32.mrf.mxu0
        %v1299 = vadd.f32 0.0, %v1298
        %1300 = vmatmul.bf16.gmra.mxu0 %v1165
        %v1301 = vpop.f32.mrf.mxu0
        %v1302 = vadd.f32 0.0, %v1301
        %v1303 = vpop.f32.mrf.mxu0
        %v1304 = vadd.f32 0.0, %v1303
        %1305 = vdwg.mxu0
        %1306 = vmatpush.bf16.msra.mxu0 0
        %1307 = vmatpush.bf16.msra.mxu0 0
        %1308 = vmatpush.bf16.msra.mxu0 0
        %1309 = vmatpush.bf16.msra.mxu0 0
        %1310 = vmatpush.bf16.msra.mxu0 0
        %1311 = vmatpush.bf16.msra.mxu0 0
        %1312 = vmatpush.bf16.msra.mxu0 0
        %1313 = vmatpush.bf16.msra.mxu0 %v1187
        %1314 = vmatmul.bf16.gmra.mxu0 %v1162
        %v1315 = vpop.f32.mrf.mxu0
        %v1316 = vadd.f32 0.0, %v1315
        %v1317 = vpop.f32.mrf.mxu0
        %v1318 = vadd.f32 0.0, %v1317
        %1319 = vmatmul.bf16.gmra.mxu0 %v1165
        %v1320 = vpop.f32.mrf.mxu0
        %v1321 = vadd.f32 0.0, %v1320
        %v1322 = vpop.f32.mrf.mxu0
        %v1323 = vadd.f32 0.0, %v1322
        %1324 = vdwg.mxu0
        %1325 = vmatpush.bf16.msra.mxu0 0
        %1326 = vmatpush.bf16.msra.mxu0 0
        %1327 = vmatpush.bf16.msra.mxu0 0
        %1328 = vmatpush.bf16.msra.mxu0 0
        %1329 = vmatpush.bf16.msra.mxu0 0
        %1330 = vmatpush.bf16.msra.mxu0 0
        %1331 = vmatpush.bf16.msra.mxu0 0
        %1332 = vmatpush.bf16.msra.mxu0 %v1190
        %1333 = vmatmul.bf16.gmra.mxu0 %v1162
        %v1334 = vpop.f32.mrf.mxu0
        %v1335 = vadd.f32 0.0, %v1334
        %v1336 = vpop.f32.mrf.mxu0
        %v1337 = vadd.f32 0.0, %v1336
        %1338 = vmatmul.bf16.gmra.mxu0 %v1165
        %v1339 = vpop.f32.mrf.mxu0
        %v1340 = vadd.f32 0.0, %v1339
        %v1341 = vpop.f32.mrf.mxu0
        %v1342 = vadd.f32 0.0, %v1341
        %1343 = vdwg.mxu0
        %1345 = vset.pattern.permute.xlu0 0
        %1346 = vperm.xlu0 %1345, %v1135
        %v1347 = vpop.permute.xlu0 %1346
        %1350 = vset.pattern.permute.xlu0 0
        %1351 = vperm.xlu0 %1350, %v1136
        %v1352 = vpop.permute.xlu0 %1351
        %v1354 = vadd.f32 %v1202, %v1347
        %v1355 = vadd.f32 %v1221, %v1347
        %v1356 = vadd.f32 %v1240, %v1347
        %v1357 = vadd.f32 %v1259, %v1347
        %v1358 = vadd.f32 %v1278, %v1347
        %v1359 = vadd.f32 %v1297, %v1347
        %v1360 = vadd.f32 %v1316, %v1347
        %v1361 = vadd.f32 %v1335, %v1347
        %v1362 = vadd.f32 %v1204, %v1352
        %v1363 = vadd.f32 %v1223, %v1352
        %v1364 = vadd.f32 %v1242, %v1352
        %v1365 = vadd.f32 %v1261, %v1352
        %v1366 = vadd.f32 %v1280, %v1352
        %v1367 = vadd.f32 %v1299, %v1352
        %v1368 = vadd.f32 %v1318, %v1352
        %v1369 = vadd.f32 %v1337, %v1352
        %1370 = vset.pattern.permute.xlu0 1
        %1371 = vperm.xlu0 %1370, %v1135
        %v1372 = vpop.permute.xlu0 %1371
        %1374 = vset.pattern.permute.xlu0 1
        %1375 = vperm.xlu0 %1374, %v1136
        %v1376 = vpop.permute.xlu0 %1375
        %v1378 = vadd.f32 %v1207, %v1372
        %v1379 = vadd.f32 %v1226, %v1372
        %v1380 = vadd.f32 %v1245, %v1372
        %v1381 = vadd.f32 %v1264, %v1372
        %v1382 = vadd.f32 %v1283, %v1372
        %v1383 = vadd.f32 %v1302, %v1372
        %v1384 = vadd.f32 %v1321, %v1372
        %v1385 = vadd.f32 %v1340, %v1372
        %v1386 = vadd.f32 %v1209, %v1376
        %v1387 = vadd.f32 %v1228, %v1376
        %v1388 = vadd.f32 %v1247, %v1376
        %v1389 = vadd.f32 %v1266, %v1376
        %v1390 = vadd.f32 %v1285, %v1376
        %v1391 = vadd.f32 %v1304, %v1376
        %v1392 = vadd.f32 %v1323, %v1376
        %v1393 = vadd.f32 %v1342, %v1376
        %v1394 = vadd.f32 %v1354, %v1378
        %v1395 = vadd.f32 %v1355, %v1379
        %v1396 = vadd.f32 %v1356, %v1380
        %v1397 = vadd.f32 %v1357, %v1381
        %v1398 = vadd.f32 %v1358, %v1382
        %v1399 = vadd.f32 %v1359, %v1383
        %v1400 = vadd.f32 %v1360, %v1384
        %v1401 = vadd.f32 %v1361, %v1385
        %v1402 = vadd.f32 %v1362, %v1386
        %v1403 = vadd.f32 %v1363, %v1387
        %v1404 = vadd.f32 %v1364, %v1388
        %v1405 = vadd.f32 %v1365, %v1389
        %v1406 = vadd.f32 %v1366, %v1390
        %v1407 = vadd.f32 %v1367, %v1391
        %v1408 = vadd.f32 %v1368, %v1392
        %v1409 = vadd.f32 %v1369, %v1393
        %v1410 = vmax.f32 %v1394, 0.0
        %v1411 = vmax.f32 %v1395, 0.0
        %v1412 = vmax.f32 %v1396, 0.0
        %v1413 = vmax.f32 %v1397, 0.0
        %v1414 = vmax.f32 %v1398, 0.0
        %v1415 = vmax.f32 %v1399, 0.0
        %v1416 = vmax.f32 %v1400, 0.0
        %v1417 = vmax.f32 %v1401, 0.0
        %v1418 = vmax.f32 %v1402, 0.0
        %v1419 = vmax.f32 %v1403, 0.0
        %v1420 = vmax.f32 %v1404, 0.0
        %v1421 = vmax.f32 %v1405, 0.0
        %v1422 = vmax.f32 %v1406, 0.0
        %v1423 = vmax.f32 %v1407, 0.0
        %v1424 = vmax.f32 %v1408, 0.0
        %v1425 = vmax.f32 %v1409, 0.0
        %s1426 = scalar_lea.vmem [#allocation2], 256
        %v1427 = vld [vmem:[%s1426] sm:$0xf]
        %v1428 = vld [vmem:[%s1426 + $0x8] sm:$0xf]
        %s1429 = scalar_lea.vmem [#allocation2], 320
        %v1430 = vld [vmem:[%s1429] sm:$0xf]
        %v1431 = vld [vmem:[%s1429 + $0x8] sm:$0xf]
        %1432 = vrot.lane.b32.xlu0 %v1410, 45
        %v1433 = vpop.permute.xlu0 %1432
        %1434 = vrot.lane.b32.xlu0 %v1418, 45
        %v1435 = vpop.permute.xlu0 %1434
        %1436 = vrot.lane.b32.xlu0 %v1411, 45
        %v1437 = vpop.permute.xlu0 %1436
        %1438 = vrot.lane.b32.xlu0 %v1419, 45
        %v1439 = vpop.permute.xlu0 %1438
        %1440 = vrot.lane.b32.xlu0 %v1412, 45
        %v1441 = vpop.permute.xlu0 %1440
        %1442 = vrot.lane.b32.xlu0 %v1420, 45
        %v1443 = vpop.permute.xlu0 %1442
        %1444 = vrot.lane.b32.xlu0 %v1413, 45
        %v1445 = vpop.permute.xlu0 %1444
        %1446 = vrot.lane.b32.xlu0 %v1421, 45
        %v1447 = vpop.permute.xlu0 %1446
        %1448 = vrot.lane.b32.xlu0 %v1414, 45
        %v1449 = vpop.permute.xlu0 %1448
        %1450 = vrot.lane.b32.xlu0 %v1422, 45
        %v1451 = vpop.permute.xlu0 %1450
        %1452 = vrot.lane.b32.xlu0 %v1415, 45
        %v1453 = vpop.permute.xlu0 %1452
        %1454 = vrot.lane.b32.xlu0 %v1423, 45
        %v1455 = vpop.permute.xlu0 %1454
        %1456 = vrot.lane.b32.xlu0 %v1416, 45
        %v1457 = vpop.permute.xlu0 %1456
        %1458 = vrot.lane.b32.xlu0 %v1424, 45
        %v1459 = vpop.permute.xlu0 %1458
        %1460 = vrot.lane.b32.xlu0 %v1417, 45
        %v1461 = vpop.permute.xlu0 %1460
        %1462 = vrot.lane.b32.xlu0 %v1425, 45
        %v1463 = vpop.permute.xlu0 %1462
        %v1464 = vsel %vm418, %v1457, %v1461
        %v1465 = vsel %vm418, %v1459, %v1463
        %v1466 = vsel %vm418, %v1453, %v1457
        %v1467 = vsel %vm418, %v1455, %v1459
        %v1468 = vsel %vm418, %v1449, %v1453
        %v1469 = vsel %vm418, %v1451, %v1455
        %v1470 = vsel %vm418, %v1445, %v1449
        %v1471 = vsel %vm418, %v1447, %v1451
        %v1472 = vsel %vm418, %v1441, %v1445
        %v1473 = vsel %vm418, %v1443, %v1447
        %v1474 = vsel %vm418, %v1437, %v1441
        %v1475 = vsel %vm418, %v1439, %v1443
        %v1476 = vsel %vm418, %v1433, %v1437
        %v1477 = vsel %vm418, %v1435, %v1439
        %v1478 = vsel %vm418, %v1461, %v1433
        %v1479 = vsel %vm418, %v1463, %v1435
        %v1480 = vsel %vm435, %v1478, 0.0
        %v1481 = vsel %vm436, %v1476, 0.0
        %v1482 = vsel %vm437, %v1474, 0.0
        %v1483 = vsel %vm438, %v1472, 0.0
        %v1484 = vsel %vm439, %v1470, 0.0
        %v1485 = vsel %vm440, %v1468, 0.0
        %v1486 = vsel %vm441, %v1466, 0.0
        %v1487 = vsel %vm442, %v1464, 0.0
        %v1488 = vsel %vm435, %v1479, 0.0
        %v1489 = vsel %vm436, %v1477, 0.0
        %v1490 = vsel %vm437, %v1475, 0.0
        %v1491 = vsel %vm438, %v1473, 0.0
        %v1492 = vsel %vm439, %v1471, 0.0
        %v1493 = vsel %vm440, %v1469, 0.0
        %v1494 = vsel %vm441, %v1467, 0.0
        %v1495 = vsel %vm442, %v1465, 0.0
        %1496 = vrot.lane.b32.xlu0 %v1410, 36
        %v1497 = vpop.permute.xlu0 %1496
        %1498 = vrot.lane.b32.xlu0 %v1418, 36
        %v1499 = vpop.permute.xlu0 %1498
        %1500 = vrot.lane.b32.xlu0 %v1411, 36
        %v1501 = vpop.permute.xlu0 %1500
        %1502 = vrot.lane.b32.xlu0 %v1419, 36
        %v1503 = vpop.permute.xlu0 %1502
        %1504 = vrot.lane.b32.xlu0 %v1412, 36
        %v1505 = vpop.permute.xlu0 %1504
        %1506 = vrot.lane.b32.xlu0 %v1420, 36
        %v1507 = vpop.permute.xlu0 %1506
        %1508 = vrot.lane.b32.xlu0 %v1413, 36
        %v1509 = vpop.permute.xlu0 %1508
        %1510 = vrot.lane.b32.xlu0 %v1421, 36
        %v1511 = vpop.permute.xlu0 %1510
        %1512 = vrot.lane.b32.xlu0 %v1414, 36
        %v1513 = vpop.permute.xlu0 %1512
        %1514 = vrot.lane.b32.xlu0 %v1422, 36
        %v1515 = vpop.permute.xlu0 %1514
        %1516 = vrot.lane.b32.xlu0 %v1415, 36
        %v1517 = vpop.permute.xlu0 %1516
        %1518 = vrot.lane.b32.xlu0 %v1423, 36
        %v1519 = vpop.permute.xlu0 %1518
        %1520 = vrot.lane.b32.xlu0 %v1416, 36
        %v1521 = vpop.permute.xlu0 %1520
        %1522 = vrot.lane.b32.xlu0 %v1424, 36
        %v1523 = vpop.permute.xlu0 %1522
        %1524 = vrot.lane.b32.xlu0 %v1417, 36
        %v1525 = vpop.permute.xlu0 %1524
        %1526 = vrot.lane.b32.xlu0 %v1425, 36
        %v1527 = vpop.permute.xlu0 %1526
        %v1528 = vsel %vm467, %v1521, %v1525
        %v1529 = vsel %vm467, %v1523, %v1527
        %v1530 = vsel %vm467, %v1517, %v1521
        %v1531 = vsel %vm467, %v1519, %v1523
        %v1532 = vsel %vm467, %v1513, %v1517
        %v1533 = vsel %vm467, %v1515, %v1519
        %v1534 = vsel %vm467, %v1509, %v1513
        %v1535 = vsel %vm467, %v1511, %v1515
        %v1536 = vsel %vm467, %v1505, %v1509
        %v1537 = vsel %vm467, %v1507, %v1511
        %v1538 = vsel %vm467, %v1501, %v1505
        %v1539 = vsel %vm467, %v1503, %v1507
        %v1540 = vsel %vm467, %v1497, %v1501
        %v1541 = vsel %vm467, %v1499, %v1503
        %v1542 = vsel %vm467, %v1525, %v1497
        %v1543 = vsel %vm467, %v1527, %v1499
        %v1544 = vsel %vm484, %v1542, 0.0
        %v1545 = vsel %vm485, %v1540, 0.0
        %v1546 = vsel %vm486, %v1538, 0.0
        %v1547 = vsel %vm487, %v1536, 0.0
        %v1548 = vsel %vm488, %v1534, 0.0
        %v1549 = vsel %vm489, %v1532, 0.0
        %v1550 = vsel %vm490, %v1530, 0.0
        %v1551 = vsel %vm491, %v1528, 0.0
        %v1552 = vsel %vm484, %v1543, 0.0
        %v1553 = vsel %vm485, %v1541, 0.0
        %v1554 = vsel %vm486, %v1539, 0.0
        %v1555 = vsel %vm487, %v1537, 0.0
        %v1556 = vsel %vm488, %v1535, 0.0
        %v1557 = vsel %vm489, %v1533, 0.0
        %v1558 = vsel %vm490, %v1531, 0.0
        %v1559 = vsel %vm491, %v1529, 0.0
        %1560 = vrot.lane.b32.xlu0 %v1410, 27
        %v1561 = vpop.permute.xlu0 %1560
        %1562 = vrot.lane.b32.xlu0 %v1418, 27
        %v1563 = vpop.permute.xlu0 %1562
        %1564 = vrot.lane.b32.xlu0 %v1411, 27
        %v1565 = vpop.permute.xlu0 %1564
        %1566 = vrot.lane.b32.xlu0 %v1419, 27
        %v1567 = vpop.permute.xlu0 %1566
        %1568 = vrot.lane.b32.xlu0 %v1412, 27
        %v1569 = vpop.permute.xlu0 %1568
        %1570 = vrot.lane.b32.xlu0 %v1420, 27
        %v1571 = vpop.permute.xlu0 %1570
        %1572 = vrot.lane.b32.xlu0 %v1413, 27
        %v1573 = vpop.permute.xlu0 %1572
        %1574 = vrot.lane.b32.xlu0 %v1421, 27
        %v1575 = vpop.permute.xlu0 %1574
        %1576 = vrot.lane.b32.xlu0 %v1414, 27
        %v1577 = vpop.permute.xlu0 %1576
        %1578 = vrot.lane.b32.xlu0 %v1422, 27
        %v1579 = vpop.permute.xlu0 %1578
        %1580 = vrot.lane.b32.xlu0 %v1415, 27
        %v1581 = vpop.permute.xlu0 %1580
        %1582 = vrot.lane.b32.xlu0 %v1423, 27
        %v1583 = vpop.permute.xlu0 %1582
        %1584 = vrot.lane.b32.xlu0 %v1416, 27
        %v1585 = vpop.permute.xlu0 %1584
        %1586 = vrot.lane.b32.xlu0 %v1424, 27
        %v1587 = vpop.permute.xlu0 %1586
        %1588 = vrot.lane.b32.xlu0 %v1417, 27
        %v1589 = vpop.permute.xlu0 %1588
        %1590 = vrot.lane.b32.xlu0 %v1425, 27
        %v1591 = vpop.permute.xlu0 %1590
        %v1592 = vsel %vm516, %v1585, %v1589
        %v1593 = vsel %vm516, %v1587, %v1591
        %v1594 = vsel %vm516, %v1581, %v1585
        %v1595 = vsel %vm516, %v1583, %v1587
        %v1596 = vsel %vm516, %v1577, %v1581
        %v1597 = vsel %vm516, %v1579, %v1583
        %v1598 = vsel %vm516, %v1573, %v1577
        %v1599 = vsel %vm516, %v1575, %v1579
        %v1600 = vsel %vm516, %v1569, %v1573
        %v1601 = vsel %vm516, %v1571, %v1575
        %v1602 = vsel %vm516, %v1565, %v1569
        %v1603 = vsel %vm516, %v1567, %v1571
        %v1604 = vsel %vm516, %v1561, %v1565
        %v1605 = vsel %vm516, %v1563, %v1567
        %v1606 = vsel %vm516, %v1589, %v1561
        %v1607 = vsel %vm516, %v1591, %v1563
        %v1608 = vsel %vm533, %v1606, 0.0
        %v1609 = vsel %vm534, %v1604, 0.0
        %v1610 = vsel %vm535, %v1602, 0.0
        %v1611 = vsel %vm536, %v1600, 0.0
        %v1612 = vsel %vm537, %v1598, 0.0
        %v1613 = vsel %vm538, %v1596, 0.0
        %v1614 = vsel %vm539, %v1594, 0.0
        %v1615 = vsel %vm540, %v1592, 0.0
        %v1616 = vsel %vm533, %v1607, 0.0
        %v1617 = vsel %vm534, %v1605, 0.0
        %v1618 = vsel %vm535, %v1603, 0.0
        %v1619 = vsel %vm536, %v1601, 0.0
        %v1620 = vsel %vm537, %v1599, 0.0
        %v1621 = vsel %vm538, %v1597, 0.0
        %v1622 = vsel %vm539, %v1595, 0.0
        %v1623 = vsel %vm540, %v1593, 0.0
        %1624 = vrot.lane.b32.xlu0 %v1410, 18
        %v1625 = vpop.permute.xlu0 %1624
        %1626 = vrot.lane.b32.xlu0 %v1418, 18
        %v1627 = vpop.permute.xlu0 %1626
        %1628 = vrot.lane.b32.xlu0 %v1411, 18
        %v1629 = vpop.permute.xlu0 %1628
        %1630 = vrot.lane.b32.xlu0 %v1419, 18
        %v1631 = vpop.permute.xlu0 %1630
        %1632 = vrot.lane.b32.xlu0 %v1412, 18
        %v1633 = vpop.permute.xlu0 %1632
        %1634 = vrot.lane.b32.xlu0 %v1420, 18
        %v1635 = vpop.permute.xlu0 %1634
        %1636 = vrot.lane.b32.xlu0 %v1413, 18
        %v1637 = vpop.permute.xlu0 %1636
        %1638 = vrot.lane.b32.xlu0 %v1421, 18
        %v1639 = vpop.permute.xlu0 %1638
        %1640 = vrot.lane.b32.xlu0 %v1414, 18
        %v1641 = vpop.permute.xlu0 %1640
        %1642 = vrot.lane.b32.xlu0 %v1422, 18
        %v1643 = vpop.permute.xlu0 %1642
        %1644 = vrot.lane.b32.xlu0 %v1415, 18
        %v1645 = vpop.permute.xlu0 %1644
        %1646 = vrot.lane.b32.xlu0 %v1423, 18
        %v1647 = vpop.permute.xlu0 %1646
        %1648 = vrot.lane.b32.xlu0 %v1416, 18
        %v1649 = vpop.permute.xlu0 %1648
        %1650 = vrot.lane.b32.xlu0 %v1424, 18
        %v1651 = vpop.permute.xlu0 %1650
        %1652 = vrot.lane.b32.xlu0 %v1417, 18
        %v1653 = vpop.permute.xlu0 %1652
        %1654 = vrot.lane.b32.xlu0 %v1425, 18
        %v1655 = vpop.permute.xlu0 %1654
        %v1656 = vsel %vm565, %v1649, %v1653
        %v1657 = vsel %vm565, %v1651, %v1655
        %v1658 = vsel %vm565, %v1645, %v1649
        %v1659 = vsel %vm565, %v1647, %v1651
        %v1660 = vsel %vm565, %v1641, %v1645
        %v1661 = vsel %vm565, %v1643, %v1647
        %v1662 = vsel %vm565, %v1637, %v1641
        %v1663 = vsel %vm565, %v1639, %v1643
        %v1664 = vsel %vm565, %v1633, %v1637
        %v1665 = vsel %vm565, %v1635, %v1639
        %v1666 = vsel %vm565, %v1629, %v1633
        %v1667 = vsel %vm565, %v1631, %v1635
        %v1668 = vsel %vm565, %v1625, %v1629
        %v1669 = vsel %vm565, %v1627, %v1631
        %v1670 = vsel %vm565, %v1653, %v1625
        %v1671 = vsel %vm565, %v1655, %v1627
        %v1672 = vsel %vm582, %v1670, 0.0
        %v1673 = vsel %vm583, %v1668, 0.0
        %v1674 = vsel %vm584, %v1666, 0.0
        %v1675 = vsel %vm585, %v1664, 0.0
        %v1676 = vsel %vm586, %v1662, 0.0
        %v1677 = vsel %vm587, %v1660, 0.0
        %v1678 = vsel %vm588, %v1658, 0.0
        %v1679 = vsel %vm589, %v1656, 0.0
        %v1680 = vsel %vm582, %v1671, 0.0
        %v1681 = vsel %vm583, %v1669, 0.0
        %v1682 = vsel %vm584, %v1667, 0.0
        %v1683 = vsel %vm585, %v1665, 0.0
        %v1684 = vsel %vm586, %v1663, 0.0
        %v1685 = vsel %vm587, %v1661, 0.0
        %v1686 = vsel %vm588, %v1659, 0.0
        %v1687 = vsel %vm589, %v1657, 0.0
        %1688 = vrot.lane.b32.xlu0 %v1410, 9
        %v1689 = vpop.permute.xlu0 %1688
        %1690 = vrot.lane.b32.xlu0 %v1418, 9
        %v1691 = vpop.permute.xlu0 %1690
        %1692 = vrot.lane.b32.xlu0 %v1411, 9
        %v1693 = vpop.permute.xlu0 %1692
        %1694 = vrot.lane.b32.xlu0 %v1419, 9
        %v1695 = vpop.permute.xlu0 %1694
        %1696 = vrot.lane.b32.xlu0 %v1412, 9
        %v1697 = vpop.permute.xlu0 %1696
        %1698 = vrot.lane.b32.xlu0 %v1420, 9
        %v1699 = vpop.permute.xlu0 %1698
        %1700 = vrot.lane.b32.xlu0 %v1413, 9
        %v1701 = vpop.permute.xlu0 %1700
        %1702 = vrot.lane.b32.xlu0 %v1421, 9
        %v1703 = vpop.permute.xlu0 %1702
        %1704 = vrot.lane.b32.xlu0 %v1414, 9
        %v1705 = vpop.permute.xlu0 %1704
        %1706 = vrot.lane.b32.xlu0 %v1422, 9
        %v1707 = vpop.permute.xlu0 %1706
        %1708 = vrot.lane.b32.xlu0 %v1415, 9
        %v1709 = vpop.permute.xlu0 %1708
        %1710 = vrot.lane.b32.xlu0 %v1423, 9
        %v1711 = vpop.permute.xlu0 %1710
        %1712 = vrot.lane.b32.xlu0 %v1416, 9
        %v1713 = vpop.permute.xlu0 %1712
        %1714 = vrot.lane.b32.xlu0 %v1424, 9
        %v1715 = vpop.permute.xlu0 %1714
        %1716 = vrot.lane.b32.xlu0 %v1417, 9
        %v1717 = vpop.permute.xlu0 %1716
        %1718 = vrot.lane.b32.xlu0 %v1425, 9
        %v1719 = vpop.permute.xlu0 %1718
        %v1720 = vsel %vm614, %v1713, %v1717
        %v1721 = vsel %vm614, %v1715, %v1719
        %v1722 = vsel %vm614, %v1709, %v1713
        %v1723 = vsel %vm614, %v1711, %v1715
        %v1724 = vsel %vm614, %v1705, %v1709
        %v1725 = vsel %vm614, %v1707, %v1711
        %v1726 = vsel %vm614, %v1701, %v1705
        %v1727 = vsel %vm614, %v1703, %v1707
        %v1728 = vsel %vm614, %v1697, %v1701
        %v1729 = vsel %vm614, %v1699, %v1703
        %v1730 = vsel %vm614, %v1693, %v1697
        %v1731 = vsel %vm614, %v1695, %v1699
        %v1732 = vsel %vm614, %v1689, %v1693
        %v1733 = vsel %vm614, %v1691, %v1695
        %v1734 = vsel %vm614, %v1717, %v1689
        %v1735 = vsel %vm614, %v1719, %v1691
        %v1736 = vsel %vm631, %v1734, 0.0
        %v1737 = vsel %vm632, %v1732, 0.0
        %v1738 = vsel %vm633, %v1730, 0.0
        %v1739 = vsel %vm634, %v1728, 0.0
        %v1740 = vsel %vm635, %v1726, 0.0
        %v1741 = vsel %vm636, %v1724, 0.0
        %v1742 = vsel %vm637, %v1722, 0.0
        %v1743 = vsel %vm638, %v1720, 0.0
        %v1744 = vsel %vm631, %v1735, 0.0
        %v1745 = vsel %vm632, %v1733, 0.0
        %v1746 = vsel %vm633, %v1731, 0.0
        %v1747 = vsel %vm634, %v1729, 0.0
        %v1748 = vsel %vm635, %v1727, 0.0
        %v1749 = vsel %vm636, %v1725, 0.0
        %v1750 = vsel %vm637, %v1723, 0.0
        %v1751 = vsel %vm638, %v1721, 0.0
        %v1752 = vpack.c.bf16 %v1488, %v1480
        %v1753 = vpack.c.bf16 %v1489, %v1481
        %v1754 = vpack.c.bf16 %v1490, %v1482
        %v1755 = vpack.c.bf16 %v1491, %v1483
        %v1756 = vpack.c.bf16 %v1492, %v1484
        %v1757 = vpack.c.bf16 %v1493, %v1485
        %v1758 = vpack.c.bf16 %v1494, %v1486
        %v1759 = vpack.c.bf16 %v1495, %v1487
        %v1760 = vpack.c.bf16 %v1552, %v1544
        %v1761 = vpack.c.bf16 %v1553, %v1545
        %v1762 = vpack.c.bf16 %v1554, %v1546
        %v1763 = vpack.c.bf16 %v1555, %v1547
        %v1764 = vpack.c.bf16 %v1556, %v1548
        %v1765 = vpack.c.bf16 %v1557, %v1549
        %v1766 = vpack.c.bf16 %v1558, %v1550
        %v1767 = vpack.c.bf16 %v1559, %v1551
        %v1768 = vpack.c.bf16 %v1616, %v1608
        %v1769 = vpack.c.bf16 %v1617, %v1609
        %v1770 = vpack.c.bf16 %v1618, %v1610
        %v1771 = vpack.c.bf16 %v1619, %v1611
        %v1772 = vpack.c.bf16 %v1620, %v1612
        %v1773 = vpack.c.bf16 %v1621, %v1613
        %v1774 = vpack.c.bf16 %v1622, %v1614
        %v1775 = vpack.c.bf16 %v1623, %v1615
        %v1776 = vpack.c.bf16 %v1680, %v1672
        %v1777 = vpack.c.bf16 %v1681, %v1673
        %v1778 = vpack.c.bf16 %v1682, %v1674
        %v1779 = vpack.c.bf16 %v1683, %v1675
        %v1780 = vpack.c.bf16 %v1684, %v1676
        %v1781 = vpack.c.bf16 %v1685, %v1677
        %v1782 = vpack.c.bf16 %v1686, %v1678
        %v1783 = vpack.c.bf16 %v1687, %v1679
        %v1784 = vpack.c.bf16 %v1744, %v1736
        %v1785 = vpack.c.bf16 %v1745, %v1737
        %v1786 = vpack.c.bf16 %v1746, %v1738
        %v1787 = vpack.c.bf16 %v1747, %v1739
        %v1788 = vpack.c.bf16 %v1748, %v1740
        %v1789 = vpack.c.bf16 %v1749, %v1741
        %v1790 = vpack.c.bf16 %v1750, %v1742
        %v1791 = vpack.c.bf16 %v1751, %v1743
        %v1792 = vpack.c.bf16 %v1418, %v1410
        %v1793 = vpack.c.bf16 %v1419, %v1411
        %v1794 = vpack.c.bf16 %v1420, %v1412
        %v1795 = vpack.c.bf16 %v1421, %v1413
        %v1796 = vpack.c.bf16 %v1422, %v1414
        %v1797 = vpack.c.bf16 %v1423, %v1415
        %v1798 = vpack.c.bf16 %v1424, %v1416
        %v1799 = vpack.c.bf16 %v1425, %v1417
        %1800 = vset.pattern.permute.xlu0 2
        %1801 = vperm.xlu0 %1800, %v1135
        %v1802 = vpop.permute.xlu0 %1801
        %1804 = vset.pattern.permute.xlu0 2
        %1805 = vperm.xlu0 %1804, %v1136
        %v1806 = vpop.permute.xlu0 %1805
        %v1810 = vunpack.c.l.b16 %v1427
        %v1811 = vunpack.c.l.b16 %v1428
        %v1812 = vpack.c.b16 %v1811, %v1810
        %vm1813 = vcmask 785408
        %v1815 = vsel %vm1813, %v1812, 0
        %1817 = vmatpush.bf16.msra.mxu0 0
        %1818 = vmatpush.bf16.msra.mxu0 0
        %1819 = vmatpush.bf16.msra.mxu0 %v1792
        %1820 = vmatpush.bf16.msra.mxu0 %v1784
        %1821 = vmatpush.bf16.msra.mxu0 %v1776
        %1822 = vmatpush.bf16.msra.mxu0 %v1768
        %1823 = vmatpush.bf16.msra.mxu0 %v1760
        %1824 = vmatpush.bf16.msra.mxu0 %v1752
        %1825 = vmatmul.bf16.gmra.mxu0 %v1815
        %v1826 = vpop.f32.mrf.mxu0
        %v1827 = vadd.f32 %v1802, %v1826
        %v1828 = vpop.f32.mrf.mxu0
        %v1829 = vadd.f32 %v1806, %v1828
        %1830 = vdwg.mxu0
        %1831 = vmatpush.bf16.msra.mxu0 0
        %1832 = vmatpush.bf16.msra.mxu0 0
        %1833 = vmatpush.bf16.msra.mxu0 %v1793
        %1834 = vmatpush.bf16.msra.mxu0 %v1785
        %1835 = vmatpush.bf16.msra.mxu0 %v1777
        %1836 = vmatpush.bf16.msra.mxu0 %v1769
        %1837 = vmatpush.bf16.msra.mxu0 %v1761
        %1838 = vmatpush.bf16.msra.mxu0 %v1753
        %1839 = vmatmul.bf16.gmra.mxu0 %v1815
        %v1840 = vpop.f32.mrf.mxu0
        %v1841 = vadd.f32 %v1802, %v1840
        %v1842 = vpop.f32.mrf.mxu0
        %v1843 = vadd.f32 %v1806, %v1842
        %1844 = vdwg.mxu0
        %1845 = vmatpush.bf16.msra.mxu0 0
        %1846 = vmatpush.bf16.msra.mxu0 0
        %1847 = vmatpush.bf16.msra.mxu0 %v1794
        %1848 = vmatpush.bf16.msra.mxu0 %v1786
        %1849 = vmatpush.bf16.msra.mxu0 %v1778
        %1850 = vmatpush.bf16.msra.mxu0 %v1770
        %1851 = vmatpush.bf16.msra.mxu0 %v1762
        %1852 = vmatpush.bf16.msra.mxu0 %v1754
        %1853 = vmatmul.bf16.gmra.mxu0 %v1815
        %v1854 = vpop.f32.mrf.mxu0
        %v1855 = vadd.f32 %v1802, %v1854
        %v1856 = vpop.f32.mrf.mxu0
        %v1857 = vadd.f32 %v1806, %v1856
        %1858 = vdwg.mxu0
        %1859 = vmatpush.bf16.msra.mxu0 0
        %1860 = vmatpush.bf16.msra.mxu0 0
        %1861 = vmatpush.bf16.msra.mxu0 %v1795
        %1862 = vmatpush.bf16.msra.mxu0 %v1787
        %1863 = vmatpush.bf16.msra.mxu0 %v1779
        %1864 = vmatpush.bf16.msra.mxu0 %v1771
        %1865 = vmatpush.bf16.msra.mxu0 %v1763
        %1866 = vmatpush.bf16.msra.mxu0 %v1755
        %1867 = vmatmul.bf16.gmra.mxu0 %v1815
        %v1868 = vpop.f32.mrf.mxu0
        %v1869 = vadd.f32 %v1802, %v1868
        %v1870 = vpop.f32.mrf.mxu0
        %v1871 = vadd.f32 %v1806, %v1870
        %1872 = vdwg.mxu0
        %1873 = vmatpush.bf16.msra.mxu0 0
        %1874 = vmatpush.bf16.msra.mxu0 0
        %1875 = vmatpush.bf16.msra.mxu0 %v1796
        %1876 = vmatpush.bf16.msra.mxu0 %v1788
        %1877 = vmatpush.bf16.msra.mxu0 %v1780
        %1878 = vmatpush.bf16.msra.mxu0 %v1772
        %1879 = vmatpush.bf16.msra.mxu0 %v1764
        %1880 = vmatpush.bf16.msra.mxu0 %v1756
        %1881 = vmatmul.bf16.gmra.mxu0 %v1815
        %v1882 = vpop.f32.mrf.mxu0
        %v1883 = vadd.f32 %v1802, %v1882
        %v1884 = vpop.f32.mrf.mxu0
        %v1885 = vadd.f32 %v1806, %v1884
        %1886 = vdwg.mxu0
        %1887 = vmatpush.bf16.msra.mxu0 0
        %1888 = vmatpush.bf16.msra.mxu0 0
        %1889 = vmatpush.bf16.msra.mxu0 %v1797
        %1890 = vmatpush.bf16.msra.mxu0 %v1789
        %1891 = vmatpush.bf16.msra.mxu0 %v1781
        %1892 = vmatpush.bf16.msra.mxu0 %v1773
        %1893 = vmatpush.bf16.msra.mxu0 %v1765
        %1894 = vmatpush.bf16.msra.mxu0 %v1757
        %1895 = vmatmul.bf16.gmra.mxu0 %v1815
        %v1896 = vpop.f32.mrf.mxu0
        %v1897 = vadd.f32 %v1802, %v1896
        %v1898 = vpop.f32.mrf.mxu0
        %v1899 = vadd.f32 %v1806, %v1898
        %1900 = vdwg.mxu0
        %1901 = vmatpush.bf16.msra.mxu0 0
        %1902 = vmatpush.bf16.msra.mxu0 0
        %1903 = vmatpush.bf16.msra.mxu0 %v1798
        %1904 = vmatpush.bf16.msra.mxu0 %v1790
        %1905 = vmatpush.bf16.msra.mxu0 %v1782
        %1906 = vmatpush.bf16.msra.mxu0 %v1774
        %1907 = vmatpush.bf16.msra.mxu0 %v1766
        %1908 = vmatpush.bf16.msra.mxu0 %v1758
        %1909 = vmatmul.bf16.gmra.mxu0 %v1815
        %v1910 = vpop.f32.mrf.mxu0
        %v1911 = vadd.f32 %v1802, %v1910
        %v1912 = vpop.f32.mrf.mxu0
        %v1913 = vadd.f32 %v1806, %v1912
        %1914 = vdwg.mxu0
        %1915 = vmatpush.bf16.msra.mxu0 0
        %1916 = vmatpush.bf16.msra.mxu0 0
        %1917 = vmatpush.bf16.msra.mxu0 %v1799
        %1918 = vmatpush.bf16.msra.mxu0 %v1791
        %1919 = vmatpush.bf16.msra.mxu0 %v1783
        %1920 = vmatpush.bf16.msra.mxu0 %v1775
        %1921 = vmatpush.bf16.msra.mxu0 %v1767
        %1922 = vmatpush.bf16.msra.mxu0 %v1759
        %1923 = vmatmul.bf16.gmra.mxu0 %v1815
        %v1924 = vpop.f32.mrf.mxu0
        %v1925 = vadd.f32 %v1802, %v1924
        %v1926 = vpop.f32.mrf.mxu0
        %v1927 = vadd.f32 %v1806, %v1926
        %1928 = vdwg.mxu0
        %v1929 = vmax.f32 %v1827, 0.0
        %v1930 = vmax.f32 %v1841, 0.0
        %v1931 = vmax.f32 %v1855, 0.0
        %v1932 = vmax.f32 %v1869, 0.0
        %v1933 = vmax.f32 %v1883, 0.0
        %v1934 = vmax.f32 %v1897, 0.0
        %v1935 = vmax.f32 %v1911, 0.0
        %v1936 = vmax.f32 %v1925, 0.0
        %v1937 = vmax.f32 %v1829, 0.0
        %v1938 = vmax.f32 %v1843, 0.0
        %v1939 = vmax.f32 %v1857, 0.0
        %v1940 = vmax.f32 %v1871, 0.0
        %v1941 = vmax.f32 %v1885, 0.0
        %v1942 = vmax.f32 %v1899, 0.0
        %v1943 = vmax.f32 %v1913, 0.0
        %v1944 = vmax.f32 %v1927, 0.0
        %1945 = vrot.lane.b32.xlu0 %v1929, 45
        %v1946 = vpop.permute.xlu0 %1945
        %1947 = vrot.lane.b32.xlu0 %v1937, 45
        %v1948 = vpop.permute.xlu0 %1947
        %1949 = vrot.lane.b32.xlu0 %v1930, 45
        %v1950 = vpop.permute.xlu0 %1949
        %1951 = vrot.lane.b32.xlu0 %v1938, 45
        %v1952 = vpop.permute.xlu0 %1951
        %1953 = vrot.lane.b32.xlu0 %v1931, 45
        %v1954 = vpop.permute.xlu0 %1953
        %1955 = vrot.lane.b32.xlu0 %v1939, 45
        %v1956 = vpop.permute.xlu0 %1955
        %1957 = vrot.lane.b32.xlu0 %v1932, 45
        %v1958 = vpop.permute.xlu0 %1957
        %1959 = vrot.lane.b32.xlu0 %v1940, 45
        %v1960 = vpop.permute.xlu0 %1959
        %1961 = vrot.lane.b32.xlu0 %v1933, 45
        %v1962 = vpop.permute.xlu0 %1961
        %1963 = vrot.lane.b32.xlu0 %v1941, 45
        %v1964 = vpop.permute.xlu0 %1963
        %1965 = vrot.lane.b32.xlu0 %v1934, 45
        %v1966 = vpop.permute.xlu0 %1965
        %1967 = vrot.lane.b32.xlu0 %v1942, 45
        %v1968 = vpop.permute.xlu0 %1967
        %1969 = vrot.lane.b32.xlu0 %v1935, 45
        %v1970 = vpop.permute.xlu0 %1969
        %1971 = vrot.lane.b32.xlu0 %v1943, 45
        %v1972 = vpop.permute.xlu0 %1971
        %1973 = vrot.lane.b32.xlu0 %v1936, 45
        %v1974 = vpop.permute.xlu0 %1973
        %1975 = vrot.lane.b32.xlu0 %v1944, 45
        %v1976 = vpop.permute.xlu0 %1975
        %v1977 = vsel %vm418, %v1970, %v1974
        %v1978 = vsel %vm418, %v1972, %v1976
        %v1979 = vsel %vm418, %v1966, %v1970
        %v1980 = vsel %vm418, %v1968, %v1972
        %v1981 = vsel %vm418, %v1962, %v1966
        %v1982 = vsel %vm418, %v1964, %v1968
        %v1983 = vsel %vm418, %v1958, %v1962
        %v1984 = vsel %vm418, %v1960, %v1964
        %v1985 = vsel %vm418, %v1954, %v1958
        %v1986 = vsel %vm418, %v1956, %v1960
        %v1987 = vsel %vm418, %v1950, %v1954
        %v1988 = vsel %vm418, %v1952, %v1956
        %v1989 = vsel %vm418, %v1946, %v1950
        %v1990 = vsel %vm418, %v1948, %v1952
        %v1991 = vsel %vm418, %v1974, %v1946
        %v1992 = vsel %vm418, %v1976, %v1948
        %v1993 = vsel %vm435, %v1991, 0.0
        %v1994 = vsel %vm436, %v1989, 0.0
        %v1995 = vsel %vm437, %v1987, 0.0
        %v1996 = vsel %vm438, %v1985, 0.0
        %v1997 = vsel %vm439, %v1983, 0.0
        %v1998 = vsel %vm440, %v1981, 0.0
        %v1999 = vsel %vm441, %v1979, 0.0
        %v2000 = vsel %vm442, %v1977, 0.0
        %v2001 = vsel %vm435, %v1992, 0.0
        %v2002 = vsel %vm436, %v1990, 0.0
        %v2003 = vsel %vm437, %v1988, 0.0
        %v2004 = vsel %vm438, %v1986, 0.0
        %v2005 = vsel %vm439, %v1984, 0.0
        %v2006 = vsel %vm440, %v1982, 0.0
        %v2007 = vsel %vm441, %v1980, 0.0
        %v2008 = vsel %vm442, %v1978, 0.0
        %2009 = vrot.lane.b32.xlu0 %v1929, 36
        %v2010 = vpop.permute.xlu0 %2009
        %2011 = vrot.lane.b32.xlu0 %v1937, 36
        %v2012 = vpop.permute.xlu0 %2011
        %2013 = vrot.lane.b32.xlu0 %v1930, 36
        %v2014 = vpop.permute.xlu0 %2013
        %2015 = vrot.lane.b32.xlu0 %v1938, 36
        %v2016 = vpop.permute.xlu0 %2015
        %2017 = vrot.lane.b32.xlu0 %v1931, 36
        %v2018 = vpop.permute.xlu0 %2017
        %2019 = vrot.lane.b32.xlu0 %v1939, 36
        %v2020 = vpop.permute.xlu0 %2019
        %2021 = vrot.lane.b32.xlu0 %v1932, 36
        %v2022 = vpop.permute.xlu0 %2021
        %2023 = vrot.lane.b32.xlu0 %v1940, 36
        %v2024 = vpop.permute.xlu0 %2023
        %2025 = vrot.lane.b32.xlu0 %v1933, 36
        %v2026 = vpop.permute.xlu0 %2025
        %2027 = vrot.lane.b32.xlu0 %v1941, 36
        %v2028 = vpop.permute.xlu0 %2027
        %2029 = vrot.lane.b32.xlu0 %v1934, 36
        %v2030 = vpop.permute.xlu0 %2029
        %2031 = vrot.lane.b32.xlu0 %v1942, 36
        %v2032 = vpop.permute.xlu0 %2031
        %2033 = vrot.lane.b32.xlu0 %v1935, 36
        %v2034 = vpop.permute.xlu0 %2033
        %2035 = vrot.lane.b32.xlu0 %v1943, 36
        %v2036 = vpop.permute.xlu0 %2035
        %2037 = vrot.lane.b32.xlu0 %v1936, 36
        %v2038 = vpop.permute.xlu0 %2037
        %2039 = vrot.lane.b32.xlu0 %v1944, 36
        %v2040 = vpop.permute.xlu0 %2039
        %v2041 = vsel %vm467, %v2034, %v2038
        %v2042 = vsel %vm467, %v2036, %v2040
        %v2043 = vsel %vm467, %v2030, %v2034
        %v2044 = vsel %vm467, %v2032, %v2036
        %v2045 = vsel %vm467, %v2026, %v2030
        %v2046 = vsel %vm467, %v2028, %v2032
        %v2047 = vsel %vm467, %v2022, %v2026
        %v2048 = vsel %vm467, %v2024, %v2028
        %v2049 = vsel %vm467, %v2018, %v2022
        %v2050 = vsel %vm467, %v2020, %v2024
        %v2051 = vsel %vm467, %v2014, %v2018
        %v2052 = vsel %vm467, %v2016, %v2020
        %v2053 = vsel %vm467, %v2010, %v2014
        %v2054 = vsel %vm467, %v2012, %v2016
        %v2055 = vsel %vm467, %v2038, %v2010
        %v2056 = vsel %vm467, %v2040, %v2012
        %v2057 = vsel %vm484, %v2055, 0.0
        %v2058 = vsel %vm485, %v2053, 0.0
        %v2059 = vsel %vm486, %v2051, 0.0
        %v2060 = vsel %vm487, %v2049, 0.0
        %v2061 = vsel %vm488, %v2047, 0.0
        %v2062 = vsel %vm489, %v2045, 0.0
        %v2063 = vsel %vm490, %v2043, 0.0
        %v2064 = vsel %vm491, %v2041, 0.0
        %v2065 = vsel %vm484, %v2056, 0.0
        %v2066 = vsel %vm485, %v2054, 0.0
        %v2067 = vsel %vm486, %v2052, 0.0
        %v2068 = vsel %vm487, %v2050, 0.0
        %v2069 = vsel %vm488, %v2048, 0.0
        %v2070 = vsel %vm489, %v2046, 0.0
        %v2071 = vsel %vm490, %v2044, 0.0
        %v2072 = vsel %vm491, %v2042, 0.0
        %2073 = vrot.lane.b32.xlu0 %v1929, 27
        %v2074 = vpop.permute.xlu0 %2073
        %2075 = vrot.lane.b32.xlu0 %v1937, 27
        %v2076 = vpop.permute.xlu0 %2075
        %2077 = vrot.lane.b32.xlu0 %v1930, 27
        %v2078 = vpop.permute.xlu0 %2077
        %2079 = vrot.lane.b32.xlu0 %v1938, 27
        %v2080 = vpop.permute.xlu0 %2079
        %2081 = vrot.lane.b32.xlu0 %v1931, 27
        %v2082 = vpop.permute.xlu0 %2081
        %2083 = vrot.lane.b32.xlu0 %v1939, 27
        %v2084 = vpop.permute.xlu0 %2083
        %2085 = vrot.lane.b32.xlu0 %v1932, 27
        %v2086 = vpop.permute.xlu0 %2085
        %2087 = vrot.lane.b32.xlu0 %v1940, 27
        %v2088 = vpop.permute.xlu0 %2087
        %2089 = vrot.lane.b32.xlu0 %v1933, 27
        %v2090 = vpop.permute.xlu0 %2089
        %2091 = vrot.lane.b32.xlu0 %v1941, 27
        %v2092 = vpop.permute.xlu0 %2091
        %2093 = vrot.lane.b32.xlu0 %v1934, 27
        %v2094 = vpop.permute.xlu0 %2093
        %2095 = vrot.lane.b32.xlu0 %v1942, 27
        %v2096 = vpop.permute.xlu0 %2095
        %2097 = vrot.lane.b32.xlu0 %v1935, 27
        %v2098 = vpop.permute.xlu0 %2097
        %2099 = vrot.lane.b32.xlu0 %v1943, 27
        %v2100 = vpop.permute.xlu0 %2099
        %2101 = vrot.lane.b32.xlu0 %v1936, 27
        %v2102 = vpop.permute.xlu0 %2101
        %2103 = vrot.lane.b32.xlu0 %v1944, 27
        %v2104 = vpop.permute.xlu0 %2103
        %v2105 = vsel %vm516, %v2098, %v2102
        %v2106 = vsel %vm516, %v2100, %v2104
        %v2107 = vsel %vm516, %v2094, %v2098
        %v2108 = vsel %vm516, %v2096, %v2100
        %v2109 = vsel %vm516, %v2090, %v2094
        %v2110 = vsel %vm516, %v2092, %v2096
        %v2111 = vsel %vm516, %v2086, %v2090
        %v2112 = vsel %vm516, %v2088, %v2092
        %v2113 = vsel %vm516, %v2082, %v2086
        %v2114 = vsel %vm516, %v2084, %v2088
        %v2115 = vsel %vm516, %v2078, %v2082
        %v2116 = vsel %vm516, %v2080, %v2084
        %v2117 = vsel %vm516, %v2074, %v2078
        %v2118 = vsel %vm516, %v2076, %v2080
        %v2119 = vsel %vm516, %v2102, %v2074
        %v2120 = vsel %vm516, %v2104, %v2076
        %v2121 = vsel %vm533, %v2119, 0.0
        %v2122 = vsel %vm534, %v2117, 0.0
        %v2123 = vsel %vm535, %v2115, 0.0
        %v2124 = vsel %vm536, %v2113, 0.0
        %v2125 = vsel %vm537, %v2111, 0.0
        %v2126 = vsel %vm538, %v2109, 0.0
        %v2127 = vsel %vm539, %v2107, 0.0
        %v2128 = vsel %vm540, %v2105, 0.0
        %v2129 = vsel %vm533, %v2120, 0.0
        %v2130 = vsel %vm534, %v2118, 0.0
        %v2131 = vsel %vm535, %v2116, 0.0
        %v2132 = vsel %vm536, %v2114, 0.0
        %v2133 = vsel %vm537, %v2112, 0.0
        %v2134 = vsel %vm538, %v2110, 0.0
        %v2135 = vsel %vm539, %v2108, 0.0
        %v2136 = vsel %vm540, %v2106, 0.0
        %2137 = vrot.lane.b32.xlu0 %v1929, 18
        %v2138 = vpop.permute.xlu0 %2137
        %2139 = vrot.lane.b32.xlu0 %v1937, 18
        %v2140 = vpop.permute.xlu0 %2139
        %2141 = vrot.lane.b32.xlu0 %v1930, 18
        %v2142 = vpop.permute.xlu0 %2141
        %2143 = vrot.lane.b32.xlu0 %v1938, 18
        %v2144 = vpop.permute.xlu0 %2143
        %2145 = vrot.lane.b32.xlu0 %v1931, 18
        %v2146 = vpop.permute.xlu0 %2145
        %2147 = vrot.lane.b32.xlu0 %v1939, 18
        %v2148 = vpop.permute.xlu0 %2147
        %2149 = vrot.lane.b32.xlu0 %v1932, 18
        %v2150 = vpop.permute.xlu0 %2149
        %2151 = vrot.lane.b32.xlu0 %v1940, 18
        %v2152 = vpop.permute.xlu0 %2151
        %2153 = vrot.lane.b32.xlu0 %v1933, 18
        %v2154 = vpop.permute.xlu0 %2153
        %2155 = vrot.lane.b32.xlu0 %v1941, 18
        %v2156 = vpop.permute.xlu0 %2155
        %2157 = vrot.lane.b32.xlu0 %v1934, 18
        %v2158 = vpop.permute.xlu0 %2157
        %2159 = vrot.lane.b32.xlu0 %v1942, 18
        %v2160 = vpop.permute.xlu0 %2159
        %2161 = vrot.lane.b32.xlu0 %v1935, 18
        %v2162 = vpop.permute.xlu0 %2161
        %2163 = vrot.lane.b32.xlu0 %v1943, 18
        %v2164 = vpop.permute.xlu0 %2163
        %2165 = vrot.lane.b32.xlu0 %v1936, 18
        %v2166 = vpop.permute.xlu0 %2165
        %2167 = vrot.lane.b32.xlu0 %v1944, 18
        %v2168 = vpop.permute.xlu0 %2167
        %v2169 = vsel %vm565, %v2162, %v2166
        %v2170 = vsel %vm565, %v2164, %v2168
        %v2171 = vsel %vm565, %v2158, %v2162
        %v2172 = vsel %vm565, %v2160, %v2164
        %v2173 = vsel %vm565, %v2154, %v2158
        %v2174 = vsel %vm565, %v2156, %v2160
        %v2175 = vsel %vm565, %v2150, %v2154
        %v2176 = vsel %vm565, %v2152, %v2156
        %v2177 = vsel %vm565, %v2146, %v2150
        %v2178 = vsel %vm565, %v2148, %v2152
        %v2179 = vsel %vm565, %v2142, %v2146
        %v2180 = vsel %vm565, %v2144, %v2148
        %v2181 = vsel %vm565, %v2138, %v2142
        %v2182 = vsel %vm565, %v2140, %v2144
        %v2183 = vsel %vm565, %v2166, %v2138
        %v2184 = vsel %vm565, %v2168, %v2140
        %v2185 = vsel %vm582, %v2183, 0.0
        %v2186 = vsel %vm583, %v2181, 0.0
        %v2187 = vsel %vm584, %v2179, 0.0
        %v2188 = vsel %vm585, %v2177, 0.0
        %v2189 = vsel %vm586, %v2175, 0.0
        %v2190 = vsel %vm587, %v2173, 0.0
        %v2191 = vsel %vm588, %v2171, 0.0
        %v2192 = vsel %vm589, %v2169, 0.0
        %v2193 = vsel %vm582, %v2184, 0.0
        %v2194 = vsel %vm583, %v2182, 0.0
        %v2195 = vsel %vm584, %v2180, 0.0
        %v2196 = vsel %vm585, %v2178, 0.0
        %v2197 = vsel %vm586, %v2176, 0.0
        %v2198 = vsel %vm587, %v2174, 0.0
        %v2199 = vsel %vm588, %v2172, 0.0
        %v2200 = vsel %vm589, %v2170, 0.0
        %2201 = vrot.lane.b32.xlu0 %v1929, 9
        %v2202 = vpop.permute.xlu0 %2201
        %2203 = vrot.lane.b32.xlu0 %v1937, 9
        %v2204 = vpop.permute.xlu0 %2203
        %2205 = vrot.lane.b32.xlu0 %v1930, 9
        %v2206 = vpop.permute.xlu0 %2205
        %2207 = vrot.lane.b32.xlu0 %v1938, 9
        %v2208 = vpop.permute.xlu0 %2207
        %2209 = vrot.lane.b32.xlu0 %v1931, 9
        %v2210 = vpop.permute.xlu0 %2209
        %2211 = vrot.lane.b32.xlu0 %v1939, 9
        %v2212 = vpop.permute.xlu0 %2211
        %2213 = vrot.lane.b32.xlu0 %v1932, 9
        %v2214 = vpop.permute.xlu0 %2213
        %2215 = vrot.lane.b32.xlu0 %v1940, 9
        %v2216 = vpop.permute.xlu0 %2215
        %2217 = vrot.lane.b32.xlu0 %v1933, 9
        %v2218 = vpop.permute.xlu0 %2217
        %2219 = vrot.lane.b32.xlu0 %v1941, 9
        %v2220 = vpop.permute.xlu0 %2219
        %2221 = vrot.lane.b32.xlu0 %v1934, 9
        %v2222 = vpop.permute.xlu0 %2221
        %2223 = vrot.lane.b32.xlu0 %v1942, 9
        %v2224 = vpop.permute.xlu0 %2223
        %2225 = vrot.lane.b32.xlu0 %v1935, 9
        %v2226 = vpop.permute.xlu0 %2225
        %2227 = vrot.lane.b32.xlu0 %v1943, 9
        %v2228 = vpop.permute.xlu0 %2227
        %2229 = vrot.lane.b32.xlu0 %v1936, 9
        %v2230 = vpop.permute.xlu0 %2229
        %2231 = vrot.lane.b32.xlu0 %v1944, 9
        %v2232 = vpop.permute.xlu0 %2231
        %v2233 = vsel %vm614, %v2226, %v2230
        %v2234 = vsel %vm614, %v2228, %v2232
        %v2235 = vsel %vm614, %v2222, %v2226
        %v2236 = vsel %vm614, %v2224, %v2228
        %v2237 = vsel %vm614, %v2218, %v2222
        %v2238 = vsel %vm614, %v2220, %v2224
        %v2239 = vsel %vm614, %v2214, %v2218
        %v2240 = vsel %vm614, %v2216, %v2220
        %v2241 = vsel %vm614, %v2210, %v2214
        %v2242 = vsel %vm614, %v2212, %v2216
        %v2243 = vsel %vm614, %v2206, %v2210
        %v2244 = vsel %vm614, %v2208, %v2212
        %v2245 = vsel %vm614, %v2202, %v2206
        %v2246 = vsel %vm614, %v2204, %v2208
        %v2247 = vsel %vm614, %v2230, %v2202
        %v2248 = vsel %vm614, %v2232, %v2204
        %v2249 = vsel %vm631, %v2247, 0.0
        %v2250 = vsel %vm632, %v2245, 0.0
        %v2251 = vsel %vm633, %v2243, 0.0
        %v2252 = vsel %vm634, %v2241, 0.0
        %v2253 = vsel %vm635, %v2239, 0.0
        %v2254 = vsel %vm636, %v2237, 0.0
        %v2255 = vsel %vm637, %v2235, 0.0
        %v2256 = vsel %vm638, %v2233, 0.0
        %v2257 = vsel %vm631, %v2248, 0.0
        %v2258 = vsel %vm632, %v2246, 0.0
        %v2259 = vsel %vm633, %v2244, 0.0
        %v2260 = vsel %vm634, %v2242, 0.0
        %v2261 = vsel %vm635, %v2240, 0.0
        %v2262 = vsel %vm636, %v2238, 0.0
        %v2263 = vsel %vm637, %v2236, 0.0
        %v2264 = vsel %vm638, %v2234, 0.0
        %v2265 = vpack.c.bf16 %v2001, %v1993
        %v2266 = vpack.c.bf16 %v2002, %v1994
        %v2267 = vpack.c.bf16 %v2003, %v1995
        %v2268 = vpack.c.bf16 %v2004, %v1996
        %v2269 = vpack.c.bf16 %v2005, %v1997
        %v2270 = vpack.c.bf16 %v2006, %v1998
        %v2271 = vpack.c.bf16 %v2007, %v1999
        %v2272 = vpack.c.bf16 %v2008, %v2000
        %v2273 = vpack.c.bf16 %v2065, %v2057
        %v2274 = vpack.c.bf16 %v2066, %v2058
        %v2275 = vpack.c.bf16 %v2067, %v2059
        %v2276 = vpack.c.bf16 %v2068, %v2060
        %v2277 = vpack.c.bf16 %v2069, %v2061
        %v2278 = vpack.c.bf16 %v2070, %v2062
        %v2279 = vpack.c.bf16 %v2071, %v2063
        %v2280 = vpack.c.bf16 %v2072, %v2064
        %v2281 = vpack.c.bf16 %v2129, %v2121
        %v2282 = vpack.c.bf16 %v2130, %v2122
        %v2283 = vpack.c.bf16 %v2131, %v2123
        %v2284 = vpack.c.bf16 %v2132, %v2124
        %v2285 = vpack.c.bf16 %v2133, %v2125
        %v2286 = vpack.c.bf16 %v2134, %v2126
        %v2287 = vpack.c.bf16 %v2135, %v2127
        %v2288 = vpack.c.bf16 %v2136, %v2128
        %v2289 = vpack.c.bf16 %v2193, %v2185
        %v2290 = vpack.c.bf16 %v2194, %v2186
        %v2291 = vpack.c.bf16 %v2195, %v2187
        %v2292 = vpack.c.bf16 %v2196, %v2188
        %v2293 = vpack.c.bf16 %v2197, %v2189
        %v2294 = vpack.c.bf16 %v2198, %v2190
        %v2295 = vpack.c.bf16 %v2199, %v2191
        %v2296 = vpack.c.bf16 %v2200, %v2192
        %v2297 = vpack.c.bf16 %v2257, %v2249
        %v2298 = vpack.c.bf16 %v2258, %v2250
        %v2299 = vpack.c.bf16 %v2259, %v2251
        %v2300 = vpack.c.bf16 %v2260, %v2252
        %v2301 = vpack.c.bf16 %v2261, %v2253
        %v2302 = vpack.c.bf16 %v2262, %v2254
        %v2303 = vpack.c.bf16 %v2263, %v2255
        %v2304 = vpack.c.bf16 %v2264, %v2256
        %v2305 = vpack.c.bf16 %v1937, %v1929
        %v2306 = vpack.c.bf16 %v1938, %v1930
        %v2307 = vpack.c.bf16 %v1939, %v1931
        %v2308 = vpack.c.bf16 %v1940, %v1932
        %v2309 = vpack.c.bf16 %v1941, %v1933
        %v2310 = vpack.c.bf16 %v1942, %v1934
        %v2311 = vpack.c.bf16 %v1943, %v1935
        %v2312 = vpack.c.bf16 %v1944, %v1936
        %2313 = vset.pattern.permute.xlu0 3
        %2314 = vperm.xlu0 %2313, %v1135
        %v2315 = vpop.permute.xlu0 %2314
        %2317 = vset.pattern.permute.xlu0 3
        %2318 = vperm.xlu0 %2317, %v1136
        %v2319 = vpop.permute.xlu0 %2318
        %v2323 = vunpack.c.l.b16 %v1430
        %v2324 = vunpack.c.l.b16 %v1431
        %v2325 = vpack.c.b16 %v2324, %v2323
        %v2327 = vsel %vm1813, %v2325, 0
        %2329 = vmatpush.bf16.msra.mxu0 0
        %2330 = vmatpush.bf16.msra.mxu0 0
        %2331 = vmatpush.bf16.msra.mxu0 %v2305
        %2332 = vmatpush.bf16.msra.mxu0 %v2297
        %2333 = vmatpush.bf16.msra.mxu0 %v2289
        %2334 = vmatpush.bf16.msra.mxu0 %v2281
        %2335 = vmatpush.bf16.msra.mxu0 %v2273
        %2336 = vmatpush.bf16.msra.mxu0 %v2265
        %2337 = vmatmul.bf16.gmra.mxu0 %v2327
        %v2338 = vpop.f32.mrf.mxu0
        %v2339 = vadd.f32 %v2315, %v2338
        %v2340 = vpop.f32.mrf.mxu0
        %v2341 = vadd.f32 %v2319, %v2340
        %2342 = vdwg.mxu0
        %2343 = vmatpush.bf16.msra.mxu0 0
        %2344 = vmatpush.bf16.msra.mxu0 0
        %2345 = vmatpush.bf16.msra.mxu0 %v2306
        %2346 = vmatpush.bf16.msra.mxu0 %v2298
        %2347 = vmatpush.bf16.msra.mxu0 %v2290
        %2348 = vmatpush.bf16.msra.mxu0 %v2282
        %2349 = vmatpush.bf16.msra.mxu0 %v2274
        %2350 = vmatpush.bf16.msra.mxu0 %v2266
        %2351 = vmatmul.bf16.gmra.mxu0 %v2327
        %v2352 = vpop.f32.mrf.mxu0
        %v2353 = vadd.f32 %v2315, %v2352
        %v2354 = vpop.f32.mrf.mxu0
        %v2355 = vadd.f32 %v2319, %v2354
        %2356 = vdwg.mxu0
        %2357 = vmatpush.bf16.msra.mxu0 0
        %2358 = vmatpush.bf16.msra.mxu0 0
        %2359 = vmatpush.bf16.msra.mxu0 %v2307
        %2360 = vmatpush.bf16.msra.mxu0 %v2299
        %2361 = vmatpush.bf16.msra.mxu0 %v2291
        %2362 = vmatpush.bf16.msra.mxu0 %v2283
        %2363 = vmatpush.bf16.msra.mxu0 %v2275
        %2364 = vmatpush.bf16.msra.mxu0 %v2267
        %2365 = vmatmul.bf16.gmra.mxu0 %v2327
        %v2366 = vpop.f32.mrf.mxu0
        %v2367 = vadd.f32 %v2315, %v2366
        %v2368 = vpop.f32.mrf.mxu0
        %v2369 = vadd.f32 %v2319, %v2368
        %2370 = vdwg.mxu0
        %2371 = vmatpush.bf16.msra.mxu0 0
        %2372 = vmatpush.bf16.msra.mxu0 0
        %2373 = vmatpush.bf16.msra.mxu0 %v2308
        %2374 = vmatpush.bf16.msra.mxu0 %v2300
        %2375 = vmatpush.bf16.msra.mxu0 %v2292
        %2376 = vmatpush.bf16.msra.mxu0 %v2284
        %2377 = vmatpush.bf16.msra.mxu0 %v2276
        %2378 = vmatpush.bf16.msra.mxu0 %v2268
        %2379 = vmatmul.bf16.gmra.mxu0 %v2327
        %v2380 = vpop.f32.mrf.mxu0
        %v2381 = vadd.f32 %v2315, %v2380
        %v2382 = vpop.f32.mrf.mxu0
        %v2383 = vadd.f32 %v2319, %v2382
        %2384 = vdwg.mxu0
        %2385 = vmatpush.bf16.msra.mxu0 0
        %2386 = vmatpush.bf16.msra.mxu0 0
        %2387 = vmatpush.bf16.msra.mxu0 %v2309
        %2388 = vmatpush.bf16.msra.mxu0 %v2301
        %2389 = vmatpush.bf16.msra.mxu0 %v2293
        %2390 = vmatpush.bf16.msra.mxu0 %v2285
        %2391 = vmatpush.bf16.msra.mxu0 %v2277
        %2392 = vmatpush.bf16.msra.mxu0 %v2269
        %2393 = vmatmul.bf16.gmra.mxu0 %v2327
        %v2394 = vpop.f32.mrf.mxu0
        %v2395 = vadd.f32 %v2315, %v2394
        %v2396 = vpop.f32.mrf.mxu0
        %v2397 = vadd.f32 %v2319, %v2396
        %2398 = vdwg.mxu0
        %2399 = vmatpush.bf16.msra.mxu0 0
        %2400 = vmatpush.bf16.msra.mxu0 0
        %2401 = vmatpush.bf16.msra.mxu0 %v2310
        %2402 = vmatpush.bf16.msra.mxu0 %v2302
        %2403 = vmatpush.bf16.msra.mxu0 %v2294
        %2404 = vmatpush.bf16.msra.mxu0 %v2286
        %2405 = vmatpush.bf16.msra.mxu0 %v2278
        %2406 = vmatpush.bf16.msra.mxu0 %v2270
        %2407 = vmatmul.bf16.gmra.mxu0 %v2327
        %v2408 = vpop.f32.mrf.mxu0
        %v2409 = vadd.f32 %v2315, %v2408
        %v2410 = vpop.f32.mrf.mxu0
        %v2411 = vadd.f32 %v2319, %v2410
        %2412 = vdwg.mxu0
        %2413 = vmatpush.bf16.msra.mxu0 0
        %2414 = vmatpush.bf16.msra.mxu0 0
        %2415 = vmatpush.bf16.msra.mxu0 %v2311
        %2416 = vmatpush.bf16.msra.mxu0 %v2303
        %2417 = vmatpush.bf16.msra.mxu0 %v2295
        %2418 = vmatpush.bf16.msra.mxu0 %v2287
        %2419 = vmatpush.bf16.msra.mxu0 %v2279
        %2420 = vmatpush.bf16.msra.mxu0 %v2271
        %2421 = vmatmul.bf16.gmra.mxu0 %v2327
        %v2422 = vpop.f32.mrf.mxu0
        %v2423 = vadd.f32 %v2315, %v2422
        %v2424 = vpop.f32.mrf.mxu0
        %v2425 = vadd.f32 %v2319, %v2424
        %2426 = vdwg.mxu0
        %2427 = vmatpush.bf16.msra.mxu0 0
        %2428 = vmatpush.bf16.msra.mxu0 0
        %2429 = vmatpush.bf16.msra.mxu0 %v2312
        %2430 = vmatpush.bf16.msra.mxu0 %v2304
        %2431 = vmatpush.bf16.msra.mxu0 %v2296
        %2432 = vmatpush.bf16.msra.mxu0 %v2288
        %2433 = vmatpush.bf16.msra.mxu0 %v2280
        %2434 = vmatpush.bf16.msra.mxu0 %v2272
        %2435 = vmatmul.bf16.gmra.mxu0 %v2327
        %v2436 = vpop.f32.mrf.mxu0
        %v2437 = vadd.f32 %v2315, %v2436
        %v2438 = vpop.f32.mrf.mxu0
        %v2439 = vadd.f32 %v2319, %v2438
        %2440 = vdwg.mxu0
        %v2441 = vmax.f32 %v2339, 0.0
        %v2442 = vmax.f32 %v2353, 0.0
        %v2443 = vmax.f32 %v2367, 0.0
        %v2444 = vmax.f32 %v2381, 0.0
        %v2445 = vmax.f32 %v2395, 0.0
        %v2446 = vmax.f32 %v2409, 0.0
        %v2447 = vmax.f32 %v2423, 0.0
        %v2448 = vmax.f32 %v2437, 0.0
        %v2449 = vmax.f32 %v2341, 0.0
        %v2450 = vmax.f32 %v2355, 0.0
        %v2451 = vmax.f32 %v2369, 0.0
        %v2452 = vmax.f32 %v2383, 0.0
        %v2453 = vmax.f32 %v2397, 0.0
        %v2454 = vmax.f32 %v2411, 0.0
        %v2455 = vmax.f32 %v2425, 0.0
        %v2456 = vmax.f32 %v2439, 0.0
        %2457 = vset.pattern.permute.xlu0 4
        %2458 = vperm.xlu0 %2457, %v1135
        %v2459 = vpop.permute.xlu0 %2458
        %2461 = vset.pattern.permute.xlu0 4
        %2462 = vperm.xlu0 %2461, %v1136
        %v2463 = vpop.permute.xlu0 %2462
        %v2465 = vmul.f32 %v2441, %v2459
        %v2466 = vmul.f32 %v2442, %v2459
        %v2467 = vmul.f32 %v2443, %v2459
        %v2468 = vmul.f32 %v2444, %v2459
        %v2469 = vmul.f32 %v2445, %v2459
        %v2470 = vmul.f32 %v2446, %v2459
        %v2471 = vmul.f32 %v2447, %v2459
        %v2472 = vmul.f32 %v2448, %v2459
        %v2473 = vmul.f32 %v2449, %v2463
        %v2474 = vmul.f32 %v2450, %v2463
        %v2475 = vmul.f32 %v2451, %v2463
        %v2476 = vmul.f32 %v2452, %v2463
        %v2477 = vmul.f32 %v2453, %v2463
        %v2478 = vmul.f32 %v2454, %v2463
        %v2479 = vmul.f32 %v2455, %v2463
        %v2480 = vmul.f32 %v2456, %v2463
        %2481 = vset.pattern.permute.xlu0 5
        %2482 = vperm.xlu0 %2481, %v1135
        %v2483 = vpop.permute.xlu0 %2482
        %2485 = vset.pattern.permute.xlu0 5
        %2486 = vperm.xlu0 %2485, %v1136
        %v2487 = vpop.permute.xlu0 %2486
        %v2489 = vadd.f32 %v2465, %v2483
        %v2490 = vadd.f32 %v2466, %v2483
        %v2491 = vadd.f32 %v2467, %v2483
        %v2492 = vadd.f32 %v2468, %v2483
        %v2493 = vadd.f32 %v2469, %v2483
        %v2494 = vadd.f32 %v2470, %v2483
        %v2495 = vadd.f32 %v2471, %v2483
        %v2496 = vadd.f32 %v2472, %v2483
        %v2497 = vadd.f32 %v2473, %v2487
        %v2498 = vadd.f32 %v2474, %v2487
        %v2499 = vadd.f32 %v2475, %v2487
        %v2500 = vadd.f32 %v2476, %v2487
        %v2501 = vadd.f32 %v2477, %v2487
        %v2502 = vadd.f32 %v2478, %v2487
        %v2503 = vadd.f32 %v2479, %v2487
        %v2504 = vadd.f32 %v2480, %v2487
        %v2505 = vadd.f32 %v1354, %v2489
        %v2506 = vadd.f32 %v1355, %v2490
        %v2507 = vadd.f32 %v1356, %v2491
        %v2508 = vadd.f32 %v1357, %v2492
        %v2509 = vadd.f32 %v1358, %v2493
        %v2510 = vadd.f32 %v1359, %v2494
        %v2511 = vadd.f32 %v1360, %v2495
        %v2512 = vadd.f32 %v1361, %v2496
        %v2513 = vadd.f32 %v1362, %v2497
        %v2514 = vadd.f32 %v1363, %v2498
        %v2515 = vadd.f32 %v1364, %v2499
        %v2516 = vadd.f32 %v1365, %v2500
        %v2517 = vadd.f32 %v1366, %v2501
        %v2518 = vadd.f32 %v1367, %v2502
        %v2519 = vadd.f32 %v1368, %v2503
        %v2520 = vadd.f32 %v1369, %v2504
        %v2521 = vmax.f32 %v2505, 0.0
        %v2522 = vmax.f32 %v2506, 0.0
        %v2523 = vmax.f32 %v2507, 0.0
        %v2524 = vmax.f32 %v2508, 0.0
        %v2525 = vmax.f32 %v2509, 0.0
        %v2526 = vmax.f32 %v2510, 0.0
        %v2527 = vmax.f32 %v2511, 0.0
        %v2528 = vmax.f32 %v2512, 0.0
        %v2529 = vmax.f32 %v2513, 0.0
        %v2530 = vmax.f32 %v2514, 0.0
        %v2531 = vmax.f32 %v2515, 0.0
        %v2532 = vmax.f32 %v2516, 0.0
        %v2533 = vmax.f32 %v2517, 0.0
        %v2534 = vmax.f32 %v2518, 0.0
        %v2535 = vmax.f32 %v2519, 0.0
        %v2536 = vmax.f32 %v2520, 0.0
        %s2537 = scalar_lea.vmem %s2, 64
        %v2538 = vld [vmem:[%s2537] sm:$0xff]
        %v2539 = vld [vmem:[%s2537 + $0x8] sm:$0xff]
        %v2540 = vld [vmem:[%s2537 + $0x10] sm:$0xff]
        %v2541 = vld [vmem:[%s2537 + $0x18] sm:$0xff]
        %s2542 = scalar_lea.vmem [#allocation2], 384
        %v2543 = vld [vmem:[%s2542] sm:$0xf]
        %v2544 = vld [vmem:[%s2542 + $0x8] sm:$0xf]
        %v2545 = vld [vmem:[%s2542 + $0x10] sm:$0xf]
        %v2546 = vld [vmem:[%s2542 + $0x18] sm:$0xf]
        %v2547 = vld [vmem:[%s2542 + $0x20] sm:$0xf]
        %v2548 = vld [vmem:[%s2542 + $0x28] sm:$0xf]
        %v2549 = vld [vmem:[%s2542 + $0x30] sm:$0xf]
        %v2550 = vld [vmem:[%s2542 + $0x38] sm:$0xf]
        %v2551 = vpack.c.bf16 %v2529, %v2521
        %v2552 = vpack.c.bf16 %v2530, %v2522
        %v2553 = vpack.c.bf16 %v2531, %v2523
        %v2554 = vpack.c.bf16 %v2532, %v2524
        %v2555 = vpack.c.bf16 %v2533, %v2525
        %v2556 = vpack.c.bf16 %v2534, %v2526
        %v2557 = vpack.c.bf16 %v2535, %v2527
        %v2558 = vpack.c.bf16 %v2536, %v2528
        %v2567 = vunpack.c.l.b16 %v2543
        %v2568 = vunpack.c.l.b16 %v2544
        %v2569 = vunpack.c.l.b16 %v2545
        %v2570 = vunpack.c.l.b16 %v2546
        %v2571 = vunpack.c.l.b16 %v2547
        %v2572 = vunpack.c.l.b16 %v2548
        %v2573 = vunpack.c.l.b16 %v2549
        %v2574 = vunpack.c.l.b16 %v2550
        %v2575 = vpack.c.b16 %v2568, %v2567
        %v2576 = vpack.c.b16 %v2570, %v2569
        %v2577 = vpack.c.b16 %v2572, %v2571
        %v2578 = vpack.c.b16 %v2574, %v2573
        %vm2579 = vcmask 130048
        %v2581 = vsel %vm2579, %v2575, 0
        %v2584 = vsel %vm2579, %v2576, 0
        %v2587 = vsel %vm2579, %v2577, 0
        %v2590 = vsel %vm2579, %v2578, 0
        %2592 = vmatpush.bf16.msra.mxu0 0
        %2593 = vmatpush.bf16.msra.mxu0 0
        %2594 = vmatpush.bf16.msra.mxu0 0
        %2595 = vmatpush.bf16.msra.mxu0 0
        %2596 = vmatpush.bf16.msra.mxu0 0
        %2597 = vmatpush.bf16.msra.mxu0 0
        %2598 = vmatpush.bf16.msra.mxu0 0
        %2599 = vmatpush.bf16.msra.mxu0 %v2551
        %2600 = vmatmul.bf16.gmra.mxu0 %v2581
        %v2601 = vpop.f32.mrf.mxu0
        %v2602 = vadd.f32 0.0, %v2601
        %v2603 = vpop.f32.mrf.mxu0
        %v2604 = vadd.f32 0.0, %v2603
        %2605 = vmatmul.bf16.gmra.mxu0 %v2584
        %v2606 = vpop.f32.mrf.mxu0
        %v2607 = vadd.f32 0.0, %v2606
        %v2608 = vpop.f32.mrf.mxu0
        %v2609 = vadd.f32 0.0, %v2608
        %2610 = vmatmul.bf16.gmra.mxu0 %v2587
        %v2611 = vpop.f32.mrf.mxu0
        %v2612 = vadd.f32 0.0, %v2611
        %v2613 = vpop.f32.mrf.mxu0
        %v2614 = vadd.f32 0.0, %v2613
        %2615 = vmatmul.bf16.gmra.mxu0 %v2590
        %v2616 = vpop.f32.mrf.mxu0
        %v2617 = vadd.f32 0.0, %v2616
        %v2618 = vpop.f32.mrf.mxu0
        %v2619 = vadd.f32 0.0, %v2618
        %2620 = vdwg.mxu0
        %2621 = vmatpush.bf16.msra.mxu0 0
        %2622 = vmatpush.bf16.msra.mxu0 0
        %2623 = vmatpush.bf16.msra.mxu0 0
        %2624 = vmatpush.bf16.msra.mxu0 0
        %2625 = vmatpush.bf16.msra.mxu0 0
        %2626 = vmatpush.bf16.msra.mxu0 0
        %2627 = vmatpush.bf16.msra.mxu0 0
        %2628 = vmatpush.bf16.msra.mxu0 %v2552
        %2629 = vmatmul.bf16.gmra.mxu0 %v2581
        %v2630 = vpop.f32.mrf.mxu0
        %v2631 = vadd.f32 0.0, %v2630
        %v2632 = vpop.f32.mrf.mxu0
        %v2633 = vadd.f32 0.0, %v2632
        %2634 = vmatmul.bf16.gmra.mxu0 %v2584
        %v2635 = vpop.f32.mrf.mxu0
        %v2636 = vadd.f32 0.0, %v2635
        %v2637 = vpop.f32.mrf.mxu0
        %v2638 = vadd.f32 0.0, %v2637
        %2639 = vmatmul.bf16.gmra.mxu0 %v2587
        %v2640 = vpop.f32.mrf.mxu0
        %v2641 = vadd.f32 0.0, %v2640
        %v2642 = vpop.f32.mrf.mxu0
        %v2643 = vadd.f32 0.0, %v2642
        %2644 = vmatmul.bf16.gmra.mxu0 %v2590
        %v2645 = vpop.f32.mrf.mxu0
        %v2646 = vadd.f32 0.0, %v2645
        %v2647 = vpop.f32.mrf.mxu0
        %v2648 = vadd.f32 0.0, %v2647
        %2649 = vdwg.mxu0
        %2650 = vmatpush.bf16.msra.mxu0 0
        %2651 = vmatpush.bf16.msra.mxu0 0
        %2652 = vmatpush.bf16.msra.mxu0 0
        %2653 = vmatpush.bf16.msra.mxu0 0
        %2654 = vmatpush.bf16.msra.mxu0 0
        %2655 = vmatpush.bf16.msra.mxu0 0
        %2656 = vmatpush.bf16.msra.mxu0 0
        %2657 = vmatpush.bf16.msra.mxu0 %v2553
        %2658 = vmatmul.bf16.gmra.mxu0 %v2581
        %v2659 = vpop.f32.mrf.mxu0
        %v2660 = vadd.f32 0.0, %v2659
        %v2661 = vpop.f32.mrf.mxu0
        %v2662 = vadd.f32 0.0, %v2661
        %2663 = vmatmul.bf16.gmra.mxu0 %v2584
        %v2664 = vpop.f32.mrf.mxu0
        %v2665 = vadd.f32 0.0, %v2664
        %v2666 = vpop.f32.mrf.mxu0
        %v2667 = vadd.f32 0.0, %v2666
        %2668 = vmatmul.bf16.gmra.mxu0 %v2587
        %v2669 = vpop.f32.mrf.mxu0
        %v2670 = vadd.f32 0.0, %v2669
        %v2671 = vpop.f32.mrf.mxu0
        %v2672 = vadd.f32 0.0, %v2671
        %2673 = vmatmul.bf16.gmra.mxu0 %v2590
        %v2674 = vpop.f32.mrf.mxu0
        %v2675 = vadd.f32 0.0, %v2674
        %v2676 = vpop.f32.mrf.mxu0
        %v2677 = vadd.f32 0.0, %v2676
        %2678 = vdwg.mxu0
        %2679 = vmatpush.bf16.msra.mxu0 0
        %2680 = vmatpush.bf16.msra.mxu0 0
        %2681 = vmatpush.bf16.msra.mxu0 0
        %2682 = vmatpush.bf16.msra.mxu0 0
        %2683 = vmatpush.bf16.msra.mxu0 0
        %2684 = vmatpush.bf16.msra.mxu0 0
        %2685 = vmatpush.bf16.msra.mxu0 0
        %2686 = vmatpush.bf16.msra.mxu0 %v2554
        %2687 = vmatmul.bf16.gmra.mxu0 %v2581
        %v2688 = vpop.f32.mrf.mxu0
        %v2689 = vadd.f32 0.0, %v2688
        %v2690 = vpop.f32.mrf.mxu0
        %v2691 = vadd.f32 0.0, %v2690
        %2692 = vmatmul.bf16.gmra.mxu0 %v2584
        %v2693 = vpop.f32.mrf.mxu0
        %v2694 = vadd.f32 0.0, %v2693
        %v2695 = vpop.f32.mrf.mxu0
        %v2696 = vadd.f32 0.0, %v2695
        %2697 = vmatmul.bf16.gmra.mxu0 %v2587
        %v2698 = vpop.f32.mrf.mxu0
        %v2699 = vadd.f32 0.0, %v2698
        %v2700 = vpop.f32.mrf.mxu0
        %v2701 = vadd.f32 0.0, %v2700
        %2702 = vmatmul.bf16.gmra.mxu0 %v2590
        %v2703 = vpop.f32.mrf.mxu0
        %v2704 = vadd.f32 0.0, %v2703
        %v2705 = vpop.f32.mrf.mxu0
        %v2706 = vadd.f32 0.0, %v2705
        %2707 = vdwg.mxu0
        %2708 = vmatpush.bf16.msra.mxu0 0
        %2709 = vmatpush.bf16.msra.mxu0 0
        %2710 = vmatpush.bf16.msra.mxu0 0
        %2711 = vmatpush.bf16.msra.mxu0 0
        %2712 = vmatpush.bf16.msra.mxu0 0
        %2713 = vmatpush.bf16.msra.mxu0 0
        %2714 = vmatpush.bf16.msra.mxu0 0
        %2715 = vmatpush.bf16.msra.mxu0 %v2555
        %2716 = vmatmul.bf16.gmra.mxu0 %v2581
        %v2717 = vpop.f32.mrf.mxu0
        %v2718 = vadd.f32 0.0, %v2717
        %v2719 = vpop.f32.mrf.mxu0
        %v2720 = vadd.f32 0.0, %v2719
        %2721 = vmatmul.bf16.gmra.mxu0 %v2584
        %v2722 = vpop.f32.mrf.mxu0
        %v2723 = vadd.f32 0.0, %v2722
        %v2724 = vpop.f32.mrf.mxu0
        %v2725 = vadd.f32 0.0, %v2724
        %2726 = vmatmul.bf16.gmra.mxu0 %v2587
        %v2727 = vpop.f32.mrf.mxu0
        %v2728 = vadd.f32 0.0, %v2727
        %v2729 = vpop.f32.mrf.mxu0
        %v2730 = vadd.f32 0.0, %v2729
        %2731 = vmatmul.bf16.gmra.mxu0 %v2590
        %v2732 = vpop.f32.mrf.mxu0
        %v2733 = vadd.f32 0.0, %v2732
        %v2734 = vpop.f32.mrf.mxu0
        %v2735 = vadd.f32 0.0, %v2734
        %2736 = vdwg.mxu0
        %2737 = vmatpush.bf16.msra.mxu0 0
        %2738 = vmatpush.bf16.msra.mxu0 0
        %2739 = vmatpush.bf16.msra.mxu0 0
        %2740 = vmatpush.bf16.msra.mxu0 0
        %2741 = vmatpush.bf16.msra.mxu0 0
        %2742 = vmatpush.bf16.msra.mxu0 0
        %2743 = vmatpush.bf16.msra.mxu0 0
        %2744 = vmatpush.bf16.msra.mxu0 %v2556
        %2745 = vmatmul.bf16.gmra.mxu0 %v2581
        %v2746 = vpop.f32.mrf.mxu0
        %v2747 = vadd.f32 0.0, %v2746
        %v2748 = vpop.f32.mrf.mxu0
        %v2749 = vadd.f32 0.0, %v2748
        %2750 = vmatmul.bf16.gmra.mxu0 %v2584
        %v2751 = vpop.f32.mrf.mxu0
        %v2752 = vadd.f32 0.0, %v2751
        %v2753 = vpop.f32.mrf.mxu0
        %v2754 = vadd.f32 0.0, %v2753
        %2755 = vmatmul.bf16.gmra.mxu0 %v2587
        %v2756 = vpop.f32.mrf.mxu0
        %v2757 = vadd.f32 0.0, %v2756
        %v2758 = vpop.f32.mrf.mxu0
        %v2759 = vadd.f32 0.0, %v2758
        %2760 = vmatmul.bf16.gmra.mxu0 %v2590
        %v2761 = vpop.f32.mrf.mxu0
        %v2762 = vadd.f32 0.0, %v2761
        %v2763 = vpop.f32.mrf.mxu0
        %v2764 = vadd.f32 0.0, %v2763
        %2765 = vdwg.mxu0
        %2766 = vmatpush.bf16.msra.mxu0 0
        %2767 = vmatpush.bf16.msra.mxu0 0
        %2768 = vmatpush.bf16.msra.mxu0 0
        %2769 = vmatpush.bf16.msra.mxu0 0
        %2770 = vmatpush.bf16.msra.mxu0 0
        %2771 = vmatpush.bf16.msra.mxu0 0
        %2772 = vmatpush.bf16.msra.mxu0 0
        %2773 = vmatpush.bf16.msra.mxu0 %v2557
        %2774 = vmatmul.bf16.gmra.mxu0 %v2581
        %v2775 = vpop.f32.mrf.mxu0
        %v2776 = vadd.f32 0.0, %v2775
        %v2777 = vpop.f32.mrf.mxu0
        %v2778 = vadd.f32 0.0, %v2777
        %2779 = vmatmul.bf16.gmra.mxu0 %v2584
        %v2780 = vpop.f32.mrf.mxu0
        %v2781 = vadd.f32 0.0, %v2780
        %v2782 = vpop.f32.mrf.mxu0
        %v2783 = vadd.f32 0.0, %v2782
        %2784 = vmatmul.bf16.gmra.mxu0 %v2587
        %v2785 = vpop.f32.mrf.mxu0
        %v2786 = vadd.f32 0.0, %v2785
        %v2787 = vpop.f32.mrf.mxu0
        %v2788 = vadd.f32 0.0, %v2787
        %2789 = vmatmul.bf16.gmra.mxu0 %v2590
        %v2790 = vpop.f32.mrf.mxu0
        %v2791 = vadd.f32 0.0, %v2790
        %v2792 = vpop.f32.mrf.mxu0
        %v2793 = vadd.f32 0.0, %v2792
        %2794 = vdwg.mxu0
        %2795 = vmatpush.bf16.msra.mxu0 0
        %2796 = vmatpush.bf16.msra.mxu0 0
        %2797 = vmatpush.bf16.msra.mxu0 0
        %2798 = vmatpush.bf16.msra.mxu0 0
        %2799 = vmatpush.bf16.msra.mxu0 0
        %2800 = vmatpush.bf16.msra.mxu0 0
        %2801 = vmatpush.bf16.msra.mxu0 0
        %2802 = vmatpush.bf16.msra.mxu0 %v2558
        %2803 = vmatmul.bf16.gmra.mxu0 %v2581
        %v2804 = vpop.f32.mrf.mxu0
        %v2805 = vadd.f32 0.0, %v2804
        %v2806 = vpop.f32.mrf.mxu0
        %v2807 = vadd.f32 0.0, %v2806
        %2808 = vmatmul.bf16.gmra.mxu0 %v2584
        %v2809 = vpop.f32.mrf.mxu0
        %v2810 = vadd.f32 0.0, %v2809
        %v2811 = vpop.f32.mrf.mxu0
        %v2812 = vadd.f32 0.0, %v2811
        %2813 = vmatmul.bf16.gmra.mxu0 %v2587
        %v2814 = vpop.f32.mrf.mxu0
        %v2815 = vadd.f32 0.0, %v2814
        %v2816 = vpop.f32.mrf.mxu0
        %v2817 = vadd.f32 0.0, %v2816
        %2818 = vmatmul.bf16.gmra.mxu0 %v2590
        %v2819 = vpop.f32.mrf.mxu0
        %v2820 = vadd.f32 0.0, %v2819
        %v2821 = vpop.f32.mrf.mxu0
        %v2822 = vadd.f32 0.0, %v2821
        %2823 = vdwg.mxu0
        %2825 = vset.pattern.permute.xlu0 0
        %2826 = vperm.xlu0 %2825, %v2538
        %v2827 = vpop.permute.xlu0 %2826
        %2830 = vset.pattern.permute.xlu0 0
        %2831 = vperm.xlu0 %2830, %v2539
        %v2832 = vpop.permute.xlu0 %2831
        %2835 = vset.pattern.permute.xlu0 0
        %2836 = vperm.xlu0 %2835, %v2540
        %v2837 = vpop.permute.xlu0 %2836
        %2840 = vset.pattern.permute.xlu0 0
        %2841 = vperm.xlu0 %2840, %v2541
        %v2842 = vpop.permute.xlu0 %2841
        %v2844 = vadd.f32 %v2602, %v2827
        %v2845 = vadd.f32 %v2631, %v2827
        %v2846 = vadd.f32 %v2660, %v2827
        %v2847 = vadd.f32 %v2689, %v2827
        %v2848 = vadd.f32 %v2718, %v2827
        %v2849 = vadd.f32 %v2747, %v2827
        %v2850 = vadd.f32 %v2776, %v2827
        %v2851 = vadd.f32 %v2805, %v2827
        %v2852 = vadd.f32 %v2604, %v2832
        %v2853 = vadd.f32 %v2633, %v2832
        %v2854 = vadd.f32 %v2662, %v2832
        %v2855 = vadd.f32 %v2691, %v2832
        %v2856 = vadd.f32 %v2720, %v2832
        %v2857 = vadd.f32 %v2749, %v2832
        %v2858 = vadd.f32 %v2778, %v2832
        %v2859 = vadd.f32 %v2807, %v2832
        %v2860 = vadd.f32 %v2607, %v2837
        %v2861 = vadd.f32 %v2636, %v2837
        %v2862 = vadd.f32 %v2665, %v2837
        %v2863 = vadd.f32 %v2694, %v2837
        %v2864 = vadd.f32 %v2723, %v2837
        %v2865 = vadd.f32 %v2752, %v2837
        %v2866 = vadd.f32 %v2781, %v2837
        %v2867 = vadd.f32 %v2810, %v2837
        %v2868 = vadd.f32 %v2609, %v2842
        %v2869 = vadd.f32 %v2638, %v2842
        %v2870 = vadd.f32 %v2667, %v2842
        %v2871 = vadd.f32 %v2696, %v2842
        %v2872 = vadd.f32 %v2725, %v2842
        %v2873 = vadd.f32 %v2754, %v2842
        %v2874 = vadd.f32 %v2783, %v2842
        %v2875 = vadd.f32 %v2812, %v2842
        %2876 = vset.pattern.permute.xlu0 1
        %2877 = vperm.xlu0 %2876, %v2538
        %v2878 = vpop.permute.xlu0 %2877
        %2880 = vset.pattern.permute.xlu0 1
        %2881 = vperm.xlu0 %2880, %v2539
        %v2882 = vpop.permute.xlu0 %2881
        %2884 = vset.pattern.permute.xlu0 1
        %2885 = vperm.xlu0 %2884, %v2540
        %v2886 = vpop.permute.xlu0 %2885
        %2888 = vset.pattern.permute.xlu0 1
        %2889 = vperm.xlu0 %2888, %v2541
        %v2890 = vpop.permute.xlu0 %2889
        %v2892 = vadd.f32 %v2612, %v2878
        %v2893 = vadd.f32 %v2641, %v2878
        %v2894 = vadd.f32 %v2670, %v2878
        %v2895 = vadd.f32 %v2699, %v2878
        %v2896 = vadd.f32 %v2728, %v2878
        %v2897 = vadd.f32 %v2757, %v2878
        %v2898 = vadd.f32 %v2786, %v2878
        %v2899 = vadd.f32 %v2815, %v2878
        %v2900 = vadd.f32 %v2614, %v2882
        %v2901 = vadd.f32 %v2643, %v2882
        %v2902 = vadd.f32 %v2672, %v2882
        %v2903 = vadd.f32 %v2701, %v2882
        %v2904 = vadd.f32 %v2730, %v2882
        %v2905 = vadd.f32 %v2759, %v2882
        %v2906 = vadd.f32 %v2788, %v2882
        %v2907 = vadd.f32 %v2817, %v2882
        %v2908 = vadd.f32 %v2617, %v2886
        %v2909 = vadd.f32 %v2646, %v2886
        %v2910 = vadd.f32 %v2675, %v2886
        %v2911 = vadd.f32 %v2704, %v2886
        %v2912 = vadd.f32 %v2733, %v2886
        %v2913 = vadd.f32 %v2762, %v2886
        %v2914 = vadd.f32 %v2791, %v2886
        %v2915 = vadd.f32 %v2820, %v2886
        %v2916 = vadd.f32 %v2619, %v2890
        %v2917 = vadd.f32 %v2648, %v2890
        %v2918 = vadd.f32 %v2677, %v2890
        %v2919 = vadd.f32 %v2706, %v2890
        %v2920 = vadd.f32 %v2735, %v2890
        %v2921 = vadd.f32 %v2764, %v2890
        %v2922 = vadd.f32 %v2793, %v2890
        %v2923 = vadd.f32 %v2822, %v2890
        %v2924 = vadd.f32 %v2844, %v2892
        %v2925 = vadd.f32 %v2845, %v2893
        %v2926 = vadd.f32 %v2846, %v2894
        %v2927 = vadd.f32 %v2847, %v2895
        %v2928 = vadd.f32 %v2848, %v2896
        %v2929 = vadd.f32 %v2849, %v2897
        %v2930 = vadd.f32 %v2850, %v2898
        %v2931 = vadd.f32 %v2851, %v2899
        %v2932 = vadd.f32 %v2852, %v2900
        %v2933 = vadd.f32 %v2853, %v2901
        %v2934 = vadd.f32 %v2854, %v2902
        %v2935 = vadd.f32 %v2855, %v2903
        %v2936 = vadd.f32 %v2856, %v2904
        %v2937 = vadd.f32 %v2857, %v2905
        %v2938 = vadd.f32 %v2858, %v2906
        %v2939 = vadd.f32 %v2859, %v2907
        %v2940 = vadd.f32 %v2860, %v2908
        %v2941 = vadd.f32 %v2861, %v2909
        %v2942 = vadd.f32 %v2862, %v2910
        %v2943 = vadd.f32 %v2863, %v2911
        %v2944 = vadd.f32 %v2864, %v2912
        %v2945 = vadd.f32 %v2865, %v2913
        %v2946 = vadd.f32 %v2866, %v2914
        %v2947 = vadd.f32 %v2867, %v2915
        %v2948 = vadd.f32 %v2868, %v2916
        %v2949 = vadd.f32 %v2869, %v2917
        %v2950 = vadd.f32 %v2870, %v2918
        %v2951 = vadd.f32 %v2871, %v2919
        %v2952 = vadd.f32 %v2872, %v2920
        %v2953 = vadd.f32 %v2873, %v2921
        %v2954 = vadd.f32 %v2874, %v2922
        %v2955 = vadd.f32 %v2875, %v2923
        %v2956 = vmax.f32 %v2924, 0.0
        %v2957 = vmax.f32 %v2925, 0.0
        %v2958 = vmax.f32 %v2926, 0.0
        %v2959 = vmax.f32 %v2927, 0.0
        %v2960 = vmax.f32 %v2928, 0.0
        %v2961 = vmax.f32 %v2929, 0.0
        %v2962 = vmax.f32 %v2930, 0.0
        %v2963 = vmax.f32 %v2931, 0.0
        %v2964 = vmax.f32 %v2932, 0.0
        %v2965 = vmax.f32 %v2933, 0.0
        %v2966 = vmax.f32 %v2934, 0.0
        %v2967 = vmax.f32 %v2935, 0.0
        %v2968 = vmax.f32 %v2936, 0.0
        %v2969 = vmax.f32 %v2937, 0.0
        %v2970 = vmax.f32 %v2938, 0.0
        %v2971 = vmax.f32 %v2939, 0.0
        %v2972 = vmax.f32 %v2940, 0.0
        %v2973 = vmax.f32 %v2941, 0.0
        %v2974 = vmax.f32 %v2942, 0.0
        %v2975 = vmax.f32 %v2943, 0.0
        %v2976 = vmax.f32 %v2944, 0.0
        %v2977 = vmax.f32 %v2945, 0.0
        %v2978 = vmax.f32 %v2946, 0.0
        %v2979 = vmax.f32 %v2947, 0.0
        %v2980 = vmax.f32 %v2948, 0.0
        %v2981 = vmax.f32 %v2949, 0.0
        %v2982 = vmax.f32 %v2950, 0.0
        %v2983 = vmax.f32 %v2951, 0.0
        %v2984 = vmax.f32 %v2952, 0.0
        %v2985 = vmax.f32 %v2953, 0.0
        %v2986 = vmax.f32 %v2954, 0.0
        %v2987 = vmax.f32 %v2955, 0.0
        %s2988 = scalar_lea.vmem [#allocation2], 448
        %v2989 = vld [vmem:[%s2988] sm:$0xff]
        %v2990 = vld [vmem:[%s2988 + $0x8] sm:$0xff]
        %v2991 = vld [vmem:[%s2988 + $0x10] sm:$0xff]
        %v2992 = vld [vmem:[%s2988 + $0x18] sm:$0xff]
        %s2993 = scalar_lea.vmem [#allocation2], 512
        %v2994 = vld [vmem:[%s2993] sm:$0xff]
        %v2995 = vld [vmem:[%s2993 + $0x8] sm:$0xff]
        %v2996 = vld [vmem:[%s2993 + $0x10] sm:$0xff]
        %v2997 = vld [vmem:[%s2993 + $0x18] sm:$0xff]
        %2998 = vrot.lane.b32.xlu0 %v2956, 45
        %v2999 = vpop.permute.xlu0 %2998
        %3000 = vrot.lane.b32.xlu0 %v2964, 45
        %v3001 = vpop.permute.xlu0 %3000
        %3002 = vrot.lane.b32.xlu0 %v2972, 45
        %v3003 = vpop.permute.xlu0 %3002
        %3004 = vrot.lane.b32.xlu0 %v2980, 45
        %v3005 = vpop.permute.xlu0 %3004
        %3006 = vrot.lane.b32.xlu0 %v2957, 45
        %v3007 = vpop.permute.xlu0 %3006
        %3008 = vrot.lane.b32.xlu0 %v2965, 45
        %v3009 = vpop.permute.xlu0 %3008
        %3010 = vrot.lane.b32.xlu0 %v2973, 45
        %v3011 = vpop.permute.xlu0 %3010
        %3012 = vrot.lane.b32.xlu0 %v2981, 45
        %v3013 = vpop.permute.xlu0 %3012
        %3014 = vrot.lane.b32.xlu0 %v2958, 45
        %v3015 = vpop.permute.xlu0 %3014
        %3016 = vrot.lane.b32.xlu0 %v2966, 45
        %v3017 = vpop.permute.xlu0 %3016
        %3018 = vrot.lane.b32.xlu0 %v2974, 45
        %v3019 = vpop.permute.xlu0 %3018
        %3020 = vrot.lane.b32.xlu0 %v2982, 45
        %v3021 = vpop.permute.xlu0 %3020
        %3022 = vrot.lane.b32.xlu0 %v2959, 45
        %v3023 = vpop.permute.xlu0 %3022
        %3024 = vrot.lane.b32.xlu0 %v2967, 45
        %v3025 = vpop.permute.xlu0 %3024
        %3026 = vrot.lane.b32.xlu0 %v2975, 45
        %v3027 = vpop.permute.xlu0 %3026
        %3028 = vrot.lane.b32.xlu0 %v2983, 45
        %v3029 = vpop.permute.xlu0 %3028
        %3030 = vrot.lane.b32.xlu0 %v2960, 45
        %v3031 = vpop.permute.xlu0 %3030
        %3032 = vrot.lane.b32.xlu0 %v2968, 45
        %v3033 = vpop.permute.xlu0 %3032
        %3034 = vrot.lane.b32.xlu0 %v2976, 45
        %v3035 = vpop.permute.xlu0 %3034
        %3036 = vrot.lane.b32.xlu0 %v2984, 45
        %v3037 = vpop.permute.xlu0 %3036
        %3038 = vrot.lane.b32.xlu0 %v2961, 45
        %v3039 = vpop.permute.xlu0 %3038
        %3040 = vrot.lane.b32.xlu0 %v2969, 45
        %v3041 = vpop.permute.xlu0 %3040
        %3042 = vrot.lane.b32.xlu0 %v2977, 45
        %v3043 = vpop.permute.xlu0 %3042
        %3044 = vrot.lane.b32.xlu0 %v2985, 45
        %v3045 = vpop.permute.xlu0 %3044
        %3046 = vrot.lane.b32.xlu0 %v2962, 45
        %v3047 = vpop.permute.xlu0 %3046
        %3048 = vrot.lane.b32.xlu0 %v2970, 45
        %v3049 = vpop.permute.xlu0 %3048
        %3050 = vrot.lane.b32.xlu0 %v2978, 45
        %v3051 = vpop.permute.xlu0 %3050
        %3052 = vrot.lane.b32.xlu0 %v2986, 45
        %v3053 = vpop.permute.xlu0 %3052
        %3054 = vrot.lane.b32.xlu0 %v2963, 45
        %v3055 = vpop.permute.xlu0 %3054
        %3056 = vrot.lane.b32.xlu0 %v2971, 45
        %v3057 = vpop.permute.xlu0 %3056
        %3058 = vrot.lane.b32.xlu0 %v2979, 45
        %v3059 = vpop.permute.xlu0 %3058
        %3060 = vrot.lane.b32.xlu0 %v2987, 45
        %v3061 = vpop.permute.xlu0 %3060
        %v3062 = vsel %vm418, %v3047, %v3055
        %v3063 = vsel %vm418, %v3049, %v3057
        %v3064 = vsel %vm418, %v3051, %v3059
        %v3065 = vsel %vm418, %v3053, %v3061
        %v3066 = vsel %vm418, %v3039, %v3047
        %v3067 = vsel %vm418, %v3041, %v3049
        %v3068 = vsel %vm418, %v3043, %v3051
        %v3069 = vsel %vm418, %v3045, %v3053
        %v3070 = vsel %vm418, %v3031, %v3039
        %v3071 = vsel %vm418, %v3033, %v3041
        %v3072 = vsel %vm418, %v3035, %v3043
        %v3073 = vsel %vm418, %v3037, %v3045
        %v3074 = vsel %vm418, %v3023, %v3031
        %v3075 = vsel %vm418, %v3025, %v3033
        %v3076 = vsel %vm418, %v3027, %v3035
        %v3077 = vsel %vm418, %v3029, %v3037
        %v3078 = vsel %vm418, %v3015, %v3023
        %v3079 = vsel %vm418, %v3017, %v3025
        %v3080 = vsel %vm418, %v3019, %v3027
        %v3081 = vsel %vm418, %v3021, %v3029
        %v3082 = vsel %vm418, %v3007, %v3015
        %v3083 = vsel %vm418, %v3009, %v3017
        %v3084 = vsel %vm418, %v3011, %v3019
        %v3085 = vsel %vm418, %v3013, %v3021
        %v3086 = vsel %vm418, %v2999, %v3007
        %v3087 = vsel %vm418, %v3001, %v3009
        %v3088 = vsel %vm418, %v3003, %v3011
        %v3089 = vsel %vm418, %v3005, %v3013
        %v3090 = vsel %vm418, %v3055, %v2999
        %v3091 = vsel %vm418, %v3057, %v3001
        %v3092 = vsel %vm418, %v3059, %v3003
        %v3093 = vsel %vm418, %v3061, %v3005
        %v3094 = vsel %vm435, %v3090, 0.0
        %v3095 = vsel %vm436, %v3086, 0.0
        %v3096 = vsel %vm437, %v3082, 0.0
        %v3097 = vsel %vm438, %v3078, 0.0
        %v3098 = vsel %vm439, %v3074, 0.0
        %v3099 = vsel %vm440, %v3070, 0.0
        %v3100 = vsel %vm441, %v3066, 0.0
        %v3101 = vsel %vm442, %v3062, 0.0
        %v3102 = vsel %vm435, %v3091, 0.0
        %v3103 = vsel %vm436, %v3087, 0.0
        %v3104 = vsel %vm437, %v3083, 0.0
        %v3105 = vsel %vm438, %v3079, 0.0
        %v3106 = vsel %vm439, %v3075, 0.0
        %v3107 = vsel %vm440, %v3071, 0.0
        %v3108 = vsel %vm441, %v3067, 0.0
        %v3109 = vsel %vm442, %v3063, 0.0
        %v3110 = vsel %vm435, %v3092, 0.0
        %v3111 = vsel %vm436, %v3088, 0.0
        %v3112 = vsel %vm437, %v3084, 0.0
        %v3113 = vsel %vm438, %v3080, 0.0
        %v3114 = vsel %vm439, %v3076, 0.0
        %v3115 = vsel %vm440, %v3072, 0.0
        %v3116 = vsel %vm441, %v3068, 0.0
        %v3117 = vsel %vm442, %v3064, 0.0
        %v3118 = vsel %vm435, %v3093, 0.0
        %v3119 = vsel %vm436, %v3089, 0.0
        %v3120 = vsel %vm437, %v3085, 0.0
        %v3121 = vsel %vm438, %v3081, 0.0
        %v3122 = vsel %vm439, %v3077, 0.0
        %v3123 = vsel %vm440, %v3073, 0.0
        %v3124 = vsel %vm441, %v3069, 0.0
        %v3125 = vsel %vm442, %v3065, 0.0
        %3126 = vrot.lane.b32.xlu0 %v2956, 36
        %v3127 = vpop.permute.xlu0 %3126
        %3128 = vrot.lane.b32.xlu0 %v2964, 36
        %v3129 = vpop.permute.xlu0 %3128
        %3130 = vrot.lane.b32.xlu0 %v2972, 36
        %v3131 = vpop.permute.xlu0 %3130
        %3132 = vrot.lane.b32.xlu0 %v2980, 36
        %v3133 = vpop.permute.xlu0 %3132
        %3134 = vrot.lane.b32.xlu0 %v2957, 36
        %v3135 = vpop.permute.xlu0 %3134
        %3136 = vrot.lane.b32.xlu0 %v2965, 36
        %v3137 = vpop.permute.xlu0 %3136
        %3138 = vrot.lane.b32.xlu0 %v2973, 36
        %v3139 = vpop.permute.xlu0 %3138
        %3140 = vrot.lane.b32.xlu0 %v2981, 36
        %v3141 = vpop.permute.xlu0 %3140
        %3142 = vrot.lane.b32.xlu0 %v2958, 36
        %v3143 = vpop.permute.xlu0 %3142
        %3144 = vrot.lane.b32.xlu0 %v2966, 36
        %v3145 = vpop.permute.xlu0 %3144
        %3146 = vrot.lane.b32.xlu0 %v2974, 36
        %v3147 = vpop.permute.xlu0 %3146
        %3148 = vrot.lane.b32.xlu0 %v2982, 36
        %v3149 = vpop.permute.xlu0 %3148
        %3150 = vrot.lane.b32.xlu0 %v2959, 36
        %v3151 = vpop.permute.xlu0 %3150
        %3152 = vrot.lane.b32.xlu0 %v2967, 36
        %v3153 = vpop.permute.xlu0 %3152
        %3154 = vrot.lane.b32.xlu0 %v2975, 36
        %v3155 = vpop.permute.xlu0 %3154
        %3156 = vrot.lane.b32.xlu0 %v2983, 36
        %v3157 = vpop.permute.xlu0 %3156
        %3158 = vrot.lane.b32.xlu0 %v2960, 36
        %v3159 = vpop.permute.xlu0 %3158
        %3160 = vrot.lane.b32.xlu0 %v2968, 36
        %v3161 = vpop.permute.xlu0 %3160
        %3162 = vrot.lane.b32.xlu0 %v2976, 36
        %v3163 = vpop.permute.xlu0 %3162
        %3164 = vrot.lane.b32.xlu0 %v2984, 36
        %v3165 = vpop.permute.xlu0 %3164
        %3166 = vrot.lane.b32.xlu0 %v2961, 36
        %v3167 = vpop.permute.xlu0 %3166
        %3168 = vrot.lane.b32.xlu0 %v2969, 36
        %v3169 = vpop.permute.xlu0 %3168
        %3170 = vrot.lane.b32.xlu0 %v2977, 36
        %v3171 = vpop.permute.xlu0 %3170
        %3172 = vrot.lane.b32.xlu0 %v2985, 36
        %v3173 = vpop.permute.xlu0 %3172
        %3174 = vrot.lane.b32.xlu0 %v2962, 36
        %v3175 = vpop.permute.xlu0 %3174
        %3176 = vrot.lane.b32.xlu0 %v2970, 36
        %v3177 = vpop.permute.xlu0 %3176
        %3178 = vrot.lane.b32.xlu0 %v2978, 36
        %v3179 = vpop.permute.xlu0 %3178
        %3180 = vrot.lane.b32.xlu0 %v2986, 36
        %v3181 = vpop.permute.xlu0 %3180
        %3182 = vrot.lane.b32.xlu0 %v2963, 36
        %v3183 = vpop.permute.xlu0 %3182
        %3184 = vrot.lane.b32.xlu0 %v2971, 36
        %v3185 = vpop.permute.xlu0 %3184
        %3186 = vrot.lane.b32.xlu0 %v2979, 36
        %v3187 = vpop.permute.xlu0 %3186
        %3188 = vrot.lane.b32.xlu0 %v2987, 36
        %v3189 = vpop.permute.xlu0 %3188
        %v3190 = vsel %vm467, %v3175, %v3183
        %v3191 = vsel %vm467, %v3177, %v3185
        %v3192 = vsel %vm467, %v3179, %v3187
        %v3193 = vsel %vm467, %v3181, %v3189
        %v3194 = vsel %vm467, %v3167, %v3175
        %v3195 = vsel %vm467, %v3169, %v3177
        %v3196 = vsel %vm467, %v3171, %v3179
        %v3197 = vsel %vm467, %v3173, %v3181
        %v3198 = vsel %vm467, %v3159, %v3167
        %v3199 = vsel %vm467, %v3161, %v3169
        %v3200 = vsel %vm467, %v3163, %v3171
        %v3201 = vsel %vm467, %v3165, %v3173
        %v3202 = vsel %vm467, %v3151, %v3159
        %v3203 = vsel %vm467, %v3153, %v3161
        %v3204 = vsel %vm467, %v3155, %v3163
        %v3205 = vsel %vm467, %v3157, %v3165
        %v3206 = vsel %vm467, %v3143, %v3151
        %v3207 = vsel %vm467, %v3145, %v3153
        %v3208 = vsel %vm467, %v3147, %v3155
        %v3209 = vsel %vm467, %v3149, %v3157
        %v3210 = vsel %vm467, %v3135, %v3143
        %v3211 = vsel %vm467, %v3137, %v3145
        %v3212 = vsel %vm467, %v3139, %v3147
        %v3213 = vsel %vm467, %v3141, %v3149
        %v3214 = vsel %vm467, %v3127, %v3135
        %v3215 = vsel %vm467, %v3129, %v3137
        %v3216 = vsel %vm467, %v3131, %v3139
        %v3217 = vsel %vm467, %v3133, %v3141
        %v3218 = vsel %vm467, %v3183, %v3127
        %v3219 = vsel %vm467, %v3185, %v3129
        %v3220 = vsel %vm467, %v3187, %v3131
        %v3221 = vsel %vm467, %v3189, %v3133
        %v3222 = vsel %vm484, %v3218, 0.0
        %v3223 = vsel %vm485, %v3214, 0.0
        %v3224 = vsel %vm486, %v3210, 0.0
        %v3225 = vsel %vm487, %v3206, 0.0
        %v3226 = vsel %vm488, %v3202, 0.0
        %v3227 = vsel %vm489, %v3198, 0.0
        %v3228 = vsel %vm490, %v3194, 0.0
        %v3229 = vsel %vm491, %v3190, 0.0
        %v3230 = vsel %vm484, %v3219, 0.0
        %v3231 = vsel %vm485, %v3215, 0.0
        %v3232 = vsel %vm486, %v3211, 0.0
        %v3233 = vsel %vm487, %v3207, 0.0
        %v3234 = vsel %vm488, %v3203, 0.0
        %v3235 = vsel %vm489, %v3199, 0.0
        %v3236 = vsel %vm490, %v3195, 0.0
        %v3237 = vsel %vm491, %v3191, 0.0
        %v3238 = vsel %vm484, %v3220, 0.0
        %v3239 = vsel %vm485, %v3216, 0.0
        %v3240 = vsel %vm486, %v3212, 0.0
        %v3241 = vsel %vm487, %v3208, 0.0
        %v3242 = vsel %vm488, %v3204, 0.0
        %v3243 = vsel %vm489, %v3200, 0.0
        %v3244 = vsel %vm490, %v3196, 0.0
        %v3245 = vsel %vm491, %v3192, 0.0
        %v3246 = vsel %vm484, %v3221, 0.0
        %v3247 = vsel %vm485, %v3217, 0.0
        %v3248 = vsel %vm486, %v3213, 0.0
        %v3249 = vsel %vm487, %v3209, 0.0
        %v3250 = vsel %vm488, %v3205, 0.0
        %v3251 = vsel %vm489, %v3201, 0.0
        %v3252 = vsel %vm490, %v3197, 0.0
        %v3253 = vsel %vm491, %v3193, 0.0
        %3254 = vrot.lane.b32.xlu0 %v2956, 27
        %v3255 = vpop.permute.xlu0 %3254
        %3256 = vrot.lane.b32.xlu0 %v2964, 27
        %v3257 = vpop.permute.xlu0 %3256
        %3258 = vrot.lane.b32.xlu0 %v2972, 27
        %v3259 = vpop.permute.xlu0 %3258
        %3260 = vrot.lane.b32.xlu0 %v2980, 27
        %v3261 = vpop.permute.xlu0 %3260
        %3262 = vrot.lane.b32.xlu0 %v2957, 27
        %v3263 = vpop.permute.xlu0 %3262
        %3264 = vrot.lane.b32.xlu0 %v2965, 27
        %v3265 = vpop.permute.xlu0 %3264
        %3266 = vrot.lane.b32.xlu0 %v2973, 27
        %v3267 = vpop.permute.xlu0 %3266
        %3268 = vrot.lane.b32.xlu0 %v2981, 27
        %v3269 = vpop.permute.xlu0 %3268
        %3270 = vrot.lane.b32.xlu0 %v2958, 27
        %v3271 = vpop.permute.xlu0 %3270
        %3272 = vrot.lane.b32.xlu0 %v2966, 27
        %v3273 = vpop.permute.xlu0 %3272
        %3274 = vrot.lane.b32.xlu0 %v2974, 27
        %v3275 = vpop.permute.xlu0 %3274
        %3276 = vrot.lane.b32.xlu0 %v2982, 27
        %v3277 = vpop.permute.xlu0 %3276
        %3278 = vrot.lane.b32.xlu0 %v2959, 27
        %v3279 = vpop.permute.xlu0 %3278
        %3280 = vrot.lane.b32.xlu0 %v2967, 27
        %v3281 = vpop.permute.xlu0 %3280
        %3282 = vrot.lane.b32.xlu0 %v2975, 27
        %v3283 = vpop.permute.xlu0 %3282
        %3284 = vrot.lane.b32.xlu0 %v2983, 27
        %v3285 = vpop.permute.xlu0 %3284
        %3286 = vrot.lane.b32.xlu0 %v2960, 27
        %v3287 = vpop.permute.xlu0 %3286
        %3288 = vrot.lane.b32.xlu0 %v2968, 27
        %v3289 = vpop.permute.xlu0 %3288
        %3290 = vrot.lane.b32.xlu0 %v2976, 27
        %v3291 = vpop.permute.xlu0 %3290
        %3292 = vrot.lane.b32.xlu0 %v2984, 27
        %v3293 = vpop.permute.xlu0 %3292
        %3294 = vrot.lane.b32.xlu0 %v2961, 27
        %v3295 = vpop.permute.xlu0 %3294
        %3296 = vrot.lane.b32.xlu0 %v2969, 27
        %v3297 = vpop.permute.xlu0 %3296
        %3298 = vrot.lane.b32.xlu0 %v2977, 27
        %v3299 = vpop.permute.xlu0 %3298
        %3300 = vrot.lane.b32.xlu0 %v2985, 27
        %v3301 = vpop.permute.xlu0 %3300
        %3302 = vrot.lane.b32.xlu0 %v2962, 27
        %v3303 = vpop.permute.xlu0 %3302
        %3304 = vrot.lane.b32.xlu0 %v2970, 27
        %v3305 = vpop.permute.xlu0 %3304
        %3306 = vrot.lane.b32.xlu0 %v2978, 27
        %v3307 = vpop.permute.xlu0 %3306
        %3308 = vrot.lane.b32.xlu0 %v2986, 27
        %v3309 = vpop.permute.xlu0 %3308
        %3310 = vrot.lane.b32.xlu0 %v2963, 27
        %v3311 = vpop.permute.xlu0 %3310
        %3312 = vrot.lane.b32.xlu0 %v2971, 27
        %v3313 = vpop.permute.xlu0 %3312
        %3314 = vrot.lane.b32.xlu0 %v2979, 27
        %v3315 = vpop.permute.xlu0 %3314
        %3316 = vrot.lane.b32.xlu0 %v2987, 27
        %v3317 = vpop.permute.xlu0 %3316
        %v3318 = vsel %vm516, %v3303, %v3311
        %v3319 = vsel %vm516, %v3305, %v3313
        %v3320 = vsel %vm516, %v3307, %v3315
        %v3321 = vsel %vm516, %v3309, %v3317
        %v3322 = vsel %vm516, %v3295, %v3303
        %v3323 = vsel %vm516, %v3297, %v3305
        %v3324 = vsel %vm516, %v3299, %v3307
        %v3325 = vsel %vm516, %v3301, %v3309
        %v3326 = vsel %vm516, %v3287, %v3295
        %v3327 = vsel %vm516, %v3289, %v3297
        %v3328 = vsel %vm516, %v3291, %v3299
        %v3329 = vsel %vm516, %v3293, %v3301
        %v3330 = vsel %vm516, %v3279, %v3287
        %v3331 = vsel %vm516, %v3281, %v3289
        %v3332 = vsel %vm516, %v3283, %v3291
        %v3333 = vsel %vm516, %v3285, %v3293
        %v3334 = vsel %vm516, %v3271, %v3279
        %v3335 = vsel %vm516, %v3273, %v3281
        %v3336 = vsel %vm516, %v3275, %v3283
        %v3337 = vsel %vm516, %v3277, %v3285
        %v3338 = vsel %vm516, %v3263, %v3271
        %v3339 = vsel %vm516, %v3265, %v3273
        %v3340 = vsel %vm516, %v3267, %v3275
        %v3341 = vsel %vm516, %v3269, %v3277
        %v3342 = vsel %vm516, %v3255, %v3263
        %v3343 = vsel %vm516, %v3257, %v3265
        %v3344 = vsel %vm516, %v3259, %v3267
        %v3345 = vsel %vm516, %v3261, %v3269
        %v3346 = vsel %vm516, %v3311, %v3255
        %v3347 = vsel %vm516, %v3313, %v3257
        %v3348 = vsel %vm516, %v3315, %v3259
        %v3349 = vsel %vm516, %v3317, %v3261
        %v3350 = vsel %vm533, %v3346, 0.0
        %v3351 = vsel %vm534, %v3342, 0.0
        %v3352 = vsel %vm535, %v3338, 0.0
        %v3353 = vsel %vm536, %v3334, 0.0
        %v3354 = vsel %vm537, %v3330, 0.0
        %v3355 = vsel %vm538, %v3326, 0.0
        %v3356 = vsel %vm539, %v3322, 0.0
        %v3357 = vsel %vm540, %v3318, 0.0
        %v3358 = vsel %vm533, %v3347, 0.0
        %v3359 = vsel %vm534, %v3343, 0.0
        %v3360 = vsel %vm535, %v3339, 0.0
        %v3361 = vsel %vm536, %v3335, 0.0
        %v3362 = vsel %vm537, %v3331, 0.0
        %v3363 = vsel %vm538, %v3327, 0.0
        %v3364 = vsel %vm539, %v3323, 0.0
        %v3365 = vsel %vm540, %v3319, 0.0
        %v3366 = vsel %vm533, %v3348, 0.0
        %v3367 = vsel %vm534, %v3344, 0.0
        %v3368 = vsel %vm535, %v3340, 0.0
        %v3369 = vsel %vm536, %v3336, 0.0
        %v3370 = vsel %vm537, %v3332, 0.0
        %v3371 = vsel %vm538, %v3328, 0.0
        %v3372 = vsel %vm539, %v3324, 0.0
        %v3373 = vsel %vm540, %v3320, 0.0
        %v3374 = vsel %vm533, %v3349, 0.0
        %v3375 = vsel %vm534, %v3345, 0.0
        %v3376 = vsel %vm535, %v3341, 0.0
        %v3377 = vsel %vm536, %v3337, 0.0
        %v3378 = vsel %vm537, %v3333, 0.0
        %v3379 = vsel %vm538, %v3329, 0.0
        %v3380 = vsel %vm539, %v3325, 0.0
        %v3381 = vsel %vm540, %v3321, 0.0
        %3382 = vrot.lane.b32.xlu0 %v2956, 18
        %v3383 = vpop.permute.xlu0 %3382
        %3384 = vrot.lane.b32.xlu0 %v2964, 18
        %v3385 = vpop.permute.xlu0 %3384
        %3386 = vrot.lane.b32.xlu0 %v2972, 18
        %v3387 = vpop.permute.xlu0 %3386
        %3388 = vrot.lane.b32.xlu0 %v2980, 18
        %v3389 = vpop.permute.xlu0 %3388
        %3390 = vrot.lane.b32.xlu0 %v2957, 18
        %v3391 = vpop.permute.xlu0 %3390
        %3392 = vrot.lane.b32.xlu0 %v2965, 18
        %v3393 = vpop.permute.xlu0 %3392
        %3394 = vrot.lane.b32.xlu0 %v2973, 18
        %v3395 = vpop.permute.xlu0 %3394
        %3396 = vrot.lane.b32.xlu0 %v2981, 18
        %v3397 = vpop.permute.xlu0 %3396
        %3398 = vrot.lane.b32.xlu0 %v2958, 18
        %v3399 = vpop.permute.xlu0 %3398
        %3400 = vrot.lane.b32.xlu0 %v2966, 18
        %v3401 = vpop.permute.xlu0 %3400
        %3402 = vrot.lane.b32.xlu0 %v2974, 18
        %v3403 = vpop.permute.xlu0 %3402
        %3404 = vrot.lane.b32.xlu0 %v2982, 18
        %v3405 = vpop.permute.xlu0 %3404
        %3406 = vrot.lane.b32.xlu0 %v2959, 18
        %v3407 = vpop.permute.xlu0 %3406
        %3408 = vrot.lane.b32.xlu0 %v2967, 18
        %v3409 = vpop.permute.xlu0 %3408
        %3410 = vrot.lane.b32.xlu0 %v2975, 18
        %v3411 = vpop.permute.xlu0 %3410
        %3412 = vrot.lane.b32.xlu0 %v2983, 18
        %v3413 = vpop.permute.xlu0 %3412
        %3414 = vrot.lane.b32.xlu0 %v2960, 18
        %v3415 = vpop.permute.xlu0 %3414
        %3416 = vrot.lane.b32.xlu0 %v2968, 18
        %v3417 = vpop.permute.xlu0 %3416
        %3418 = vrot.lane.b32.xlu0 %v2976, 18
        %v3419 = vpop.permute.xlu0 %3418
        %3420 = vrot.lane.b32.xlu0 %v2984, 18
        %v3421 = vpop.permute.xlu0 %3420
        %3422 = vrot.lane.b32.xlu0 %v2961, 18
        %v3423 = vpop.permute.xlu0 %3422
        %3424 = vrot.lane.b32.xlu0 %v2969, 18
        %v3425 = vpop.permute.xlu0 %3424
        %3426 = vrot.lane.b32.xlu0 %v2977, 18
        %v3427 = vpop.permute.xlu0 %3426
        %3428 = vrot.lane.b32.xlu0 %v2985, 18
        %v3429 = vpop.permute.xlu0 %3428
        %3430 = vrot.lane.b32.xlu0 %v2962, 18
        %v3431 = vpop.permute.xlu0 %3430
        %3432 = vrot.lane.b32.xlu0 %v2970, 18
        %v3433 = vpop.permute.xlu0 %3432
        %3434 = vrot.lane.b32.xlu0 %v2978, 18
        %v3435 = vpop.permute.xlu0 %3434
        %3436 = vrot.lane.b32.xlu0 %v2986, 18
        %v3437 = vpop.permute.xlu0 %3436
        %3438 = vrot.lane.b32.xlu0 %v2963, 18
        %v3439 = vpop.permute.xlu0 %3438
        %3440 = vrot.lane.b32.xlu0 %v2971, 18
        %v3441 = vpop.permute.xlu0 %3440
        %3442 = vrot.lane.b32.xlu0 %v2979, 18
        %v3443 = vpop.permute.xlu0 %3442
        %3444 = vrot.lane.b32.xlu0 %v2987, 18
        %v3445 = vpop.permute.xlu0 %3444
        %v3446 = vsel %vm565, %v3431, %v3439
        %v3447 = vsel %vm565, %v3433, %v3441
        %v3448 = vsel %vm565, %v3435, %v3443
        %v3449 = vsel %vm565, %v3437, %v3445
        %v3450 = vsel %vm565, %v3423, %v3431
        %v3451 = vsel %vm565, %v3425, %v3433
        %v3452 = vsel %vm565, %v3427, %v3435
        %v3453 = vsel %vm565, %v3429, %v3437
        %v3454 = vsel %vm565, %v3415, %v3423
        %v3455 = vsel %vm565, %v3417, %v3425
        %v3456 = vsel %vm565, %v3419, %v3427
        %v3457 = vsel %vm565, %v3421, %v3429
        %v3458 = vsel %vm565, %v3407, %v3415
        %v3459 = vsel %vm565, %v3409, %v3417
        %v3460 = vsel %vm565, %v3411, %v3419
        %v3461 = vsel %vm565, %v3413, %v3421
        %v3462 = vsel %vm565, %v3399, %v3407
        %v3463 = vsel %vm565, %v3401, %v3409
        %v3464 = vsel %vm565, %v3403, %v3411
        %v3465 = vsel %vm565, %v3405, %v3413
        %v3466 = vsel %vm565, %v3391, %v3399
        %v3467 = vsel %vm565, %v3393, %v3401
        %v3468 = vsel %vm565, %v3395, %v3403
        %v3469 = vsel %vm565, %v3397, %v3405
        %v3470 = vsel %vm565, %v3383, %v3391
        %v3471 = vsel %vm565, %v3385, %v3393
        %v3472 = vsel %vm565, %v3387, %v3395
        %v3473 = vsel %vm565, %v3389, %v3397
        %v3474 = vsel %vm565, %v3439, %v3383
        %v3475 = vsel %vm565, %v3441, %v3385
        %v3476 = vsel %vm565, %v3443, %v3387
        %v3477 = vsel %vm565, %v3445, %v3389
        %v3478 = vsel %vm582, %v3474, 0.0
        %v3479 = vsel %vm583, %v3470, 0.0
        %v3480 = vsel %vm584, %v3466, 0.0
        %v3481 = vsel %vm585, %v3462, 0.0
        %v3482 = vsel %vm586, %v3458, 0.0
        %v3483 = vsel %vm587, %v3454, 0.0
        %v3484 = vsel %vm588, %v3450, 0.0
        %v3485 = vsel %vm589, %v3446, 0.0
        %v3486 = vsel %vm582, %v3475, 0.0
        %v3487 = vsel %vm583, %v3471, 0.0
        %v3488 = vsel %vm584, %v3467, 0.0
        %v3489 = vsel %vm585, %v3463, 0.0
        %v3490 = vsel %vm586, %v3459, 0.0
        %v3491 = vsel %vm587, %v3455, 0.0
        %v3492 = vsel %vm588, %v3451, 0.0
        %v3493 = vsel %vm589, %v3447, 0.0
        %v3494 = vsel %vm582, %v3476, 0.0
        %v3495 = vsel %vm583, %v3472, 0.0
        %v3496 = vsel %vm584, %v3468, 0.0
        %v3497 = vsel %vm585, %v3464, 0.0
        %v3498 = vsel %vm586, %v3460, 0.0
        %v3499 = vsel %vm587, %v3456, 0.0
        %v3500 = vsel %vm588, %v3452, 0.0
        %v3501 = vsel %vm589, %v3448, 0.0
        %v3502 = vsel %vm582, %v3477, 0.0
        %v3503 = vsel %vm583, %v3473, 0.0
        %v3504 = vsel %vm584, %v3469, 0.0
        %v3505 = vsel %vm585, %v3465, 0.0
        %v3506 = vsel %vm586, %v3461, 0.0
        %v3507 = vsel %vm587, %v3457, 0.0
        %v3508 = vsel %vm588, %v3453, 0.0
        %v3509 = vsel %vm589, %v3449, 0.0
        %3510 = vrot.lane.b32.xlu0 %v2956, 9
        %v3511 = vpop.permute.xlu0 %3510
        %3512 = vrot.lane.b32.xlu0 %v2964, 9
        %v3513 = vpop.permute.xlu0 %3512
        %3514 = vrot.lane.b32.xlu0 %v2972, 9
        %v3515 = vpop.permute.xlu0 %3514
        %3516 = vrot.lane.b32.xlu0 %v2980, 9
        %v3517 = vpop.permute.xlu0 %3516
        %3518 = vrot.lane.b32.xlu0 %v2957, 9
        %v3519 = vpop.permute.xlu0 %3518
        %3520 = vrot.lane.b32.xlu0 %v2965, 9
        %v3521 = vpop.permute.xlu0 %3520
        %3522 = vrot.lane.b32.xlu0 %v2973, 9
        %v3523 = vpop.permute.xlu0 %3522
        %3524 = vrot.lane.b32.xlu0 %v2981, 9
        %v3525 = vpop.permute.xlu0 %3524
        %3526 = vrot.lane.b32.xlu0 %v2958, 9
        %v3527 = vpop.permute.xlu0 %3526
        %3528 = vrot.lane.b32.xlu0 %v2966, 9
        %v3529 = vpop.permute.xlu0 %3528
        %3530 = vrot.lane.b32.xlu0 %v2974, 9
        %v3531 = vpop.permute.xlu0 %3530
        %3532 = vrot.lane.b32.xlu0 %v2982, 9
        %v3533 = vpop.permute.xlu0 %3532
        %3534 = vrot.lane.b32.xlu0 %v2959, 9
        %v3535 = vpop.permute.xlu0 %3534
        %3536 = vrot.lane.b32.xlu0 %v2967, 9
        %v3537 = vpop.permute.xlu0 %3536
        %3538 = vrot.lane.b32.xlu0 %v2975, 9
        %v3539 = vpop.permute.xlu0 %3538
        %3540 = vrot.lane.b32.xlu0 %v2983, 9
        %v3541 = vpop.permute.xlu0 %3540
        %3542 = vrot.lane.b32.xlu0 %v2960, 9
        %v3543 = vpop.permute.xlu0 %3542
        %3544 = vrot.lane.b32.xlu0 %v2968, 9
        %v3545 = vpop.permute.xlu0 %3544
        %3546 = vrot.lane.b32.xlu0 %v2976, 9
        %v3547 = vpop.permute.xlu0 %3546
        %3548 = vrot.lane.b32.xlu0 %v2984, 9
        %v3549 = vpop.permute.xlu0 %3548
        %3550 = vrot.lane.b32.xlu0 %v2961, 9
        %v3551 = vpop.permute.xlu0 %3550
        %3552 = vrot.lane.b32.xlu0 %v2969, 9
        %v3553 = vpop.permute.xlu0 %3552
        %3554 = vrot.lane.b32.xlu0 %v2977, 9
        %v3555 = vpop.permute.xlu0 %3554
        %3556 = vrot.lane.b32.xlu0 %v2985, 9
        %v3557 = vpop.permute.xlu0 %3556
        %3558 = vrot.lane.b32.xlu0 %v2962, 9
        %v3559 = vpop.permute.xlu0 %3558
        %3560 = vrot.lane.b32.xlu0 %v2970, 9
        %v3561 = vpop.permute.xlu0 %3560
        %3562 = vrot.lane.b32.xlu0 %v2978, 9
        %v3563 = vpop.permute.xlu0 %3562
        %3564 = vrot.lane.b32.xlu0 %v2986, 9
        %v3565 = vpop.permute.xlu0 %3564
        %3566 = vrot.lane.b32.xlu0 %v2963, 9
        %v3567 = vpop.permute.xlu0 %3566
        %3568 = vrot.lane.b32.xlu0 %v2971, 9
        %v3569 = vpop.permute.xlu0 %3568
        %3570 = vrot.lane.b32.xlu0 %v2979, 9
        %v3571 = vpop.permute.xlu0 %3570
        %3572 = vrot.lane.b32.xlu0 %v2987, 9
        %v3573 = vpop.permute.xlu0 %3572
        %v3574 = vsel %vm614, %v3559, %v3567
        %v3575 = vsel %vm614, %v3561, %v3569
        %v3576 = vsel %vm614, %v3563, %v3571
        %v3577 = vsel %vm614, %v3565, %v3573
        %v3578 = vsel %vm614, %v3551, %v3559
        %v3579 = vsel %vm614, %v3553, %v3561
        %v3580 = vsel %vm614, %v3555, %v3563
        %v3581 = vsel %vm614, %v3557, %v3565
        %v3582 = vsel %vm614, %v3543, %v3551
        %v3583 = vsel %vm614, %v3545, %v3553
        %v3584 = vsel %vm614, %v3547, %v3555
        %v3585 = vsel %vm614, %v3549, %v3557
        %v3586 = vsel %vm614, %v3535, %v3543
        %v3587 = vsel %vm614, %v3537, %v3545
        %v3588 = vsel %vm614, %v3539, %v3547
        %v3589 = vsel %vm614, %v3541, %v3549
        %v3590 = vsel %vm614, %v3527, %v3535
        %v3591 = vsel %vm614, %v3529, %v3537
        %v3592 = vsel %vm614, %v3531, %v3539
        %v3593 = vsel %vm614, %v3533, %v3541
        %v3594 = vsel %vm614, %v3519, %v3527
        %v3595 = vsel %vm614, %v3521, %v3529
        %v3596 = vsel %vm614, %v3523, %v3531
        %v3597 = vsel %vm614, %v3525, %v3533
        %v3598 = vsel %vm614, %v3511, %v3519
        %v3599 = vsel %vm614, %v3513, %v3521
        %v3600 = vsel %vm614, %v3515, %v3523
        %v3601 = vsel %vm614, %v3517, %v3525
        %v3602 = vsel %vm614, %v3567, %v3511
        %v3603 = vsel %vm614, %v3569, %v3513
        %v3604 = vsel %vm614, %v3571, %v3515
        %v3605 = vsel %vm614, %v3573, %v3517
        %v3606 = vsel %vm631, %v3602, 0.0
        %v3607 = vsel %vm632, %v3598, 0.0
        %v3608 = vsel %vm633, %v3594, 0.0
        %v3609 = vsel %vm634, %v3590, 0.0
        %v3610 = vsel %vm635, %v3586, 0.0
        %v3611 = vsel %vm636, %v3582, 0.0
        %v3612 = vsel %vm637, %v3578, 0.0
        %v3613 = vsel %vm638, %v3574, 0.0
        %v3614 = vsel %vm631, %v3603, 0.0
        %v3615 = vsel %vm632, %v3599, 0.0
        %v3616 = vsel %vm633, %v3595, 0.0
        %v3617 = vsel %vm634, %v3591, 0.0
        %v3618 = vsel %vm635, %v3587, 0.0
        %v3619 = vsel %vm636, %v3583, 0.0
        %v3620 = vsel %vm637, %v3579, 0.0
        %v3621 = vsel %vm638, %v3575, 0.0
        %v3622 = vsel %vm631, %v3604, 0.0
        %v3623 = vsel %vm632, %v3600, 0.0
        %v3624 = vsel %vm633, %v3596, 0.0
        %v3625 = vsel %vm634, %v3592, 0.0
        %v3626 = vsel %vm635, %v3588, 0.0
        %v3627 = vsel %vm636, %v3584, 0.0
        %v3628 = vsel %vm637, %v3580, 0.0
        %v3629 = vsel %vm638, %v3576, 0.0
        %v3630 = vsel %vm631, %v3605, 0.0
        %v3631 = vsel %vm632, %v3601, 0.0
        %v3632 = vsel %vm633, %v3597, 0.0
        %v3633 = vsel %vm634, %v3593, 0.0
        %v3634 = vsel %vm635, %v3589, 0.0
        %v3635 = vsel %vm636, %v3585, 0.0
        %v3636 = vsel %vm637, %v3581, 0.0
        %v3637 = vsel %vm638, %v3577, 0.0
        %v3638 = vpack.c.bf16 %v3102, %v3094
        %v3639 = vpack.c.bf16 %v3103, %v3095
        %v3640 = vpack.c.bf16 %v3104, %v3096
        %v3641 = vpack.c.bf16 %v3105, %v3097
        %v3642 = vpack.c.bf16 %v3106, %v3098
        %v3643 = vpack.c.bf16 %v3107, %v3099
        %v3644 = vpack.c.bf16 %v3108, %v3100
        %v3645 = vpack.c.bf16 %v3109, %v3101
        %v3646 = vpack.c.bf16 %v3118, %v3110
        %v3647 = vpack.c.bf16 %v3119, %v3111
        %v3648 = vpack.c.bf16 %v3120, %v3112
        %v3649 = vpack.c.bf16 %v3121, %v3113
        %v3650 = vpack.c.bf16 %v3122, %v3114
        %v3651 = vpack.c.bf16 %v3123, %v3115
        %v3652 = vpack.c.bf16 %v3124, %v3116
        %v3653 = vpack.c.bf16 %v3125, %v3117
        %v3654 = vpack.c.bf16 %v3230, %v3222
        %v3655 = vpack.c.bf16 %v3231, %v3223
        %v3656 = vpack.c.bf16 %v3232, %v3224
        %v3657 = vpack.c.bf16 %v3233, %v3225
        %v3658 = vpack.c.bf16 %v3234, %v3226
        %v3659 = vpack.c.bf16 %v3235, %v3227
        %v3660 = vpack.c.bf16 %v3236, %v3228
        %v3661 = vpack.c.bf16 %v3237, %v3229
        %v3662 = vpack.c.bf16 %v3246, %v3238
        %v3663 = vpack.c.bf16 %v3247, %v3239
        %v3664 = vpack.c.bf16 %v3248, %v3240
        %v3665 = vpack.c.bf16 %v3249, %v3241
        %v3666 = vpack.c.bf16 %v3250, %v3242
        %v3667 = vpack.c.bf16 %v3251, %v3243
        %v3668 = vpack.c.bf16 %v3252, %v3244
        %v3669 = vpack.c.bf16 %v3253, %v3245
        %v3670 = vpack.c.bf16 %v3358, %v3350
        %v3671 = vpack.c.bf16 %v3359, %v3351
        %v3672 = vpack.c.bf16 %v3360, %v3352
        %v3673 = vpack.c.bf16 %v3361, %v3353
        %v3674 = vpack.c.bf16 %v3362, %v3354
        %v3675 = vpack.c.bf16 %v3363, %v3355
        %v3676 = vpack.c.bf16 %v3364, %v3356
        %v3677 = vpack.c.bf16 %v3365, %v3357
        %v3678 = vpack.c.bf16 %v3374, %v3366
        %v3679 = vpack.c.bf16 %v3375, %v3367
        %v3680 = vpack.c.bf16 %v3376, %v3368
        %v3681 = vpack.c.bf16 %v3377, %v3369
        %v3682 = vpack.c.bf16 %v3378, %v3370
        %v3683 = vpack.c.bf16 %v3379, %v3371
        %v3684 = vpack.c.bf16 %v3380, %v3372
        %v3685 = vpack.c.bf16 %v3381, %v3373
        %v3686 = vpack.c.bf16 %v3486, %v3478
        %v3687 = vpack.c.bf16 %v3487, %v3479
        %v3688 = vpack.c.bf16 %v3488, %v3480
        %v3689 = vpack.c.bf16 %v3489, %v3481
        %v3690 = vpack.c.bf16 %v3490, %v3482
        %v3691 = vpack.c.bf16 %v3491, %v3483
        %v3692 = vpack.c.bf16 %v3492, %v3484
        %v3693 = vpack.c.bf16 %v3493, %v3485
        %v3694 = vpack.c.bf16 %v3502, %v3494
        %v3695 = vpack.c.bf16 %v3503, %v3495
        %v3696 = vpack.c.bf16 %v3504, %v3496
        %v3697 = vpack.c.bf16 %v3505, %v3497
        %v3698 = vpack.c.bf16 %v3506, %v3498
        %v3699 = vpack.c.bf16 %v3507, %v3499
        %v3700 = vpack.c.bf16 %v3508, %v3500
        %v3701 = vpack.c.bf16 %v3509, %v3501
        %v3702 = vpack.c.bf16 %v3614, %v3606
        %v3703 = vpack.c.bf16 %v3615, %v3607
        %v3704 = vpack.c.bf16 %v3616, %v3608
        %v3705 = vpack.c.bf16 %v3617, %v3609
        %v3706 = vpack.c.bf16 %v3618, %v3610
        %v3707 = vpack.c.bf16 %v3619, %v3611
        %v3708 = vpack.c.bf16 %v3620, %v3612
        %v3709 = vpack.c.bf16 %v3621, %v3613
        %v3710 = vpack.c.bf16 %v3630, %v3622
        %v3711 = vpack.c.bf16 %v3631, %v3623
        %v3712 = vpack.c.bf16 %v3632, %v3624
        %v3713 = vpack.c.bf16 %v3633, %v3625
        %v3714 = vpack.c.bf16 %v3634, %v3626
        %v3715 = vpack.c.bf16 %v3635, %v3627
        %v3716 = vpack.c.bf16 %v3636, %v3628
        %v3717 = vpack.c.bf16 %v3637, %v3629
        %v3718 = vpack.c.bf16 %v2964, %v2956
        %v3719 = vpack.c.bf16 %v2965, %v2957
        %v3720 = vpack.c.bf16 %v2966, %v2958
        %v3721 = vpack.c.bf16 %v2967, %v2959
        %v3722 = vpack.c.bf16 %v2968, %v2960
        %v3723 = vpack.c.bf16 %v2969, %v2961
        %v3724 = vpack.c.bf16 %v2970, %v2962
        %v3725 = vpack.c.bf16 %v2971, %v2963
        %v3726 = vpack.c.bf16 %v2980, %v2972
        %v3727 = vpack.c.bf16 %v2981, %v2973
        %v3728 = vpack.c.bf16 %v2982, %v2974
        %v3729 = vpack.c.bf16 %v2983, %v2975
        %v3730 = vpack.c.bf16 %v2984, %v2976
        %v3731 = vpack.c.bf16 %v2985, %v2977
        %v3732 = vpack.c.bf16 %v2986, %v2978
        %v3733 = vpack.c.bf16 %v2987, %v2979
        %3734 = vset.pattern.permute.xlu0 2
        %3735 = vperm.xlu0 %3734, %v2538
        %v3736 = vpop.permute.xlu0 %3735
        %3738 = vset.pattern.permute.xlu0 2
        %3739 = vperm.xlu0 %3738, %v2539
        %v3740 = vpop.permute.xlu0 %3739
        %3742 = vset.pattern.permute.xlu0 2
        %3743 = vperm.xlu0 %3742, %v2540
        %v3744 = vpop.permute.xlu0 %3743
        %3746 = vset.pattern.permute.xlu0 2
        %3747 = vperm.xlu0 %3746, %v2541
        %v3748 = vpop.permute.xlu0 %3747
        %v3754 = vunpack.c.l.b16 %v2989
        %v3755 = vunpack.c.h.b16 %v2989
        %v3756 = vunpack.c.l.b16 %v2990
        %v3757 = vunpack.c.h.b16 %v2990
        %v3758 = vunpack.c.l.b16 %v2991
        %v3759 = vunpack.c.h.b16 %v2991
        %v3760 = vunpack.c.l.b16 %v2992
        %v3761 = vunpack.c.h.b16 %v2992
        %v3762 = vpack.c.b16 %v3756, %v3754
        %v3763 = vpack.c.b16 %v3757, %v3755
        %v3764 = vpack.c.b16 %v3760, %v3758
        %v3765 = vpack.c.b16 %v3761, %v3759
        %vm3768 = vcmask 523264
        %v3770 = vsel %vm3768, %v3763, 0
        %v3773 = vsel %vm3768, %v3765, 0
        %3775 = vmatpush.bf16.msra.mxu0 %v3694
        %3776 = vmatpush.bf16.msra.mxu0 %v3686
        %3777 = vmatpush.bf16.msra.mxu0 %v3678
        %3778 = vmatpush.bf16.msra.mxu0 %v3670
        %3779 = vmatpush.bf16.msra.mxu0 %v3662
        %3780 = vmatpush.bf16.msra.mxu0 %v3654
        %3781 = vmatpush.bf16.msra.mxu0 %v3646
        %3782 = vmatpush.bf16.msra.mxu0 %v3638
        %3783 = vmatmul.bf16.gmra.mxu0 %v3762
        %v3784 = vpop.f32.mrf.mxu0
        %v3785 = vadd.f32 %v3736, %v3784
        %v3786 = vpop.f32.mrf.mxu0
        %v3787 = vadd.f32 %v3740, %v3786
        %3788 = vmatmul.bf16.gmra.mxu0 %v3764
        %v3789 = vpop.f32.mrf.mxu0
        %v3790 = vadd.f32 %v3744, %v3789
        %v3791 = vpop.f32.mrf.mxu0
        %v3792 = vadd.f32 %v3748, %v3791
        %3793 = vdwg.mxu0
        %3794 = vmatpush.bf16.msra.mxu0 0
        %3795 = vmatpush.bf16.msra.mxu0 0
        %3796 = vmatpush.bf16.msra.mxu0 0
        %3797 = vmatpush.bf16.msra.mxu0 0
        %3798 = vmatpush.bf16.msra.mxu0 %v3726
        %3799 = vmatpush.bf16.msra.mxu0 %v3718
        %3800 = vmatpush.bf16.msra.mxu0 %v3710
        %3801 = vmatpush.bf16.msra.mxu0 %v3702
        %3802 = vmatmul.bf16.gmra.mxu0 %v3770
        %v3803 = vpop.f32.mrf.mxu0
        %v3804 = vadd.f32 %v3785, %v3803
        %v3805 = vpop.f32.mrf.mxu0
        %v3806 = vadd.f32 %v3787, %v3805
        %3807 = vmatmul.bf16.gmra.mxu0 %v3773
        %v3808 = vpop.f32.mrf.mxu0
        %v3809 = vadd.f32 %v3790, %v3808
        %v3810 = vpop.f32.mrf.mxu0
        %v3811 = vadd.f32 %v3792, %v3810
        %3812 = vdwg.mxu0
        %3813 = vmatpush.bf16.msra.mxu0 %v3695
        %3814 = vmatpush.bf16.msra.mxu0 %v3687
        %3815 = vmatpush.bf16.msra.mxu0 %v3679
        %3816 = vmatpush.bf16.msra.mxu0 %v3671
        %3817 = vmatpush.bf16.msra.mxu0 %v3663
        %3818 = vmatpush.bf16.msra.mxu0 %v3655
        %3819 = vmatpush.bf16.msra.mxu0 %v3647
        %3820 = vmatpush.bf16.msra.mxu0 %v3639
        %3821 = vmatmul.bf16.gmra.mxu0 %v3762
        %v3822 = vpop.f32.mrf.mxu0
        %v3823 = vadd.f32 %v3736, %v3822
        %v3824 = vpop.f32.mrf.mxu0
        %v3825 = vadd.f32 %v3740, %v3824
        %3826 = vmatmul.bf16.gmra.mxu0 %v3764
        %v3827 = vpop.f32.mrf.mxu0
        %v3828 = vadd.f32 %v3744, %v3827
        %v3829 = vpop.f32.mrf.mxu0
        %v3830 = vadd.f32 %v3748, %v3829
        %3831 = vdwg.mxu0
        %3832 = vmatpush.bf16.msra.mxu0 0
        %3833 = vmatpush.bf16.msra.mxu0 0
        %3834 = vmatpush.bf16.msra.mxu0 0
        %3835 = vmatpush.bf16.msra.mxu0 0
        %3836 = vmatpush.bf16.msra.mxu0 %v3727
        %3837 = vmatpush.bf16.msra.mxu0 %v3719
        %3838 = vmatpush.bf16.msra.mxu0 %v3711
        %3839 = vmatpush.bf16.msra.mxu0 %v3703
        %3840 = vmatmul.bf16.gmra.mxu0 %v3770
        %v3841 = vpop.f32.mrf.mxu0
        %v3842 = vadd.f32 %v3823, %v3841
        %v3843 = vpop.f32.mrf.mxu0
        %v3844 = vadd.f32 %v3825, %v3843
        %3845 = vmatmul.bf16.gmra.mxu0 %v3773
        %v3846 = vpop.f32.mrf.mxu0
        %v3847 = vadd.f32 %v3828, %v3846
        %v3848 = vpop.f32.mrf.mxu0
        %v3849 = vadd.f32 %v3830, %v3848
        %3850 = vdwg.mxu0
        %3851 = vmatpush.bf16.msra.mxu0 %v3696
        %3852 = vmatpush.bf16.msra.mxu0 %v3688
        %3853 = vmatpush.bf16.msra.mxu0 %v3680
        %3854 = vmatpush.bf16.msra.mxu0 %v3672
        %3855 = vmatpush.bf16.msra.mxu0 %v3664
        %3856 = vmatpush.bf16.msra.mxu0 %v3656
        %3857 = vmatpush.bf16.msra.mxu0 %v3648
        %3858 = vmatpush.bf16.msra.mxu0 %v3640
        %3859 = vmatmul.bf16.gmra.mxu0 %v3762
        %v3860 = vpop.f32.mrf.mxu0
        %v3861 = vadd.f32 %v3736, %v3860
        %v3862 = vpop.f32.mrf.mxu0
        %v3863 = vadd.f32 %v3740, %v3862
        %3864 = vmatmul.bf16.gmra.mxu0 %v3764
        %v3865 = vpop.f32.mrf.mxu0
        %v3866 = vadd.f32 %v3744, %v3865
        %v3867 = vpop.f32.mrf.mxu0
        %v3868 = vadd.f32 %v3748, %v3867
        %3869 = vdwg.mxu0
        %3870 = vmatpush.bf16.msra.mxu0 0
        %3871 = vmatpush.bf16.msra.mxu0 0
        %3872 = vmatpush.bf16.msra.mxu0 0
        %3873 = vmatpush.bf16.msra.mxu0 0
        %3874 = vmatpush.bf16.msra.mxu0 %v3728
        %3875 = vmatpush.bf16.msra.mxu0 %v3720
        %3876 = vmatpush.bf16.msra.mxu0 %v3712
        %3877 = vmatpush.bf16.msra.mxu0 %v3704
        %3878 = vmatmul.bf16.gmra.mxu0 %v3770
        %v3879 = vpop.f32.mrf.mxu0
        %v3880 = vadd.f32 %v3861, %v3879
        %v3881 = vpop.f32.mrf.mxu0
        %v3882 = vadd.f32 %v3863, %v3881
        %3883 = vmatmul.bf16.gmra.mxu0 %v3773
        %v3884 = vpop.f32.mrf.mxu0
        %v3885 = vadd.f32 %v3866, %v3884
        %v3886 = vpop.f32.mrf.mxu0
        %v3887 = vadd.f32 %v3868, %v3886
        %3888 = vdwg.mxu0
        %3889 = vmatpush.bf16.msra.mxu0 %v3697
        %3890 = vmatpush.bf16.msra.mxu0 %v3689
        %3891 = vmatpush.bf16.msra.mxu0 %v3681
        %3892 = vmatpush.bf16.msra.mxu0 %v3673
        %3893 = vmatpush.bf16.msra.mxu0 %v3665
        %3894 = vmatpush.bf16.msra.mxu0 %v3657
        %3895 = vmatpush.bf16.msra.mxu0 %v3649
        %3896 = vmatpush.bf16.msra.mxu0 %v3641
        %3897 = vmatmul.bf16.gmra.mxu0 %v3762
        %v3898 = vpop.f32.mrf.mxu0
        %v3899 = vadd.f32 %v3736, %v3898
        %v3900 = vpop.f32.mrf.mxu0
        %v3901 = vadd.f32 %v3740, %v3900
        %3902 = vmatmul.bf16.gmra.mxu0 %v3764
        %v3903 = vpop.f32.mrf.mxu0
        %v3904 = vadd.f32 %v3744, %v3903
        %v3905 = vpop.f32.mrf.mxu0
        %v3906 = vadd.f32 %v3748, %v3905
        %3907 = vdwg.mxu0
        %3908 = vmatpush.bf16.msra.mxu0 0
        %3909 = vmatpush.bf16.msra.mxu0 0
        %3910 = vmatpush.bf16.msra.mxu0 0
        %3911 = vmatpush.bf16.msra.mxu0 0
        %3912 = vmatpush.bf16.msra.mxu0 %v3729
        %3913 = vmatpush.bf16.msra.mxu0 %v3721
        %3914 = vmatpush.bf16.msra.mxu0 %v3713
        %3915 = vmatpush.bf16.msra.mxu0 %v3705
        %3916 = vmatmul.bf16.gmra.mxu0 %v3770
        %v3917 = vpop.f32.mrf.mxu0
        %v3918 = vadd.f32 %v3899, %v3917
        %v3919 = vpop.f32.mrf.mxu0
        %v3920 = vadd.f32 %v3901, %v3919
        %3921 = vmatmul.bf16.gmra.mxu0 %v3773
        %v3922 = vpop.f32.mrf.mxu0
        %v3923 = vadd.f32 %v3904, %v3922
        %v3924 = vpop.f32.mrf.mxu0
        %v3925 = vadd.f32 %v3906, %v3924
        %3926 = vdwg.mxu0
        %3927 = vmatpush.bf16.msra.mxu0 %v3698
        %3928 = vmatpush.bf16.msra.mxu0 %v3690
        %3929 = vmatpush.bf16.msra.mxu0 %v3682
        %3930 = vmatpush.bf16.msra.mxu0 %v3674
        %3931 = vmatpush.bf16.msra.mxu0 %v3666
        %3932 = vmatpush.bf16.msra.mxu0 %v3658
        %3933 = vmatpush.bf16.msra.mxu0 %v3650
        %3934 = vmatpush.bf16.msra.mxu0 %v3642
        %3935 = vmatmul.bf16.gmra.mxu0 %v3762
        %v3936 = vpop.f32.mrf.mxu0
        %v3937 = vadd.f32 %v3736, %v3936
        %v3938 = vpop.f32.mrf.mxu0
        %v3939 = vadd.f32 %v3740, %v3938
        %3940 = vmatmul.bf16.gmra.mxu0 %v3764
        %v3941 = vpop.f32.mrf.mxu0
        %v3942 = vadd.f32 %v3744, %v3941
        %v3943 = vpop.f32.mrf.mxu0
        %v3944 = vadd.f32 %v3748, %v3943
        %3945 = vdwg.mxu0
        %3946 = vmatpush.bf16.msra.mxu0 0
        %3947 = vmatpush.bf16.msra.mxu0 0
        %3948 = vmatpush.bf16.msra.mxu0 0
        %3949 = vmatpush.bf16.msra.mxu0 0
        %3950 = vmatpush.bf16.msra.mxu0 %v3730
        %3951 = vmatpush.bf16.msra.mxu0 %v3722
        %3952 = vmatpush.bf16.msra.mxu0 %v3714
        %3953 = vmatpush.bf16.msra.mxu0 %v3706
        %3954 = vmatmul.bf16.gmra.mxu0 %v3770
        %v3955 = vpop.f32.mrf.mxu0
        %v3956 = vadd.f32 %v3937, %v3955
        %v3957 = vpop.f32.mrf.mxu0
        %v3958 = vadd.f32 %v3939, %v3957
        %3959 = vmatmul.bf16.gmra.mxu0 %v3773
        %v3960 = vpop.f32.mrf.mxu0
        %v3961 = vadd.f32 %v3942, %v3960
        %v3962 = vpop.f32.mrf.mxu0
        %v3963 = vadd.f32 %v3944, %v3962
        %3964 = vdwg.mxu0
        %3965 = vmatpush.bf16.msra.mxu0 %v3699
        %3966 = vmatpush.bf16.msra.mxu0 %v3691
        %3967 = vmatpush.bf16.msra.mxu0 %v3683
        %3968 = vmatpush.bf16.msra.mxu0 %v3675
        %3969 = vmatpush.bf16.msra.mxu0 %v3667
        %3970 = vmatpush.bf16.msra.mxu0 %v3659
        %3971 = vmatpush.bf16.msra.mxu0 %v3651
        %3972 = vmatpush.bf16.msra.mxu0 %v3643
        %3973 = vmatmul.bf16.gmra.mxu0 %v3762
        %v3974 = vpop.f32.mrf.mxu0
        %v3975 = vadd.f32 %v3736, %v3974
        %v3976 = vpop.f32.mrf.mxu0
        %v3977 = vadd.f32 %v3740, %v3976
        %3978 = vmatmul.bf16.gmra.mxu0 %v3764
        %v3979 = vpop.f32.mrf.mxu0
        %v3980 = vadd.f32 %v3744, %v3979
        %v3981 = vpop.f32.mrf.mxu0
        %v3982 = vadd.f32 %v3748, %v3981
        %3983 = vdwg.mxu0
        %3984 = vmatpush.bf16.msra.mxu0 0
        %3985 = vmatpush.bf16.msra.mxu0 0
        %3986 = vmatpush.bf16.msra.mxu0 0
        %3987 = vmatpush.bf16.msra.mxu0 0
        %3988 = vmatpush.bf16.msra.mxu0 %v3731
        %3989 = vmatpush.bf16.msra.mxu0 %v3723
        %3990 = vmatpush.bf16.msra.mxu0 %v3715
        %3991 = vmatpush.bf16.msra.mxu0 %v3707
        %3992 = vmatmul.bf16.gmra.mxu0 %v3770
        %v3993 = vpop.f32.mrf.mxu0
        %v3994 = vadd.f32 %v3975, %v3993
        %v3995 = vpop.f32.mrf.mxu0
        %v3996 = vadd.f32 %v3977, %v3995
        %3997 = vmatmul.bf16.gmra.mxu0 %v3773
        %v3998 = vpop.f32.mrf.mxu0
        %v3999 = vadd.f32 %v3980, %v3998
        %v4000 = vpop.f32.mrf.mxu0
        %v4001 = vadd.f32 %v3982, %v4000
        %4002 = vdwg.mxu0
        %4003 = vmatpush.bf16.msra.mxu0 %v3700
        %4004 = vmatpush.bf16.msra.mxu0 %v3692
        %4005 = vmatpush.bf16.msra.mxu0 %v3684
        %4006 = vmatpush.bf16.msra.mxu0 %v3676
        %4007 = vmatpush.bf16.msra.mxu0 %v3668
        %4008 = vmatpush.bf16.msra.mxu0 %v3660
        %4009 = vmatpush.bf16.msra.mxu0 %v3652
        %4010 = vmatpush.bf16.msra.mxu0 %v3644
        %4011 = vmatmul.bf16.gmra.mxu0 %v3762
        %v4012 = vpop.f32.mrf.mxu0
        %v4013 = vadd.f32 %v3736, %v4012
        %v4014 = vpop.f32.mrf.mxu0
        %v4015 = vadd.f32 %v3740, %v4014
        %4016 = vmatmul.bf16.gmra.mxu0 %v3764
        %v4017 = vpop.f32.mrf.mxu0
        %v4018 = vadd.f32 %v3744, %v4017
        %v4019 = vpop.f32.mrf.mxu0
        %v4020 = vadd.f32 %v3748, %v4019
        %4021 = vdwg.mxu0
        %4022 = vmatpush.bf16.msra.mxu0 0
        %4023 = vmatpush.bf16.msra.mxu0 0
        %4024 = vmatpush.bf16.msra.mxu0 0
        %4025 = vmatpush.bf16.msra.mxu0 0
        %4026 = vmatpush.bf16.msra.mxu0 %v3732
        %4027 = vmatpush.bf16.msra.mxu0 %v3724
        %4028 = vmatpush.bf16.msra.mxu0 %v3716
        %4029 = vmatpush.bf16.msra.mxu0 %v3708
        %4030 = vmatmul.bf16.gmra.mxu0 %v3770
        %v4031 = vpop.f32.mrf.mxu0
        %v4032 = vadd.f32 %v4013, %v4031
        %v4033 = vpop.f32.mrf.mxu0
        %v4034 = vadd.f32 %v4015, %v4033
        %4035 = vmatmul.bf16.gmra.mxu0 %v3773
        %v4036 = vpop.f32.mrf.mxu0
        %v4037 = vadd.f32 %v4018, %v4036
        %v4038 = vpop.f32.mrf.mxu0
        %v4039 = vadd.f32 %v4020, %v4038
        %4040 = vdwg.mxu0
        %4041 = vmatpush.bf16.msra.mxu0 %v3701
        %4042 = vmatpush.bf16.msra.mxu0 %v3693
        %4043 = vmatpush.bf16.msra.mxu0 %v3685
        %4044 = vmatpush.bf16.msra.mxu0 %v3677
        %4045 = vmatpush.bf16.msra.mxu0 %v3669
        %4046 = vmatpush.bf16.msra.mxu0 %v3661
        %4047 = vmatpush.bf16.msra.mxu0 %v3653
        %4048 = vmatpush.bf16.msra.mxu0 %v3645
        %4049 = vmatmul.bf16.gmra.mxu0 %v3762
        %v4050 = vpop.f32.mrf.mxu0
        %v4051 = vadd.f32 %v3736, %v4050
        %v4052 = vpop.f32.mrf.mxu0
        %v4053 = vadd.f32 %v3740, %v4052
        %4054 = vmatmul.bf16.gmra.mxu0 %v3764
        %v4055 = vpop.f32.mrf.mxu0
        %v4056 = vadd.f32 %v3744, %v4055
        %v4057 = vpop.f32.mrf.mxu0
        %v4058 = vadd.f32 %v3748, %v4057
        %4059 = vdwg.mxu0
        %4060 = vmatpush.bf16.msra.mxu0 0
        %4061 = vmatpush.bf16.msra.mxu0 0
        %4062 = vmatpush.bf16.msra.mxu0 0
        %4063 = vmatpush.bf16.msra.mxu0 0
        %4064 = vmatpush.bf16.msra.mxu0 %v3733
        %4065 = vmatpush.bf16.msra.mxu0 %v3725
        %4066 = vmatpush.bf16.msra.mxu0 %v3717
        %4067 = vmatpush.bf16.msra.mxu0 %v3709
        %4068 = vmatmul.bf16.gmra.mxu0 %v3770
        %v4069 = vpop.f32.mrf.mxu0
        %v4070 = vadd.f32 %v4051, %v4069
        %v4071 = vpop.f32.mrf.mxu0
        %v4072 = vadd.f32 %v4053, %v4071
        %4073 = vmatmul.bf16.gmra.mxu0 %v3773
        %v4074 = vpop.f32.mrf.mxu0
        %v4075 = vadd.f32 %v4056, %v4074
        %v4076 = vpop.f32.mrf.mxu0
        %v4077 = vadd.f32 %v4058, %v4076
        %4078 = vdwg.mxu0
        %v4079 = vmax.f32 %v3804, 0.0
        %v4080 = vmax.f32 %v3842, 0.0
        %v4081 = vmax.f32 %v3880, 0.0
        %v4082 = vmax.f32 %v3918, 0.0
        %v4083 = vmax.f32 %v3956, 0.0
        %v4084 = vmax.f32 %v3994, 0.0
        %v4085 = vmax.f32 %v4032, 0.0
        %v4086 = vmax.f32 %v4070, 0.0
        %v4087 = vmax.f32 %v3806, 0.0
        %v4088 = vmax.f32 %v3844, 0.0
        %v4089 = vmax.f32 %v3882, 0.0
        %v4090 = vmax.f32 %v3920, 0.0
        %v4091 = vmax.f32 %v3958, 0.0
        %v4092 = vmax.f32 %v3996, 0.0
        %v4093 = vmax.f32 %v4034, 0.0
        %v4094 = vmax.f32 %v4072, 0.0
        %v4095 = vmax.f32 %v3809, 0.0
        %v4096 = vmax.f32 %v3847, 0.0
        %v4097 = vmax.f32 %v3885, 0.0
        %v4098 = vmax.f32 %v3923, 0.0
        %v4099 = vmax.f32 %v3961, 0.0
        %v4100 = vmax.f32 %v3999, 0.0
        %v4101 = vmax.f32 %v4037, 0.0
        %v4102 = vmax.f32 %v4075, 0.0
        %v4103 = vmax.f32 %v3811, 0.0
        %v4104 = vmax.f32 %v3849, 0.0
        %v4105 = vmax.f32 %v3887, 0.0
        %v4106 = vmax.f32 %v3925, 0.0
        %v4107 = vmax.f32 %v3963, 0.0
        %v4108 = vmax.f32 %v4001, 0.0
        %v4109 = vmax.f32 %v4039, 0.0
        %v4110 = vmax.f32 %v4077, 0.0
        %4111 = vrot.lane.b32.xlu0 %v4079, 45
        %v4112 = vpop.permute.xlu0 %4111
        %4113 = vrot.lane.b32.xlu0 %v4087, 45
        %v4114 = vpop.permute.xlu0 %4113
        %4115 = vrot.lane.b32.xlu0 %v4095, 45
        %v4116 = vpop.permute.xlu0 %4115
        %4117 = vrot.lane.b32.xlu0 %v4103, 45
        %v4118 = vpop.permute.xlu0 %4117
        %4119 = vrot.lane.b32.xlu0 %v4080, 45
        %v4120 = vpop.permute.xlu0 %4119
        %4121 = vrot.lane.b32.xlu0 %v4088, 45
        %v4122 = vpop.permute.xlu0 %4121
        %4123 = vrot.lane.b32.xlu0 %v4096, 45
        %v4124 = vpop.permute.xlu0 %4123
        %4125 = vrot.lane.b32.xlu0 %v4104, 45
        %v4126 = vpop.permute.xlu0 %4125
        %4127 = vrot.lane.b32.xlu0 %v4081, 45
        %v4128 = vpop.permute.xlu0 %4127
        %4129 = vrot.lane.b32.xlu0 %v4089, 45
        %v4130 = vpop.permute.xlu0 %4129
        %4131 = vrot.lane.b32.xlu0 %v4097, 45
        %v4132 = vpop.permute.xlu0 %4131
        %4133 = vrot.lane.b32.xlu0 %v4105, 45
        %v4134 = vpop.permute.xlu0 %4133
        %4135 = vrot.lane.b32.xlu0 %v4082, 45
        %v4136 = vpop.permute.xlu0 %4135
        %4137 = vrot.lane.b32.xlu0 %v4090, 45
        %v4138 = vpop.permute.xlu0 %4137
        %4139 = vrot.lane.b32.xlu0 %v4098, 45
        %v4140 = vpop.permute.xlu0 %4139
        %4141 = vrot.lane.b32.xlu0 %v4106, 45
        %v4142 = vpop.permute.xlu0 %4141
        %4143 = vrot.lane.b32.xlu0 %v4083, 45
        %v4144 = vpop.permute.xlu0 %4143
        %4145 = vrot.lane.b32.xlu0 %v4091, 45
        %v4146 = vpop.permute.xlu0 %4145
        %4147 = vrot.lane.b32.xlu0 %v4099, 45
        %v4148 = vpop.permute.xlu0 %4147
        %4149 = vrot.lane.b32.xlu0 %v4107, 45
        %v4150 = vpop.permute.xlu0 %4149
        %4151 = vrot.lane.b32.xlu0 %v4084, 45
        %v4152 = vpop.permute.xlu0 %4151
        %4153 = vrot.lane.b32.xlu0 %v4092, 45
        %v4154 = vpop.permute.xlu0 %4153
        %4155 = vrot.lane.b32.xlu0 %v4100, 45
        %v4156 = vpop.permute.xlu0 %4155
        %4157 = vrot.lane.b32.xlu0 %v4108, 45
        %v4158 = vpop.permute.xlu0 %4157
        %4159 = vrot.lane.b32.xlu0 %v4085, 45
        %v4160 = vpop.permute.xlu0 %4159
        %4161 = vrot.lane.b32.xlu0 %v4093, 45
        %v4162 = vpop.permute.xlu0 %4161
        %4163 = vrot.lane.b32.xlu0 %v4101, 45
        %v4164 = vpop.permute.xlu0 %4163
        %4165 = vrot.lane.b32.xlu0 %v4109, 45
        %v4166 = vpop.permute.xlu0 %4165
        %4167 = vrot.lane.b32.xlu0 %v4086, 45
        %v4168 = vpop.permute.xlu0 %4167
        %4169 = vrot.lane.b32.xlu0 %v4094, 45
        %v4170 = vpop.permute.xlu0 %4169
        %4171 = vrot.lane.b32.xlu0 %v4102, 45
        %v4172 = vpop.permute.xlu0 %4171
        %4173 = vrot.lane.b32.xlu0 %v4110, 45
        %v4174 = vpop.permute.xlu0 %4173
        %v4175 = vsel %vm418, %v4160, %v4168
        %v4176 = vsel %vm418, %v4162, %v4170
        %v4177 = vsel %vm418, %v4164, %v4172
        %v4178 = vsel %vm418, %v4166, %v4174
        %v4179 = vsel %vm418, %v4152, %v4160
        %v4180 = vsel %vm418, %v4154, %v4162
        %v4181 = vsel %vm418, %v4156, %v4164
        %v4182 = vsel %vm418, %v4158, %v4166
        %v4183 = vsel %vm418, %v4144, %v4152
        %v4184 = vsel %vm418, %v4146, %v4154
        %v4185 = vsel %vm418, %v4148, %v4156
        %v4186 = vsel %vm418, %v4150, %v4158
        %v4187 = vsel %vm418, %v4136, %v4144
        %v4188 = vsel %vm418, %v4138, %v4146
        %v4189 = vsel %vm418, %v4140, %v4148
        %v4190 = vsel %vm418, %v4142, %v4150
        %v4191 = vsel %vm418, %v4128, %v4136
        %v4192 = vsel %vm418, %v4130, %v4138
        %v4193 = vsel %vm418, %v4132, %v4140
        %v4194 = vsel %vm418, %v4134, %v4142
        %v4195 = vsel %vm418, %v4120, %v4128
        %v4196 = vsel %vm418, %v4122, %v4130
        %v4197 = vsel %vm418, %v4124, %v4132
        %v4198 = vsel %vm418, %v4126, %v4134
        %v4199 = vsel %vm418, %v4112, %v4120
        %v4200 = vsel %vm418, %v4114, %v4122
        %v4201 = vsel %vm418, %v4116, %v4124
        %v4202 = vsel %vm418, %v4118, %v4126
        %v4203 = vsel %vm418, %v4168, %v4112
        %v4204 = vsel %vm418, %v4170, %v4114
        %v4205 = vsel %vm418, %v4172, %v4116
        %v4206 = vsel %vm418, %v4174, %v4118
        %v4207 = vsel %vm435, %v4203, 0.0
        %v4208 = vsel %vm436, %v4199, 0.0
        %v4209 = vsel %vm437, %v4195, 0.0
        %v4210 = vsel %vm438, %v4191, 0.0
        %v4211 = vsel %vm439, %v4187, 0.0
        %v4212 = vsel %vm440, %v4183, 0.0
        %v4213 = vsel %vm441, %v4179, 0.0
        %v4214 = vsel %vm442, %v4175, 0.0
        %v4215 = vsel %vm435, %v4204, 0.0
        %v4216 = vsel %vm436, %v4200, 0.0
        %v4217 = vsel %vm437, %v4196, 0.0
        %v4218 = vsel %vm438, %v4192, 0.0
        %v4219 = vsel %vm439, %v4188, 0.0
        %v4220 = vsel %vm440, %v4184, 0.0
        %v4221 = vsel %vm441, %v4180, 0.0
        %v4222 = vsel %vm442, %v4176, 0.0
        %v4223 = vsel %vm435, %v4205, 0.0
        %v4224 = vsel %vm436, %v4201, 0.0
        %v4225 = vsel %vm437, %v4197, 0.0
        %v4226 = vsel %vm438, %v4193, 0.0
        %v4227 = vsel %vm439, %v4189, 0.0
        %v4228 = vsel %vm440, %v4185, 0.0
        %v4229 = vsel %vm441, %v4181, 0.0
        %v4230 = vsel %vm442, %v4177, 0.0
        %v4231 = vsel %vm435, %v4206, 0.0
        %v4232 = vsel %vm436, %v4202, 0.0
        %v4233 = vsel %vm437, %v4198, 0.0
        %v4234 = vsel %vm438, %v4194, 0.0
        %v4235 = vsel %vm439, %v4190, 0.0
        %v4236 = vsel %vm440, %v4186, 0.0
        %v4237 = vsel %vm441, %v4182, 0.0
        %v4238 = vsel %vm442, %v4178, 0.0
        %4239 = vrot.lane.b32.xlu0 %v4079, 36
        %v4240 = vpop.permute.xlu0 %4239
        %4241 = vrot.lane.b32.xlu0 %v4087, 36
        %v4242 = vpop.permute.xlu0 %4241
        %4243 = vrot.lane.b32.xlu0 %v4095, 36
        %v4244 = vpop.permute.xlu0 %4243
        %4245 = vrot.lane.b32.xlu0 %v4103, 36
        %v4246 = vpop.permute.xlu0 %4245
        %4247 = vrot.lane.b32.xlu0 %v4080, 36
        %v4248 = vpop.permute.xlu0 %4247
        %4249 = vrot.lane.b32.xlu0 %v4088, 36
        %v4250 = vpop.permute.xlu0 %4249
        %4251 = vrot.lane.b32.xlu0 %v4096, 36
        %v4252 = vpop.permute.xlu0 %4251
        %4253 = vrot.lane.b32.xlu0 %v4104, 36
        %v4254 = vpop.permute.xlu0 %4253
        %4255 = vrot.lane.b32.xlu0 %v4081, 36
        %v4256 = vpop.permute.xlu0 %4255
        %4257 = vrot.lane.b32.xlu0 %v4089, 36
        %v4258 = vpop.permute.xlu0 %4257
        %4259 = vrot.lane.b32.xlu0 %v4097, 36
        %v4260 = vpop.permute.xlu0 %4259
        %4261 = vrot.lane.b32.xlu0 %v4105, 36
        %v4262 = vpop.permute.xlu0 %4261
        %4263 = vrot.lane.b32.xlu0 %v4082, 36
        %v4264 = vpop.permute.xlu0 %4263
        %4265 = vrot.lane.b32.xlu0 %v4090, 36
        %v4266 = vpop.permute.xlu0 %4265
        %4267 = vrot.lane.b32.xlu0 %v4098, 36
        %v4268 = vpop.permute.xlu0 %4267
        %4269 = vrot.lane.b32.xlu0 %v4106, 36
        %v4270 = vpop.permute.xlu0 %4269
        %4271 = vrot.lane.b32.xlu0 %v4083, 36
        %v4272 = vpop.permute.xlu0 %4271
        %4273 = vrot.lane.b32.xlu0 %v4091, 36
        %v4274 = vpop.permute.xlu0 %4273
        %4275 = vrot.lane.b32.xlu0 %v4099, 36
        %v4276 = vpop.permute.xlu0 %4275
        %4277 = vrot.lane.b32.xlu0 %v4107, 36
        %v4278 = vpop.permute.xlu0 %4277
        %4279 = vrot.lane.b32.xlu0 %v4084, 36
        %v4280 = vpop.permute.xlu0 %4279
        %4281 = vrot.lane.b32.xlu0 %v4092, 36
        %v4282 = vpop.permute.xlu0 %4281
        %4283 = vrot.lane.b32.xlu0 %v4100, 36
        %v4284 = vpop.permute.xlu0 %4283
        %4285 = vrot.lane.b32.xlu0 %v4108, 36
        %v4286 = vpop.permute.xlu0 %4285
        %4287 = vrot.lane.b32.xlu0 %v4085, 36
        %v4288 = vpop.permute.xlu0 %4287
        %4289 = vrot.lane.b32.xlu0 %v4093, 36
        %v4290 = vpop.permute.xlu0 %4289
        %4291 = vrot.lane.b32.xlu0 %v4101, 36
        %v4292 = vpop.permute.xlu0 %4291
        %4293 = vrot.lane.b32.xlu0 %v4109, 36
        %v4294 = vpop.permute.xlu0 %4293
        %4295 = vrot.lane.b32.xlu0 %v4086, 36
        %v4296 = vpop.permute.xlu0 %4295
        %4297 = vrot.lane.b32.xlu0 %v4094, 36
        %v4298 = vpop.permute.xlu0 %4297
        %4299 = vrot.lane.b32.xlu0 %v4102, 36
        %v4300 = vpop.permute.xlu0 %4299
        %4301 = vrot.lane.b32.xlu0 %v4110, 36
        %v4302 = vpop.permute.xlu0 %4301
        %v4303 = vsel %vm467, %v4288, %v4296
        %v4304 = vsel %vm467, %v4290, %v4298
        %v4305 = vsel %vm467, %v4292, %v4300
        %v4306 = vsel %vm467, %v4294, %v4302
        %v4307 = vsel %vm467, %v4280, %v4288
        %v4308 = vsel %vm467, %v4282, %v4290
        %v4309 = vsel %vm467, %v4284, %v4292
        %v4310 = vsel %vm467, %v4286, %v4294
        %v4311 = vsel %vm467, %v4272, %v4280
        %v4312 = vsel %vm467, %v4274, %v4282
        %v4313 = vsel %vm467, %v4276, %v4284
        %v4314 = vsel %vm467, %v4278, %v4286
        %v4315 = vsel %vm467, %v4264, %v4272
        %v4316 = vsel %vm467, %v4266, %v4274
        %v4317 = vsel %vm467, %v4268, %v4276
        %v4318 = vsel %vm467, %v4270, %v4278
        %v4319 = vsel %vm467, %v4256, %v4264
        %v4320 = vsel %vm467, %v4258, %v4266
        %v4321 = vsel %vm467, %v4260, %v4268
        %v4322 = vsel %vm467, %v4262, %v4270
        %v4323 = vsel %vm467, %v4248, %v4256
        %v4324 = vsel %vm467, %v4250, %v4258
        %v4325 = vsel %vm467, %v4252, %v4260
        %v4326 = vsel %vm467, %v4254, %v4262
        %v4327 = vsel %vm467, %v4240, %v4248
        %v4328 = vsel %vm467, %v4242, %v4250
        %v4329 = vsel %vm467, %v4244, %v4252
        %v4330 = vsel %vm467, %v4246, %v4254
        %v4331 = vsel %vm467, %v4296, %v4240
        %v4332 = vsel %vm467, %v4298, %v4242
        %v4333 = vsel %vm467, %v4300, %v4244
        %v4334 = vsel %vm467, %v4302, %v4246
        %v4335 = vsel %vm484, %v4331, 0.0
        %v4336 = vsel %vm485, %v4327, 0.0
        %v4337 = vsel %vm486, %v4323, 0.0
        %v4338 = vsel %vm487, %v4319, 0.0
        %v4339 = vsel %vm488, %v4315, 0.0
        %v4340 = vsel %vm489, %v4311, 0.0
        %v4341 = vsel %vm490, %v4307, 0.0
        %v4342 = vsel %vm491, %v4303, 0.0
        %v4343 = vsel %vm484, %v4332, 0.0
        %v4344 = vsel %vm485, %v4328, 0.0
        %v4345 = vsel %vm486, %v4324, 0.0
        %v4346 = vsel %vm487, %v4320, 0.0
        %v4347 = vsel %vm488, %v4316, 0.0
        %v4348 = vsel %vm489, %v4312, 0.0
        %v4349 = vsel %vm490, %v4308, 0.0
        %v4350 = vsel %vm491, %v4304, 0.0
        %v4351 = vsel %vm484, %v4333, 0.0
        %v4352 = vsel %vm485, %v4329, 0.0
        %v4353 = vsel %vm486, %v4325, 0.0
        %v4354 = vsel %vm487, %v4321, 0.0
        %v4355 = vsel %vm488, %v4317, 0.0
        %v4356 = vsel %vm489, %v4313, 0.0
        %v4357 = vsel %vm490, %v4309, 0.0
        %v4358 = vsel %vm491, %v4305, 0.0
        %v4359 = vsel %vm484, %v4334, 0.0
        %v4360 = vsel %vm485, %v4330, 0.0
        %v4361 = vsel %vm486, %v4326, 0.0
        %v4362 = vsel %vm487, %v4322, 0.0
        %v4363 = vsel %vm488, %v4318, 0.0
        %v4364 = vsel %vm489, %v4314, 0.0
        %v4365 = vsel %vm490, %v4310, 0.0
        %v4366 = vsel %vm491, %v4306, 0.0
        %4367 = vrot.lane.b32.xlu0 %v4079, 27
        %v4368 = vpop.permute.xlu0 %4367
        %4369 = vrot.lane.b32.xlu0 %v4087, 27
        %v4370 = vpop.permute.xlu0 %4369
        %4371 = vrot.lane.b32.xlu0 %v4095, 27
        %v4372 = vpop.permute.xlu0 %4371
        %4373 = vrot.lane.b32.xlu0 %v4103, 27
        %v4374 = vpop.permute.xlu0 %4373
        %4375 = vrot.lane.b32.xlu0 %v4080, 27
        %v4376 = vpop.permute.xlu0 %4375
        %4377 = vrot.lane.b32.xlu0 %v4088, 27
        %v4378 = vpop.permute.xlu0 %4377
        %4379 = vrot.lane.b32.xlu0 %v4096, 27
        %v4380 = vpop.permute.xlu0 %4379
        %4381 = vrot.lane.b32.xlu0 %v4104, 27
        %v4382 = vpop.permute.xlu0 %4381
        %4383 = vrot.lane.b32.xlu0 %v4081, 27
        %v4384 = vpop.permute.xlu0 %4383
        %4385 = vrot.lane.b32.xlu0 %v4089, 27
        %v4386 = vpop.permute.xlu0 %4385
        %4387 = vrot.lane.b32.xlu0 %v4097, 27
        %v4388 = vpop.permute.xlu0 %4387
        %4389 = vrot.lane.b32.xlu0 %v4105, 27
        %v4390 = vpop.permute.xlu0 %4389
        %4391 = vrot.lane.b32.xlu0 %v4082, 27
        %v4392 = vpop.permute.xlu0 %4391
        %4393 = vrot.lane.b32.xlu0 %v4090, 27
        %v4394 = vpop.permute.xlu0 %4393
        %4395 = vrot.lane.b32.xlu0 %v4098, 27
        %v4396 = vpop.permute.xlu0 %4395
        %4397 = vrot.lane.b32.xlu0 %v4106, 27
        %v4398 = vpop.permute.xlu0 %4397
        %4399 = vrot.lane.b32.xlu0 %v4083, 27
        %v4400 = vpop.permute.xlu0 %4399
        %4401 = vrot.lane.b32.xlu0 %v4091, 27
        %v4402 = vpop.permute.xlu0 %4401
        %4403 = vrot.lane.b32.xlu0 %v4099, 27
        %v4404 = vpop.permute.xlu0 %4403
        %4405 = vrot.lane.b32.xlu0 %v4107, 27
        %v4406 = vpop.permute.xlu0 %4405
        %4407 = vrot.lane.b32.xlu0 %v4084, 27
        %v4408 = vpop.permute.xlu0 %4407
        %4409 = vrot.lane.b32.xlu0 %v4092, 27
        %v4410 = vpop.permute.xlu0 %4409
        %4411 = vrot.lane.b32.xlu0 %v4100, 27
        %v4412 = vpop.permute.xlu0 %4411
        %4413 = vrot.lane.b32.xlu0 %v4108, 27
        %v4414 = vpop.permute.xlu0 %4413
        %4415 = vrot.lane.b32.xlu0 %v4085, 27
        %v4416 = vpop.permute.xlu0 %4415
        %4417 = vrot.lane.b32.xlu0 %v4093, 27
        %v4418 = vpop.permute.xlu0 %4417
        %4419 = vrot.lane.b32.xlu0 %v4101, 27
        %v4420 = vpop.permute.xlu0 %4419
        %4421 = vrot.lane.b32.xlu0 %v4109, 27
        %v4422 = vpop.permute.xlu0 %4421
        %4423 = vrot.lane.b32.xlu0 %v4086, 27
        %v4424 = vpop.permute.xlu0 %4423
        %4425 = vrot.lane.b32.xlu0 %v4094, 27
        %v4426 = vpop.permute.xlu0 %4425
        %4427 = vrot.lane.b32.xlu0 %v4102, 27
        %v4428 = vpop.permute.xlu0 %4427
        %4429 = vrot.lane.b32.xlu0 %v4110, 27
        %v4430 = vpop.permute.xlu0 %4429
        %v4431 = vsel %vm516, %v4416, %v4424
        %v4432 = vsel %vm516, %v4418, %v4426
        %v4433 = vsel %vm516, %v4420, %v4428
        %v4434 = vsel %vm516, %v4422, %v4430
        %v4435 = vsel %vm516, %v4408, %v4416
        %v4436 = vsel %vm516, %v4410, %v4418
        %v4437 = vsel %vm516, %v4412, %v4420
        %v4438 = vsel %vm516, %v4414, %v4422
        %v4439 = vsel %vm516, %v4400, %v4408
        %v4440 = vsel %vm516, %v4402, %v4410
        %v4441 = vsel %vm516, %v4404, %v4412
        %v4442 = vsel %vm516, %v4406, %v4414
        %v4443 = vsel %vm516, %v4392, %v4400
        %v4444 = vsel %vm516, %v4394, %v4402
        %v4445 = vsel %vm516, %v4396, %v4404
        %v4446 = vsel %vm516, %v4398, %v4406
        %v4447 = vsel %vm516, %v4384, %v4392
        %v4448 = vsel %vm516, %v4386, %v4394
        %v4449 = vsel %vm516, %v4388, %v4396
        %v4450 = vsel %vm516, %v4390, %v4398
        %v4451 = vsel %vm516, %v4376, %v4384
        %v4452 = vsel %vm516, %v4378, %v4386
        %v4453 = vsel %vm516, %v4380, %v4388
        %v4454 = vsel %vm516, %v4382, %v4390
        %v4455 = vsel %vm516, %v4368, %v4376
        %v4456 = vsel %vm516, %v4370, %v4378
        %v4457 = vsel %vm516, %v4372, %v4380
        %v4458 = vsel %vm516, %v4374, %v4382
        %v4459 = vsel %vm516, %v4424, %v4368
        %v4460 = vsel %vm516, %v4426, %v4370
        %v4461 = vsel %vm516, %v4428, %v4372
        %v4462 = vsel %vm516, %v4430, %v4374
        %v4463 = vsel %vm533, %v4459, 0.0
        %v4464 = vsel %vm534, %v4455, 0.0
        %v4465 = vsel %vm535, %v4451, 0.0
        %v4466 = vsel %vm536, %v4447, 0.0
        %v4467 = vsel %vm537, %v4443, 0.0
        %v4468 = vsel %vm538, %v4439, 0.0
        %v4469 = vsel %vm539, %v4435, 0.0
        %v4470 = vsel %vm540, %v4431, 0.0
        %v4471 = vsel %vm533, %v4460, 0.0
        %v4472 = vsel %vm534, %v4456, 0.0
        %v4473 = vsel %vm535, %v4452, 0.0
        %v4474 = vsel %vm536, %v4448, 0.0
        %v4475 = vsel %vm537, %v4444, 0.0
        %v4476 = vsel %vm538, %v4440, 0.0
        %v4477 = vsel %vm539, %v4436, 0.0
        %v4478 = vsel %vm540, %v4432, 0.0
        %v4479 = vsel %vm533, %v4461, 0.0
        %v4480 = vsel %vm534, %v4457, 0.0
        %v4481 = vsel %vm535, %v4453, 0.0
        %v4482 = vsel %vm536, %v4449, 0.0
        %v4483 = vsel %vm537, %v4445, 0.0
        %v4484 = vsel %vm538, %v4441, 0.0
        %v4485 = vsel %vm539, %v4437, 0.0
        %v4486 = vsel %vm540, %v4433, 0.0
        %v4487 = vsel %vm533, %v4462, 0.0
        %v4488 = vsel %vm534, %v4458, 0.0
        %v4489 = vsel %vm535, %v4454, 0.0
        %v4490 = vsel %vm536, %v4450, 0.0
        %v4491 = vsel %vm537, %v4446, 0.0
        %v4492 = vsel %vm538, %v4442, 0.0
        %v4493 = vsel %vm539, %v4438, 0.0
        %v4494 = vsel %vm540, %v4434, 0.0
        %4495 = vrot.lane.b32.xlu0 %v4079, 18
        %v4496 = vpop.permute.xlu0 %4495
        %4497 = vrot.lane.b32.xlu0 %v4087, 18
        %v4498 = vpop.permute.xlu0 %4497
        %4499 = vrot.lane.b32.xlu0 %v4095, 18
        %v4500 = vpop.permute.xlu0 %4499
        %4501 = vrot.lane.b32.xlu0 %v4103, 18
        %v4502 = vpop.permute.xlu0 %4501
        %4503 = vrot.lane.b32.xlu0 %v4080, 18
        %v4504 = vpop.permute.xlu0 %4503
        %4505 = vrot.lane.b32.xlu0 %v4088, 18
        %v4506 = vpop.permute.xlu0 %4505
        %4507 = vrot.lane.b32.xlu0 %v4096, 18
        %v4508 = vpop.permute.xlu0 %4507
        %4509 = vrot.lane.b32.xlu0 %v4104, 18
        %v4510 = vpop.permute.xlu0 %4509
        %4511 = vrot.lane.b32.xlu0 %v4081, 18
        %v4512 = vpop.permute.xlu0 %4511
        %4513 = vrot.lane.b32.xlu0 %v4089, 18
        %v4514 = vpop.permute.xlu0 %4513
        %4515 = vrot.lane.b32.xlu0 %v4097, 18
        %v4516 = vpop.permute.xlu0 %4515
        %4517 = vrot.lane.b32.xlu0 %v4105, 18
        %v4518 = vpop.permute.xlu0 %4517
        %4519 = vrot.lane.b32.xlu0 %v4082, 18
        %v4520 = vpop.permute.xlu0 %4519
        %4521 = vrot.lane.b32.xlu0 %v4090, 18
        %v4522 = vpop.permute.xlu0 %4521
        %4523 = vrot.lane.b32.xlu0 %v4098, 18
        %v4524 = vpop.permute.xlu0 %4523
        %4525 = vrot.lane.b32.xlu0 %v4106, 18
        %v4526 = vpop.permute.xlu0 %4525
        %4527 = vrot.lane.b32.xlu0 %v4083, 18
        %v4528 = vpop.permute.xlu0 %4527
        %4529 = vrot.lane.b32.xlu0 %v4091, 18
        %v4530 = vpop.permute.xlu0 %4529
        %4531 = vrot.lane.b32.xlu0 %v4099, 18
        %v4532 = vpop.permute.xlu0 %4531
        %4533 = vrot.lane.b32.xlu0 %v4107, 18
        %v4534 = vpop.permute.xlu0 %4533
        %4535 = vrot.lane.b32.xlu0 %v4084, 18
        %v4536 = vpop.permute.xlu0 %4535
        %4537 = vrot.lane.b32.xlu0 %v4092, 18
        %v4538 = vpop.permute.xlu0 %4537
        %4539 = vrot.lane.b32.xlu0 %v4100, 18
        %v4540 = vpop.permute.xlu0 %4539
        %4541 = vrot.lane.b32.xlu0 %v4108, 18
        %v4542 = vpop.permute.xlu0 %4541
        %4543 = vrot.lane.b32.xlu0 %v4085, 18
        %v4544 = vpop.permute.xlu0 %4543
        %4545 = vrot.lane.b32.xlu0 %v4093, 18
        %v4546 = vpop.permute.xlu0 %4545
        %4547 = vrot.lane.b32.xlu0 %v4101, 18
        %v4548 = vpop.permute.xlu0 %4547
        %4549 = vrot.lane.b32.xlu0 %v4109, 18
        %v4550 = vpop.permute.xlu0 %4549
        %4551 = vrot.lane.b32.xlu0 %v4086, 18
        %v4552 = vpop.permute.xlu0 %4551
        %4553 = vrot.lane.b32.xlu0 %v4094, 18
        %v4554 = vpop.permute.xlu0 %4553
        %4555 = vrot.lane.b32.xlu0 %v4102, 18
        %v4556 = vpop.permute.xlu0 %4555
        %4557 = vrot.lane.b32.xlu0 %v4110, 18
        %v4558 = vpop.permute.xlu0 %4557
        %v4559 = vsel %vm565, %v4544, %v4552
        %v4560 = vsel %vm565, %v4546, %v4554
        %v4561 = vsel %vm565, %v4548, %v4556
        %v4562 = vsel %vm565, %v4550, %v4558
        %v4563 = vsel %vm565, %v4536, %v4544
        %v4564 = vsel %vm565, %v4538, %v4546
        %v4565 = vsel %vm565, %v4540, %v4548
        %v4566 = vsel %vm565, %v4542, %v4550
        %v4567 = vsel %vm565, %v4528, %v4536
        %v4568 = vsel %vm565, %v4530, %v4538
        %v4569 = vsel %vm565, %v4532, %v4540
        %v4570 = vsel %vm565, %v4534, %v4542
        %v4571 = vsel %vm565, %v4520, %v4528
        %v4572 = vsel %vm565, %v4522, %v4530
        %v4573 = vsel %vm565, %v4524, %v4532
        %v4574 = vsel %vm565, %v4526, %v4534
        %v4575 = vsel %vm565, %v4512, %v4520
        %v4576 = vsel %vm565, %v4514, %v4522
        %v4577 = vsel %vm565, %v4516, %v4524
        %v4578 = vsel %vm565, %v4518, %v4526
        %v4579 = vsel %vm565, %v4504, %v4512
        %v4580 = vsel %vm565, %v4506, %v4514
        %v4581 = vsel %vm565, %v4508, %v4516
        %v4582 = vsel %vm565, %v4510, %v4518
        %v4583 = vsel %vm565, %v4496, %v4504
        %v4584 = vsel %vm565, %v4498, %v4506
        %v4585 = vsel %vm565, %v4500, %v4508
        %v4586 = vsel %vm565, %v4502, %v4510
        %v4587 = vsel %vm565, %v4552, %v4496
        %v4588 = vsel %vm565, %v4554, %v4498
        %v4589 = vsel %vm565, %v4556, %v4500
        %v4590 = vsel %vm565, %v4558, %v4502
        %v4591 = vsel %vm582, %v4587, 0.0
        %v4592 = vsel %vm583, %v4583, 0.0
        %v4593 = vsel %vm584, %v4579, 0.0
        %v4594 = vsel %vm585, %v4575, 0.0
        %v4595 = vsel %vm586, %v4571, 0.0
        %v4596 = vsel %vm587, %v4567, 0.0
        %v4597 = vsel %vm588, %v4563, 0.0
        %v4598 = vsel %vm589, %v4559, 0.0
        %v4599 = vsel %vm582, %v4588, 0.0
        %v4600 = vsel %vm583, %v4584, 0.0
        %v4601 = vsel %vm584, %v4580, 0.0
        %v4602 = vsel %vm585, %v4576, 0.0
        %v4603 = vsel %vm586, %v4572, 0.0
        %v4604 = vsel %vm587, %v4568, 0.0
        %v4605 = vsel %vm588, %v4564, 0.0
        %v4606 = vsel %vm589, %v4560, 0.0
        %v4607 = vsel %vm582, %v4589, 0.0
        %v4608 = vsel %vm583, %v4585, 0.0
        %v4609 = vsel %vm584, %v4581, 0.0
        %v4610 = vsel %vm585, %v4577, 0.0
        %v4611 = vsel %vm586, %v4573, 0.0
        %v4612 = vsel %vm587, %v4569, 0.0
        %v4613 = vsel %vm588, %v4565, 0.0
        %v4614 = vsel %vm589, %v4561, 0.0
        %v4615 = vsel %vm582, %v4590, 0.0
        %v4616 = vsel %vm583, %v4586, 0.0
        %v4617 = vsel %vm584, %v4582, 0.0
        %v4618 = vsel %vm585, %v4578, 0.0
        %v4619 = vsel %vm586, %v4574, 0.0
        %v4620 = vsel %vm587, %v4570, 0.0
        %v4621 = vsel %vm588, %v4566, 0.0
        %v4622 = vsel %vm589, %v4562, 0.0
        %4623 = vrot.lane.b32.xlu0 %v4079, 9
        %v4624 = vpop.permute.xlu0 %4623
        %4625 = vrot.lane.b32.xlu0 %v4087, 9
        %v4626 = vpop.permute.xlu0 %4625
        %4627 = vrot.lane.b32.xlu0 %v4095, 9
        %v4628 = vpop.permute.xlu0 %4627
        %4629 = vrot.lane.b32.xlu0 %v4103, 9
        %v4630 = vpop.permute.xlu0 %4629
        %4631 = vrot.lane.b32.xlu0 %v4080, 9
        %v4632 = vpop.permute.xlu0 %4631
        %4633 = vrot.lane.b32.xlu0 %v4088, 9
        %v4634 = vpop.permute.xlu0 %4633
        %4635 = vrot.lane.b32.xlu0 %v4096, 9
        %v4636 = vpop.permute.xlu0 %4635
        %4637 = vrot.lane.b32.xlu0 %v4104, 9
        %v4638 = vpop.permute.xlu0 %4637
        %4639 = vrot.lane.b32.xlu0 %v4081, 9
        %v4640 = vpop.permute.xlu0 %4639
        %4641 = vrot.lane.b32.xlu0 %v4089, 9
        %v4642 = vpop.permute.xlu0 %4641
        %4643 = vrot.lane.b32.xlu0 %v4097, 9
        %v4644 = vpop.permute.xlu0 %4643
        %4645 = vrot.lane.b32.xlu0 %v4105, 9
        %v4646 = vpop.permute.xlu0 %4645
        %4647 = vrot.lane.b32.xlu0 %v4082, 9
        %v4648 = vpop.permute.xlu0 %4647
        %4649 = vrot.lane.b32.xlu0 %v4090, 9
        %v4650 = vpop.permute.xlu0 %4649
        %4651 = vrot.lane.b32.xlu0 %v4098, 9
        %v4652 = vpop.permute.xlu0 %4651
        %4653 = vrot.lane.b32.xlu0 %v4106, 9
        %v4654 = vpop.permute.xlu0 %4653
        %4655 = vrot.lane.b32.xlu0 %v4083, 9
        %v4656 = vpop.permute.xlu0 %4655
        %4657 = vrot.lane.b32.xlu0 %v4091, 9
        %v4658 = vpop.permute.xlu0 %4657
        %4659 = vrot.lane.b32.xlu0 %v4099, 9
        %v4660 = vpop.permute.xlu0 %4659
        %4661 = vrot.lane.b32.xlu0 %v4107, 9
        %v4662 = vpop.permute.xlu0 %4661
        %4663 = vrot.lane.b32.xlu0 %v4084, 9
        %v4664 = vpop.permute.xlu0 %4663
        %4665 = vrot.lane.b32.xlu0 %v4092, 9
        %v4666 = vpop.permute.xlu0 %4665
        %4667 = vrot.lane.b32.xlu0 %v4100, 9
        %v4668 = vpop.permute.xlu0 %4667
        %4669 = vrot.lane.b32.xlu0 %v4108, 9
        %v4670 = vpop.permute.xlu0 %4669
        %4671 = vrot.lane.b32.xlu0 %v4085, 9
        %v4672 = vpop.permute.xlu0 %4671
        %4673 = vrot.lane.b32.xlu0 %v4093, 9
        %v4674 = vpop.permute.xlu0 %4673
        %4675 = vrot.lane.b32.xlu0 %v4101, 9
        %v4676 = vpop.permute.xlu0 %4675
        %4677 = vrot.lane.b32.xlu0 %v4109, 9
        %v4678 = vpop.permute.xlu0 %4677
        %4679 = vrot.lane.b32.xlu0 %v4086, 9
        %v4680 = vpop.permute.xlu0 %4679
        %4681 = vrot.lane.b32.xlu0 %v4094, 9
        %v4682 = vpop.permute.xlu0 %4681
        %4683 = vrot.lane.b32.xlu0 %v4102, 9
        %v4684 = vpop.permute.xlu0 %4683
        %4685 = vrot.lane.b32.xlu0 %v4110, 9
        %v4686 = vpop.permute.xlu0 %4685
        %v4687 = vsel %vm614, %v4672, %v4680
        %v4688 = vsel %vm614, %v4674, %v4682
        %v4689 = vsel %vm614, %v4676, %v4684
        %v4690 = vsel %vm614, %v4678, %v4686
        %v4691 = vsel %vm614, %v4664, %v4672
        %v4692 = vsel %vm614, %v4666, %v4674
        %v4693 = vsel %vm614, %v4668, %v4676
        %v4694 = vsel %vm614, %v4670, %v4678
        %v4695 = vsel %vm614, %v4656, %v4664
        %v4696 = vsel %vm614, %v4658, %v4666
        %v4697 = vsel %vm614, %v4660, %v4668
        %v4698 = vsel %vm614, %v4662, %v4670
        %v4699 = vsel %vm614, %v4648, %v4656
        %v4700 = vsel %vm614, %v4650, %v4658
        %v4701 = vsel %vm614, %v4652, %v4660
        %v4702 = vsel %vm614, %v4654, %v4662
        %v4703 = vsel %vm614, %v4640, %v4648
        %v4704 = vsel %vm614, %v4642, %v4650
        %v4705 = vsel %vm614, %v4644, %v4652
        %v4706 = vsel %vm614, %v4646, %v4654
        %v4707 = vsel %vm614, %v4632, %v4640
        %v4708 = vsel %vm614, %v4634, %v4642
        %v4709 = vsel %vm614, %v4636, %v4644
        %v4710 = vsel %vm614, %v4638, %v4646
        %v4711 = vsel %vm614, %v4624, %v4632
        %v4712 = vsel %vm614, %v4626, %v4634
        %v4713 = vsel %vm614, %v4628, %v4636
        %v4714 = vsel %vm614, %v4630, %v4638
        %v4715 = vsel %vm614, %v4680, %v4624
        %v4716 = vsel %vm614, %v4682, %v4626
        %v4717 = vsel %vm614, %v4684, %v4628
        %v4718 = vsel %vm614, %v4686, %v4630
        %v4719 = vsel %vm631, %v4715, 0.0
        %v4720 = vsel %vm632, %v4711, 0.0
        %v4721 = vsel %vm633, %v4707, 0.0
        %v4722 = vsel %vm634, %v4703, 0.0
        %v4723 = vsel %vm635, %v4699, 0.0
        %v4724 = vsel %vm636, %v4695, 0.0
        %v4725 = vsel %vm637, %v4691, 0.0
        %v4726 = vsel %vm638, %v4687, 0.0
        %v4727 = vsel %vm631, %v4716, 0.0
        %v4728 = vsel %vm632, %v4712, 0.0
        %v4729 = vsel %vm633, %v4708, 0.0
        %v4730 = vsel %vm634, %v4704, 0.0
        %v4731 = vsel %vm635, %v4700, 0.0
        %v4732 = vsel %vm636, %v4696, 0.0
        %v4733 = vsel %vm637, %v4692, 0.0
        %v4734 = vsel %vm638, %v4688, 0.0
        %v4735 = vsel %vm631, %v4717, 0.0
        %v4736 = vsel %vm632, %v4713, 0.0
        %v4737 = vsel %vm633, %v4709, 0.0
        %v4738 = vsel %vm634, %v4705, 0.0
        %v4739 = vsel %vm635, %v4701, 0.0
        %v4740 = vsel %vm636, %v4697, 0.0
        %v4741 = vsel %vm637, %v4693, 0.0
        %v4742 = vsel %vm638, %v4689, 0.0
        %v4743 = vsel %vm631, %v4718, 0.0
        %v4744 = vsel %vm632, %v4714, 0.0
        %v4745 = vsel %vm633, %v4710, 0.0
        %v4746 = vsel %vm634, %v4706, 0.0
        %v4747 = vsel %vm635, %v4702, 0.0
        %v4748 = vsel %vm636, %v4698, 0.0
        %v4749 = vsel %vm637, %v4694, 0.0
        %v4750 = vsel %vm638, %v4690, 0.0
        %v4751 = vpack.c.bf16 %v4215, %v4207
        %v4752 = vpack.c.bf16 %v4216, %v4208
        %v4753 = vpack.c.bf16 %v4217, %v4209
        %v4754 = vpack.c.bf16 %v4218, %v4210
        %v4755 = vpack.c.bf16 %v4219, %v4211
        %v4756 = vpack.c.bf16 %v4220, %v4212
        %v4757 = vpack.c.bf16 %v4221, %v4213
        %v4758 = vpack.c.bf16 %v4222, %v4214
        %v4759 = vpack.c.bf16 %v4231, %v4223
        %v4760 = vpack.c.bf16 %v4232, %v4224
        %v4761 = vpack.c.bf16 %v4233, %v4225
        %v4762 = vpack.c.bf16 %v4234, %v4226
        %v4763 = vpack.c.bf16 %v4235, %v4227
        %v4764 = vpack.c.bf16 %v4236, %v4228
        %v4765 = vpack.c.bf16 %v4237, %v4229
        %v4766 = vpack.c.bf16 %v4238, %v4230
        %v4767 = vpack.c.bf16 %v4343, %v4335
        %v4768 = vpack.c.bf16 %v4344, %v4336
        %v4769 = vpack.c.bf16 %v4345, %v4337
        %v4770 = vpack.c.bf16 %v4346, %v4338
        %v4771 = vpack.c.bf16 %v4347, %v4339
        %v4772 = vpack.c.bf16 %v4348, %v4340
        %v4773 = vpack.c.bf16 %v4349, %v4341
        %v4774 = vpack.c.bf16 %v4350, %v4342
        %v4775 = vpack.c.bf16 %v4359, %v4351
        %v4776 = vpack.c.bf16 %v4360, %v4352
        %v4777 = vpack.c.bf16 %v4361, %v4353
        %v4778 = vpack.c.bf16 %v4362, %v4354
        %v4779 = vpack.c.bf16 %v4363, %v4355
        %v4780 = vpack.c.bf16 %v4364, %v4356
        %v4781 = vpack.c.bf16 %v4365, %v4357
        %v4782 = vpack.c.bf16 %v4366, %v4358
        %v4783 = vpack.c.bf16 %v4471, %v4463
        %v4784 = vpack.c.bf16 %v4472, %v4464
        %v4785 = vpack.c.bf16 %v4473, %v4465
        %v4786 = vpack.c.bf16 %v4474, %v4466
        %v4787 = vpack.c.bf16 %v4475, %v4467
        %v4788 = vpack.c.bf16 %v4476, %v4468
        %v4789 = vpack.c.bf16 %v4477, %v4469
        %v4790 = vpack.c.bf16 %v4478, %v4470
        %v4791 = vpack.c.bf16 %v4487, %v4479
        %v4792 = vpack.c.bf16 %v4488, %v4480
        %v4793 = vpack.c.bf16 %v4489, %v4481
        %v4794 = vpack.c.bf16 %v4490, %v4482
        %v4795 = vpack.c.bf16 %v4491, %v4483
        %v4796 = vpack.c.bf16 %v4492, %v4484
        %v4797 = vpack.c.bf16 %v4493, %v4485
        %v4798 = vpack.c.bf16 %v4494, %v4486
        %v4799 = vpack.c.bf16 %v4599, %v4591
        %v4800 = vpack.c.bf16 %v4600, %v4592
        %v4801 = vpack.c.bf16 %v4601, %v4593
        %v4802 = vpack.c.bf16 %v4602, %v4594
        %v4803 = vpack.c.bf16 %v4603, %v4595
        %v4804 = vpack.c.bf16 %v4604, %v4596
        %v4805 = vpack.c.bf16 %v4605, %v4597
        %v4806 = vpack.c.bf16 %v4606, %v4598
        %v4807 = vpack.c.bf16 %v4615, %v4607
        %v4808 = vpack.c.bf16 %v4616, %v4608
        %v4809 = vpack.c.bf16 %v4617, %v4609
        %v4810 = vpack.c.bf16 %v4618, %v4610
        %v4811 = vpack.c.bf16 %v4619, %v4611
        %v4812 = vpack.c.bf16 %v4620, %v4612
        %v4813 = vpack.c.bf16 %v4621, %v4613
        %v4814 = vpack.c.bf16 %v4622, %v4614
        %v4815 = vpack.c.bf16 %v4727, %v4719
        %v4816 = vpack.c.bf16 %v4728, %v4720
        %v4817 = vpack.c.bf16 %v4729, %v4721
        %v4818 = vpack.c.bf16 %v4730, %v4722
        %v4819 = vpack.c.bf16 %v4731, %v4723
        %v4820 = vpack.c.bf16 %v4732, %v4724
        %v4821 = vpack.c.bf16 %v4733, %v4725
        %v4822 = vpack.c.bf16 %v4734, %v4726
        %v4823 = vpack.c.bf16 %v4743, %v4735
        %v4824 = vpack.c.bf16 %v4744, %v4736
        %v4825 = vpack.c.bf16 %v4745, %v4737
        %v4826 = vpack.c.bf16 %v4746, %v4738
        %v4827 = vpack.c.bf16 %v4747, %v4739
        %v4828 = vpack.c.bf16 %v4748, %v4740
        %v4829 = vpack.c.bf16 %v4749, %v4741
        %v4830 = vpack.c.bf16 %v4750, %v4742
        %v4831 = vpack.c.bf16 %v4087, %v4079
        %v4832 = vpack.c.bf16 %v4088, %v4080
        %v4833 = vpack.c.bf16 %v4089, %v4081
        %v4834 = vpack.c.bf16 %v4090, %v4082
        %v4835 = vpack.c.bf16 %v4091, %v4083
        %v4836 = vpack.c.bf16 %v4092, %v4084
        %v4837 = vpack.c.bf16 %v4093, %v4085
        %v4838 = vpack.c.bf16 %v4094, %v4086
        %v4839 = vpack.c.bf16 %v4103, %v4095
        %v4840 = vpack.c.bf16 %v4104, %v4096
        %v4841 = vpack.c.bf16 %v4105, %v4097
        %v4842 = vpack.c.bf16 %v4106, %v4098
        %v4843 = vpack.c.bf16 %v4107, %v4099
        %v4844 = vpack.c.bf16 %v4108, %v4100
        %v4845 = vpack.c.bf16 %v4109, %v4101
        %v4846 = vpack.c.bf16 %v4110, %v4102
        %4847 = vset.pattern.permute.xlu0 3
        %4848 = vperm.xlu0 %4847, %v2538
        %v4849 = vpop.permute.xlu0 %4848
        %4851 = vset.pattern.permute.xlu0 3
        %4852 = vperm.xlu0 %4851, %v2539
        %v4853 = vpop.permute.xlu0 %4852
        %4855 = vset.pattern.permute.xlu0 3
        %4856 = vperm.xlu0 %4855, %v2540
        %v4857 = vpop.permute.xlu0 %4856
        %4859 = vset.pattern.permute.xlu0 3
        %4860 = vperm.xlu0 %4859, %v2541
        %v4861 = vpop.permute.xlu0 %4860
        %v4867 = vunpack.c.l.b16 %v2994
        %v4868 = vunpack.c.h.b16 %v2994
        %v4869 = vunpack.c.l.b16 %v2995
        %v4870 = vunpack.c.h.b16 %v2995
        %v4871 = vunpack.c.l.b16 %v2996
        %v4872 = vunpack.c.h.b16 %v2996
        %v4873 = vunpack.c.l.b16 %v2997
        %v4874 = vunpack.c.h.b16 %v2997
        %v4875 = vpack.c.b16 %v4869, %v4867
        %v4876 = vpack.c.b16 %v4870, %v4868
        %v4877 = vpack.c.b16 %v4873, %v4871
        %v4878 = vpack.c.b16 %v4874, %v4872
        %v4882 = vsel %vm3768, %v4876, 0
        %v4885 = vsel %vm3768, %v4878, 0
        %4887 = vmatpush.bf16.msra.mxu0 %v4807
        %4888 = vmatpush.bf16.msra.mxu0 %v4799
        %4889 = vmatpush.bf16.msra.mxu0 %v4791
        %4890 = vmatpush.bf16.msra.mxu0 %v4783
        %4891 = vmatpush.bf16.msra.mxu0 %v4775
        %4892 = vmatpush.bf16.msra.mxu0 %v4767
        %4893 = vmatpush.bf16.msra.mxu0 %v4759
        %4894 = vmatpush.bf16.msra.mxu0 %v4751
        %4895 = vmatmul.bf16.gmra.mxu0 %v4875
        %v4896 = vpop.f32.mrf.mxu0
        %v4897 = vadd.f32 %v4849, %v4896
        %v4898 = vpop.f32.mrf.mxu0
        %v4899 = vadd.f32 %v4853, %v4898
        %4900 = vmatmul.bf16.gmra.mxu0 %v4877
        %v4901 = vpop.f32.mrf.mxu0
        %v4902 = vadd.f32 %v4857, %v4901
        %v4903 = vpop.f32.mrf.mxu0
        %v4904 = vadd.f32 %v4861, %v4903
        %4905 = vdwg.mxu0
        %4906 = vmatpush.bf16.msra.mxu0 0
        %4907 = vmatpush.bf16.msra.mxu0 0
        %4908 = vmatpush.bf16.msra.mxu0 0
        %4909 = vmatpush.bf16.msra.mxu0 0
        %4910 = vmatpush.bf16.msra.mxu0 %v4839
        %4911 = vmatpush.bf16.msra.mxu0 %v4831
        %4912 = vmatpush.bf16.msra.mxu0 %v4823
        %4913 = vmatpush.bf16.msra.mxu0 %v4815
        %4914 = vmatmul.bf16.gmra.mxu0 %v4882
        %v4915 = vpop.f32.mrf.mxu0
        %v4916 = vadd.f32 %v4897, %v4915
        %v4917 = vpop.f32.mrf.mxu0
        %v4918 = vadd.f32 %v4899, %v4917
        %4919 = vmatmul.bf16.gmra.mxu0 %v4885
        %v4920 = vpop.f32.mrf.mxu0
        %v4921 = vadd.f32 %v4902, %v4920
        %v4922 = vpop.f32.mrf.mxu0
        %v4923 = vadd.f32 %v4904, %v4922
        %4924 = vdwg.mxu0
        %4925 = vmatpush.bf16.msra.mxu0 %v4808
        %4926 = vmatpush.bf16.msra.mxu0 %v4800
        %4927 = vmatpush.bf16.msra.mxu0 %v4792
        %4928 = vmatpush.bf16.msra.mxu0 %v4784
        %4929 = vmatpush.bf16.msra.mxu0 %v4776
        %4930 = vmatpush.bf16.msra.mxu0 %v4768
        %4931 = vmatpush.bf16.msra.mxu0 %v4760
        %4932 = vmatpush.bf16.msra.mxu0 %v4752
        %4933 = vmatmul.bf16.gmra.mxu0 %v4875
        %v4934 = vpop.f32.mrf.mxu0
        %v4935 = vadd.f32 %v4849, %v4934
        %v4936 = vpop.f32.mrf.mxu0
        %v4937 = vadd.f32 %v4853, %v4936
        %4938 = vmatmul.bf16.gmra.mxu0 %v4877
        %v4939 = vpop.f32.mrf.mxu0
        %v4940 = vadd.f32 %v4857, %v4939
        %v4941 = vpop.f32.mrf.mxu0
        %v4942 = vadd.f32 %v4861, %v4941
        %4943 = vdwg.mxu0
        %4944 = vmatpush.bf16.msra.mxu0 0
        %4945 = vmatpush.bf16.msra.mxu0 0
        %4946 = vmatpush.bf16.msra.mxu0 0
        %4947 = vmatpush.bf16.msra.mxu0 0
        %4948 = vmatpush.bf16.msra.mxu0 %v4840
        %4949 = vmatpush.bf16.msra.mxu0 %v4832
        %4950 = vmatpush.bf16.msra.mxu0 %v4824
        %4951 = vmatpush.bf16.msra.mxu0 %v4816
        %4952 = vmatmul.bf16.gmra.mxu0 %v4882
        %v4953 = vpop.f32.mrf.mxu0
        %v4954 = vadd.f32 %v4935, %v4953
        %v4955 = vpop.f32.mrf.mxu0
        %v4956 = vadd.f32 %v4937, %v4955
        %4957 = vmatmul.bf16.gmra.mxu0 %v4885
        %v4958 = vpop.f32.mrf.mxu0
        %v4959 = vadd.f32 %v4940, %v4958
        %v4960 = vpop.f32.mrf.mxu0
        %v4961 = vadd.f32 %v4942, %v4960
        %4962 = vdwg.mxu0
        %4963 = vmatpush.bf16.msra.mxu0 %v4809
        %4964 = vmatpush.bf16.msra.mxu0 %v4801
        %4965 = vmatpush.bf16.msra.mxu0 %v4793
        %4966 = vmatpush.bf16.msra.mxu0 %v4785
        %4967 = vmatpush.bf16.msra.mxu0 %v4777
        %4968 = vmatpush.bf16.msra.mxu0 %v4769
        %4969 = vmatpush.bf16.msra.mxu0 %v4761
        %4970 = vmatpush.bf16.msra.mxu0 %v4753
        %4971 = vmatmul.bf16.gmra.mxu0 %v4875
        %v4972 = vpop.f32.mrf.mxu0
        %v4973 = vadd.f32 %v4849, %v4972
        %v4974 = vpop.f32.mrf.mxu0
        %v4975 = vadd.f32 %v4853, %v4974
        %4976 = vmatmul.bf16.gmra.mxu0 %v4877
        %v4977 = vpop.f32.mrf.mxu0
        %v4978 = vadd.f32 %v4857, %v4977
        %v4979 = vpop.f32.mrf.mxu0
        %v4980 = vadd.f32 %v4861, %v4979
        %4981 = vdwg.mxu0
        %4982 = vmatpush.bf16.msra.mxu0 0
        %4983 = vmatpush.bf16.msra.mxu0 0
        %4984 = vmatpush.bf16.msra.mxu0 0
        %4985 = vmatpush.bf16.msra.mxu0 0
        %4986 = vmatpush.bf16.msra.mxu0 %v4841
        %4987 = vmatpush.bf16.msra.mxu0 %v4833
        %4988 = vmatpush.bf16.msra.mxu0 %v4825
        %4989 = vmatpush.bf16.msra.mxu0 %v4817
        %4990 = vmatmul.bf16.gmra.mxu0 %v4882
        %v4991 = vpop.f32.mrf.mxu0
        %v4992 = vadd.f32 %v4973, %v4991
        %v4993 = vpop.f32.mrf.mxu0
        %v4994 = vadd.f32 %v4975, %v4993
        %4995 = vmatmul.bf16.gmra.mxu0 %v4885
        %v4996 = vpop.f32.mrf.mxu0
        %v4997 = vadd.f32 %v4978, %v4996
        %v4998 = vpop.f32.mrf.mxu0
        %v4999 = vadd.f32 %v4980, %v4998
        %5000 = vdwg.mxu0
        %5001 = vmatpush.bf16.msra.mxu0 %v4810
        %5002 = vmatpush.bf16.msra.mxu0 %v4802
        %5003 = vmatpush.bf16.msra.mxu0 %v4794
        %5004 = vmatpush.bf16.msra.mxu0 %v4786
        %5005 = vmatpush.bf16.msra.mxu0 %v4778
        %5006 = vmatpush.bf16.msra.mxu0 %v4770
        %5007 = vmatpush.bf16.msra.mxu0 %v4762
        %5008 = vmatpush.bf16.msra.mxu0 %v4754
        %5009 = vmatmul.bf16.gmra.mxu0 %v4875
        %v5010 = vpop.f32.mrf.mxu0
        %v5011 = vadd.f32 %v4849, %v5010
        %v5012 = vpop.f32.mrf.mxu0
        %v5013 = vadd.f32 %v4853, %v5012
        %5014 = vmatmul.bf16.gmra.mxu0 %v4877
        %v5015 = vpop.f32.mrf.mxu0
        %v5016 = vadd.f32 %v4857, %v5015
        %v5017 = vpop.f32.mrf.mxu0
        %v5018 = vadd.f32 %v4861, %v5017
        %5019 = vdwg.mxu0
        %5020 = vmatpush.bf16.msra.mxu0 0
        %5021 = vmatpush.bf16.msra.mxu0 0
        %5022 = vmatpush.bf16.msra.mxu0 0
        %5023 = vmatpush.bf16.msra.mxu0 0
        %5024 = vmatpush.bf16.msra.mxu0 %v4842
        %5025 = vmatpush.bf16.msra.mxu0 %v4834
        %5026 = vmatpush.bf16.msra.mxu0 %v4826
        %5027 = vmatpush.bf16.msra.mxu0 %v4818
        %5028 = vmatmul.bf16.gmra.mxu0 %v4882
        %v5029 = vpop.f32.mrf.mxu0
        %v5030 = vadd.f32 %v5011, %v5029
        %v5031 = vpop.f32.mrf.mxu0
        %v5032 = vadd.f32 %v5013, %v5031
        %5033 = vmatmul.bf16.gmra.mxu0 %v4885
        %v5034 = vpop.f32.mrf.mxu0
        %v5035 = vadd.f32 %v5016, %v5034
        %v5036 = vpop.f32.mrf.mxu0
        %v5037 = vadd.f32 %v5018, %v5036
        %5038 = vdwg.mxu0
        %5039 = vmatpush.bf16.msra.mxu0 %v4811
        %5040 = vmatpush.bf16.msra.mxu0 %v4803
        %5041 = vmatpush.bf16.msra.mxu0 %v4795
        %5042 = vmatpush.bf16.msra.mxu0 %v4787
        %5043 = vmatpush.bf16.msra.mxu0 %v4779
        %5044 = vmatpush.bf16.msra.mxu0 %v4771
        %5045 = vmatpush.bf16.msra.mxu0 %v4763
        %5046 = vmatpush.bf16.msra.mxu0 %v4755
        %5047 = vmatmul.bf16.gmra.mxu0 %v4875
        %v5048 = vpop.f32.mrf.mxu0
        %v5049 = vadd.f32 %v4849, %v5048
        %v5050 = vpop.f32.mrf.mxu0
        %v5051 = vadd.f32 %v4853, %v5050
        %5052 = vmatmul.bf16.gmra.mxu0 %v4877
        %v5053 = vpop.f32.mrf.mxu0
        %v5054 = vadd.f32 %v4857, %v5053
        %v5055 = vpop.f32.mrf.mxu0
        %v5056 = vadd.f32 %v4861, %v5055
        %5057 = vdwg.mxu0
        %5058 = vmatpush.bf16.msra.mxu0 0
        %5059 = vmatpush.bf16.msra.mxu0 0
        %5060 = vmatpush.bf16.msra.mxu0 0
        %5061 = vmatpush.bf16.msra.mxu0 0
        %5062 = vmatpush.bf16.msra.mxu0 %v4843
        %5063 = vmatpush.bf16.msra.mxu0 %v4835
        %5064 = vmatpush.bf16.msra.mxu0 %v4827
        %5065 = vmatpush.bf16.msra.mxu0 %v4819
        %5066 = vmatmul.bf16.gmra.mxu0 %v4882
        %v5067 = vpop.f32.mrf.mxu0
        %v5068 = vadd.f32 %v5049, %v5067
        %v5069 = vpop.f32.mrf.mxu0
        %v5070 = vadd.f32 %v5051, %v5069
        %5071 = vmatmul.bf16.gmra.mxu0 %v4885
        %v5072 = vpop.f32.mrf.mxu0
        %v5073 = vadd.f32 %v5054, %v5072
        %v5074 = vpop.f32.mrf.mxu0
        %v5075 = vadd.f32 %v5056, %v5074
        %5076 = vdwg.mxu0
        %5077 = vmatpush.bf16.msra.mxu0 %v4812
        %5078 = vmatpush.bf16.msra.mxu0 %v4804
        %5079 = vmatpush.bf16.msra.mxu0 %v4796
        %5080 = vmatpush.bf16.msra.mxu0 %v4788
        %5081 = vmatpush.bf16.msra.mxu0 %v4780
        %5082 = vmatpush.bf16.msra.mxu0 %v4772
        %5083 = vmatpush.bf16.msra.mxu0 %v4764
        %5084 = vmatpush.bf16.msra.mxu0 %v4756
        %5085 = vmatmul.bf16.gmra.mxu0 %v4875
        %v5086 = vpop.f32.mrf.mxu0
        %v5087 = vadd.f32 %v4849, %v5086
        %v5088 = vpop.f32.mrf.mxu0
        %v5089 = vadd.f32 %v4853, %v5088
        %5090 = vmatmul.bf16.gmra.mxu0 %v4877
        %v5091 = vpop.f32.mrf.mxu0
        %v5092 = vadd.f32 %v4857, %v5091
        %v5093 = vpop.f32.mrf.mxu0
        %v5094 = vadd.f32 %v4861, %v5093
        %5095 = vdwg.mxu0
        %5096 = vmatpush.bf16.msra.mxu0 0
        %5097 = vmatpush.bf16.msra.mxu0 0
        %5098 = vmatpush.bf16.msra.mxu0 0
        %5099 = vmatpush.bf16.msra.mxu0 0
        %5100 = vmatpush.bf16.msra.mxu0 %v4844
        %5101 = vmatpush.bf16.msra.mxu0 %v4836
        %5102 = vmatpush.bf16.msra.mxu0 %v4828
        %5103 = vmatpush.bf16.msra.mxu0 %v4820
        %5104 = vmatmul.bf16.gmra.mxu0 %v4882
        %v5105 = vpop.f32.mrf.mxu0
        %v5106 = vadd.f32 %v5087, %v5105
        %v5107 = vpop.f32.mrf.mxu0
        %v5108 = vadd.f32 %v5089, %v5107
        %5109 = vmatmul.bf16.gmra.mxu0 %v4885
        %v5110 = vpop.f32.mrf.mxu0
        %v5111 = vadd.f32 %v5092, %v5110
        %v5112 = vpop.f32.mrf.mxu0
        %v5113 = vadd.f32 %v5094, %v5112
        %5114 = vdwg.mxu0
        %5115 = vmatpush.bf16.msra.mxu0 %v4813
        %5116 = vmatpush.bf16.msra.mxu0 %v4805
        %5117 = vmatpush.bf16.msra.mxu0 %v4797
        %5118 = vmatpush.bf16.msra.mxu0 %v4789
        %5119 = vmatpush.bf16.msra.mxu0 %v4781
        %5120 = vmatpush.bf16.msra.mxu0 %v4773
        %5121 = vmatpush.bf16.msra.mxu0 %v4765
        %5122 = vmatpush.bf16.msra.mxu0 %v4757
        %5123 = vmatmul.bf16.gmra.mxu0 %v4875
        %v5124 = vpop.f32.mrf.mxu0
        %v5125 = vadd.f32 %v4849, %v5124
        %v5126 = vpop.f32.mrf.mxu0
        %v5127 = vadd.f32 %v4853, %v5126
        %5128 = vmatmul.bf16.gmra.mxu0 %v4877
        %v5129 = vpop.f32.mrf.mxu0
        %v5130 = vadd.f32 %v4857, %v5129
        %v5131 = vpop.f32.mrf.mxu0
        %v5132 = vadd.f32 %v4861, %v5131
        %5133 = vdwg.mxu0
        %5134 = vmatpush.bf16.msra.mxu0 0
        %5135 = vmatpush.bf16.msra.mxu0 0
        %5136 = vmatpush.bf16.msra.mxu0 0
        %5137 = vmatpush.bf16.msra.mxu0 0
        %5138 = vmatpush.bf16.msra.mxu0 %v4845
        %5139 = vmatpush.bf16.msra.mxu0 %v4837
        %5140 = vmatpush.bf16.msra.mxu0 %v4829
        %5141 = vmatpush.bf16.msra.mxu0 %v4821
        %5142 = vmatmul.bf16.gmra.mxu0 %v4882
        %v5143 = vpop.f32.mrf.mxu0
        %v5144 = vadd.f32 %v5125, %v5143
        %v5145 = vpop.f32.mrf.mxu0
        %v5146 = vadd.f32 %v5127, %v5145
        %5147 = vmatmul.bf16.gmra.mxu0 %v4885
        %v5148 = vpop.f32.mrf.mxu0
        %v5149 = vadd.f32 %v5130, %v5148
        %v5150 = vpop.f32.mrf.mxu0
        %v5151 = vadd.f32 %v5132, %v5150
        %5152 = vdwg.mxu0
        %5153 = vmatpush.bf16.msra.mxu0 %v4814
        %5154 = vmatpush.bf16.msra.mxu0 %v4806
        %5155 = vmatpush.bf16.msra.mxu0 %v4798
        %5156 = vmatpush.bf16.msra.mxu0 %v4790
        %5157 = vmatpush.bf16.msra.mxu0 %v4782
        %5158 = vmatpush.bf16.msra.mxu0 %v4774
        %5159 = vmatpush.bf16.msra.mxu0 %v4766
        %5160 = vmatpush.bf16.msra.mxu0 %v4758
        %5161 = vmatmul.bf16.gmra.mxu0 %v4875
        %v5162 = vpop.f32.mrf.mxu0
        %v5163 = vadd.f32 %v4849, %v5162
        %v5164 = vpop.f32.mrf.mxu0
        %v5165 = vadd.f32 %v4853, %v5164
        %5166 = vmatmul.bf16.gmra.mxu0 %v4877
        %v5167 = vpop.f32.mrf.mxu0
        %v5168 = vadd.f32 %v4857, %v5167
        %v5169 = vpop.f32.mrf.mxu0
        %v5170 = vadd.f32 %v4861, %v5169
        %5171 = vdwg.mxu0
        %5172 = vmatpush.bf16.msra.mxu0 0
        %5173 = vmatpush.bf16.msra.mxu0 0
        %5174 = vmatpush.bf16.msra.mxu0 0
        %5175 = vmatpush.bf16.msra.mxu0 0
        %5176 = vmatpush.bf16.msra.mxu0 %v4846
        %5177 = vmatpush.bf16.msra.mxu0 %v4838
        %5178 = vmatpush.bf16.msra.mxu0 %v4830
        %5179 = vmatpush.bf16.msra.mxu0 %v4822
        %5180 = vmatmul.bf16.gmra.mxu0 %v4882
        %v5181 = vpop.f32.mrf.mxu0
        %v5182 = vadd.f32 %v5163, %v5181
        %v5183 = vpop.f32.mrf.mxu0
        %v5184 = vadd.f32 %v5165, %v5183
        %5185 = vmatmul.bf16.gmra.mxu0 %v4885
        %v5186 = vpop.f32.mrf.mxu0
        %v5187 = vadd.f32 %v5168, %v5186
        %v5188 = vpop.f32.mrf.mxu0
        %v5189 = vadd.f32 %v5170, %v5188
        %5190 = vdwg.mxu0
        %v5191 = vmax.f32 %v4916, 0.0
        %v5192 = vmax.f32 %v4954, 0.0
        %v5193 = vmax.f32 %v4992, 0.0
        %v5194 = vmax.f32 %v5030, 0.0
        %v5195 = vmax.f32 %v5068, 0.0
        %v5196 = vmax.f32 %v5106, 0.0
        %v5197 = vmax.f32 %v5144, 0.0
        %v5198 = vmax.f32 %v5182, 0.0
        %v5199 = vmax.f32 %v4918, 0.0
        %v5200 = vmax.f32 %v4956, 0.0
        %v5201 = vmax.f32 %v4994, 0.0
        %v5202 = vmax.f32 %v5032, 0.0
        %v5203 = vmax.f32 %v5070, 0.0
        %v5204 = vmax.f32 %v5108, 0.0
        %v5205 = vmax.f32 %v5146, 0.0
        %v5206 = vmax.f32 %v5184, 0.0
        %v5207 = vmax.f32 %v4921, 0.0
        %v5208 = vmax.f32 %v4959, 0.0
        %v5209 = vmax.f32 %v4997, 0.0
        %v5210 = vmax.f32 %v5035, 0.0
        %v5211 = vmax.f32 %v5073, 0.0
        %v5212 = vmax.f32 %v5111, 0.0
        %v5213 = vmax.f32 %v5149, 0.0
        %v5214 = vmax.f32 %v5187, 0.0
        %v5215 = vmax.f32 %v4923, 0.0
        %v5216 = vmax.f32 %v4961, 0.0
        %v5217 = vmax.f32 %v4999, 0.0
        %v5218 = vmax.f32 %v5037, 0.0
        %v5219 = vmax.f32 %v5075, 0.0
        %v5220 = vmax.f32 %v5113, 0.0
        %v5221 = vmax.f32 %v5151, 0.0
        %v5222 = vmax.f32 %v5189, 0.0
        %5223 = vset.pattern.permute.xlu0 4
        %5224 = vperm.xlu0 %5223, %v2538
        %v5225 = vpop.permute.xlu0 %5224
        %5227 = vset.pattern.permute.xlu0 4
        %5228 = vperm.xlu0 %5227, %v2539
        %v5229 = vpop.permute.xlu0 %5228
        %5231 = vset.pattern.permute.xlu0 4
        %5232 = vperm.xlu0 %5231, %v2540
        %v5233 = vpop.permute.xlu0 %5232
        %5235 = vset.pattern.permute.xlu0 4
        %5236 = vperm.xlu0 %5235, %v2541
        %v5237 = vpop.permute.xlu0 %5236
        %v5239 = vmul.f32 %v5191, %v5225
        %v5240 = vmul.f32 %v5192, %v5225
        %v5241 = vmul.f32 %v5193, %v5225
        %v5242 = vmul.f32 %v5194, %v5225
        %v5243 = vmul.f32 %v5195, %v5225
        %v5244 = vmul.f32 %v5196, %v5225
        %v5245 = vmul.f32 %v5197, %v5225
        %v5246 = vmul.f32 %v5198, %v5225
        %v5247 = vmul.f32 %v5199, %v5229
        %v5248 = vmul.f32 %v5200, %v5229
        %v5249 = vmul.f32 %v5201, %v5229
        %v5250 = vmul.f32 %v5202, %v5229
        %v5251 = vmul.f32 %v5203, %v5229
        %v5252 = vmul.f32 %v5204, %v5229
        %v5253 = vmul.f32 %v5205, %v5229
        %v5254 = vmul.f32 %v5206, %v5229
        %v5255 = vmul.f32 %v5207, %v5233
        %v5256 = vmul.f32 %v5208, %v5233
        %v5257 = vmul.f32 %v5209, %v5233
        %v5258 = vmul.f32 %v5210, %v5233
        %v5259 = vmul.f32 %v5211, %v5233
        %v5260 = vmul.f32 %v5212, %v5233
        %v5261 = vmul.f32 %v5213, %v5233
        %v5262 = vmul.f32 %v5214, %v5233
        %v5263 = vmul.f32 %v5215, %v5237
        %v5264 = vmul.f32 %v5216, %v5237
        %v5265 = vmul.f32 %v5217, %v5237
        %v5266 = vmul.f32 %v5218, %v5237
        %v5267 = vmul.f32 %v5219, %v5237
        %v5268 = vmul.f32 %v5220, %v5237
        %v5269 = vmul.f32 %v5221, %v5237
        %v5270 = vmul.f32 %v5222, %v5237
        %5271 = vset.pattern.permute.xlu0 5
        %5272 = vperm.xlu0 %5271, %v2538
        %v5273 = vpop.permute.xlu0 %5272
        %5275 = vset.pattern.permute.xlu0 5
        %5276 = vperm.xlu0 %5275, %v2539
        %v5277 = vpop.permute.xlu0 %5276
        %5279 = vset.pattern.permute.xlu0 5
        %5280 = vperm.xlu0 %5279, %v2540
        %v5281 = vpop.permute.xlu0 %5280
        %5283 = vset.pattern.permute.xlu0 5
        %5284 = vperm.xlu0 %5283, %v2541
        %v5285 = vpop.permute.xlu0 %5284
        %v5287 = vadd.f32 %v5239, %v5273
        %v5288 = vadd.f32 %v5240, %v5273
        %v5289 = vadd.f32 %v5241, %v5273
        %v5290 = vadd.f32 %v5242, %v5273
        %v5291 = vadd.f32 %v5243, %v5273
        %v5292 = vadd.f32 %v5244, %v5273
        %v5293 = vadd.f32 %v5245, %v5273
        %v5294 = vadd.f32 %v5246, %v5273
        %v5295 = vadd.f32 %v5247, %v5277
        %v5296 = vadd.f32 %v5248, %v5277
        %v5297 = vadd.f32 %v5249, %v5277
        %v5298 = vadd.f32 %v5250, %v5277
        %v5299 = vadd.f32 %v5251, %v5277
        %v5300 = vadd.f32 %v5252, %v5277
        %v5301 = vadd.f32 %v5253, %v5277
        %v5302 = vadd.f32 %v5254, %v5277
        %v5303 = vadd.f32 %v5255, %v5281
        %v5304 = vadd.f32 %v5256, %v5281
        %v5305 = vadd.f32 %v5257, %v5281
        %v5306 = vadd.f32 %v5258, %v5281
        %v5307 = vadd.f32 %v5259, %v5281
        %v5308 = vadd.f32 %v5260, %v5281
        %v5309 = vadd.f32 %v5261, %v5281
        %v5310 = vadd.f32 %v5262, %v5281
        %v5311 = vadd.f32 %v5263, %v5285
        %v5312 = vadd.f32 %v5264, %v5285
        %v5313 = vadd.f32 %v5265, %v5285
        %v5314 = vadd.f32 %v5266, %v5285
        %v5315 = vadd.f32 %v5267, %v5285
        %v5316 = vadd.f32 %v5268, %v5285
        %v5317 = vadd.f32 %v5269, %v5285
        %v5318 = vadd.f32 %v5270, %v5285
        %v5319 = vadd.f32 %v2844, %v5287
        %v5320 = vadd.f32 %v2845, %v5288
        %v5321 = vadd.f32 %v2846, %v5289
        %v5322 = vadd.f32 %v2847, %v5290
        %v5323 = vadd.f32 %v2848, %v5291
        %v5324 = vadd.f32 %v2849, %v5292
        %v5325 = vadd.f32 %v2850, %v5293
        %v5326 = vadd.f32 %v2851, %v5294
        %v5327 = vadd.f32 %v2852, %v5295
        %v5328 = vadd.f32 %v2853, %v5296
        %v5329 = vadd.f32 %v2854, %v5297
        %v5330 = vadd.f32 %v2855, %v5298
        %v5331 = vadd.f32 %v2856, %v5299
        %v5332 = vadd.f32 %v2857, %v5300
        %v5333 = vadd.f32 %v2858, %v5301
        %v5334 = vadd.f32 %v2859, %v5302
        %v5335 = vadd.f32 %v2860, %v5303
        %v5336 = vadd.f32 %v2861, %v5304
        %v5337 = vadd.f32 %v2862, %v5305
        %v5338 = vadd.f32 %v2863, %v5306
        %v5339 = vadd.f32 %v2864, %v5307
        %v5340 = vadd.f32 %v2865, %v5308
        %v5341 = vadd.f32 %v2866, %v5309
        %v5342 = vadd.f32 %v2867, %v5310
        %v5343 = vadd.f32 %v2868, %v5311
        %v5344 = vadd.f32 %v2869, %v5312
        %v5345 = vadd.f32 %v2870, %v5313
        %v5346 = vadd.f32 %v2871, %v5314
        %v5347 = vadd.f32 %v2872, %v5315
        %v5348 = vadd.f32 %v2873, %v5316
        %v5349 = vadd.f32 %v2874, %v5317
        %v5350 = vadd.f32 %v2875, %v5318
        %v5351 = vmax.f32 %v5319, 0.0
        %v5352 = vmax.f32 %v5320, 0.0
        %v5353 = vmax.f32 %v5321, 0.0
        %v5354 = vmax.f32 %v5322, 0.0
        %v5355 = vmax.f32 %v5323, 0.0
        %v5356 = vmax.f32 %v5324, 0.0
        %v5357 = vmax.f32 %v5325, 0.0
        %v5358 = vmax.f32 %v5326, 0.0
        %v5359 = vmax.f32 %v5327, 0.0
        %v5360 = vmax.f32 %v5328, 0.0
        %v5361 = vmax.f32 %v5329, 0.0
        %v5362 = vmax.f32 %v5330, 0.0
        %v5363 = vmax.f32 %v5331, 0.0
        %v5364 = vmax.f32 %v5332, 0.0
        %v5365 = vmax.f32 %v5333, 0.0
        %v5366 = vmax.f32 %v5334, 0.0
        %v5367 = vmax.f32 %v5335, 0.0
        %v5368 = vmax.f32 %v5336, 0.0
        %v5369 = vmax.f32 %v5337, 0.0
        %v5370 = vmax.f32 %v5338, 0.0
        %v5371 = vmax.f32 %v5339, 0.0
        %v5372 = vmax.f32 %v5340, 0.0
        %v5373 = vmax.f32 %v5341, 0.0
        %v5374 = vmax.f32 %v5342, 0.0
        %v5375 = vmax.f32 %v5343, 0.0
        %v5376 = vmax.f32 %v5344, 0.0
        %v5377 = vmax.f32 %v5345, 0.0
        %v5378 = vmax.f32 %v5346, 0.0
        %v5379 = vmax.f32 %v5347, 0.0
        %v5380 = vmax.f32 %v5348, 0.0
        %v5381 = vmax.f32 %v5349, 0.0
        %v5382 = vmax.f32 %v5350, 0.0
        %s5383 = scalar_lea.vmem %s2, 96
        %v5384 = vld [vmem:[%s5383] sm:$0xff]
        %s5385 = scalar_lea.vmem [#allocation2], 576
        %v5386 = vld [vmem:[%s5385] sm:$0xf]
        %v5387 = vld [vmem:[%s5385 + $0x8] sm:$0xf]
        %v5388 = vpack.c.bf16 %v5359, %v5351
        %v5389 = vpack.c.bf16 %v5360, %v5352
        %v5390 = vpack.c.bf16 %v5361, %v5353
        %v5391 = vpack.c.bf16 %v5362, %v5354
        %v5392 = vpack.c.bf16 %v5363, %v5355
        %v5393 = vpack.c.bf16 %v5364, %v5356
        %v5394 = vpack.c.bf16 %v5365, %v5357
        %v5395 = vpack.c.bf16 %v5366, %v5358
        %v5396 = vpack.c.bf16 %v5375, %v5367
        %v5397 = vpack.c.bf16 %v5376, %v5368
        %v5398 = vpack.c.bf16 %v5377, %v5369
        %v5399 = vpack.c.bf16 %v5378, %v5370
        %v5400 = vpack.c.bf16 %v5379, %v5371
        %v5401 = vpack.c.bf16 %v5380, %v5372
        %v5402 = vpack.c.bf16 %v5381, %v5373
        %v5403 = vpack.c.bf16 %v5382, %v5374
        %v5406 = vunpack.c.l.b16 %v5386
        %v5407 = vunpack.c.l.b16 %v5387
        %v5408 = vpack.c.b16 %v5407, %v5406
        %vm5409 = vcmask 261120
        %v5411 = vsel %vm5409, %v5408, 0
        %5413 = vmatpush.bf16.msra.mxu0 0
        %5414 = vmatpush.bf16.msra.mxu0 0
        %5415 = vmatpush.bf16.msra.mxu0 0
        %5416 = vmatpush.bf16.msra.mxu0 0
        %5417 = vmatpush.bf16.msra.mxu0 0
        %5418 = vmatpush.bf16.msra.mxu0 0
        %5419 = vmatpush.bf16.msra.mxu0 %v5396
        %5420 = vmatpush.bf16.msra.mxu0 %v5388
        %5421 = vmatmul.bf16.gmra.mxu0 %v5411
        %v5422 = vpop.f32.mrf.mxu0
        %v5423 = vadd.f32 0.0, %v5422
        %v5424 = vpop.f32.mrf.mxu0
        %v5425 = vadd.f32 0.0, %v5424
        %5426 = vdwg.mxu0
        %5427 = vmatpush.bf16.msra.mxu0 0
        %5428 = vmatpush.bf16.msra.mxu0 0
        %5429 = vmatpush.bf16.msra.mxu0 0
        %5430 = vmatpush.bf16.msra.mxu0 0
        %5431 = vmatpush.bf16.msra.mxu0 0
        %5432 = vmatpush.bf16.msra.mxu0 0
        %5433 = vmatpush.bf16.msra.mxu0 %v5397
        %5434 = vmatpush.bf16.msra.mxu0 %v5389
        %5435 = vmatmul.bf16.gmra.mxu0 %v5411
        %v5436 = vpop.f32.mrf.mxu0
        %v5437 = vadd.f32 0.0, %v5436
        %v5438 = vpop.f32.mrf.mxu0
        %v5439 = vadd.f32 0.0, %v5438
        %5440 = vdwg.mxu0
        %5441 = vmatpush.bf16.msra.mxu0 0
        %5442 = vmatpush.bf16.msra.mxu0 0
        %5443 = vmatpush.bf16.msra.mxu0 0
        %5444 = vmatpush.bf16.msra.mxu0 0
        %5445 = vmatpush.bf16.msra.mxu0 0
        %5446 = vmatpush.bf16.msra.mxu0 0
        %5447 = vmatpush.bf16.msra.mxu0 %v5398
        %5448 = vmatpush.bf16.msra.mxu0 %v5390
        %5449 = vmatmul.bf16.gmra.mxu0 %v5411
        %v5450 = vpop.f32.mrf.mxu0
        %v5451 = vadd.f32 0.0, %v5450
        %v5452 = vpop.f32.mrf.mxu0
        %v5453 = vadd.f32 0.0, %v5452
        %5454 = vdwg.mxu0
        %5455 = vmatpush.bf16.msra.mxu0 0
        %5456 = vmatpush.bf16.msra.mxu0 0
        %5457 = vmatpush.bf16.msra.mxu0 0
        %5458 = vmatpush.bf16.msra.mxu0 0
        %5459 = vmatpush.bf16.msra.mxu0 0
        %5460 = vmatpush.bf16.msra.mxu0 0
        %5461 = vmatpush.bf16.msra.mxu0 %v5399
        %5462 = vmatpush.bf16.msra.mxu0 %v5391
        %5463 = vmatmul.bf16.gmra.mxu0 %v5411
        %v5464 = vpop.f32.mrf.mxu0
        %v5465 = vadd.f32 0.0, %v5464
        %v5466 = vpop.f32.mrf.mxu0
        %v5467 = vadd.f32 0.0, %v5466
        %5468 = vdwg.mxu0
        %5469 = vmatpush.bf16.msra.mxu0 0
        %5470 = vmatpush.bf16.msra.mxu0 0
        %5471 = vmatpush.bf16.msra.mxu0 0
        %5472 = vmatpush.bf16.msra.mxu0 0
        %5473 = vmatpush.bf16.msra.mxu0 0
        %5474 = vmatpush.bf16.msra.mxu0 0
        %5475 = vmatpush.bf16.msra.mxu0 %v5400
        %5476 = vmatpush.bf16.msra.mxu0 %v5392
        %5477 = vmatmul.bf16.gmra.mxu0 %v5411
        %v5478 = vpop.f32.mrf.mxu0
        %v5479 = vadd.f32 0.0, %v5478
        %v5480 = vpop.f32.mrf.mxu0
        %v5481 = vadd.f32 0.0, %v5480
        %5482 = vdwg.mxu0
        %5483 = vmatpush.bf16.msra.mxu0 0
        %5484 = vmatpush.bf16.msra.mxu0 0
        %5485 = vmatpush.bf16.msra.mxu0 0
        %5486 = vmatpush.bf16.msra.mxu0 0
        %5487 = vmatpush.bf16.msra.mxu0 0
        %5488 = vmatpush.bf16.msra.mxu0 0
        %5489 = vmatpush.bf16.msra.mxu0 %v5401
        %5490 = vmatpush.bf16.msra.mxu0 %v5393
        %5491 = vmatmul.bf16.gmra.mxu0 %v5411
        %v5492 = vpop.f32.mrf.mxu0
        %v5493 = vadd.f32 0.0, %v5492
        %v5494 = vpop.f32.mrf.mxu0
        %v5495 = vadd.f32 0.0, %v5494
        %5496 = vdwg.mxu0
        %5497 = vmatpush.bf16.msra.mxu0 0
        %5498 = vmatpush.bf16.msra.mxu0 0
        %5499 = vmatpush.bf16.msra.mxu0 0
        %5500 = vmatpush.bf16.msra.mxu0 0
        %5501 = vmatpush.bf16.msra.mxu0 0
        %5502 = vmatpush.bf16.msra.mxu0 0
        %5503 = vmatpush.bf16.msra.mxu0 %v5402
        %5504 = vmatpush.bf16.msra.mxu0 %v5394
        %5505 = vmatmul.bf16.gmra.mxu0 %v5411
        %v5506 = vpop.f32.mrf.mxu0
        %v5507 = vadd.f32 0.0, %v5506
        %v5508 = vpop.f32.mrf.mxu0
        %v5509 = vadd.f32 0.0, %v5508
        %5510 = vdwg.mxu0
        %5511 = vmatpush.bf16.msra.mxu0 0
        %5512 = vmatpush.bf16.msra.mxu0 0
        %5513 = vmatpush.bf16.msra.mxu0 0
        %5514 = vmatpush.bf16.msra.mxu0 0
        %5515 = vmatpush.bf16.msra.mxu0 0
        %5516 = vmatpush.bf16.msra.mxu0 0
        %5517 = vmatpush.bf16.msra.mxu0 %v5403
        %5518 = vmatpush.bf16.msra.mxu0 %v5395
        %5519 = vmatmul.bf16.gmra.mxu0 %v5411
        %v5520 = vpop.f32.mrf.mxu0
        %v5521 = vadd.f32 0.0, %v5520
        %v5522 = vpop.f32.mrf.mxu0
        %v5523 = vadd.f32 0.0, %v5522
        %5524 = vdwg.mxu0
        %5526 = vset.pattern.permute.xlu0 0
        %5527 = vperm.xlu0 %5526, %v5384
        %v5528 = vpop.permute.xlu0 %5527
        %v5530 = vadd.f32 %v5423, %v5528
        %v5531 = vadd.f32 %v5437, %v5528
        %v5532 = vadd.f32 %v5451, %v5528
        %v5533 = vadd.f32 %v5465, %v5528
        %v5534 = vadd.f32 %v5479, %v5528
        %v5535 = vadd.f32 %v5493, %v5528
        %v5536 = vadd.f32 %v5507, %v5528
        %v5537 = vadd.f32 %v5521, %v5528
        %5538 = vset.pattern.permute.xlu0 1
        %5539 = vperm.xlu0 %5538, %v5384
        %v5540 = vpop.permute.xlu0 %5539
        %v5542 = vadd.f32 %v5425, %v5540
        %v5543 = vadd.f32 %v5439, %v5540
        %v5544 = vadd.f32 %v5453, %v5540
        %v5545 = vadd.f32 %v5467, %v5540
        %v5546 = vadd.f32 %v5481, %v5540
        %v5547 = vadd.f32 %v5495, %v5540
        %v5548 = vadd.f32 %v5509, %v5540
        %v5549 = vadd.f32 %v5523, %v5540
        %v5550 = vadd.f32 %v5530, %v5542
        %v5551 = vadd.f32 %v5531, %v5543
        %v5552 = vadd.f32 %v5532, %v5544
        %v5553 = vadd.f32 %v5533, %v5545
        %v5554 = vadd.f32 %v5534, %v5546
        %v5555 = vadd.f32 %v5535, %v5547
        %v5556 = vadd.f32 %v5536, %v5548
        %v5557 = vadd.f32 %v5537, %v5549
        %v5558 = vmax.f32 %v5550, 0.0
        %v5559 = vmax.f32 %v5551, 0.0
        %v5560 = vmax.f32 %v5552, 0.0
        %v5561 = vmax.f32 %v5553, 0.0
        %v5562 = vmax.f32 %v5554, 0.0
        %v5563 = vmax.f32 %v5555, 0.0
        %v5564 = vmax.f32 %v5556, 0.0
        %v5565 = vmax.f32 %v5557, 0.0
        %s5566 = scalar_lea.vmem [#allocation2], 640
        %v5567 = vld [vmem:[%s5566] sm:$0xf]
        %s5568 = scalar_lea.vmem [#allocation2], 704
        %v5569 = vld [vmem:[%s5568] sm:$0xf]
        %5570 = vrot.lane.b32.xlu0 %v5558, 45
        %v5571 = vpop.permute.xlu0 %5570
        %5572 = vrot.lane.b32.xlu0 %v5559, 45
        %v5573 = vpop.permute.xlu0 %5572
        %5574 = vrot.lane.b32.xlu0 %v5560, 45
        %v5575 = vpop.permute.xlu0 %5574
        %5576 = vrot.lane.b32.xlu0 %v5561, 45
        %v5577 = vpop.permute.xlu0 %5576
        %5578 = vrot.lane.b32.xlu0 %v5562, 45
        %v5579 = vpop.permute.xlu0 %5578
        %5580 = vrot.lane.b32.xlu0 %v5563, 45
        %v5581 = vpop.permute.xlu0 %5580
        %5582 = vrot.lane.b32.xlu0 %v5564, 45
        %v5583 = vpop.permute.xlu0 %5582
        %5584 = vrot.lane.b32.xlu0 %v5565, 45
        %v5585 = vpop.permute.xlu0 %5584
        %v5586 = vsel %vm418, %v5583, %v5585
        %v5587 = vsel %vm418, %v5581, %v5583
        %v5588 = vsel %vm418, %v5579, %v5581
        %v5589 = vsel %vm418, %v5577, %v5579
        %v5590 = vsel %vm418, %v5575, %v5577
        %v5591 = vsel %vm418, %v5573, %v5575
        %v5592 = vsel %vm418, %v5571, %v5573
        %v5593 = vsel %vm418, %v5585, %v5571
        %v5594 = vsel %vm435, %v5593, 0.0
        %v5595 = vsel %vm436, %v5592, 0.0
        %v5596 = vsel %vm437, %v5591, 0.0
        %v5597 = vsel %vm438, %v5590, 0.0
        %v5598 = vsel %vm439, %v5589, 0.0
        %v5599 = vsel %vm440, %v5588, 0.0
        %v5600 = vsel %vm441, %v5587, 0.0
        %v5601 = vsel %vm442, %v5586, 0.0
        %5602 = vrot.lane.b32.xlu0 %v5558, 36
        %v5603 = vpop.permute.xlu0 %5602
        %5604 = vrot.lane.b32.xlu0 %v5559, 36
        %v5605 = vpop.permute.xlu0 %5604
        %5606 = vrot.lane.b32.xlu0 %v5560, 36
        %v5607 = vpop.permute.xlu0 %5606
        %5608 = vrot.lane.b32.xlu0 %v5561, 36
        %v5609 = vpop.permute.xlu0 %5608
        %5610 = vrot.lane.b32.xlu0 %v5562, 36
        %v5611 = vpop.permute.xlu0 %5610
        %5612 = vrot.lane.b32.xlu0 %v5563, 36
        %v5613 = vpop.permute.xlu0 %5612
        %5614 = vrot.lane.b32.xlu0 %v5564, 36
        %v5615 = vpop.permute.xlu0 %5614
        %5616 = vrot.lane.b32.xlu0 %v5565, 36
        %v5617 = vpop.permute.xlu0 %5616
        %v5618 = vsel %vm467, %v5615, %v5617
        %v5619 = vsel %vm467, %v5613, %v5615
        %v5620 = vsel %vm467, %v5611, %v5613
        %v5621 = vsel %vm467, %v5609, %v5611
        %v5622 = vsel %vm467, %v5607, %v5609
        %v5623 = vsel %vm467, %v5605, %v5607
        %v5624 = vsel %vm467, %v5603, %v5605
        %v5625 = vsel %vm467, %v5617, %v5603
        %v5626 = vsel %vm484, %v5625, 0.0
        %v5627 = vsel %vm485, %v5624, 0.0
        %v5628 = vsel %vm486, %v5623, 0.0
        %v5629 = vsel %vm487, %v5622, 0.0
        %v5630 = vsel %vm488, %v5621, 0.0
        %v5631 = vsel %vm489, %v5620, 0.0
        %v5632 = vsel %vm490, %v5619, 0.0
        %v5633 = vsel %vm491, %v5618, 0.0
        %5634 = vrot.lane.b32.xlu0 %v5558, 27
        %v5635 = vpop.permute.xlu0 %5634
        %5636 = vrot.lane.b32.xlu0 %v5559, 27
        %v5637 = vpop.permute.xlu0 %5636
        %5638 = vrot.lane.b32.xlu0 %v5560, 27
        %v5639 = vpop.permute.xlu0 %5638
        %5640 = vrot.lane.b32.xlu0 %v5561, 27
        %v5641 = vpop.permute.xlu0 %5640
        %5642 = vrot.lane.b32.xlu0 %v5562, 27
        %v5643 = vpop.permute.xlu0 %5642
        %5644 = vrot.lane.b32.xlu0 %v5563, 27
        %v5645 = vpop.permute.xlu0 %5644
        %5646 = vrot.lane.b32.xlu0 %v5564, 27
        %v5647 = vpop.permute.xlu0 %5646
        %5648 = vrot.lane.b32.xlu0 %v5565, 27
        %v5649 = vpop.permute.xlu0 %5648
        %v5650 = vsel %vm516, %v5647, %v5649
        %v5651 = vsel %vm516, %v5645, %v5647
        %v5652 = vsel %vm516, %v5643, %v5645
        %v5653 = vsel %vm516, %v5641, %v5643
        %v5654 = vsel %vm516, %v5639, %v5641
        %v5655 = vsel %vm516, %v5637, %v5639
        %v5656 = vsel %vm516, %v5635, %v5637
        %v5657 = vsel %vm516, %v5649, %v5635
        %v5658 = vsel %vm533, %v5657, 0.0
        %v5659 = vsel %vm534, %v5656, 0.0
        %v5660 = vsel %vm535, %v5655, 0.0
        %v5661 = vsel %vm536, %v5654, 0.0
        %v5662 = vsel %vm537, %v5653, 0.0
        %v5663 = vsel %vm538, %v5652, 0.0
        %v5664 = vsel %vm539, %v5651, 0.0
        %v5665 = vsel %vm540, %v5650, 0.0
        %5666 = vrot.lane.b32.xlu0 %v5558, 18
        %v5667 = vpop.permute.xlu0 %5666
        %5668 = vrot.lane.b32.xlu0 %v5559, 18
        %v5669 = vpop.permute.xlu0 %5668
        %5670 = vrot.lane.b32.xlu0 %v5560, 18
        %v5671 = vpop.permute.xlu0 %5670
        %5672 = vrot.lane.b32.xlu0 %v5561, 18
        %v5673 = vpop.permute.xlu0 %5672
        %5674 = vrot.lane.b32.xlu0 %v5562, 18
        %v5675 = vpop.permute.xlu0 %5674
        %5676 = vrot.lane.b32.xlu0 %v5563, 18
        %v5677 = vpop.permute.xlu0 %5676
        %5678 = vrot.lane.b32.xlu0 %v5564, 18
        %v5679 = vpop.permute.xlu0 %5678
        %5680 = vrot.lane.b32.xlu0 %v5565, 18
        %v5681 = vpop.permute.xlu0 %5680
        %v5682 = vsel %vm565, %v5679, %v5681
        %v5683 = vsel %vm565, %v5677, %v5679
        %v5684 = vsel %vm565, %v5675, %v5677
        %v5685 = vsel %vm565, %v5673, %v5675
        %v5686 = vsel %vm565, %v5671, %v5673
        %v5687 = vsel %vm565, %v5669, %v5671
        %v5688 = vsel %vm565, %v5667, %v5669
        %v5689 = vsel %vm565, %v5681, %v5667
        %v5690 = vsel %vm582, %v5689, 0.0
        %v5691 = vsel %vm583, %v5688, 0.0
        %v5692 = vsel %vm584, %v5687, 0.0
        %v5693 = vsel %vm585, %v5686, 0.0
        %v5694 = vsel %vm586, %v5685, 0.0
        %v5695 = vsel %vm587, %v5684, 0.0
        %v5696 = vsel %vm588, %v5683, 0.0
        %v5697 = vsel %vm589, %v5682, 0.0
        %5698 = vrot.lane.b32.xlu0 %v5558, 9
        %v5699 = vpop.permute.xlu0 %5698
        %5700 = vrot.lane.b32.xlu0 %v5559, 9
        %v5701 = vpop.permute.xlu0 %5700
        %5702 = vrot.lane.b32.xlu0 %v5560, 9
        %v5703 = vpop.permute.xlu0 %5702
        %5704 = vrot.lane.b32.xlu0 %v5561, 9
        %v5705 = vpop.permute.xlu0 %5704
        %5706 = vrot.lane.b32.xlu0 %v5562, 9
        %v5707 = vpop.permute.xlu0 %5706
        %5708 = vrot.lane.b32.xlu0 %v5563, 9
        %v5709 = vpop.permute.xlu0 %5708
        %5710 = vrot.lane.b32.xlu0 %v5564, 9
        %v5711 = vpop.permute.xlu0 %5710
        %5712 = vrot.lane.b32.xlu0 %v5565, 9
        %v5713 = vpop.permute.xlu0 %5712
        %v5714 = vsel %vm614, %v5711, %v5713
        %v5715 = vsel %vm614, %v5709, %v5711
        %v5716 = vsel %vm614, %v5707, %v5709
        %v5717 = vsel %vm614, %v5705, %v5707
        %v5718 = vsel %vm614, %v5703, %v5705
        %v5719 = vsel %vm614, %v5701, %v5703
        %v5720 = vsel %vm614, %v5699, %v5701
        %v5721 = vsel %vm614, %v5713, %v5699
        %v5722 = vsel %vm631, %v5721, 0.0
        %v5723 = vsel %vm632, %v5720, 0.0
        %v5724 = vsel %vm633, %v5719, 0.0
        %v5725 = vsel %vm634, %v5718, 0.0
        %v5726 = vsel %vm635, %v5717, 0.0
        %v5727 = vsel %vm636, %v5716, 0.0
        %v5728 = vsel %vm637, %v5715, 0.0
        %v5729 = vsel %vm638, %v5714, 0.0
        %v5730 = vpack.c.bf16 %v5626, %v5594
        %v5731 = vpack.c.bf16 %v5627, %v5595
        %v5732 = vpack.c.bf16 %v5628, %v5596
        %v5733 = vpack.c.bf16 %v5629, %v5597
        %v5734 = vpack.c.bf16 %v5630, %v5598
        %v5735 = vpack.c.bf16 %v5631, %v5599
        %v5736 = vpack.c.bf16 %v5632, %v5600
        %v5737 = vpack.c.bf16 %v5633, %v5601
        %v5738 = vpack.c.bf16 %v5690, %v5658
        %v5739 = vpack.c.bf16 %v5691, %v5659
        %v5740 = vpack.c.bf16 %v5692, %v5660
        %v5741 = vpack.c.bf16 %v5693, %v5661
        %v5742 = vpack.c.bf16 %v5694, %v5662
        %v5743 = vpack.c.bf16 %v5695, %v5663
        %v5744 = vpack.c.bf16 %v5696, %v5664
        %v5745 = vpack.c.bf16 %v5697, %v5665
        %v5746 = vpack.c.bf16 %v5558, %v5722
        %v5747 = vpack.c.bf16 %v5559, %v5723
        %v5748 = vpack.c.bf16 %v5560, %v5724
        %v5749 = vpack.c.bf16 %v5561, %v5725
        %v5750 = vpack.c.bf16 %v5562, %v5726
        %v5751 = vpack.c.bf16 %v5563, %v5727
        %v5752 = vpack.c.bf16 %v5564, %v5728
        %v5753 = vpack.c.bf16 %v5565, %v5729
        %5754 = vset.pattern.permute.xlu0 2
        %5755 = vperm.xlu0 %5754, %v5384
        %v5756 = vpop.permute.xlu0 %5755
        %v5759 = vsel %vm675, %v5567, 0
        %5761 = vmatpush.bf16.msra.mxu0 0
        %5762 = vmatpush.bf16.msra.mxu0 0
        %5763 = vmatpush.bf16.msra.mxu0 0
        %5764 = vmatpush.bf16.msra.mxu0 0
        %5765 = vmatpush.bf16.msra.mxu0 0
        %5766 = vmatpush.bf16.msra.mxu0 %v5746
        %5767 = vmatpush.bf16.msra.mxu0 %v5738
        %5768 = vmatpush.bf16.msra.mxu0 %v5730
        %5769 = vmatmul.bf16.gmra.mxu0 %v5759
        %v5770 = vpop.f32.mrf.mxu0
        %v5771 = vadd.f32 %v5756, %v5770
        %v5772 = vpop.f32.mrf.mxu0
        %5773 = vdwg.mxu0
        %5774 = vmatpush.bf16.msra.mxu0 0
        %5775 = vmatpush.bf16.msra.mxu0 0
        %5776 = vmatpush.bf16.msra.mxu0 0
        %5777 = vmatpush.bf16.msra.mxu0 0
        %5778 = vmatpush.bf16.msra.mxu0 0
        %5779 = vmatpush.bf16.msra.mxu0 %v5747
        %5780 = vmatpush.bf16.msra.mxu0 %v5739
        %5781 = vmatpush.bf16.msra.mxu0 %v5731
        %5782 = vmatmul.bf16.gmra.mxu0 %v5759
        %v5783 = vpop.f32.mrf.mxu0
        %v5784 = vadd.f32 %v5756, %v5783
        %v5785 = vpop.f32.mrf.mxu0
        %5786 = vdwg.mxu0
        %5787 = vmatpush.bf16.msra.mxu0 0
        %5788 = vmatpush.bf16.msra.mxu0 0
        %5789 = vmatpush.bf16.msra.mxu0 0
        %5790 = vmatpush.bf16.msra.mxu0 0
        %5791 = vmatpush.bf16.msra.mxu0 0
        %5792 = vmatpush.bf16.msra.mxu0 %v5748
        %5793 = vmatpush.bf16.msra.mxu0 %v5740
        %5794 = vmatpush.bf16.msra.mxu0 %v5732
        %5795 = vmatmul.bf16.gmra.mxu0 %v5759
        %v5796 = vpop.f32.mrf.mxu0
        %v5797 = vadd.f32 %v5756, %v5796
        %v5798 = vpop.f32.mrf.mxu0
        %5799 = vdwg.mxu0
        %5800 = vmatpush.bf16.msra.mxu0 0
        %5801 = vmatpush.bf16.msra.mxu0 0
        %5802 = vmatpush.bf16.msra.mxu0 0
        %5803 = vmatpush.bf16.msra.mxu0 0
        %5804 = vmatpush.bf16.msra.mxu0 0
        %5805 = vmatpush.bf16.msra.mxu0 %v5749
        %5806 = vmatpush.bf16.msra.mxu0 %v5741
        %5807 = vmatpush.bf16.msra.mxu0 %v5733
        %5808 = vmatmul.bf16.gmra.mxu0 %v5759
        %v5809 = vpop.f32.mrf.mxu0
        %v5810 = vadd.f32 %v5756, %v5809
        %v5811 = vpop.f32.mrf.mxu0
        %5812 = vdwg.mxu0
        %5813 = vmatpush.bf16.msra.mxu0 0
        %5814 = vmatpush.bf16.msra.mxu0 0
        %5815 = vmatpush.bf16.msra.mxu0 0
        %5816 = vmatpush.bf16.msra.mxu0 0
        %5817 = vmatpush.bf16.msra.mxu0 0
        %5818 = vmatpush.bf16.msra.mxu0 %v5750
        %5819 = vmatpush.bf16.msra.mxu0 %v5742
        %5820 = vmatpush.bf16.msra.mxu0 %v5734
        %5821 = vmatmul.bf16.gmra.mxu0 %v5759
        %v5822 = vpop.f32.mrf.mxu0
        %v5823 = vadd.f32 %v5756, %v5822
        %v5824 = vpop.f32.mrf.mxu0
        %5825 = vdwg.mxu0
        %5826 = vmatpush.bf16.msra.mxu0 0
        %5827 = vmatpush.bf16.msra.mxu0 0
        %5828 = vmatpush.bf16.msra.mxu0 0
        %5829 = vmatpush.bf16.msra.mxu0 0
        %5830 = vmatpush.bf16.msra.mxu0 0
        %5831 = vmatpush.bf16.msra.mxu0 %v5751
        %5832 = vmatpush.bf16.msra.mxu0 %v5743
        %5833 = vmatpush.bf16.msra.mxu0 %v5735
        %5834 = vmatmul.bf16.gmra.mxu0 %v5759
        %v5835 = vpop.f32.mrf.mxu0
        %v5836 = vadd.f32 %v5756, %v5835
        %v5837 = vpop.f32.mrf.mxu0
        %5838 = vdwg.mxu0
        %5839 = vmatpush.bf16.msra.mxu0 0
        %5840 = vmatpush.bf16.msra.mxu0 0
        %5841 = vmatpush.bf16.msra.mxu0 0
        %5842 = vmatpush.bf16.msra.mxu0 0
        %5843 = vmatpush.bf16.msra.mxu0 0
        %5844 = vmatpush.bf16.msra.mxu0 %v5752
        %5845 = vmatpush.bf16.msra.mxu0 %v5744
        %5846 = vmatpush.bf16.msra.mxu0 %v5736
        %5847 = vmatmul.bf16.gmra.mxu0 %v5759
        %v5848 = vpop.f32.mrf.mxu0
        %v5849 = vadd.f32 %v5756, %v5848
        %v5850 = vpop.f32.mrf.mxu0
        %5851 = vdwg.mxu0
        %5852 = vmatpush.bf16.msra.mxu0 0
        %5853 = vmatpush.bf16.msra.mxu0 0
        %5854 = vmatpush.bf16.msra.mxu0 0
        %5855 = vmatpush.bf16.msra.mxu0 0
        %5856 = vmatpush.bf16.msra.mxu0 0
        %5857 = vmatpush.bf16.msra.mxu0 %v5753
        %5858 = vmatpush.bf16.msra.mxu0 %v5745
        %5859 = vmatpush.bf16.msra.mxu0 %v5737
        %5860 = vmatmul.bf16.gmra.mxu0 %v5759
        %v5861 = vpop.f32.mrf.mxu0
        %v5862 = vadd.f32 %v5756, %v5861
        %v5863 = vpop.f32.mrf.mxu0
        %5864 = vdwg.mxu0
        %v5865 = vmax.f32 %v5771, 0.0
        %v5866 = vmax.f32 %v5784, 0.0
        %v5867 = vmax.f32 %v5797, 0.0
        %v5868 = vmax.f32 %v5810, 0.0
        %v5869 = vmax.f32 %v5823, 0.0
        %v5870 = vmax.f32 %v5836, 0.0
        %v5871 = vmax.f32 %v5849, 0.0
        %v5872 = vmax.f32 %v5862, 0.0
        %5873 = vrot.lane.b32.xlu0 %v5865, 45
        %v5874 = vpop.permute.xlu0 %5873
        %5875 = vrot.lane.b32.xlu0 %v5866, 45
        %v5876 = vpop.permute.xlu0 %5875
        %5877 = vrot.lane.b32.xlu0 %v5867, 45
        %v5878 = vpop.permute.xlu0 %5877
        %5879 = vrot.lane.b32.xlu0 %v5868, 45
        %v5880 = vpop.permute.xlu0 %5879
        %5881 = vrot.lane.b32.xlu0 %v5869, 45
        %v5882 = vpop.permute.xlu0 %5881
        %5883 = vrot.lane.b32.xlu0 %v5870, 45
        %v5884 = vpop.permute.xlu0 %5883
        %5885 = vrot.lane.b32.xlu0 %v5871, 45
        %v5886 = vpop.permute.xlu0 %5885
        %5887 = vrot.lane.b32.xlu0 %v5872, 45
        %v5888 = vpop.permute.xlu0 %5887
        %v5889 = vsel %vm418, %v5886, %v5888
        %v5890 = vsel %vm418, %v5884, %v5886
        %v5891 = vsel %vm418, %v5882, %v5884
        %v5892 = vsel %vm418, %v5880, %v5882
        %v5893 = vsel %vm418, %v5878, %v5880
        %v5894 = vsel %vm418, %v5876, %v5878
        %v5895 = vsel %vm418, %v5874, %v5876
        %v5896 = vsel %vm418, %v5888, %v5874
        %v5897 = vsel %vm435, %v5896, 0.0
        %v5898 = vsel %vm436, %v5895, 0.0
        %v5899 = vsel %vm437, %v5894, 0.0
        %v5900 = vsel %vm438, %v5893, 0.0
        %v5901 = vsel %vm439, %v5892, 0.0
        %v5902 = vsel %vm440, %v5891, 0.0
        %v5903 = vsel %vm441, %v5890, 0.0
        %v5904 = vsel %vm442, %v5889, 0.0
        %5905 = vrot.lane.b32.xlu0 %v5865, 36
        %v5906 = vpop.permute.xlu0 %5905
        %5907 = vrot.lane.b32.xlu0 %v5866, 36
        %v5908 = vpop.permute.xlu0 %5907
        %5909 = vrot.lane.b32.xlu0 %v5867, 36
        %v5910 = vpop.permute.xlu0 %5909
        %5911 = vrot.lane.b32.xlu0 %v5868, 36
        %v5912 = vpop.permute.xlu0 %5911
        %5913 = vrot.lane.b32.xlu0 %v5869, 36
        %v5914 = vpop.permute.xlu0 %5913
        %5915 = vrot.lane.b32.xlu0 %v5870, 36
        %v5916 = vpop.permute.xlu0 %5915
        %5917 = vrot.lane.b32.xlu0 %v5871, 36
        %v5918 = vpop.permute.xlu0 %5917
        %5919 = vrot.lane.b32.xlu0 %v5872, 36
        %v5920 = vpop.permute.xlu0 %5919
        %v5921 = vsel %vm467, %v5918, %v5920
        %v5922 = vsel %vm467, %v5916, %v5918
        %v5923 = vsel %vm467, %v5914, %v5916
        %v5924 = vsel %vm467, %v5912, %v5914
        %v5925 = vsel %vm467, %v5910, %v5912
        %v5926 = vsel %vm467, %v5908, %v5910
        %v5927 = vsel %vm467, %v5906, %v5908
        %v5928 = vsel %vm467, %v5920, %v5906
        %v5929 = vsel %vm484, %v5928, 0.0
        %v5930 = vsel %vm485, %v5927, 0.0
        %v5931 = vsel %vm486, %v5926, 0.0
        %v5932 = vsel %vm487, %v5925, 0.0
        %v5933 = vsel %vm488, %v5924, 0.0
        %v5934 = vsel %vm489, %v5923, 0.0
        %v5935 = vsel %vm490, %v5922, 0.0
        %v5936 = vsel %vm491, %v5921, 0.0
        %5937 = vrot.lane.b32.xlu0 %v5865, 27
        %v5938 = vpop.permute.xlu0 %5937
        %5939 = vrot.lane.b32.xlu0 %v5866, 27
        %v5940 = vpop.permute.xlu0 %5939
        %5941 = vrot.lane.b32.xlu0 %v5867, 27
        %v5942 = vpop.permute.xlu0 %5941
        %5943 = vrot.lane.b32.xlu0 %v5868, 27
        %v5944 = vpop.permute.xlu0 %5943
        %5945 = vrot.lane.b32.xlu0 %v5869, 27
        %v5946 = vpop.permute.xlu0 %5945
        %5947 = vrot.lane.b32.xlu0 %v5870, 27
        %v5948 = vpop.permute.xlu0 %5947
        %5949 = vrot.lane.b32.xlu0 %v5871, 27
        %v5950 = vpop.permute.xlu0 %5949
        %5951 = vrot.lane.b32.xlu0 %v5872, 27
        %v5952 = vpop.permute.xlu0 %5951
        %v5953 = vsel %vm516, %v5950, %v5952
        %v5954 = vsel %vm516, %v5948, %v5950
        %v5955 = vsel %vm516, %v5946, %v5948
        %v5956 = vsel %vm516, %v5944, %v5946
        %v5957 = vsel %vm516, %v5942, %v5944
        %v5958 = vsel %vm516, %v5940, %v5942
        %v5959 = vsel %vm516, %v5938, %v5940
        %v5960 = vsel %vm516, %v5952, %v5938
        %v5961 = vsel %vm533, %v5960, 0.0
        %v5962 = vsel %vm534, %v5959, 0.0
        %v5963 = vsel %vm535, %v5958, 0.0
        %v5964 = vsel %vm536, %v5957, 0.0
        %v5965 = vsel %vm537, %v5956, 0.0
        %v5966 = vsel %vm538, %v5955, 0.0
        %v5967 = vsel %vm539, %v5954, 0.0
        %v5968 = vsel %vm540, %v5953, 0.0
        %5969 = vrot.lane.b32.xlu0 %v5865, 18
        %v5970 = vpop.permute.xlu0 %5969
        %5971 = vrot.lane.b32.xlu0 %v5866, 18
        %v5972 = vpop.permute.xlu0 %5971
        %5973 = vrot.lane.b32.xlu0 %v5867, 18
        %v5974 = vpop.permute.xlu0 %5973
        %5975 = vrot.lane.b32.xlu0 %v5868, 18
        %v5976 = vpop.permute.xlu0 %5975
        %5977 = vrot.lane.b32.xlu0 %v5869, 18
        %v5978 = vpop.permute.xlu0 %5977
        %5979 = vrot.lane.b32.xlu0 %v5870, 18
        %v5980 = vpop.permute.xlu0 %5979
        %5981 = vrot.lane.b32.xlu0 %v5871, 18
        %v5982 = vpop.permute.xlu0 %5981
        %5983 = vrot.lane.b32.xlu0 %v5872, 18
        %v5984 = vpop.permute.xlu0 %5983
        %v5985 = vsel %vm565, %v5982, %v5984
        %v5986 = vsel %vm565, %v5980, %v5982
        %v5987 = vsel %vm565, %v5978, %v5980
        %v5988 = vsel %vm565, %v5976, %v5978
        %v5989 = vsel %vm565, %v5974, %v5976
        %v5990 = vsel %vm565, %v5972, %v5974
        %v5991 = vsel %vm565, %v5970, %v5972
        %v5992 = vsel %vm565, %v5984, %v5970
        %v5993 = vsel %vm582, %v5992, 0.0
        %v5994 = vsel %vm583, %v5991, 0.0
        %v5995 = vsel %vm584, %v5990, 0.0
        %v5996 = vsel %vm585, %v5989, 0.0
        %v5997 = vsel %vm586, %v5988, 0.0
        %v5998 = vsel %vm587, %v5987, 0.0
        %v5999 = vsel %vm588, %v5986, 0.0
        %v6000 = vsel %vm589, %v5985, 0.0
        %6001 = vrot.lane.b32.xlu0 %v5865, 9
        %v6002 = vpop.permute.xlu0 %6001
        %6003 = vrot.lane.b32.xlu0 %v5866, 9
        %v6004 = vpop.permute.xlu0 %6003
        %6005 = vrot.lane.b32.xlu0 %v5867, 9
        %v6006 = vpop.permute.xlu0 %6005
        %6007 = vrot.lane.b32.xlu0 %v5868, 9
        %v6008 = vpop.permute.xlu0 %6007
        %6009 = vrot.lane.b32.xlu0 %v5869, 9
        %v6010 = vpop.permute.xlu0 %6009
        %6011 = vrot.lane.b32.xlu0 %v5870, 9
        %v6012 = vpop.permute.xlu0 %6011
        %6013 = vrot.lane.b32.xlu0 %v5871, 9
        %v6014 = vpop.permute.xlu0 %6013
        %6015 = vrot.lane.b32.xlu0 %v5872, 9
        %v6016 = vpop.permute.xlu0 %6015
        %v6017 = vsel %vm614, %v6014, %v6016
        %v6018 = vsel %vm614, %v6012, %v6014
        %v6019 = vsel %vm614, %v6010, %v6012
        %v6020 = vsel %vm614, %v6008, %v6010
        %v6021 = vsel %vm614, %v6006, %v6008
        %v6022 = vsel %vm614, %v6004, %v6006
        %v6023 = vsel %vm614, %v6002, %v6004
        %v6024 = vsel %vm614, %v6016, %v6002
        %v6025 = vsel %vm631, %v6024, 0.0
        %v6026 = vsel %vm632, %v6023, 0.0
        %v6027 = vsel %vm633, %v6022, 0.0
        %v6028 = vsel %vm634, %v6021, 0.0
        %v6029 = vsel %vm635, %v6020, 0.0
        %v6030 = vsel %vm636, %v6019, 0.0
        %v6031 = vsel %vm637, %v6018, 0.0
        %v6032 = vsel %vm638, %v6017, 0.0
        %v6033 = vpack.c.bf16 %v5929, %v5897
        %v6034 = vpack.c.bf16 %v5930, %v5898
        %v6035 = vpack.c.bf16 %v5931, %v5899
        %v6036 = vpack.c.bf16 %v5932, %v5900
        %v6037 = vpack.c.bf16 %v5933, %v5901
        %v6038 = vpack.c.bf16 %v5934, %v5902
        %v6039 = vpack.c.bf16 %v5935, %v5903
        %v6040 = vpack.c.bf16 %v5936, %v5904
        %v6041 = vpack.c.bf16 %v5993, %v5961
        %v6042 = vpack.c.bf16 %v5994, %v5962
        %v6043 = vpack.c.bf16 %v5995, %v5963
        %v6044 = vpack.c.bf16 %v5996, %v5964
        %v6045 = vpack.c.bf16 %v5997, %v5965
        %v6046 = vpack.c.bf16 %v5998, %v5966
        %v6047 = vpack.c.bf16 %v5999, %v5967
        %v6048 = vpack.c.bf16 %v6000, %v5968
        %v6049 = vpack.c.bf16 %v5865, %v6025
        %v6050 = vpack.c.bf16 %v5866, %v6026
        %v6051 = vpack.c.bf16 %v5867, %v6027
        %v6052 = vpack.c.bf16 %v5868, %v6028
        %v6053 = vpack.c.bf16 %v5869, %v6029
        %v6054 = vpack.c.bf16 %v5870, %v6030
        %v6055 = vpack.c.bf16 %v5871, %v6031
        %v6056 = vpack.c.bf16 %v5872, %v6032
        %6057 = vset.pattern.permute.xlu0 3
        %6058 = vperm.xlu0 %6057, %v5384
        %v6059 = vpop.permute.xlu0 %6058
        %v6062 = vsel %vm675, %v5569, 0
        %6064 = vmatpush.bf16.msra.mxu0 0
        %6065 = vmatpush.bf16.msra.mxu0 0
        %6066 = vmatpush.bf16.msra.mxu0 0
        %6067 = vmatpush.bf16.msra.mxu0 0
        %6068 = vmatpush.bf16.msra.mxu0 0
        %6069 = vmatpush.bf16.msra.mxu0 %v6049
        %6070 = vmatpush.bf16.msra.mxu0 %v6041
        %6071 = vmatpush.bf16.msra.mxu0 %v6033
        %6072 = vmatmul.bf16.gmra.mxu0 %v6062
        %v6073 = vpop.f32.mrf.mxu0
        %v6074 = vadd.f32 %v6059, %v6073
        %v6075 = vpop.f32.mrf.mxu0
        %6076 = vdwg.mxu0
        %6077 = vmatpush.bf16.msra.mxu0 0
        %6078 = vmatpush.bf16.msra.mxu0 0
        %6079 = vmatpush.bf16.msra.mxu0 0
        %6080 = vmatpush.bf16.msra.mxu0 0
        %6081 = vmatpush.bf16.msra.mxu0 0
        %6082 = vmatpush.bf16.msra.mxu0 %v6050
        %6083 = vmatpush.bf16.msra.mxu0 %v6042
        %6084 = vmatpush.bf16.msra.mxu0 %v6034
        %6085 = vmatmul.bf16.gmra.mxu0 %v6062
        %v6086 = vpop.f32.mrf.mxu0
        %v6087 = vadd.f32 %v6059, %v6086
        %v6088 = vpop.f32.mrf.mxu0
        %6089 = vdwg.mxu0
        %6090 = vmatpush.bf16.msra.mxu0 0
        %6091 = vmatpush.bf16.msra.mxu0 0
        %6092 = vmatpush.bf16.msra.mxu0 0
        %6093 = vmatpush.bf16.msra.mxu0 0
        %6094 = vmatpush.bf16.msra.mxu0 0
        %6095 = vmatpush.bf16.msra.mxu0 %v6051
        %6096 = vmatpush.bf16.msra.mxu0 %v6043
        %6097 = vmatpush.bf16.msra.mxu0 %v6035
        %6098 = vmatmul.bf16.gmra.mxu0 %v6062
        %v6099 = vpop.f32.mrf.mxu0
        %v6100 = vadd.f32 %v6059, %v6099
        %v6101 = vpop.f32.mrf.mxu0
        %6102 = vdwg.mxu0
        %6103 = vmatpush.bf16.msra.mxu0 0
        %6104 = vmatpush.bf16.msra.mxu0 0
        %6105 = vmatpush.bf16.msra.mxu0 0
        %6106 = vmatpush.bf16.msra.mxu0 0
        %6107 = vmatpush.bf16.msra.mxu0 0
        %6108 = vmatpush.bf16.msra.mxu0 %v6052
        %6109 = vmatpush.bf16.msra.mxu0 %v6044
        %6110 = vmatpush.bf16.msra.mxu0 %v6036
        %6111 = vmatmul.bf16.gmra.mxu0 %v6062
        %v6112 = vpop.f32.mrf.mxu0
        %v6113 = vadd.f32 %v6059, %v6112
        %v6114 = vpop.f32.mrf.mxu0
        %6115 = vdwg.mxu0
        %6116 = vmatpush.bf16.msra.mxu0 0
        %6117 = vmatpush.bf16.msra.mxu0 0
        %6118 = vmatpush.bf16.msra.mxu0 0
        %6119 = vmatpush.bf16.msra.mxu0 0
        %6120 = vmatpush.bf16.msra.mxu0 0
        %6121 = vmatpush.bf16.msra.mxu0 %v6053
        %6122 = vmatpush.bf16.msra.mxu0 %v6045
        %6123 = vmatpush.bf16.msra.mxu0 %v6037
        %6124 = vmatmul.bf16.gmra.mxu0 %v6062
        %v6125 = vpop.f32.mrf.mxu0
        %v6126 = vadd.f32 %v6059, %v6125
        %v6127 = vpop.f32.mrf.mxu0
        %6128 = vdwg.mxu0
        %6129 = vmatpush.bf16.msra.mxu0 0
        %6130 = vmatpush.bf16.msra.mxu0 0
        %6131 = vmatpush.bf16.msra.mxu0 0
        %6132 = vmatpush.bf16.msra.mxu0 0
        %6133 = vmatpush.bf16.msra.mxu0 0
        %6134 = vmatpush.bf16.msra.mxu0 %v6054
        %6135 = vmatpush.bf16.msra.mxu0 %v6046
        %6136 = vmatpush.bf16.msra.mxu0 %v6038
        %6137 = vmatmul.bf16.gmra.mxu0 %v6062
        %v6138 = vpop.f32.mrf.mxu0
        %v6139 = vadd.f32 %v6059, %v6138
        %v6140 = vpop.f32.mrf.mxu0
        %6141 = vdwg.mxu0
        %6142 = vmatpush.bf16.msra.mxu0 0
        %6143 = vmatpush.bf16.msra.mxu0 0
        %6144 = vmatpush.bf16.msra.mxu0 0
        %6145 = vmatpush.bf16.msra.mxu0 0
        %6146 = vmatpush.bf16.msra.mxu0 0
        %6147 = vmatpush.bf16.msra.mxu0 %v6055
        %6148 = vmatpush.bf16.msra.mxu0 %v6047
        %6149 = vmatpush.bf16.msra.mxu0 %v6039
        %6150 = vmatmul.bf16.gmra.mxu0 %v6062
        %v6151 = vpop.f32.mrf.mxu0
        %v6152 = vadd.f32 %v6059, %v6151
        %v6153 = vpop.f32.mrf.mxu0
        %6154 = vdwg.mxu0
        %6155 = vmatpush.bf16.msra.mxu0 0
        %6156 = vmatpush.bf16.msra.mxu0 0
        %6157 = vmatpush.bf16.msra.mxu0 0
        %6158 = vmatpush.bf16.msra.mxu0 0
        %6159 = vmatpush.bf16.msra.mxu0 0
        %6160 = vmatpush.bf16.msra.mxu0 %v6056
        %6161 = vmatpush.bf16.msra.mxu0 %v6048
        %6162 = vmatpush.bf16.msra.mxu0 %v6040
        %6163 = vmatmul.bf16.gmra.mxu0 %v6062
        %v6164 = vpop.f32.mrf.mxu0
        %v6165 = vadd.f32 %v6059, %v6164
        %v6166 = vpop.f32.mrf.mxu0
        %6167 = vdwg.mxu0
        %v6168 = vmax.f32 %v6074, 0.0
        %v6169 = vmax.f32 %v6087, 0.0
        %v6170 = vmax.f32 %v6100, 0.0
        %v6171 = vmax.f32 %v6113, 0.0
        %v6172 = vmax.f32 %v6126, 0.0
        %v6173 = vmax.f32 %v6139, 0.0
        %v6174 = vmax.f32 %v6152, 0.0
        %v6175 = vmax.f32 %v6165, 0.0
        %6176 = vset.pattern.permute.xlu0 4
        %6177 = vperm.xlu0 %6176, %v5384
        %v6178 = vpop.permute.xlu0 %6177
        %v6180 = vmul.f32 %v6168, %v6178
        %v6181 = vmul.f32 %v6169, %v6178
        %v6182 = vmul.f32 %v6170, %v6178
        %v6183 = vmul.f32 %v6171, %v6178
        %v6184 = vmul.f32 %v6172, %v6178
        %v6185 = vmul.f32 %v6173, %v6178
        %v6186 = vmul.f32 %v6174, %v6178
        %v6187 = vmul.f32 %v6175, %v6178
        %6188 = vset.pattern.permute.xlu0 5
        %6189 = vperm.xlu0 %6188, %v5384
        %v6190 = vpop.permute.xlu0 %6189
        %v6192 = vadd.f32 %v6180, %v6190
        %v6193 = vadd.f32 %v6181, %v6190
        %v6194 = vadd.f32 %v6182, %v6190
        %v6195 = vadd.f32 %v6183, %v6190
        %v6196 = vadd.f32 %v6184, %v6190
        %v6197 = vadd.f32 %v6185, %v6190
        %v6198 = vadd.f32 %v6186, %v6190
        %v6199 = vadd.f32 %v6187, %v6190
        %v6200 = vadd.f32 %v5530, %v6192
        %v6201 = vadd.f32 %v5531, %v6193
        %v6202 = vadd.f32 %v5532, %v6194
        %v6203 = vadd.f32 %v5533, %v6195
        %v6204 = vadd.f32 %v5534, %v6196
        %v6205 = vadd.f32 %v5535, %v6197
        %v6206 = vadd.f32 %v5536, %v6198
        %v6207 = vadd.f32 %v5537, %v6199
        %v6208 = vmax.f32 %v6200, 0.0
        %v6209 = vmax.f32 %v6201, 0.0
        %v6210 = vmax.f32 %v6202, 0.0
        %v6211 = vmax.f32 %v6203, 0.0
        %v6212 = vmax.f32 %v6204, 0.0
        %v6213 = vmax.f32 %v6205, 0.0
        %v6214 = vmax.f32 %v6206, 0.0
        %v6215 = vmax.f32 %v6207, 0.0
        %v6216 = vsel %vm306, 1, 0
        %v6217 = vsel %vm307, 1, 0
        %v6218 = vsel %vm308, 1, 0
        %v6219 = vsel %vm309, 1, 0
        %v6220 = vsel %vm310, 1, 0
        %v6221 = vsel %vm311, 1, 0
        %v6222 = vsel %vm312, 1, 0
        %v6223 = vsel %vm313, 1, 0
        %vm6224 = vcmp.eq.s32.totalorder %v6216, 1
        %vm6225 = vcmp.eq.s32.totalorder %v6217, 1
        %vm6226 = vcmp.eq.s32.totalorder %v6218, 1
        %vm6227 = vcmp.eq.s32.totalorder %v6219, 1
        %vm6228 = vcmp.eq.s32.totalorder %v6220, 1
        %vm6229 = vcmp.eq.s32.totalorder %v6221, 1
        %vm6230 = vcmp.eq.s32.totalorder %v6222, 1
        %vm6231 = vcmp.eq.s32.totalorder %v6223, 1
        %v6232 = vsel %vm6224, %v6208, 0.0
        %v6233 = vsel %vm6225, %v6209, 0.0
        %v6234 = vsel %vm6226, %v6210, 0.0
        %v6235 = vsel %vm6227, %v6211, 0.0
        %v6236 = vsel %vm6228, %v6212, 0.0
        %v6237 = vsel %vm6229, %v6213, 0.0
        %v6238 = vsel %vm6230, %v6214, 0.0
        %v6239 = vsel %vm6231, %v6215, 0.0
        %6240 = vst [vmem:[%s239] sm:$0xff] %v6232
        %6241 = vst [vmem:[%s239 + $0x8] sm:$0xff] %v6233
        %6242 = vst [vmem:[%s239 + $0x10] sm:$0xff] %v6234
        %6243 = vst [vmem:[%s239 + $0x18] sm:$0xff] %v6235
        %6244 = vst [vmem:[%s239 + $0x20] sm:$0xff] %v6236
        %6245 = vst [vmem:[%s239 + $0x28] sm:$0xff] %v6237
        %6246 = vst [vmem:[%s239 + $0x30] sm:$0xff] %v6238
        %6247 = vst [vmem:[%s239 + $0x38] sm:$0xff] %v6239
        %v6248 = vld [vmem:[%s3] sm:$0xff]
        %v6250 = vperm.slane %v6248, 0
        %v6251 = vperm.slane %v6248, 1
        %v6252 = vperm.slane %v6248, 2
        %v6253 = vperm.slane %v6248, 3
        %v6254 = vperm.slane %v6248, 4
        %v6255 = vperm.slane %v6248, 5
        %v6256 = vperm.slane %v6248, 6
        %v6257 = vperm.slane %v6248, 7
        %v6266 = vmul.f32 %v6232, %v6250
        %v6267 = vmul.f32 %v6233, %v6251
        %v6268 = vmul.f32 %v6234, %v6252
        %v6269 = vmul.f32 %v6235, %v6253
        %v6270 = vmul.f32 %v6236, %v6254
        %v6271 = vmul.f32 %v6237, %v6255
        %v6272 = vmul.f32 %v6238, %v6256
        %v6273 = vmul.f32 %v6239, %v6257
        %v6274 = vadd.f32 %v6266, %v6267
        %v6275 = vadd.f32 %v6274, %v6268
        %v6276 = vadd.f32 %v6275, %v6269
        %v6277 = vadd.f32 %v6276, %v6270
        %v6278 = vadd.f32 %v6277, %v6271
        %v6279 = vadd.f32 %v6278, %v6272
        %v6280 = vadd.f32 %v6279, %v6273
        %6281 = vadd.xlane.f32.xlu0 %v6280
        %v6282 = vpop.xlane.xlu0 %6281
        %v6283 = vrot.slane %v6282, 4
        %v6284 = vmax.f32 %v6282, %v6283
        %v6285 = vrot.slane %v6284, 2
        %v6286 = vmax.f32 %v6284, %v6285
        %v6287 = vrot.slane %v6286, 1
        %v6288 = vmax.f32 %v6286, %v6287
        %v6289 = vsub.f32 %v6282, %v6288
        %v6290 = vmul.f32 %v6289, 1.442695
        %v6291 = vpow.pop %v6290
        %v6292 = vrot.slane %v6291, 4
        %v6293 = vadd.f32 %v6291, %v6292
        %v6294 = vrot.slane %v6293, 2
        %v6295 = vadd.f32 %v6293, %v6294
        %v6296 = vrot.slane %v6295, 1
        %v6297 = vadd.f32 %v6295, %v6296
        %v6298 = vlog2.pop %v6297
        %v6299 = vmul.f32 %v6298, 0.6931472
        %v6300 = vadd.f32 %v6299, %v6288
        %v6301 = vsub.f32 %v6282, %v6300
        %vm6302 = vcmask 7168
        %6303 = vst.msk [vmem:[%s247] sm:$0xff] %vm6302, %v6301
        %p6304 = scmp.lt.s32.totalorder %s21, 1
        %s6305 = scalar_select %p6304, %s21, 1
        %s6306 = smul.addr %s6305, 8
        %s6307 = scalar_lea.vmem %s4, %s6306
        %s6308 = sand.u32 %s144, 1
        %s6309 = scalar_lea.sflag [#allocation4], %s6308
        %s6310 = sand.u32 %s144, 1
        %s6311 = smul.addr %s6310, 64
        %s6312 = scalar_lea.vmem [#allocation5], %s6311
        // Predicated region
        $region41: #{armbandgnn_forward.1} parent=35 // pred_check
          %p6313 = pneg %p128
        $region42: #{armbandgnn_forward.1} parent=35 // pred_check_branch
          %6315 = sbr.rel (%p6313) target = $region44
        $region43: #{armbandgnn_forward.1} parent=35 // pred_region
          _
        $region44: #{armbandgnn_forward.1} parent=35 // pred_fallthru
          _
        // Predicated region
        $region45: #{armbandgnn_forward.1} parent=35 // pred_check
          %p6316 = pneg %p154
        $region46: #{armbandgnn_forward.1} parent=35 // pred_check_branch
          %6318 = sbr.rel (%p6316) target = $region48
        $region47: #{armbandgnn_forward.1} parent=35 // pred_region
          %6320 = vsyncadd %s6309, 0
          %s6321 = smul.addr %s21, 8
          %s6322 = smul.addr %s6321, 8
          %s6323 = scalar_lea.hbm %s5, %s6322
          %s6325 = sshll.u32 %s6312, 4
          %s6326 = int_to_ptr.vmem [resolvable:$true] %s6325
          %s6327 = sshll.u32 %s6323, 4
          %s6328 = int_to_ptr.hbm [resolvable:$true] %s6327
          %6330 = dma.vmem_to_hbm [thread:$0]  %s6326, 1024, %s6328, %s6309
        $region48: #{armbandgnn_forward.1} parent=35 // pred_fallthru
          _
      $region36: #{armbandgnn_forward.1} parent=5 // pred_fallthru
        _
      %p6331 = scmp.le.s32.totalorder 2, %s16
      // Predicated region
      $region49: #{armbandgnn_forward.1} parent=5 // pred_check
        %p6332 = pneg %p6331
      $region50: #{armbandgnn_forward.1} parent=5 // pred_check_branch
        %6334 = sbr.rel (%p6332) target = $region52
      $region51: #{armbandgnn_forward.1} parent=5 // pred_region
        %s6335 = ssub.s32 %s16, 2
        // Predicated region
        $region53: #{armbandgnn_forward.1} parent=51 // pred_check
          %p6336 = pneg %p134
        $region54: #{armbandgnn_forward.1} parent=51 // pred_check_branch
          %6338 = sbr.rel (%p6336) target = $region56
        $region55: #{armbandgnn_forward.1} parent=51 // pred_region
          %p6339 = scmp.lt.s32.totalorder %s22, 1
          %s6340 = scalar_select %p6339, %s22, 1
          %s6341 = smul.addr %s6340, 8
          %s6342 = scalar_lea.vmem %s4, %s6341
        $region56: #{armbandgnn_forward.1} parent=51 // pred_fallthru
          _
        // Predicated region
        $region57: #{armbandgnn_forward.1} parent=51 // pred_check
          %p6343 = pneg %p160
        $region58: #{armbandgnn_forward.1} parent=51 // pred_check_branch
          %6345 = sbr.rel (%p6343) target = $region60
        $region59: #{armbandgnn_forward.1} parent=51 // pred_region
          %s6346 = sand.u32 %s145, 1
          %s6347 = scalar_lea.sflag [#allocation4], %s6346
          %s6348 = sand.u32 %s145, 1
          %s6349 = smul.addr %s6348, 64
          %s6350 = scalar_lea.vmem [#allocation5], %s6349
          %6352 = dma.done %s6347, 1024
        $region60: #{armbandgnn_forward.1} parent=51 // pred_fallthru
          _
      $region52: #{armbandgnn_forward.1} parent=5 // pred_fallthru
        _
    $region6: #{armbandgnn_forward.1} parent=1 // loop_footer
      %s20 = sadd.s32 1, %s16
    $region7: #{armbandgnn_forward.1} parent=1 // loop_footer_branch
      %15 = sbr.rel target = $region3
    $region8: #{armbandgnn_forward.1} parent=1 // loop_exit
      _
    %6353 = vsyncpa [#allocation3], 1
    %s6354 = scalar_lea.sflag [#allocation3], 1
    %6355 = vsyncpa %s6354, 1
    %6356 = vsyncpa [#allocation4], 1
    %s6357 = scalar_lea.sflag [#allocation4], 1
    %6358 = vsyncpa %s6357, 1

</llo_original>
